<compile_context>
chip_gen: v7x
topology: tpu7x:2x2x1
jax: 0.10.0
libtpu: 0.0.40
codegen_flags: <defaults>
</compile_context>

<pallas_src>
import functools

import jax
import jax.numpy as jnp
from jax import lax
from jax.experimental import pallas as pl
from jax.experimental.pallas import tpu as pltpu

_EPS = 1e-5


# ----------------------------------------------------------------------------
# Kernel
# ----------------------------------------------------------------------------
def _im2col_patches(xpad_ref, p_ref, src_f32, H, W, Cp, M):
    """Write `src_f32` (Nb,H,W,Cp) into the padded-activation scratch and emit
    the 9 shifted 3x3 tap windows (cast to bf16) into the im2col scratch.
    Returns the (M, 9*Cp) bf16 patch matrix ready for the MXU.  The 1-pixel
    halo of `xpad_ref` is assumed to already be zero (== conv zero padding);
    every tap store covers the full (H, W) window, so `p_ref` needs no fill."""
    xpad_ref[:, 1:H + 1, 1:W + 1, :Cp] = src_f32
    k = 0
    for kh in range(3):
        for kw in range(3):
            tap = xpad_ref[:, kh:kh + H, kw:kw + W, :Cp]      # (Nb,H,W,Cp) f32
            p_ref[:, :, :, k * Cp:(k + 1) * Cp] = tap.astype(p_ref.dtype)
            k += 1
    return p_ref[:, :, :, :9 * Cp].reshape(M, 9 * Cp)


def _basic_block_kernel(x_ref, w1_ref, s1_ref, b1_ref, w2t_ref, s2t_ref,
                        b2t_ref, *rest, Nb, H, W, Cin, C, has_projection):
    if has_projection:
        wst_ref, sst_ref, bst_ref, out_ref, xpad_ref, p_ref = rest
    else:
        out_ref, xpad_ref, p_ref = rest

    f32 = jnp.float32
    bf16 = jnp.bfloat16
    M = Nb * H * W
    Cmax = max(Cin, C)
    nt = (((1,), (1,)), ((), ()))       # contract last dims: (a,k)x(b,k)->(a,b)

    # Zero only the 1-pixel halo of the padded-activation scratch (the interior
    # is fully rewritten before each conv).  Re-zeroed every grid step so it is
    # safe even when the batch axis is split across TensorCores.
    xpad_ref[:, 0:1, :, :] = jnp.zeros((Nb, 1, W + 2, Cmax), f32)
    xpad_ref[:, H + 1:H + 2, :, :] = jnp.zeros((Nb, 1, W + 2, Cmax), f32)
    xpad_ref[:, :, 0:1, :] = jnp.zeros((Nb, H + 2, 1, Cmax), f32)
    xpad_ref[:, :, W + 1:W + 2, :] = jnp.zeros((Nb, H + 2, 1, Cmax), f32)

    # -------- conv1 (3x3, stride 1, pad 1) + folded BN1 + ReLU --------------
    p1 = _im2col_patches(xpad_ref, p_ref, x_ref[...].astype(f32),
                         H, W, Cin, M)                           # (M, 9*Cin)
    acc1 = jnp.dot(p1, w1_ref[...], preferred_element_type=f32)  # (M, C)
    out1 = jnp.maximum(acc1 * s1_ref[...] + b1_ref[...], 0.0)    # f32

    # -------- conv2 (3x3) + folded BN2, transposed (C, M) orientation -------
    p2 = _im2col_patches(xpad_ref, p_ref, out1.reshape(Nb, H, W, C),
                         H, W, C, M)                             # (M, 9*C)
    acc2_t = lax.dot_general(w2t_ref[...], p2, nt,
                             preferred_element_type=f32)         # (C, M)
    out2_t = acc2_t * s2t_ref[...] + b2t_ref[...]

    # -------- shortcut (transposed) ------------------------------------------
    xm = x_ref[...].reshape(M, Cin)          # re-read x (bf16) at point of use
    if has_projection:
        sc_t = lax.dot_general(wst_ref[...], xm, nt,
                               preferred_element_type=f32)       # 1x1 conv
        sc_t = sc_t * sst_ref[...] + bst_ref[...]
    else:
        eye = (lax.broadcasted_iota(jnp.int32, (C, C), 0)
               == lax.broadcasted_iota(jnp.int32, (C, C), 1)).astype(bf16)
        sc_t = lax.dot_general(eye, xm, nt,
                               preferred_element_type=f32)       # MXU transpose

    # Residual add + ReLU in f32, stored as a lane-dense bf16 (C, M) slab.
    out_ref[...] = jnp.maximum(out2_t + sc_t, 0.0).astype(out_ref.dtype)


# ----------------------------------------------------------------------------
# Wrapper
# ----------------------------------------------------------------------------
def _round_up(x, m):
    return (x + m - 1) // m * m


def _num_tensorcores():
    try:
        return max(1, int(getattr(jax.devices()[0], "num_cores", 1)))
    except Exception:
        return 1


def _pick_block_batch(n, max_nb=8):
    """Largest divisor of n that is <= max_nb; only insist on >= 2 grid steps
    when the chip actually has more than one TensorCore to share the axis."""
    min_steps = 2 if _num_tensorcores() > 1 else 1
    best = 1
    for d in range(1, min(n, max_nb) + 1):
        if n % d == 0 and n // d >= min_steps:
            best = d
    return best


def _vmem_capacity_bytes():
    try:
        return int(pltpu.get_tpu_info().vmem_capacity_bytes)
    except Exception:
        return 64 * 1024 * 1024


def _estimate_vmem_bytes(nb, H, W, Cin, C):
    """Rough tile-padded footprint: double-buffered in/out blocks + scratches."""
    Cmax = max(Cin, C)
    M = nb * H * W

    def tile(rows, cols, itemsize, sub):
        return _round_up(rows, sub) * _round_up(cols, 128) * itemsize

    x_blk = nb * H * tile(W, Cin, 2, 16)
    out_blk = tile(C, M, 2, 16)
    w_blk = (tile(9 * Cin, C, 2, 16) + tile(C, 9 * C, 2, 16)
             + tile(C, Cin, 2, 16) + 6 * tile(8, 128, 4, 8))
    xpad = nb * (H + 2) * tile(W + 2, Cmax, 4, 8)
    p_scr = nb * H * tile(W, 9 * Cmax, 2, 16)
    return 2 * (x_blk + out_blk + w_blk) + xpad + p_scr


def basic_block_forward(x_nchw, params, *, stride=1, block_batch=None):
    """BasicBlock forward. Input/output are NCHW like PyTorch (output bf16)."""
    # TODO(synk): stride > 1 (strided-conv downsampling variant) not implemented.
    assert stride == 1, "only stride=1 is supported by this kernel"
    N, Cin, H, W = x_nchw.shape
    C = params["w1"].shape[-1]
    has_projection = bool(params["proj"])
    if not has_projection:
        assert Cin == C, "identity shortcut requires in_planes == planes"
    assert W % 8 == 0, "W must be a multiple of 8 (sublane tile)"

    nb = block_batch if block_batch is not None else _pick_block_batch(N)
    assert N % nb == 0
    Mb = nb * H * W
    Cmax = max(Cin, C)

    # NHWC bf16 activations; weights reshaped for the fat-K matmuls.
    # TODO(synk): a lane-dense (N, H, W*Cin) input layout would also shrink the
    # input DMA / VMEM block, but needs a minor-dim value reshape in-kernel.
    x = jnp.transpose(x_nchw, (0, 2, 3, 1)).astype(jnp.bfloat16)
    w1f = params["w1"].reshape(9 * Cin, C).astype(jnp.bfloat16)      # (9*Cin, C)
    w2t = params["w2"].reshape(9 * C, C).T.astype(jnp.bfloat16)      # (C, 9*C)
    s2t = params["s2"].reshape(C, 1)
    b2t = params["b2"].reshape(C, 1)

    kernel = functools.partial(_basic_block_kernel, Nb=nb, H=H, W=W,
                               Cin=Cin, C=C, has_projection=has_projection)

    row_spec = pl.BlockSpec((1, C), lambda n: (0, 0))
    col_spec = pl.BlockSpec((C, 1), lambda n: (0, 0))
    in_specs = [
        pl.BlockSpec((nb, H, W, Cin), lambda n: (n, 0, 0, 0)),
        pl.BlockSpec((9 * Cin, C), lambda n: (0, 0)),
        row_spec, row_spec,
        pl.BlockSpec((C, 9 * C), lambda n: (0, 0)),
        col_spec, col_spec,
    ]
    args = [x, w1f, params["s1"], params["b1"], w2t, s2t, b2t]
    if has_projection:
        in_specs += [pl.BlockSpec((C, Cin), lambda n: (0, 0)),
                     col_spec, col_spec]
        args += [params["ws"].T.astype(jnp.bfloat16),
                 params["ss"].reshape(C, 1), params["bs"].reshape(C, 1)]

    vmem_limit = int(min(0.9 * _vmem_capacity_bytes(),
                         max(2 * _estimate_vmem_bytes(nb, H, W, Cin, C),
                             32 * 1024 * 1024)))

    # Output produced transposed + flattened as (C, N*H*W): the block's last
    # dim is a large multiple of 128, so output stores are unmasked lane-dense.
    out_flat = pl.pallas_call(
        kernel,
        out_shape=jax.ShapeDtypeStruct((C, N * H * W), jnp.bfloat16),
        grid_spec=pltpu.PrefetchScalarGridSpec(
            num_scalar_prefetch=0,
            grid=(N // nb,),
            in_specs=in_specs,
            out_specs=pl.BlockSpec((C, Mb), lambda n: (0, n)),
            scratch_shapes=[
                pltpu.VMEM((nb, H + 2, W + 2, Cmax), jnp.float32),  # padded x
                pltpu.VMEM((nb, H, W, 9 * Cmax), jnp.bfloat16),     # im2col
            ],
        ),
        # TODO(synk): on v7x consider pltpu.CORE_PARALLEL (or pl.core_map) to
        # guarantee the batch axis is actually split across both TensorCores.
        compiler_params=pltpu.CompilerParams(
            dimension_semantics=("parallel",),
            vmem_limit_bytes=vmem_limit),
    )(*args)

    out = out_flat.reshape(C, N, H, W)
    return jnp.transpose(out, (1, 0, 2, 3))                  # NCHW (bf16)


# ----------------------------------------------------------------------------
# Parameters / reference / test
# ----------------------------------------------------------------------------
def _fold_bn(gamma, beta, mean, var):
    scale = gamma / jnp.sqrt(var + _EPS)
    bias = beta - mean * scale
    return scale.reshape(1, -1), bias.reshape(1, -1)


def make_params(key, in_planes, planes):
    """Deterministic synthetic parameters (BatchNorm folded, inference form)."""
    ks = jax.random.split(key, 12)
    w1 = jax.random.normal(ks[0], (3, 3, in_planes, planes), jnp.float32) \
        * jnp.sqrt(2.0 / (9 * in_planes))
    w2 = jax.random.normal(ks[1], (3, 3, planes, planes), jnp.float32) \
        * jnp.sqrt(2.0 / (9 * planes))

    def bn_params(k):
        ka, kb, kc, kd = jax.random.split(k, 4)
        gamma = 0.5 + jax.random.uniform(ka, (planes,), jnp.float32)
        beta = 0.1 * jax.random.normal(kb, (planes,), jnp.float32)
        mean = 0.1 * jax.random.normal(kc, (planes,), jnp.float32)
        var = 0.5 + jax.random.uniform(kd, (planes,), jnp.float32)
        return _fold_bn(gamma, beta, mean, var)

    s1, b1 = bn_params(ks[2])
    s2, b2 = bn_params(ks[3])

    proj = in_planes != planes
    if proj:
        ws = jax.random.normal(ks[4], (in_planes, planes), jnp.float32) \
            * jnp.sqrt(2.0 / in_planes)
        ss, bs = bn_params(ks[5])
    else:
        ws = jnp.zeros((in_planes, planes), jnp.float32)
        ss = jnp.ones((1, planes), jnp.float32)
        bs = jnp.zeros((1, planes), jnp.float32)

    return dict(w1=w1, s1=s1, b1=b1, w2=w2, s2=s2, b2=b2,
                ws=ws, ss=ss, bs=bs, proj=proj)


def ref_forward(x_nchw, params):
    """Pure-JAX reference (NHWC convs, BN folded identically)."""
    x = jnp.transpose(x_nchw, (0, 2, 3, 1)).astype(jnp.float32)

    def conv3(h, w):
        return lax.conv_general_dilated(
            h, w, window_strides=(1, 1), padding="SAME",
            dimension_numbers=("NHWC", "HWIO", "NHWC"),
            precision=lax.Precision.HIGHEST)

    h = jnp.maximum(conv3(x, params["w1"]) * params["s1"] + params["b1"], 0.0)
    out = conv3(h, params["w2"]) * params["s2"] + params["b2"]
    if params["proj"]:
        sc = jnp.einsum("nhwc,co->nhwo", x, params["ws"],
                        precision=lax.Precision.HIGHEST)
        sc = sc * params["ss"] + params["bs"]
    else:
        sc = x
    out = jnp.maximum(out + sc, 0.0)
    return jnp.transpose(out, (0, 3, 1, 2))


def _check(out, ref, name):
    err = float(jnp.max(jnp.abs(out.astype(jnp.float32) - ref)))
    scale = 1.0 + float(jnp.max(jnp.abs(ref)))
    assert err < 5e-2 * scale, f"{name}: max abs err {err} (scale {scale})"


if __name__ == "__main__":
    key = jax.random.PRNGKey(0)
    kx1, kp1, kx2, kp2 = jax.random.split(key, 4)

    # Config A: identity shortcut (in_planes == planes, stride=1)
    x_a = jax.random.normal(kx1, (2, 8, 16, 16), jnp.float32)
    p_a = make_params(kp1, in_planes=8, planes=8)
    out_a = jax.block_until_ready(basic_block_forward(x_a, p_a))
    _check(out_a, ref_forward(x_a, p_a), "identity-shortcut")

    # Config B: projection shortcut (in_planes != planes, stride=1)
    x_b = jax.random.normal(kx2, (2, 4, 16, 16), jnp.float32)
    p_b = make_params(kp2, in_planes=4, planes=8)
    out_b = jax.block_until_ready(basic_block_forward(x_b, p_b))
    _check(out_b, ref_forward(x_b, p_b), "projection-shortcut")

    print("KERNEL_OK")
</pallas_src>

<mosaic_0001>
module attributes {stable_mosaic.version = 11 : i64} {
  func.func @_basic_block_kernel(%arg0: i32, %arg1: memref<2x16x16x8xbf16, #tpu.memory_space<vmem>>, %arg2: memref<72x8xbf16, #tpu.memory_space<vmem>>, %arg3: memref<1x8xf32, #tpu.memory_space<vmem>>, %arg4: memref<1x8xf32, #tpu.memory_space<vmem>>, %arg5: memref<8x72xbf16, #tpu.memory_space<vmem>>, %arg6: memref<8x1xf32, #tpu.memory_space<vmem>>, %arg7: memref<8x1xf32, #tpu.memory_space<vmem>>, %arg8: memref<8x512xbf16, #tpu.memory_space<vmem>>, %arg9: memref<2x18x18x8xf32, #tpu.memory_space<vmem>>, %arg10: memref<2x16x16x72xbf16, #tpu.memory_space<vmem>>) attributes {dimension_semantics = [#tpu.dimension_semantics<parallel>], iteration_bounds = array<i64: 1>, scalar_prefetch = 0 : i64, scratch_operands = 2 : i64, tpu.core_type = #tpu.core_type<tc>, window_params = [{transform_indices = @transform_0, window_bounds = array<i64: 2, 16, 16, 8>}, {pipeline_mode = #tpu.pipeline_mode<synchronous>, transform_indices = @transform_1, window_bounds = array<i64: 72, 8>}, {pipeline_mode = #tpu.pipeline_mode<synchronous>, transform_indices = @transform_2, window_bounds = array<i64: 1, 8>}, {pipeline_mode = #tpu.pipeline_mode<synchronous>, transform_indices = @transform_3, window_bounds = array<i64: 1, 8>}, {pipeline_mode = #tpu.pipeline_mode<synchronous>, transform_indices = @transform_4, window_bounds = array<i64: 8, 72>}, {pipeline_mode = #tpu.pipeline_mode<synchronous>, transform_indices = @transform_5, window_bounds = array<i64: 8, 1>}, {pipeline_mode = #tpu.pipeline_mode<synchronous>, transform_indices = @transform_6, window_bounds = array<i64: 8, 1>}, {transform_indices = @transform_7, window_bounds = array<i64: 8, 512>}]} {
    %cst = arith.constant 0.000000e+00 : f32
    %0 = vector.broadcast %cst : f32 to vector<2x1x18x8xf32>
    %c0 = arith.constant 0 : index
    %c0_0 = arith.constant 0 : index
    %c0_1 = arith.constant 0 : index
    %c0_2 = arith.constant 0 : index
    %1 = vector.load %arg9[%c0, %c0_0, %c0_1, %c0_2] : memref<2x18x18x8xf32, #tpu.memory_space<vmem>>, vector<2x1x18x8xf32>
    tpu.vector_store %arg9[%c0, %c0_0, %c0_1, %c0_2], %0 {strides = array<i32>} : memref<2x18x18x8xf32, #tpu.memory_space<vmem>>, vector<2x1x18x8xf32>,
    %cst_3 = arith.constant 0.000000e+00 : f32
    %2 = vector.broadcast %cst_3 : f32 to vector<2x1x18x8xf32>
    %c0_4 = arith.constant 0 : index
    %c17 = arith.constant 17 : index
    %c0_5 = arith.constant 0 : index
    %c0_6 = arith.constant 0 : index
    %3 = vector.load %arg9[%c0_4, %c17, %c0_5, %c0_6] : memref<2x18x18x8xf32, #tpu.memory_space<vmem>>, vector<2x1x18x8xf32>
    tpu.vector_store %arg9[%c0_4, %c17, %c0_5, %c0_6], %2 {strides = array<i32>} : memref<2x18x18x8xf32, #tpu.memory_space<vmem>>, vector<2x1x18x8xf32>,
    %cst_7 = arith.constant 0.000000e+00 : f32
    %4 = vector.broadcast %cst_7 : f32 to vector<2x18x1x8xf32>
    %c0_8 = arith.constant 0 : index
    %c0_9 = arith.constant 0 : index
    %c0_10 = arith.constant 0 : index
    %c0_11 = arith.constant 0 : index
    %5 = vector.load %arg9[%c0_8, %c0_9, %c0_10, %c0_11] : memref<2x18x18x8xf32, #tpu.memory_space<vmem>>, vector<2x18x1x8xf32>
    tpu.vector_store %arg9[%c0_8, %c0_9, %c0_10, %c0_11], %4 {strides = array<i32>} : memref<2x18x18x8xf32, #tpu.memory_space<vmem>>, vector<2x18x1x8xf32>,
    %cst_12 = arith.constant 0.000000e+00 : f32
    %6 = vector.broadcast %cst_12 : f32 to vector<2x18x1x8xf32>
    %c0_13 = arith.constant 0 : index
    %c0_14 = arith.constant 0 : index
    %c17_15 = arith.constant 17 : index
    %c0_16 = arith.constant 0 : index
    %7 = vector.load %arg9[%c0_13, %c0_14, %c17_15, %c0_16] : memref<2x18x18x8xf32, #tpu.memory_space<vmem>>, vector<2x18x1x8xf32>
    tpu.vector_store %arg9[%c0_13, %c0_14, %c17_15, %c0_16], %6 {strides = array<i32>} : memref<2x18x18x8xf32, #tpu.memory_space<vmem>>, vector<2x18x1x8xf32>,
    %c0_17 = arith.constant 0 : index
    %c0_18 = arith.constant 0 : index
    %c0_19 = arith.constant 0 : index
    %c0_20 = arith.constant 0 : index
    %8 = vector.load %arg1[%c0_17, %c0_18, %c0_19, %c0_20] : memref<2x16x16x8xbf16, #tpu.memory_space<vmem>>, vector<2x16x16x8xbf16>
    %9 = arith.extf %8 : vector<2x16x16x8xbf16> to vector<2x16x16x8xf32>
    %c0_21 = arith.constant 0 : index
    %c1 = arith.constant 1 : index
    %c1_22 = arith.constant 1 : index
    %c0_23 = arith.constant 0 : index
    %10 = vector.load %arg9[%c0_21, %c1, %c1_22, %c0_23] : memref<2x18x18x8xf32, #tpu.memory_space<vmem>>, vector<2x16x16x8xf32>
    tpu.vector_store %arg9[%c0_21, %c1, %c1_22, %c0_23], %9 {strides = array<i32>} : memref<2x18x18x8xf32, #tpu.memory_space<vmem>>, vector<2x16x16x8xf32>,
    %c0_24 = arith.constant 0 : index
    %c0_25 = arith.constant 0 : index
    %c0_26 = arith.constant 0 : index
    %c0_27 = arith.constant 0 : index
    %11 = vector.load %arg9[%c0_24, %c0_25, %c0_26, %c0_27] : memref<2x18x18x8xf32, #tpu.memory_space<vmem>>, vector<2x16x16x8xf32>
    %12 = arith.truncf %11 : vector<2x16x16x8xf32> to vector<2x16x16x8xbf16>
    %c0_28 = arith.constant 0 : index
    %c0_29 = arith.constant 0 : index
    %c0_30 = arith.constant 0 : index
    %c0_31 = arith.constant 0 : index
    %13 = vector.load %arg10[%c0_28, %c0_29, %c0_30, %c0_31] : memref<2x16x16x72xbf16, #tpu.memory_space<vmem>>, vector<2x16x16x8xbf16>
    tpu.vector_store %arg10[%c0_28, %c0_29, %c0_30, %c0_31], %12 {strides = array<i32>} : memref<2x16x16x72xbf16, #tpu.memory_space<vmem>>, vector<2x16x16x8xbf16>,
    %c0_32 = arith.constant 0 : index
    %c0_33 = arith.constant 0 : index
    %c1_34 = arith.constant 1 : index
    %c0_35 = arith.constant 0 : index
    %14 = vector.load %arg9[%c0_32, %c0_33, %c1_34, %c0_35] : memref<2x18x18x8xf32, #tpu.memory_space<vmem>>, vector<2x16x16x8xf32>
    %15 = arith.truncf %14 : vector<2x16x16x8xf32> to vector<2x16x16x8xbf16>
    %c0_36 = arith.constant 0 : index
    %c0_37 = arith.constant 0 : index
    %c0_38 = arith.constant 0 : index
    %c8 = arith.constant 8 : index
    %16 = vector.load %arg10[%c0_36, %c0_37, %c0_38, %c8] : memref<2x16x16x72xbf16, #tpu.memory_space<vmem>>, vector<2x16x16x8xbf16>
    tpu.vector_store %arg10[%c0_36, %c0_37, %c0_38, %c8], %15 {strides = array<i32>} : memref<2x16x16x72xbf16, #tpu.memory_space<vmem>>, vector<2x16x16x8xbf16>,
    %c0_39 = arith.constant 0 : index
    %c0_40 = arith.constant 0 : index
    %c2 = arith.constant 2 : index
    %c0_41 = arith.constant 0 : index
    %17 = vector.load %arg9[%c0_39, %c0_40, %c2, %c0_41] : memref<2x18x18x8xf32, #tpu.memory_space<vmem>>, vector<2x16x16x8xf32>
    %18 = arith.truncf %17 : vector<2x16x16x8xf32> to vector<2x16x16x8xbf16>
    %c0_42 = arith.constant 0 : index
    %c0_43 = arith.constant 0 : index
    %c0_44 = arith.constant 0 : index
    %c16 = arith.constant 16 : index
    %19 = vector.load %arg10[%c0_42, %c0_43, %c0_44, %c16] : memref<2x16x16x72xbf16, #tpu.memory_space<vmem>>, vector<2x16x16x8xbf16>
    tpu.vector_store %arg10[%c0_42, %c0_43, %c0_44, %c16], %18 {strides = array<i32>} : memref<2x16x16x72xbf16, #tpu.memory_space<vmem>>, vector<2x16x16x8xbf16>,
    %c0_45 = arith.constant 0 : index
    %c1_46 = arith.constant 1 : index
    %c0_47 = arith.constant 0 : index
    %c0_48 = arith.constant 0 : index
    %20 = vector.load %arg9[%c0_45, %c1_46, %c0_47, %c0_48] : memref<2x18x18x8xf32, #tpu.memory_space<vmem>>, vector<2x16x16x8xf32>
    %21 = arith.truncf %20 : vector<2x16x16x8xf32> to vector<2x16x16x8xbf16>
    %c0_49 = arith.constant 0 : index
    %c0_50 = arith.constant 0 : index
    %c0_51 = arith.constant 0 : index
    %c24 = arith.constant 24 : index
    %22 = vector.load %arg10[%c0_49, %c0_50, %c0_51, %c24] : memref<2x16x16x72xbf16, #tpu.memory_space<vmem>>, vector<2x16x16x8xbf16>
    tpu.vector_store %arg10[%c0_49, %c0_50, %c0_51, %c24], %21 {strides = array<i32>} : memref<2x16x16x72xbf16, #tpu.memory_space<vmem>>, vector<2x16x16x8xbf16>,
    %c0_52 = arith.constant 0 : index
    %c1_53 = arith.constant 1 : index
    %c1_54 = arith.constant 1 : index
    %c0_55 = arith.constant 0 : index
    %23 = vector.load %arg9[%c0_52, %c1_53, %c1_54, %c0_55] : memref<2x18x18x8xf32, #tpu.memory_space<vmem>>, vector<2x16x16x8xf32>
    %24 = arith.truncf %23 : vector<2x16x16x8xf32> to vector<2x16x16x8xbf16>
    %c0_56 = arith.constant 0 : index
    %c0_57 = arith.constant 0 : index
    %c0_58 = arith.constant 0 : index
    %c32 = arith.constant 32 : index
    %25 = vector.load %arg10[%c0_56, %c0_57, %c0_58, %c32] : memref<2x16x16x72xbf16, #tpu.memory_space<vmem>>, vector<2x16x16x8xbf16>
    tpu.vector_store %arg10[%c0_56, %c0_57, %c0_58, %c32], %24 {strides = array<i32>} : memref<2x16x16x72xbf16, #tpu.memory_space<vmem>>, vector<2x16x16x8xbf16>,
    %c0_59 = arith.constant 0 : index
    %c1_60 = arith.constant 1 : index
    %c2_61 = arith.constant 2 : index
    %c0_62 = arith.constant 0 : index
    %26 = vector.load %arg9[%c0_59, %c1_60, %c2_61, %c0_62] : memref<2x18x18x8xf32, #tpu.memory_space<vmem>>, vector<2x16x16x8xf32>
    %27 = arith.truncf %26 : vector<2x16x16x8xf32> to vector<2x16x16x8xbf16>
    %c0_63 = arith.constant 0 : index
    %c0_64 = arith.constant 0 : index
    %c0_65 = arith.constant 0 : index
    %c40 = arith.constant 40 : index
    %28 = vector.load %arg10[%c0_63, %c0_64, %c0_65, %c40] : memref<2x16x16x72xbf16, #tpu.memory_space<vmem>>, vector<2x16x16x8xbf16>
    tpu.vector_store %arg10[%c0_63, %c0_64, %c0_65, %c40], %27 {strides = array<i32>} : memref<2x16x16x72xbf16, #tpu.memory_space<vmem>>, vector<2x16x16x8xbf16>,
    %c0_66 = arith.constant 0 : index
    %c2_67 = arith.constant 2 : index
    %c0_68 = arith.constant 0 : index
    %c0_69 = arith.constant 0 : index
    %29 = vector.load %arg9[%c0_66, %c2_67, %c0_68, %c0_69] : memref<2x18x18x8xf32, #tpu.memory_space<vmem>>, vector<2x16x16x8xf32>
    %30 = arith.truncf %29 : vector<2x16x16x8xf32> to vector<2x16x16x8xbf16>
    %c0_70 = arith.constant 0 : index
    %c0_71 = arith.constant 0 : index
    %c0_72 = arith.constant 0 : index
    %c48 = arith.constant 48 : index
    %31 = vector.load %arg10[%c0_70, %c0_71, %c0_72, %c48] : memref<2x16x16x72xbf16, #tpu.memory_space<vmem>>, vector<2x16x16x8xbf16>
    tpu.vector_store %arg10[%c0_70, %c0_71, %c0_72, %c48], %30 {strides = array<i32>} : memref<2x16x16x72xbf16, #tpu.memory_space<vmem>>, vector<2x16x16x8xbf16>,
    %c0_73 = arith.constant 0 : index
    %c2_74 = arith.constant 2 : index
    %c1_75 = arith.constant 1 : index
    %c0_76 = arith.constant 0 : index
    %32 = vector.load %arg9[%c0_73, %c2_74, %c1_75, %c0_76] : memref<2x18x18x8xf32, #tpu.memory_space<vmem>>, vector<2x16x16x8xf32>
    %33 = arith.truncf %32 : vector<2x16x16x8xf32> to vector<2x16x16x8xbf16>
    %c0_77 = arith.constant 0 : index
    %c0_78 = arith.constant 0 : index
    %c0_79 = arith.constant 0 : index
    %c56 = arith.constant 56 : index
    %34 = vector.load %arg10[%c0_77, %c0_78, %c0_79, %c56] : memref<2x16x16x72xbf16, #tpu.memory_space<vmem>>, vector<2x16x16x8xbf16>
    tpu.vector_store %arg10[%c0_77, %c0_78, %c0_79, %c56], %33 {strides = array<i32>} : memref<2x16x16x72xbf16, #tpu.memory_space<vmem>>, vector<2x16x16x8xbf16>,
    %c0_80 = arith.constant 0 : index
    %c2_81 = arith.constant 2 : index
    %c2_82 = arith.constant 2 : index
    %c0_83 = arith.constant 0 : index
    %35 = vector.load %arg9[%c0_80, %c2_81, %c2_82, %c0_83] : memref<2x18x18x8xf32, #tpu.memory_space<vmem>>, vector<2x16x16x8xf32>
    %36 = arith.truncf %35 : vector<2x16x16x8xf32> to vector<2x16x16x8xbf16>
    %c0_84 = arith.constant 0 : index
    %c0_85 = arith.constant 0 : index
    %c0_86 = arith.constant 0 : index
    %c64 = arith.constant 64 : index
    %37 = vector.load %arg10[%c0_84, %c0_85, %c0_86, %c64] : memref<2x16x16x72xbf16, #tpu.memory_space<vmem>>, vector<2x16x16x8xbf16>
    tpu.vector_store %arg10[%c0_84, %c0_85, %c0_86, %c64], %36 {strides = array<i32>} : memref<2x16x16x72xbf16, #tpu.memory_space<vmem>>, vector<2x16x16x8xbf16>,
    %c0_87 = arith.constant 0 : index
    %c0_88 = arith.constant 0 : index
    %c0_89 = arith.constant 0 : index
    %c0_90 = arith.constant 0 : index
    %38 = vector.load %arg10[%c0_87, %c0_88, %c0_89, %c0_90] : memref<2x16x16x72xbf16, #tpu.memory_space<vmem>>, vector<2x16x16x72xbf16>
    %39 = vector.shape_cast %38 : vector<2x16x16x72xbf16> to vector<512x72xbf16>
    %c0_91 = arith.constant 0 : index
    %c0_92 = arith.constant 0 : index
    %40 = vector.load %arg2[%c0_91, %c0_92] : memref<72x8xbf16, #tpu.memory_space<vmem>>, vector<72x8xbf16>
    %cst_93 = arith.constant dense<0.000000e+00> : vector<512x8xf32>
    %41 = tpu.matmul %39, %40, %cst_93 {dimension_numbers = #tpu.dot_dimension_numbers<[1], [0], [0], [1], [0, 0, 1, 1], [], []>} : vector<512x72xbf16>, vector<72x8xbf16>, vector<512x8xf32> -> vector<512x8xf32>
    %c0_94 = arith.constant 0 : index
    %c0_95 = arith.constant 0 : index
    %42 = vector.load %arg3[%c0_94, %c0_95] : memref<1x8xf32, #tpu.memory_space<vmem>>, vector<1x8xf32>
    %43 = vector.broadcast %42 : vector<1x8xf32> to vector<512x8xf32>
    %44 = arith.mulf %41, %43 : vector<512x8xf32>
    %c0_96 = arith.constant 0 : index
    %c0_97 = arith.constant 0 : index
    %45 = vector.load %arg4[%c0_96, %c0_97] : memref<1x8xf32, #tpu.memory_space<vmem>>, vector<1x8xf32>
    %46 = vector.broadcast %45 : vector<1x8xf32> to vector<512x8xf32>
    %47 = arith.addf %44, %46 : vector<512x8xf32>
    %cst_98 = arith.constant 0.000000e+00 : f32
    %48 = vector.broadcast %cst_98 : f32 to vector<512x8xf32>
    %49 = arith.maximumf %47, %48 : vector<512x8xf32>
    %50 = vector.shape_cast %49 : vector<512x8xf32> to vector<2x16x16x8xf32>
    %c0_99 = arith.constant 0 : index
    %c1_100 = arith.constant 1 : index
    %c1_101 = arith.constant 1 : index
    %c0_102 = arith.constant 0 : index
    %51 = vector.load %arg9[%c0_99, %c1_100, %c1_101, %c0_102] : memref<2x18x18x8xf32, #tpu.memory_space<vmem>>, vector<2x16x16x8xf32>
    tpu.vector_store %arg9[%c0_99, %c1_100, %c1_101, %c0_102], %50 {strides = array<i32>} : memref<2x18x18x8xf32, #tpu.memory_space<vmem>>, vector<2x16x16x8xf32>,
    %c0_103 = arith.constant 0 : index
    %c0_104 = arith.constant 0 : index
    %c0_105 = arith.constant 0 : index
    %c0_106 = arith.constant 0 : index
    %52 = vector.load %arg9[%c0_103, %c0_104, %c0_105, %c0_106] : memref<2x18x18x8xf32, #tpu.memory_space<vmem>>, vector<2x16x16x8xf32>
    %53 = arith.truncf %52 : vector<2x16x16x8xf32> to vector<2x16x16x8xbf16>
    %c0_107 = arith.constant 0 : index
    %c0_108 = arith.constant 0 : index
    %c0_109 = arith.constant 0 : index
    %c0_110 = arith.constant 0 : index
    %54 = vector.load %arg10[%c0_107, %c0_108, %c0_109, %c0_110] : memref<2x16x16x72xbf16, #tpu.memory_space<vmem>>, vector<2x16x16x8xbf16>
    tpu.vector_store %arg10[%c0_107, %c0_108, %c0_109, %c0_110], %53 {strides = array<i32>} : memref<2x16x16x72xbf16, #tpu.memory_space<vmem>>, vector<2x16x16x8xbf16>,
    %c0_111 = arith.constant 0 : index
    %c0_112 = arith.constant 0 : index
    %c1_113 = arith.constant 1 : index
    %c0_114 = arith.constant 0 : index
    %55 = vector.load %arg9[%c0_111, %c0_112, %c1_113, %c0_114] : memref<2x18x18x8xf32, #tpu.memory_space<vmem>>, vector<2x16x16x8xf32>
    %56 = arith.truncf %55 : vector<2x16x16x8xf32> to vector<2x16x16x8xbf16>
    %c0_115 = arith.constant 0 : index
    %c0_116 = arith.constant 0 : index
    %c0_117 = arith.constant 0 : index
    %c8_118 = arith.constant 8 : index
    %57 = vector.load %arg10[%c0_115, %c0_116, %c0_117, %c8_118] : memref<2x16x16x72xbf16, #tpu.memory_space<vmem>>, vector<2x16x16x8xbf16>
    tpu.vector_store %arg10[%c0_115, %c0_116, %c0_117, %c8_118], %56 {strides = array<i32>} : memref<2x16x16x72xbf16, #tpu.memory_space<vmem>>, vector<2x16x16x8xbf16>,
    %c0_119 = arith.constant 0 : index
    %c0_120 = arith.constant 0 : index
    %c2_121 = arith.constant 2 : index
    %c0_122 = arith.constant 0 : index
    %58 = vector.load %arg9[%c0_119, %c0_120, %c2_121, %c0_122] : memref<2x18x18x8xf32, #tpu.memory_space<vmem>>, vector<2x16x16x8xf32>
    %59 = arith.truncf %58 : vector<2x16x16x8xf32> to vector<2x16x16x8xbf16>
    %c0_123 = arith.constant 0 : index
    %c0_124 = arith.constant 0 : index
    %c0_125 = arith.constant 0 : index
    %c16_126 = arith.constant 16 : index
    %60 = vector.load %arg10[%c0_123, %c0_124, %c0_125, %c16_126] : memref<2x16x16x72xbf16, #tpu.memory_space<vmem>>, vector<2x16x16x8xbf16>
    tpu.vector_store %arg10[%c0_123, %c0_124, %c0_125, %c16_126], %59 {strides = array<i32>} : memref<2x16x16x72xbf16, #tpu.memory_space<vmem>>, vector<2x16x16x8xbf16>,
    %c0_127 = arith.constant 0 : index
    %c1_128 = arith.constant 1 : index
    %c0_129 = arith.constant 0 : index
    %c0_130 = arith.constant 0 : index
    %61 = vector.load %arg9[%c0_127, %c1_128, %c0_129, %c0_130] : memref<2x18x18x8xf32, #tpu.memory_space<vmem>>, vector<2x16x16x8xf32>
    %62 = arith.truncf %61 : vector<2x16x16x8xf32> to vector<2x16x16x8xbf16>
    %c0_131 = arith.constant 0 : index
    %c0_132 = arith.constant 0 : index
    %c0_133 = arith.constant 0 : index
    %c24_134 = arith.constant 24 : index
    %63 = vector.load %arg10[%c0_131, %c0_132, %c0_133, %c24_134] : memref<2x16x16x72xbf16, #tpu.memory_space<vmem>>, vector<2x16x16x8xbf16>
    tpu.vector_store %arg10[%c0_131, %c0_132, %c0_133, %c24_134], %62 {strides = array<i32>} : memref<2x16x16x72xbf16, #tpu.memory_space<vmem>>, vector<2x16x16x8xbf16>,
    %c0_135 = arith.constant 0 : index
    %c1_136 = arith.constant 1 : index
    %c1_137 = arith.constant 1 : index
    %c0_138 = arith.constant 0 : index
    %64 = vector.load %arg9[%c0_135, %c1_136, %c1_137, %c0_138] : memref<2x18x18x8xf32, #tpu.memory_space<vmem>>, vector<2x16x16x8xf32>
    %65 = arith.truncf %64 : vector<2x16x16x8xf32> to vector<2x16x16x8xbf16>
    %c0_139 = arith.constant 0 : index
    %c0_140 = arith.constant 0 : index
    %c0_141 = arith.constant 0 : index
    %c32_142 = arith.constant 32 : index
    %66 = vector.load %arg10[%c0_139, %c0_140, %c0_141, %c32_142] : memref<2x16x16x72xbf16, #tpu.memory_space<vmem>>, vector<2x16x16x8xbf16>
    tpu.vector_store %arg10[%c0_139, %c0_140, %c0_141, %c32_142], %65 {strides = array<i32>} : memref<2x16x16x72xbf16, #tpu.memory_space<vmem>>, vector<2x16x16x8xbf16>,
    %c0_143 = arith.constant 0 : index
    %c1_144 = arith.constant 1 : index
    %c2_145 = arith.constant 2 : index
    %c0_146 = arith.constant 0 : index
    %67 = vector.load %arg9[%c0_143, %c1_144, %c2_145, %c0_146] : memref<2x18x18x8xf32, #tpu.memory_space<vmem>>, vector<2x16x16x8xf32>
    %68 = arith.truncf %67 : vector<2x16x16x8xf32> to vector<2x16x16x8xbf16>
    %c0_147 = arith.constant 0 : index
    %c0_148 = arith.constant 0 : index
    %c0_149 = arith.constant 0 : index
    %c40_150 = arith.constant 40 : index
    %69 = vector.load %arg10[%c0_147, %c0_148, %c0_149, %c40_150] : memref<2x16x16x72xbf16, #tpu.memory_space<vmem>>, vector<2x16x16x8xbf16>
    tpu.vector_store %arg10[%c0_147, %c0_148, %c0_149, %c40_150], %68 {strides = array<i32>} : memref<2x16x16x72xbf16, #tpu.memory_space<vmem>>, vector<2x16x16x8xbf16>,
    %c0_151 = arith.constant 0 : index
    %c2_152 = arith.constant 2 : index
    %c0_153 = arith.constant 0 : index
    %c0_154 = arith.constant 0 : index
    %70 = vector.load %arg9[%c0_151, %c2_152, %c0_153, %c0_154] : memref<2x18x18x8xf32, #tpu.memory_space<vmem>>, vector<2x16x16x8xf32>
    %71 = arith.truncf %70 : vector<2x16x16x8xf32> to vector<2x16x16x8xbf16>
    %c0_155 = arith.constant 0 : index
    %c0_156 = arith.constant 0 : index
    %c0_157 = arith.constant 0 : index
    %c48_158 = arith.constant 48 : index
    %72 = vector.load %arg10[%c0_155, %c0_156, %c0_157, %c48_158] : memref<2x16x16x72xbf16, #tpu.memory_space<vmem>>, vector<2x16x16x8xbf16>
    tpu.vector_store %arg10[%c0_155, %c0_156, %c0_157, %c48_158], %71 {strides = array<i32>} : memref<2x16x16x72xbf16, #tpu.memory_space<vmem>>, vector<2x16x16x8xbf16>,
    %c0_159 = arith.constant 0 : index
    %c2_160 = arith.constant 2 : index
    %c1_161 = arith.constant 1 : index
    %c0_162 = arith.constant 0 : index
    %73 = vector.load %arg9[%c0_159, %c2_160, %c1_161, %c0_162] : memref<2x18x18x8xf32, #tpu.memory_space<vmem>>, vector<2x16x16x8xf32>
    %74 = arith.truncf %73 : vector<2x16x16x8xf32> to vector<2x16x16x8xbf16>
    %c0_163 = arith.constant 0 : index
    %c0_164 = arith.constant 0 : index
    %c0_165 = arith.constant 0 : index
    %c56_166 = arith.constant 56 : index
    %75 = vector.load %arg10[%c0_163, %c0_164, %c0_165, %c56_166] : memref<2x16x16x72xbf16, #tpu.memory_space<vmem>>, vector<2x16x16x8xbf16>
    tpu.vector_store %arg10[%c0_163, %c0_164, %c0_165, %c56_166], %74 {strides = array<i32>} : memref<2x16x16x72xbf16, #tpu.memory_space<vmem>>, vector<2x16x16x8xbf16>,
    %c0_167 = arith.constant 0 : index
    %c2_168 = arith.constant 2 : index
    %c2_169 = arith.constant 2 : index
    %c0_170 = arith.constant 0 : index
    %76 = vector.load %arg9[%c0_167, %c2_168, %c2_169, %c0_170] : memref<2x18x18x8xf32, #tpu.memory_space<vmem>>, vector<2x16x16x8xf32>
    %77 = arith.truncf %76 : vector<2x16x16x8xf32> to vector<2x16x16x8xbf16>
    %c0_171 = arith.constant 0 : index
    %c0_172 = arith.constant 0 : index
    %c0_173 = arith.constant 0 : index
    %c64_174 = arith.constant 64 : index
    %78 = vector.load %arg10[%c0_171, %c0_172, %c0_173, %c64_174] : memref<2x16x16x72xbf16, #tpu.memory_space<vmem>>, vector<2x16x16x8xbf16>
    tpu.vector_store %arg10[%c0_171, %c0_172, %c0_173, %c64_174], %77 {strides = array<i32>} : memref<2x16x16x72xbf16, #tpu.memory_space<vmem>>, vector<2x16x16x8xbf16>,
    %c0_175 = arith.constant 0 : index
    %c0_176 = arith.constant 0 : index
    %c0_177 = arith.constant 0 : index
    %c0_178 = arith.constant 0 : index
    %79 = vector.load %arg10[%c0_175, %c0_176, %c0_177, %c0_178] : memref<2x16x16x72xbf16, #tpu.memory_space<vmem>>, vector<2x16x16x72xbf16>
    %80 = vector.shape_cast %79 : vector<2x16x16x72xbf16> to vector<512x72xbf16>
    %c0_179 = arith.constant 0 : index
    %c0_180 = arith.constant 0 : index
    %81 = vector.load %arg5[%c0_179, %c0_180] : memref<8x72xbf16, #tpu.memory_space<vmem>>, vector<8x72xbf16>
    %cst_181 = arith.constant dense<0.000000e+00> : vector<8x512xf32>
    %82 = tpu.matmul %81, %80, %cst_181 {dimension_numbers = #tpu.dot_dimension_numbers<[1], [1], [0], [0], [0, 0, 1, 0], [], []>} : vector<8x72xbf16>, vector<512x72xbf16>, vector<8x512xf32> -> vector<8x512xf32>
    %c0_182 = arith.constant 0 : index
    %c0_183 = arith.constant 0 : index
    %83 = vector.load %arg6[%c0_182, %c0_183] : memref<8x1xf32, #tpu.memory_space<vmem>>, vector<8x1xf32>
    %84 = vector.broadcast %83 : vector<8x1xf32> to vector<8x512xf32>
    %85 = arith.mulf %82, %84 : vector<8x512xf32>
    %c0_184 = arith.constant 0 : index
    %c0_185 = arith.constant 0 : index
    %86 = vector.load %arg7[%c0_184, %c0_185] : memref<8x1xf32, #tpu.memory_space<vmem>>, vector<8x1xf32>
    %87 = vector.broadcast %86 : vector<8x1xf32> to vector<8x512xf32>
    %88 = arith.addf %85, %87 : vector<8x512xf32>
    %c0_186 = arith.constant 0 : index
    %c0_187 = arith.constant 0 : index
    %c0_188 = arith.constant 0 : index
    %c0_189 = arith.constant 0 : index
    %89 = vector.load %arg1[%c0_186, %c0_187, %c0_188, %c0_189] : memref<2x16x16x8xbf16, #tpu.memory_space<vmem>>, vector<2x16x16x8xbf16>
    %90 = vector.shape_cast %89 : vector<2x16x16x8xbf16> to vector<512x8xbf16>
    %91 = tpu.iota {dimensions = array<i32: 0>} : vector<8x8xi32>
    %92 = tpu.iota {dimensions = array<i32: 1>} : vector<8x8xi32>
    %93 = arith.cmpi eq, %91, %92 : vector<8x8xi32>
    %94 = arith.extui %93 : vector<8x8xi1> to vector<8x8xi32>
    %95 = arith.sitofp %94 : vector<8x8xi32> to vector<8x8xf32>
    %96 = arith.truncf %95 : vector<8x8xf32> to vector<8x8xbf16>
    %cst_190 = arith.constant dense<0.000000e+00> : vector<8x512xf32>
    %97 = tpu.matmul %96, %90, %cst_190 {dimension_numbers = #tpu.dot_dimension_numbers<[1], [1], [0], [0], [0, 0, 1, 0], [], []>} : vector<8x8xbf16>, vector<512x8xbf16>, vector<8x512xf32> -> vector<8x512xf32>
    %98 = arith.addf %88, %97 : vector<8x512xf32>
    %cst_191 = arith.constant 0.000000e+00 : f32
    %99 = vector.broadcast %cst_191 : f32 to vector<8x512xf32>
    %100 = arith.maximumf %98, %99 : vector<8x512xf32>
    %101 = arith.truncf %100 : vector<8x512xf32> to vector<8x512xbf16>
    %c0_192 = arith.constant 0 : index
    %c0_193 = arith.constant 0 : index
    %102 = vector.load %arg8[%c0_192, %c0_193] : memref<8x512xbf16, #tpu.memory_space<vmem>>, vector<8x512xbf16>
    tpu.vector_store %arg8[%c0_192, %c0_193], %101 {strides = array<i32>} : memref<8x512xbf16, #tpu.memory_space<vmem>>, vector<8x512xbf16>,
    return
  }
  func.func @transform_0(%arg0: i32) -> (i32, i32, i32, i32) {
    %c0_i32 = arith.constant 0 : i32
    %c0_i32_0 = arith.constant 0 : i32
    %c0_i32_1 = arith.constant 0 : i32
    %c0_i32_2 = arith.constant 0 : i32
    return %arg0, %c0_i32, %c0_i32_0, %c0_i32_1 : i32, i32, i32, i32
  }
  func.func @transform_1(%arg0: i32) -> (i32, i32) {
    %c0_i32 = arith.constant 0 : i32
    %c0_i32_0 = arith.constant 0 : i32
    %c0_i32_1 = arith.constant 0 : i32
    return %c0_i32, %c0_i32_0 : i32, i32
  }
  func.func @transform_2(%arg0: i32) -> (i32, i32) {
    %c0_i32 = arith.constant 0 : i32
    %c0_i32_0 = arith.constant 0 : i32
    %c0_i32_1 = arith.constant 0 : i32
    return %c0_i32, %c0_i32_0 : i32, i32
  }
  func.func @transform_3(%arg0: i32) -> (i32, i32) {
    %c0_i32 = arith.constant 0 : i32
    %c0_i32_0 = arith.constant 0 : i32
    %c0_i32_1 = arith.constant 0 : i32
    return %c0_i32, %c0_i32_0 : i32, i32
  }
  func.func @transform_4(%arg0: i32) -> (i32, i32) {
    %c0_i32 = arith.constant 0 : i32
    %c0_i32_0 = arith.constant 0 : i32
    %c0_i32_1 = arith.constant 0 : i32
    return %c0_i32, %c0_i32_0 : i32, i32
  }
  func.func @transform_5(%arg0: i32) -> (i32, i32) {
    %c0_i32 = arith.constant 0 : i32
    %c0_i32_0 = arith.constant 0 : i32
    %c0_i32_1 = arith.constant 0 : i32
    return %c0_i32, %c0_i32_0 : i32, i32
  }
  func.func @transform_6(%arg0: i32) -> (i32, i32) {
    %c0_i32 = arith.constant 0 : i32
    %c0_i32_0 = arith.constant 0 : i32
    %c0_i32_1 = arith.constant 0 : i32
    return %c0_i32, %c0_i32_0 : i32, i32
  }
  func.func @transform_7(%arg0: i32) -> (i32, i32) {
    %c0_i32 = arith.constant 0 : i32
    %c0_i32_0 = arith.constant 0 : i32
    return %c0_i32, %arg0 : i32, i32
  }
}

</mosaic_0001>

<llo_original>
// kernel: tpu_custom_call.1
$region0: #{tpu_custom_call.1}
  #allocation0 [shape = 'u32[]', space=smem, size = 0x4, offset = 0x4, fixed_abs, tag = 'smem constant byte address 0x4 - core index']
  #allocation1 [shape = 'u32[144,128]{1,0:T(1,128)}', space=vmem, size = 0x12000, scoped, tag = 'internal scratch']
  #allocation2 [shape = 'f32[2,18,18,8]{3,2,1,0:T(8,128)}', space=vmem, size = 0x6c000, scoped, tag = 'scratch operand']
  #allocation3 [shape = 'bf16[2,16,16,72]{3,2,1,0:T(16,128)(2,1)}', space=vmem, size = 0x20000, scoped, tag = 'scratch operand']
  %s0 = inlined_call_operand.vmem [shape: bf16[2,16,16,8], index: 0, kind: input, shape index: {}]
  %s1 = inlined_call_operand.vmem [shape: bf16[72,8], index: 1, kind: input, shape index: {}]
  %s2 = inlined_call_operand.vmem [shape: f32[1,8], index: 2, kind: input, shape index: {}]
  %s3 = inlined_call_operand.vmem [shape: f32[1,8], index: 3, kind: input, shape index: {}]
  %s4 = inlined_call_operand.vmem [shape: bf16[8,72], index: 4, kind: input, shape index: {}]
  %s5 = inlined_call_operand.vmem [shape: f32[8,1], index: 5, kind: input, shape index: {}]
  %s6 = inlined_call_operand.vmem [shape: f32[8,1], index: 6, kind: input, shape index: {}]
  %s7 = inlined_call_operand.hbm [shape: bf16[8,512], index: 7, kind: output, shape index: {}]
  %s8 = sld [smem:[#allocation0]]
  $region38: #{tpu_custom_call.1} parent=0
    _
  %s10 = ssub.s32 1, %s8
  %s11 = scalar_select 0, %s10, %s8
  $region1: #{tpu_custom_call.1} parent=0
    #allocation4 [shape = 'u8[8192]{0}', space=vmem, size = 0x2000, scoped, tag = 'output window, operand 0, single buffered']
    #allocation5 [shape = 's32[1]{0}', space=sflag, size = 0x4, scoped, tag = 'scoped memory for tpu_custom_call.1']
    %12 = vsyncpa [#allocation5], 0
    // Predicated region
    $region2: #{tpu_custom_call.1} parent=1 // pred_check
      _
    $region3: #{tpu_custom_call.1} parent=1 // pred_check_branch
      %14 = sbr.rel (0) target = $region5
    $region4: #{tpu_custom_call.1} parent=1 // pred_region
      _
    $region5: #{tpu_custom_call.1} parent=1 // pred_fallthru
      _
    // Predicated region
    $region6: #{tpu_custom_call.1} parent=1 // pred_check
      _
    $region7: #{tpu_custom_call.1} parent=1 // pred_check_branch
      %16 = sbr.rel (0) target = $region9
    $region8: #{tpu_custom_call.1} parent=1 // pred_region
      _
    $region9: #{tpu_custom_call.1} parent=1 // pred_fallthru
      _
    // Predicated region
    $region10: #{tpu_custom_call.1} parent=1 // pred_check
      _
    $region11: #{tpu_custom_call.1} parent=1 // pred_check_branch
      %18 = sbr.rel (0) target = $region13
    $region12: #{tpu_custom_call.1} parent=1 // pred_region
      _
    $region13: #{tpu_custom_call.1} parent=1 // pred_fallthru
      _
    // Predicated region
    $region14: #{tpu_custom_call.1} parent=1 // pred_check
      _
    $region15: #{tpu_custom_call.1} parent=1 // pred_check_branch
      %20 = sbr.rel (0) target = $region17
    $region16: #{tpu_custom_call.1} parent=1 // pred_region
      _
    $region17: #{tpu_custom_call.1} parent=1 // pred_fallthru
      _
    // Predicated region
    $region18: #{tpu_custom_call.1} parent=1 // pred_check
      _
    $region19: #{tpu_custom_call.1} parent=1 // pred_check_branch
      %22 = sbr.rel (0) target = $region21
    $region20: #{tpu_custom_call.1} parent=1 // pred_region
      _
    $region21: #{tpu_custom_call.1} parent=1 // pred_fallthru
      _
    // Predicated region
    $region22: #{tpu_custom_call.1} parent=1 // pred_check
      _
    $region23: #{tpu_custom_call.1} parent=1 // pred_check_branch
      %24 = sbr.rel (0) target = $region25
    $region24: #{tpu_custom_call.1} parent=1 // pred_region
      _
    $region25: #{tpu_custom_call.1} parent=1 // pred_fallthru
      _
    // Predicated region
    $region26: #{tpu_custom_call.1} parent=1 // pred_check
      _
    $region27: #{tpu_custom_call.1} parent=1 // pred_check_branch
      %26 = sbr.rel (0) target = $region29
    $region28: #{tpu_custom_call.1} parent=1 // pred_region
      _
    $region29: #{tpu_custom_call.1} parent=1 // pred_fallthru
      _
    %vm28 = vcmask 64512
    %29 = vst.msk [vmem:[#allocation2] sm:$0xff] %vm28, 0.0
    %30 = vst.msk [vmem:[#allocation2 + $0x8] sm:$0xff] %vm28, 0.0
    %vm31 = vcmask 58368
    %32 = vst.msk [vmem:[#allocation2 + $0x10] sm:$0x3] %vm31, 0.0
    %33 = vst.msk [vmem:[#allocation2 + $0x1b0] sm:$0xff] %vm28, 0.0
    %34 = vst.msk [vmem:[#allocation2 + $0x1b8] sm:$0xff] %vm28, 0.0
    %35 = vst.msk [vmem:[#allocation2 + $0x1c0] sm:$0x3] %vm31, 0.0
    %s36 = scalar_lea.vmem [#allocation2], 408
    %37 = vst.msk [vmem:[%s36] sm:$0xff] %vm28, 0.0
    %38 = vst.msk [vmem:[%s36 + $0x8] sm:$0xff] %vm28, 0.0
    %39 = vst.msk [vmem:[%s36 + $0x10] sm:$0x3] %vm31, 0.0
    %40 = vst.msk [vmem:[%s36 + $0x1b0] sm:$0xff] %vm28, 0.0
    %41 = vst.msk [vmem:[%s36 + $0x1b8] sm:$0xff] %vm28, 0.0
    %42 = vst.msk [vmem:[%s36 + $0x1c0] sm:$0x3] %vm31, 0.0
    %vm43 = vcmask 57344
    %44 = vst.msk [vmem:[#allocation2] sm:$0x1] %vm43, 0.0
    %45 = vst.msk [vmem:[#allocation2 + $0x18] sm:$0x1] %vm43, 0.0
    %46 = vst.msk [vmem:[#allocation2 + $0x30] sm:$0x1] %vm43, 0.0
    %47 = vst.msk [vmem:[#allocation2 + $0x48] sm:$0x1] %vm43, 0.0
    %48 = vst.msk [vmem:[#allocation2 + $0x60] sm:$0x1] %vm43, 0.0
    %49 = vst.msk [vmem:[#allocation2 + $0x78] sm:$0x1] %vm43, 0.0
    %50 = vst.msk [vmem:[#allocation2 + $0x90] sm:$0x1] %vm43, 0.0
    %51 = vst.msk [vmem:[#allocation2 + $0xa8] sm:$0x1] %vm43, 0.0
    %52 = vst.msk [vmem:[#allocation2 + $0xc0] sm:$0x1] %vm43, 0.0
    %53 = vst.msk [vmem:[#allocation2 + $0xd8] sm:$0x1] %vm43, 0.0
    %54 = vst.msk [vmem:[#allocation2 + $0xf0] sm:$0x1] %vm43, 0.0
    %55 = vst.msk [vmem:[#allocation2 + $0x108] sm:$0x1] %vm43, 0.0
    %56 = vst.msk [vmem:[#allocation2 + $0x120] sm:$0x1] %vm43, 0.0
    %57 = vst.msk [vmem:[#allocation2 + $0x138] sm:$0x1] %vm43, 0.0
    %58 = vst.msk [vmem:[#allocation2 + $0x150] sm:$0x1] %vm43, 0.0
    %59 = vst.msk [vmem:[#allocation2 + $0x168] sm:$0x1] %vm43, 0.0
    %60 = vst.msk [vmem:[#allocation2 + $0x180] sm:$0x1] %vm43, 0.0
    %61 = vst.msk [vmem:[#allocation2 + $0x198] sm:$0x1] %vm43, 0.0
    %62 = vst.msk [vmem:[#allocation2 + $0x1b0] sm:$0x1] %vm43, 0.0
    %63 = vst.msk [vmem:[#allocation2 + $0x1c8] sm:$0x1] %vm43, 0.0
    %64 = vst.msk [vmem:[#allocation2 + $0x1e0] sm:$0x1] %vm43, 0.0
    %65 = vst.msk [vmem:[#allocation2 + $0x1f8] sm:$0x1] %vm43, 0.0
    %66 = vst.msk [vmem:[#allocation2 + $0x210] sm:$0x1] %vm43, 0.0
    %67 = vst.msk [vmem:[#allocation2 + $0x228] sm:$0x1] %vm43, 0.0
    %68 = vst.msk [vmem:[#allocation2 + $0x240] sm:$0x1] %vm43, 0.0
    %69 = vst.msk [vmem:[#allocation2 + $0x258] sm:$0x1] %vm43, 0.0
    %70 = vst.msk [vmem:[#allocation2 + $0x270] sm:$0x1] %vm43, 0.0
    %71 = vst.msk [vmem:[#allocation2 + $0x288] sm:$0x1] %vm43, 0.0
    %72 = vst.msk [vmem:[#allocation2 + $0x2a0] sm:$0x1] %vm43, 0.0
    %73 = vst.msk [vmem:[#allocation2 + $0x2b8] sm:$0x1] %vm43, 0.0
    %74 = vst.msk [vmem:[#allocation2 + $0x2d0] sm:$0x1] %vm43, 0.0
    %75 = vst.msk [vmem:[#allocation2 + $0x2e8] sm:$0x1] %vm43, 0.0
    %76 = vst.msk [vmem:[#allocation2 + $0x300] sm:$0x1] %vm43, 0.0
    %77 = vst.msk [vmem:[#allocation2 + $0x318] sm:$0x1] %vm43, 0.0
    %78 = vst.msk [vmem:[#allocation2 + $0x330] sm:$0x1] %vm43, 0.0
    %79 = vst.msk [vmem:[#allocation2 + $0x348] sm:$0x1] %vm43, 0.0
    %80 = vst.msk [vmem:[#allocation2 + $0x11] sm:$0x1] %vm43, 0.0
    %81 = vst.msk [vmem:[#allocation2 + $0x29] sm:$0x1] %vm43, 0.0
    %82 = vst.msk [vmem:[#allocation2 + $0x41] sm:$0x1] %vm43, 0.0
    %83 = vst.msk [vmem:[#allocation2 + $0x59] sm:$0x1] %vm43, 0.0
    %84 = vst.msk [vmem:[#allocation2 + $0x71] sm:$0x1] %vm43, 0.0
    %85 = vst.msk [vmem:[#allocation2 + $0x89] sm:$0x1] %vm43, 0.0
    %86 = vst.msk [vmem:[#allocation2 + $0xa1] sm:$0x1] %vm43, 0.0
    %87 = vst.msk [vmem:[#allocation2 + $0xb9] sm:$0x1] %vm43, 0.0
    %88 = vst.msk [vmem:[#allocation2 + $0xd1] sm:$0x1] %vm43, 0.0
    %89 = vst.msk [vmem:[#allocation2 + $0xe9] sm:$0x1] %vm43, 0.0
    %90 = vst.msk [vmem:[#allocation2 + $0x101] sm:$0x1] %vm43, 0.0
    %91 = vst.msk [vmem:[#allocation2 + $0x119] sm:$0x1] %vm43, 0.0
    %92 = vst.msk [vmem:[#allocation2 + $0x131] sm:$0x1] %vm43, 0.0
    %93 = vst.msk [vmem:[#allocation2 + $0x149] sm:$0x1] %vm43, 0.0
    %94 = vst.msk [vmem:[#allocation2 + $0x161] sm:$0x1] %vm43, 0.0
    %95 = vst.msk [vmem:[#allocation2 + $0x179] sm:$0x1] %vm43, 0.0
    %96 = vst.msk [vmem:[#allocation2 + $0x191] sm:$0x1] %vm43, 0.0
    %97 = vst.msk [vmem:[#allocation2 + $0x1a9] sm:$0x1] %vm43, 0.0
    %98 = vst.msk [vmem:[#allocation2 + $0x1c1] sm:$0x1] %vm43, 0.0
    %99 = vst.msk [vmem:[#allocation2 + $0x1d9] sm:$0x1] %vm43, 0.0
    %100 = vst.msk [vmem:[#allocation2 + $0x1f1] sm:$0x1] %vm43, 0.0
    %101 = vst.msk [vmem:[#allocation2 + $0x209] sm:$0x1] %vm43, 0.0
    %102 = vst.msk [vmem:[#allocation2 + $0x221] sm:$0x1] %vm43, 0.0
    %103 = vst.msk [vmem:[#allocation2 + $0x239] sm:$0x1] %vm43, 0.0
    %104 = vst.msk [vmem:[#allocation2 + $0x251] sm:$0x1] %vm43, 0.0
    %105 = vst.msk [vmem:[#allocation2 + $0x269] sm:$0x1] %vm43, 0.0
    %106 = vst.msk [vmem:[#allocation2 + $0x281] sm:$0x1] %vm43, 0.0
    %107 = vst.msk [vmem:[#allocation2 + $0x299] sm:$0x1] %vm43, 0.0
    %108 = vst.msk [vmem:[#allocation2 + $0x2b1] sm:$0x1] %vm43, 0.0
    %109 = vst.msk [vmem:[#allocation2 + $0x2c9] sm:$0x1] %vm43, 0.0
    %110 = vst.msk [vmem:[#allocation2 + $0x2e1] sm:$0x1] %vm43, 0.0
    %111 = vst.msk [vmem:[#allocation2 + $0x2f9] sm:$0x1] %vm43, 0.0
    %112 = vst.msk [vmem:[#allocation2 + $0x311] sm:$0x1] %vm43, 0.0
    %113 = vst.msk [vmem:[#allocation2 + $0x329] sm:$0x1] %vm43, 0.0
    %114 = vst.msk [vmem:[#allocation2 + $0x341] sm:$0x1] %vm43, 0.0
    %115 = vst.msk [vmem:[#allocation2 + $0x359] sm:$0x1] %vm43, 0.0
    %v116 = vld [vmem:[%s0] sm:$0xf]
    %v117 = vld [vmem:[%s0 + $0x4] sm:$0xf]
    %v118 = vld [vmem:[%s0 + $0x8] sm:$0xf]
    %v119 = vld [vmem:[%s0 + $0xc] sm:$0xf]
    %v120 = vld [vmem:[%s0 + $0x10] sm:$0xf]
    %v121 = vld [vmem:[%s0 + $0x14] sm:$0xf]
    %v122 = vld [vmem:[%s0 + $0x18] sm:$0xf]
    %v123 = vld [vmem:[%s0 + $0x1c] sm:$0xf]
    %v124 = vld [vmem:[%s0 + $0x20] sm:$0xf]
    %v125 = vld [vmem:[%s0 + $0x24] sm:$0xf]
    %v126 = vld [vmem:[%s0 + $0x28] sm:$0xf]
    %v127 = vld [vmem:[%s0 + $0x2c] sm:$0xf]
    %v128 = vld [vmem:[%s0 + $0x30] sm:$0xf]
    %v129 = vld [vmem:[%s0 + $0x34] sm:$0xf]
    %v130 = vld [vmem:[%s0 + $0x38] sm:$0xf]
    %v131 = vld [vmem:[%s0 + $0x3c] sm:$0xf]
    %v132 = vld [vmem:[%s0 + $0x40] sm:$0xf]
    %v133 = vld [vmem:[%s0 + $0x44] sm:$0xf]
    %v134 = vld [vmem:[%s0 + $0x48] sm:$0xf]
    %v135 = vld [vmem:[%s0 + $0x4c] sm:$0xf]
    %v136 = vld [vmem:[%s0 + $0x50] sm:$0xf]
    %v137 = vld [vmem:[%s0 + $0x54] sm:$0xf]
    %v138 = vld [vmem:[%s0 + $0x58] sm:$0xf]
    %v139 = vld [vmem:[%s0 + $0x5c] sm:$0xf]
    %v140 = vld [vmem:[%s0 + $0x60] sm:$0xf]
    %v141 = vld [vmem:[%s0 + $0x64] sm:$0xf]
    %v142 = vld [vmem:[%s0 + $0x68] sm:$0xf]
    %v143 = vld [vmem:[%s0 + $0x6c] sm:$0xf]
    %v144 = vld [vmem:[%s0 + $0x70] sm:$0xf]
    %v145 = vld [vmem:[%s0 + $0x74] sm:$0xf]
    %v146 = vld [vmem:[%s0 + $0x78] sm:$0xf]
    %v147 = vld [vmem:[%s0 + $0x7c] sm:$0xf]
    %v148 = vld [vmem:[%s0 + $0x80] sm:$0xf]
    %v149 = vld [vmem:[%s0 + $0x84] sm:$0xf]
    %v150 = vld [vmem:[%s0 + $0x88] sm:$0xf]
    %v151 = vld [vmem:[%s0 + $0x8c] sm:$0xf]
    %v152 = vld [vmem:[%s0 + $0x90] sm:$0xf]
    %v153 = vld [vmem:[%s0 + $0x94] sm:$0xf]
    %v154 = vld [vmem:[%s0 + $0x98] sm:$0xf]
    %v155 = vld [vmem:[%s0 + $0x9c] sm:$0xf]
    %v156 = vld [vmem:[%s0 + $0xa0] sm:$0xf]
    %v157 = vld [vmem:[%s0 + $0xa4] sm:$0xf]
    %v158 = vld [vmem:[%s0 + $0xa8] sm:$0xf]
    %v159 = vld [vmem:[%s0 + $0xac] sm:$0xf]
    %v160 = vld [vmem:[%s0 + $0xb0] sm:$0xf]
    %v161 = vld [vmem:[%s0 + $0xb4] sm:$0xf]
    %v162 = vld [vmem:[%s0 + $0xb8] sm:$0xf]
    %v163 = vld [vmem:[%s0 + $0xbc] sm:$0xf]
    %v164 = vld [vmem:[%s0 + $0xc0] sm:$0xf]
    %v165 = vld [vmem:[%s0 + $0xc4] sm:$0xf]
    %v166 = vld [vmem:[%s0 + $0xc8] sm:$0xf]
    %v167 = vld [vmem:[%s0 + $0xcc] sm:$0xf]
    %v168 = vld [vmem:[%s0 + $0xd0] sm:$0xf]
    %v169 = vld [vmem:[%s0 + $0xd4] sm:$0xf]
    %v170 = vld [vmem:[%s0 + $0xd8] sm:$0xf]
    %v171 = vld [vmem:[%s0 + $0xdc] sm:$0xf]
    %v172 = vld [vmem:[%s0 + $0xe0] sm:$0xf]
    %v173 = vld [vmem:[%s0 + $0xe4] sm:$0xf]
    %v174 = vld [vmem:[%s0 + $0xe8] sm:$0xf]
    %v175 = vld [vmem:[%s0 + $0xec] sm:$0xf]
    %v176 = vld [vmem:[%s0 + $0xf0] sm:$0xf]
    %v177 = vld [vmem:[%s0 + $0xf4] sm:$0xf]
    %v178 = vld [vmem:[%s0 + $0xf8] sm:$0xf]
    %v179 = vld [vmem:[%s0 + $0xfc] sm:$0xf]
    %v180 = vunpack.c.l.bf16 %v116
    %v181 = vunpack.c.l.bf16 %v117
    %v182 = vunpack.c.l.bf16 %v118
    %v183 = vunpack.c.l.bf16 %v119
    %v184 = vunpack.c.l.bf16 %v120
    %v185 = vunpack.c.l.bf16 %v121
    %v186 = vunpack.c.l.bf16 %v122
    %v187 = vunpack.c.l.bf16 %v123
    %v188 = vunpack.c.l.bf16 %v124
    %v189 = vunpack.c.l.bf16 %v125
    %v190 = vunpack.c.l.bf16 %v126
    %v191 = vunpack.c.l.bf16 %v127
    %v192 = vunpack.c.l.bf16 %v128
    %v193 = vunpack.c.l.bf16 %v129
    %v194 = vunpack.c.l.bf16 %v130
    %v195 = vunpack.c.l.bf16 %v131
    %v196 = vunpack.c.l.bf16 %v132
    %v197 = vunpack.c.l.bf16 %v133
    %v198 = vunpack.c.l.bf16 %v134
    %v199 = vunpack.c.l.bf16 %v135
    %v200 = vunpack.c.l.bf16 %v136
    %v201 = vunpack.c.l.bf16 %v137
    %v202 = vunpack.c.l.bf16 %v138
    %v203 = vunpack.c.l.bf16 %v139
    %v204 = vunpack.c.l.bf16 %v140
    %v205 = vunpack.c.l.bf16 %v141
    %v206 = vunpack.c.l.bf16 %v142
    %v207 = vunpack.c.l.bf16 %v143
    %v208 = vunpack.c.l.bf16 %v144
    %v209 = vunpack.c.l.bf16 %v145
    %v210 = vunpack.c.l.bf16 %v146
    %v211 = vunpack.c.l.bf16 %v147
    %v212 = vunpack.c.l.bf16 %v148
    %v213 = vunpack.c.l.bf16 %v149
    %v214 = vunpack.c.l.bf16 %v150
    %v215 = vunpack.c.l.bf16 %v151
    %v216 = vunpack.c.l.bf16 %v152
    %v217 = vunpack.c.l.bf16 %v153
    %v218 = vunpack.c.l.bf16 %v154
    %v219 = vunpack.c.l.bf16 %v155
    %v220 = vunpack.c.l.bf16 %v156
    %v221 = vunpack.c.l.bf16 %v157
    %v222 = vunpack.c.l.bf16 %v158
    %v223 = vunpack.c.l.bf16 %v159
    %v224 = vunpack.c.l.bf16 %v160
    %v225 = vunpack.c.l.bf16 %v161
    %v226 = vunpack.c.l.bf16 %v162
    %v227 = vunpack.c.l.bf16 %v163
    %v228 = vunpack.c.l.bf16 %v164
    %v229 = vunpack.c.l.bf16 %v165
    %v230 = vunpack.c.l.bf16 %v166
    %v231 = vunpack.c.l.bf16 %v167
    %v232 = vunpack.c.l.bf16 %v168
    %v233 = vunpack.c.l.bf16 %v169
    %v234 = vunpack.c.l.bf16 %v170
    %v235 = vunpack.c.l.bf16 %v171
    %v236 = vunpack.c.l.bf16 %v172
    %v237 = vunpack.c.l.bf16 %v173
    %v238 = vunpack.c.l.bf16 %v174
    %v239 = vunpack.c.l.bf16 %v175
    %v240 = vunpack.c.l.bf16 %v176
    %v241 = vunpack.c.l.bf16 %v177
    %v242 = vunpack.c.l.bf16 %v178
    %v243 = vunpack.c.l.bf16 %v179
    %s244 = scalar_lea.vmem [#allocation2], 24
    %245 = vst.msk [vmem:[%s244 + $0x1] sm:$0xff] %vm28, %v180
    %246 = vst.msk [vmem:[%s244 + $0x9] sm:$0xff] %vm28, %v181
    %247 = vst.msk [vmem:[%s244 + $0x19] sm:$0xff] %vm28, %v182
    %248 = vst.msk [vmem:[%s244 + $0x21] sm:$0xff] %vm28, %v183
    %249 = vst.msk [vmem:[%s244 + $0x31] sm:$0xff] %vm28, %v184
    %250 = vst.msk [vmem:[%s244 + $0x39] sm:$0xff] %vm28, %v185
    %251 = vst.msk [vmem:[%s244 + $0x49] sm:$0xff] %vm28, %v186
    %252 = vst.msk [vmem:[%s244 + $0x51] sm:$0xff] %vm28, %v187
    %253 = vst.msk [vmem:[%s244 + $0x61] sm:$0xff] %vm28, %v188
    %254 = vst.msk [vmem:[%s244 + $0x69] sm:$0xff] %vm28, %v189
    %255 = vst.msk [vmem:[%s244 + $0x79] sm:$0xff] %vm28, %v190
    %256 = vst.msk [vmem:[%s244 + $0x81] sm:$0xff] %vm28, %v191
    %257 = vst.msk [vmem:[%s244 + $0x91] sm:$0xff] %vm28, %v192
    %258 = vst.msk [vmem:[%s244 + $0x99] sm:$0xff] %vm28, %v193
    %259 = vst.msk [vmem:[%s244 + $0xa9] sm:$0xff] %vm28, %v194
    %260 = vst.msk [vmem:[%s244 + $0xb1] sm:$0xff] %vm28, %v195
    %261 = vst.msk [vmem:[%s244 + $0xc1] sm:$0xff] %vm28, %v196
    %262 = vst.msk [vmem:[%s244 + $0xc9] sm:$0xff] %vm28, %v197
    %263 = vst.msk [vmem:[%s244 + $0xd9] sm:$0xff] %vm28, %v198
    %264 = vst.msk [vmem:[%s244 + $0xe1] sm:$0xff] %vm28, %v199
    %265 = vst.msk [vmem:[%s244 + $0xf1] sm:$0xff] %vm28, %v200
    %266 = vst.msk [vmem:[%s244 + $0xf9] sm:$0xff] %vm28, %v201
    %267 = vst.msk [vmem:[%s244 + $0x109] sm:$0xff] %vm28, %v202
    %268 = vst.msk [vmem:[%s244 + $0x111] sm:$0xff] %vm28, %v203
    %269 = vst.msk [vmem:[%s244 + $0x121] sm:$0xff] %vm28, %v204
    %270 = vst.msk [vmem:[%s244 + $0x129] sm:$0xff] %vm28, %v205
    %271 = vst.msk [vmem:[%s244 + $0x139] sm:$0xff] %vm28, %v206
    %272 = vst.msk [vmem:[%s244 + $0x141] sm:$0xff] %vm28, %v207
    %273 = vst.msk [vmem:[%s244 + $0x151] sm:$0xff] %vm28, %v208
    %274 = vst.msk [vmem:[%s244 + $0x159] sm:$0xff] %vm28, %v209
    %275 = vst.msk [vmem:[%s244 + $0x169] sm:$0xff] %vm28, %v210
    %276 = vst.msk [vmem:[%s244 + $0x171] sm:$0xff] %vm28, %v211
    %277 = vst.msk [vmem:[%s244 + $0x1b1] sm:$0xff] %vm28, %v212
    %278 = vst.msk [vmem:[%s244 + $0x1b9] sm:$0xff] %vm28, %v213
    %279 = vst.msk [vmem:[%s244 + $0x1c9] sm:$0xff] %vm28, %v214
    %280 = vst.msk [vmem:[%s244 + $0x1d1] sm:$0xff] %vm28, %v215
    %281 = vst.msk [vmem:[%s244 + $0x1e1] sm:$0xff] %vm28, %v216
    %282 = vst.msk [vmem:[%s244 + $0x1e9] sm:$0xff] %vm28, %v217
    %283 = vst.msk [vmem:[%s244 + $0x1f9] sm:$0xff] %vm28, %v218
    %284 = vst.msk [vmem:[%s244 + $0x201] sm:$0xff] %vm28, %v219
    %285 = vst.msk [vmem:[%s244 + $0x211] sm:$0xff] %vm28, %v220
    %286 = vst.msk [vmem:[%s244 + $0x219] sm:$0xff] %vm28, %v221
    %287 = vst.msk [vmem:[%s244 + $0x229] sm:$0xff] %vm28, %v222
    %288 = vst.msk [vmem:[%s244 + $0x231] sm:$0xff] %vm28, %v223
    %289 = vst.msk [vmem:[%s244 + $0x241] sm:$0xff] %vm28, %v224
    %290 = vst.msk [vmem:[%s244 + $0x249] sm:$0xff] %vm28, %v225
    %291 = vst.msk [vmem:[%s244 + $0x259] sm:$0xff] %vm28, %v226
    %292 = vst.msk [vmem:[%s244 + $0x261] sm:$0xff] %vm28, %v227
    %293 = vst.msk [vmem:[%s244 + $0x271] sm:$0xff] %vm28, %v228
    %294 = vst.msk [vmem:[%s244 + $0x279] sm:$0xff] %vm28, %v229
    %295 = vst.msk [vmem:[%s244 + $0x289] sm:$0xff] %vm28, %v230
    %296 = vst.msk [vmem:[%s244 + $0x291] sm:$0xff] %vm28, %v231
    %297 = vst.msk [vmem:[%s244 + $0x2a1] sm:$0xff] %vm28, %v232
    %298 = vst.msk [vmem:[%s244 + $0x2a9] sm:$0xff] %vm28, %v233
    %299 = vst.msk [vmem:[%s244 + $0x2b9] sm:$0xff] %vm28, %v234
    %300 = vst.msk [vmem:[%s244 + $0x2c1] sm:$0xff] %vm28, %v235
    %301 = vst.msk [vmem:[%s244 + $0x2d1] sm:$0xff] %vm28, %v236
    %302 = vst.msk [vmem:[%s244 + $0x2d9] sm:$0xff] %vm28, %v237
    %303 = vst.msk [vmem:[%s244 + $0x2e9] sm:$0xff] %vm28, %v238
    %304 = vst.msk [vmem:[%s244 + $0x2f1] sm:$0xff] %vm28, %v239
    %305 = vst.msk [vmem:[%s244 + $0x301] sm:$0xff] %vm28, %v240
    %306 = vst.msk [vmem:[%s244 + $0x309] sm:$0xff] %vm28, %v241
    %307 = vst.msk [vmem:[%s244 + $0x319] sm:$0xff] %vm28, %v242
    %308 = vst.msk [vmem:[%s244 + $0x321] sm:$0xff] %vm28, %v243
    %v309 = vld [vmem:[#allocation2] sm:$0xff]
    %v310 = vld [vmem:[#allocation2 + $0x8] sm:$0xff]
    %v311 = vld [vmem:[#allocation2 + $0x18] sm:$0xff]
    %v312 = vld [vmem:[#allocation2 + $0x20] sm:$0xff]
    %v313 = vld [vmem:[#allocation2 + $0x30] sm:$0xff]
    %v314 = vld [vmem:[#allocation2 + $0x38] sm:$0xff]
    %v315 = vld [vmem:[#allocation2 + $0x48] sm:$0xff]
    %v316 = vld [vmem:[#allocation2 + $0x50] sm:$0xff]
    %v317 = vld [vmem:[#allocation2 + $0x60] sm:$0xff]
    %v318 = vld [vmem:[#allocation2 + $0x68] sm:$0xff]
    %v319 = vld [vmem:[#allocation2 + $0x78] sm:$0xff]
    %v320 = vld [vmem:[#allocation2 + $0x80] sm:$0xff]
    %v321 = vld [vmem:[#allocation2 + $0x90] sm:$0xff]
    %v322 = vld [vmem:[#allocation2 + $0x98] sm:$0xff]
    %v323 = vld [vmem:[#allocation2 + $0xa8] sm:$0xff]
    %v324 = vld [vmem:[#allocation2 + $0xb0] sm:$0xff]
    %v325 = vld [vmem:[#allocation2 + $0xc0] sm:$0xff]
    %v326 = vld [vmem:[#allocation2 + $0xc8] sm:$0xff]
    %v327 = vld [vmem:[#allocation2 + $0xd8] sm:$0xff]
    %v328 = vld [vmem:[#allocation2 + $0xe0] sm:$0xff]
    %v329 = vld [vmem:[#allocation2 + $0xf0] sm:$0xff]
    %v330 = vld [vmem:[#allocation2 + $0xf8] sm:$0xff]
    %v331 = vld [vmem:[#allocation2 + $0x108] sm:$0xff]
    %v332 = vld [vmem:[#allocation2 + $0x110] sm:$0xff]
    %v333 = vld [vmem:[#allocation2 + $0x120] sm:$0xff]
    %v334 = vld [vmem:[#allocation2 + $0x128] sm:$0xff]
    %v335 = vld [vmem:[#allocation2 + $0x138] sm:$0xff]
    %v336 = vld [vmem:[#allocation2 + $0x140] sm:$0xff]
    %v337 = vld [vmem:[#allocation2 + $0x150] sm:$0xff]
    %v338 = vld [vmem:[#allocation2 + $0x158] sm:$0xff]
    %v339 = vld [vmem:[#allocation2 + $0x168] sm:$0xff]
    %v340 = vld [vmem:[#allocation2 + $0x170] sm:$0xff]
    %v341 = vld [vmem:[#allocation2 + $0x1b0] sm:$0xff]
    %v342 = vld [vmem:[#allocation2 + $0x1b8] sm:$0xff]
    %v343 = vld [vmem:[#allocation2 + $0x1c8] sm:$0xff]
    %v344 = vld [vmem:[#allocation2 + $0x1d0] sm:$0xff]
    %v345 = vld [vmem:[#allocation2 + $0x1e0] sm:$0xff]
    %v346 = vld [vmem:[#allocation2 + $0x1e8] sm:$0xff]
    %v347 = vld [vmem:[#allocation2 + $0x1f8] sm:$0xff]
    %v348 = vld [vmem:[#allocation2 + $0x200] sm:$0xff]
    %v349 = vld [vmem:[#allocation2 + $0x210] sm:$0xff]
    %v350 = vld [vmem:[#allocation2 + $0x218] sm:$0xff]
    %v351 = vld [vmem:[#allocation2 + $0x228] sm:$0xff]
    %v352 = vld [vmem:[#allocation2 + $0x230] sm:$0xff]
    %v353 = vld [vmem:[#allocation2 + $0x240] sm:$0xff]
    %v354 = vld [vmem:[#allocation2 + $0x248] sm:$0xff]
    %v355 = vld [vmem:[#allocation2 + $0x258] sm:$0xff]
    %v356 = vld [vmem:[#allocation2 + $0x260] sm:$0xff]
    %v357 = vld [vmem:[#allocation2 + $0x270] sm:$0xff]
    %v358 = vld [vmem:[#allocation2 + $0x278] sm:$0xff]
    %v359 = vld [vmem:[#allocation2 + $0x288] sm:$0xff]
    %v360 = vld [vmem:[#allocation2 + $0x290] sm:$0xff]
    %v361 = vld [vmem:[#allocation2 + $0x2a0] sm:$0xff]
    %v362 = vld [vmem:[#allocation2 + $0x2a8] sm:$0xff]
    %v363 = vld [vmem:[#allocation2 + $0x2b8] sm:$0xff]
    %v364 = vld [vmem:[#allocation2 + $0x2c0] sm:$0xff]
    %v365 = vld [vmem:[#allocation2 + $0x2d0] sm:$0xff]
    %v366 = vld [vmem:[#allocation2 + $0x2d8] sm:$0xff]
    %v367 = vld [vmem:[#allocation2 + $0x2e8] sm:$0xff]
    %v368 = vld [vmem:[#allocation2 + $0x2f0] sm:$0xff]
    %v369 = vld [vmem:[#allocation2 + $0x300] sm:$0xff]
    %v370 = vld [vmem:[#allocation2 + $0x308] sm:$0xff]
    %v371 = vld [vmem:[#allocation2 + $0x318] sm:$0xff]
    %v372 = vld [vmem:[#allocation2 + $0x320] sm:$0xff]
    %v373 = vpack.c.bf16 %v310, %v309
    %v374 = vpack.c.bf16 %v312, %v311
    %v375 = vpack.c.bf16 %v314, %v313
    %v376 = vpack.c.bf16 %v316, %v315
    %v377 = vpack.c.bf16 %v318, %v317
    %v378 = vpack.c.bf16 %v320, %v319
    %v379 = vpack.c.bf16 %v322, %v321
    %v380 = vpack.c.bf16 %v324, %v323
    %v381 = vpack.c.bf16 %v326, %v325
    %v382 = vpack.c.bf16 %v328, %v327
    %v383 = vpack.c.bf16 %v330, %v329
    %v384 = vpack.c.bf16 %v332, %v331
    %v385 = vpack.c.bf16 %v334, %v333
    %v386 = vpack.c.bf16 %v336, %v335
    %v387 = vpack.c.bf16 %v338, %v337
    %v388 = vpack.c.bf16 %v340, %v339
    %v389 = vpack.c.bf16 %v342, %v341
    %v390 = vpack.c.bf16 %v344, %v343
    %v391 = vpack.c.bf16 %v346, %v345
    %v392 = vpack.c.bf16 %v348, %v347
    %v393 = vpack.c.bf16 %v350, %v349
    %v394 = vpack.c.bf16 %v352, %v351
    %v395 = vpack.c.bf16 %v354, %v353
    %v396 = vpack.c.bf16 %v356, %v355
    %v397 = vpack.c.bf16 %v358, %v357
    %v398 = vpack.c.bf16 %v360, %v359
    %v399 = vpack.c.bf16 %v362, %v361
    %v400 = vpack.c.bf16 %v364, %v363
    %v401 = vpack.c.bf16 %v366, %v365
    %v402 = vpack.c.bf16 %v368, %v367
    %v403 = vpack.c.bf16 %v370, %v369
    %v404 = vpack.c.bf16 %v372, %v371
    %405 = vst.msk [vmem:[#allocation3] sm:$0xff] %vm28, %v373
    %406 = vst.msk [vmem:[#allocation3 + $0x8] sm:$0xff] %vm28, %v374
    %407 = vst.msk [vmem:[#allocation3 + $0x10] sm:$0xff] %vm28, %v375
    %408 = vst.msk [vmem:[#allocation3 + $0x18] sm:$0xff] %vm28, %v376
    %409 = vst.msk [vmem:[#allocation3 + $0x20] sm:$0xff] %vm28, %v377
    %410 = vst.msk [vmem:[#allocation3 + $0x28] sm:$0xff] %vm28, %v378
    %411 = vst.msk [vmem:[#allocation3 + $0x30] sm:$0xff] %vm28, %v379
    %412 = vst.msk [vmem:[#allocation3 + $0x38] sm:$0xff] %vm28, %v380
    %413 = vst.msk [vmem:[#allocation3 + $0x40] sm:$0xff] %vm28, %v381
    %414 = vst.msk [vmem:[#allocation3 + $0x48] sm:$0xff] %vm28, %v382
    %415 = vst.msk [vmem:[#allocation3 + $0x50] sm:$0xff] %vm28, %v383
    %416 = vst.msk [vmem:[#allocation3 + $0x58] sm:$0xff] %vm28, %v384
    %417 = vst.msk [vmem:[#allocation3 + $0x60] sm:$0xff] %vm28, %v385
    %418 = vst.msk [vmem:[#allocation3 + $0x68] sm:$0xff] %vm28, %v386
    %419 = vst.msk [vmem:[#allocation3 + $0x70] sm:$0xff] %vm28, %v387
    %420 = vst.msk [vmem:[#allocation3 + $0x78] sm:$0xff] %vm28, %v388
    %421 = vst.msk [vmem:[#allocation3 + $0x80] sm:$0xff] %vm28, %v389
    %422 = vst.msk [vmem:[#allocation3 + $0x88] sm:$0xff] %vm28, %v390
    %423 = vst.msk [vmem:[#allocation3 + $0x90] sm:$0xff] %vm28, %v391
    %424 = vst.msk [vmem:[#allocation3 + $0x98] sm:$0xff] %vm28, %v392
    %425 = vst.msk [vmem:[#allocation3 + $0xa0] sm:$0xff] %vm28, %v393
    %426 = vst.msk [vmem:[#allocation3 + $0xa8] sm:$0xff] %vm28, %v394
    %427 = vst.msk [vmem:[#allocation3 + $0xb0] sm:$0xff] %vm28, %v395
    %428 = vst.msk [vmem:[#allocation3 + $0xb8] sm:$0xff] %vm28, %v396
    %429 = vst.msk [vmem:[#allocation3 + $0xc0] sm:$0xff] %vm28, %v397
    %430 = vst.msk [vmem:[#allocation3 + $0xc8] sm:$0xff] %vm28, %v398
    %431 = vst.msk [vmem:[#allocation3 + $0xd0] sm:$0xff] %vm28, %v399
    %432 = vst.msk [vmem:[#allocation3 + $0xd8] sm:$0xff] %vm28, %v400
    %433 = vst.msk [vmem:[#allocation3 + $0xe0] sm:$0xff] %vm28, %v401
    %434 = vst.msk [vmem:[#allocation3 + $0xe8] sm:$0xff] %vm28, %v402
    %435 = vst.msk [vmem:[#allocation3 + $0xf0] sm:$0xff] %vm28, %v403
    %436 = vst.msk [vmem:[#allocation3 + $0xf8] sm:$0xff] %vm28, %v404
    %v437 = vld [vmem:[#allocation2 + $0x1] sm:$0xff]
    %v438 = vld [vmem:[#allocation2 + $0x9] sm:$0xff]
    %v439 = vld [vmem:[#allocation2 + $0x19] sm:$0xff]
    %v440 = vld [vmem:[#allocation2 + $0x21] sm:$0xff]
    %v441 = vld [vmem:[#allocation2 + $0x31] sm:$0xff]
    %v442 = vld [vmem:[#allocation2 + $0x39] sm:$0xff]
    %v443 = vld [vmem:[#allocation2 + $0x49] sm:$0xff]
    %v444 = vld [vmem:[#allocation2 + $0x51] sm:$0xff]
    %v445 = vld [vmem:[#allocation2 + $0x61] sm:$0xff]
    %v446 = vld [vmem:[#allocation2 + $0x69] sm:$0xff]
    %v447 = vld [vmem:[#allocation2 + $0x79] sm:$0xff]
    %v448 = vld [vmem:[#allocation2 + $0x81] sm:$0xff]
    %v449 = vld [vmem:[#allocation2 + $0x91] sm:$0xff]
    %v450 = vld [vmem:[#allocation2 + $0x99] sm:$0xff]
    %v451 = vld [vmem:[#allocation2 + $0xa9] sm:$0xff]
    %v452 = vld [vmem:[#allocation2 + $0xb1] sm:$0xff]
    %v453 = vld [vmem:[#allocation2 + $0xc1] sm:$0xff]
    %v454 = vld [vmem:[#allocation2 + $0xc9] sm:$0xff]
    %v455 = vld [vmem:[#allocation2 + $0xd9] sm:$0xff]
    %v456 = vld [vmem:[#allocation2 + $0xe1] sm:$0xff]
    %v457 = vld [vmem:[#allocation2 + $0xf1] sm:$0xff]
    %v458 = vld [vmem:[#allocation2 + $0xf9] sm:$0xff]
    %v459 = vld [vmem:[#allocation2 + $0x109] sm:$0xff]
    %v460 = vld [vmem:[#allocation2 + $0x111] sm:$0xff]
    %v461 = vld [vmem:[#allocation2 + $0x121] sm:$0xff]
    %v462 = vld [vmem:[#allocation2 + $0x129] sm:$0xff]
    %v463 = vld [vmem:[#allocation2 + $0x139] sm:$0xff]
    %v464 = vld [vmem:[#allocation2 + $0x141] sm:$0xff]
    %v465 = vld [vmem:[#allocation2 + $0x151] sm:$0xff]
    %v466 = vld [vmem:[#allocation2 + $0x159] sm:$0xff]
    %v467 = vld [vmem:[#allocation2 + $0x169] sm:$0xff]
    %v468 = vld [vmem:[#allocation2 + $0x171] sm:$0xff]
    %v469 = vld [vmem:[#allocation2 + $0x1b1] sm:$0xff]
    %v470 = vld [vmem:[#allocation2 + $0x1b9] sm:$0xff]
    %v471 = vld [vmem:[#allocation2 + $0x1c9] sm:$0xff]
    %v472 = vld [vmem:[#allocation2 + $0x1d1] sm:$0xff]
    %v473 = vld [vmem:[#allocation2 + $0x1e1] sm:$0xff]
    %v474 = vld [vmem:[#allocation2 + $0x1e9] sm:$0xff]
    %v475 = vld [vmem:[#allocation2 + $0x1f9] sm:$0xff]
    %v476 = vld [vmem:[#allocation2 + $0x201] sm:$0xff]
    %v477 = vld [vmem:[#allocation2 + $0x211] sm:$0xff]
    %v478 = vld [vmem:[#allocation2 + $0x219] sm:$0xff]
    %v479 = vld [vmem:[#allocation2 + $0x229] sm:$0xff]
    %v480 = vld [vmem:[#allocation2 + $0x231] sm:$0xff]
    %v481 = vld [vmem:[#allocation2 + $0x241] sm:$0xff]
    %v482 = vld [vmem:[#allocation2 + $0x249] sm:$0xff]
    %v483 = vld [vmem:[#allocation2 + $0x259] sm:$0xff]
    %v484 = vld [vmem:[#allocation2 + $0x261] sm:$0xff]
    %v485 = vld [vmem:[#allocation2 + $0x271] sm:$0xff]
    %v486 = vld [vmem:[#allocation2 + $0x279] sm:$0xff]
    %v487 = vld [vmem:[#allocation2 + $0x289] sm:$0xff]
    %v488 = vld [vmem:[#allocation2 + $0x291] sm:$0xff]
    %v489 = vld [vmem:[#allocation2 + $0x2a1] sm:$0xff]
    %v490 = vld [vmem:[#allocation2 + $0x2a9] sm:$0xff]
    %v491 = vld [vmem:[#allocation2 + $0x2b9] sm:$0xff]
    %v492 = vld [vmem:[#allocation2 + $0x2c1] sm:$0xff]
    %v493 = vld [vmem:[#allocation2 + $0x2d1] sm:$0xff]
    %v494 = vld [vmem:[#allocation2 + $0x2d9] sm:$0xff]
    %v495 = vld [vmem:[#allocation2 + $0x2e9] sm:$0xff]
    %v496 = vld [vmem:[#allocation2 + $0x2f1] sm:$0xff]
    %v497 = vld [vmem:[#allocation2 + $0x301] sm:$0xff]
    %v498 = vld [vmem:[#allocation2 + $0x309] sm:$0xff]
    %v499 = vld [vmem:[#allocation2 + $0x319] sm:$0xff]
    %v500 = vld [vmem:[#allocation2 + $0x321] sm:$0xff]
    %v501 = vpack.c.bf16 %v438, %v437
    %v502 = vpack.c.bf16 %v440, %v439
    %v503 = vpack.c.bf16 %v442, %v441
    %v504 = vpack.c.bf16 %v444, %v443
    %v505 = vpack.c.bf16 %v446, %v445
    %v506 = vpack.c.bf16 %v448, %v447
    %v507 = vpack.c.bf16 %v450, %v449
    %v508 = vpack.c.bf16 %v452, %v451
    %v509 = vpack.c.bf16 %v454, %v453
    %v510 = vpack.c.bf16 %v456, %v455
    %v511 = vpack.c.bf16 %v458, %v457
    %v512 = vpack.c.bf16 %v460, %v459
    %v513 = vpack.c.bf16 %v462, %v461
    %v514 = vpack.c.bf16 %v464, %v463
    %v515 = vpack.c.bf16 %v466, %v465
    %v516 = vpack.c.bf16 %v468, %v467
    %v517 = vpack.c.bf16 %v470, %v469
    %v518 = vpack.c.bf16 %v472, %v471
    %v519 = vpack.c.bf16 %v474, %v473
    %v520 = vpack.c.bf16 %v476, %v475
    %v521 = vpack.c.bf16 %v478, %v477
    %v522 = vpack.c.bf16 %v480, %v479
    %v523 = vpack.c.bf16 %v482, %v481
    %v524 = vpack.c.bf16 %v484, %v483
    %v525 = vpack.c.bf16 %v486, %v485
    %v526 = vpack.c.bf16 %v488, %v487
    %v527 = vpack.c.bf16 %v490, %v489
    %v528 = vpack.c.bf16 %v492, %v491
    %v529 = vpack.c.bf16 %v494, %v493
    %v530 = vpack.c.bf16 %v496, %v495
    %v531 = vpack.c.bf16 %v498, %v497
    %v532 = vpack.c.bf16 %v500, %v499
    %565 = vrot.lane.b32.xlu0 %v501, 8
    %v566 = vpop.permute.xlu0 %565
    %567 = vrot.lane.b32.xlu0 %v502, 8
    %v568 = vpop.permute.xlu0 %567
    %569 = vrot.lane.b32.xlu0 %v503, 8
    %v570 = vpop.permute.xlu0 %569
    %571 = vrot.lane.b32.xlu0 %v504, 8
    %v572 = vpop.permute.xlu0 %571
    %573 = vrot.lane.b32.xlu0 %v505, 8
    %v574 = vpop.permute.xlu0 %573
    %575 = vrot.lane.b32.xlu0 %v506, 8
    %v576 = vpop.permute.xlu0 %575
    %577 = vrot.lane.b32.xlu0 %v507, 8
    %v578 = vpop.permute.xlu0 %577
    %579 = vrot.lane.b32.xlu0 %v508, 8
    %v580 = vpop.permute.xlu0 %579
    %581 = vrot.lane.b32.xlu0 %v509, 8
    %v582 = vpop.permute.xlu0 %581
    %583 = vrot.lane.b32.xlu0 %v510, 8
    %v584 = vpop.permute.xlu0 %583
    %585 = vrot.lane.b32.xlu0 %v511, 8
    %v586 = vpop.permute.xlu0 %585
    %587 = vrot.lane.b32.xlu0 %v512, 8
    %v588 = vpop.permute.xlu0 %587
    %589 = vrot.lane.b32.xlu0 %v513, 8
    %v590 = vpop.permute.xlu0 %589
    %591 = vrot.lane.b32.xlu0 %v514, 8
    %v592 = vpop.permute.xlu0 %591
    %593 = vrot.lane.b32.xlu0 %v515, 8
    %v594 = vpop.permute.xlu0 %593
    %595 = vrot.lane.b32.xlu0 %v516, 8
    %v596 = vpop.permute.xlu0 %595
    %597 = vrot.lane.b32.xlu0 %v517, 8
    %v598 = vpop.permute.xlu0 %597
    %599 = vrot.lane.b32.xlu0 %v518, 8
    %v600 = vpop.permute.xlu0 %599
    %601 = vrot.lane.b32.xlu0 %v519, 8
    %v602 = vpop.permute.xlu0 %601
    %603 = vrot.lane.b32.xlu0 %v520, 8
    %v604 = vpop.permute.xlu0 %603
    %605 = vrot.lane.b32.xlu0 %v521, 8
    %v606 = vpop.permute.xlu0 %605
    %607 = vrot.lane.b32.xlu0 %v522, 8
    %v608 = vpop.permute.xlu0 %607
    %609 = vrot.lane.b32.xlu0 %v523, 8
    %v610 = vpop.permute.xlu0 %609
    %611 = vrot.lane.b32.xlu0 %v524, 8
    %v612 = vpop.permute.xlu0 %611
    %613 = vrot.lane.b32.xlu0 %v525, 8
    %v614 = vpop.permute.xlu0 %613
    %615 = vrot.lane.b32.xlu0 %v526, 8
    %v616 = vpop.permute.xlu0 %615
    %617 = vrot.lane.b32.xlu0 %v527, 8
    %v618 = vpop.permute.xlu0 %617
    %619 = vrot.lane.b32.xlu0 %v528, 8
    %v620 = vpop.permute.xlu0 %619
    %621 = vrot.lane.b32.xlu0 %v529, 8
    %v622 = vpop.permute.xlu0 %621
    %623 = vrot.lane.b32.xlu0 %v530, 8
    %v624 = vpop.permute.xlu0 %623
    %625 = vrot.lane.b32.xlu0 %v531, 8
    %v626 = vpop.permute.xlu0 %625
    %627 = vrot.lane.b32.xlu0 %v532, 8
    %v628 = vpop.permute.xlu0 %627
    %vm661 = vcmask 130112
    %662 = vst.msk [vmem:[#allocation3] sm:$0xff] %vm661, %v566
    %663 = vst.msk [vmem:[#allocation3 + $0x8] sm:$0xff] %vm661, %v568
    %664 = vst.msk [vmem:[#allocation3 + $0x10] sm:$0xff] %vm661, %v570
    %665 = vst.msk [vmem:[#allocation3 + $0x18] sm:$0xff] %vm661, %v572
    %666 = vst.msk [vmem:[#allocation3 + $0x20] sm:$0xff] %vm661, %v574
    %667 = vst.msk [vmem:[#allocation3 + $0x28] sm:$0xff] %vm661, %v576
    %668 = vst.msk [vmem:[#allocation3 + $0x30] sm:$0xff] %vm661, %v578
    %669 = vst.msk [vmem:[#allocation3 + $0x38] sm:$0xff] %vm661, %v580
    %670 = vst.msk [vmem:[#allocation3 + $0x40] sm:$0xff] %vm661, %v582
    %671 = vst.msk [vmem:[#allocation3 + $0x48] sm:$0xff] %vm661, %v584
    %672 = vst.msk [vmem:[#allocation3 + $0x50] sm:$0xff] %vm661, %v586
    %673 = vst.msk [vmem:[#allocation3 + $0x58] sm:$0xff] %vm661, %v588
    %674 = vst.msk [vmem:[#allocation3 + $0x60] sm:$0xff] %vm661, %v590
    %675 = vst.msk [vmem:[#allocation3 + $0x68] sm:$0xff] %vm661, %v592
    %676 = vst.msk [vmem:[#allocation3 + $0x70] sm:$0xff] %vm661, %v594
    %677 = vst.msk [vmem:[#allocation3 + $0x78] sm:$0xff] %vm661, %v596
    %678 = vst.msk [vmem:[#allocation3 + $0x80] sm:$0xff] %vm661, %v598
    %679 = vst.msk [vmem:[#allocation3 + $0x88] sm:$0xff] %vm661, %v600
    %680 = vst.msk [vmem:[#allocation3 + $0x90] sm:$0xff] %vm661, %v602
    %681 = vst.msk [vmem:[#allocation3 + $0x98] sm:$0xff] %vm661, %v604
    %682 = vst.msk [vmem:[#allocation3 + $0xa0] sm:$0xff] %vm661, %v606
    %683 = vst.msk [vmem:[#allocation3 + $0xa8] sm:$0xff] %vm661, %v608
    %684 = vst.msk [vmem:[#allocation3 + $0xb0] sm:$0xff] %vm661, %v610
    %685 = vst.msk [vmem:[#allocation3 + $0xb8] sm:$0xff] %vm661, %v612
    %686 = vst.msk [vmem:[#allocation3 + $0xc0] sm:$0xff] %vm661, %v614
    %687 = vst.msk [vmem:[#allocation3 + $0xc8] sm:$0xff] %vm661, %v616
    %688 = vst.msk [vmem:[#allocation3 + $0xd0] sm:$0xff] %vm661, %v618
    %689 = vst.msk [vmem:[#allocation3 + $0xd8] sm:$0xff] %vm661, %v620
    %690 = vst.msk [vmem:[#allocation3 + $0xe0] sm:$0xff] %vm661, %v622
    %691 = vst.msk [vmem:[#allocation3 + $0xe8] sm:$0xff] %vm661, %v624
    %692 = vst.msk [vmem:[#allocation3 + $0xf0] sm:$0xff] %vm661, %v626
    %693 = vst.msk [vmem:[#allocation3 + $0xf8] sm:$0xff] %vm661, %v628
    %v694 = vld [vmem:[#allocation2 + $0x2] sm:$0xff]
    %v695 = vld [vmem:[#allocation2 + $0xa] sm:$0xff]
    %v696 = vld [vmem:[#allocation2 + $0x1a] sm:$0xff]
    %v697 = vld [vmem:[#allocation2 + $0x22] sm:$0xff]
    %v698 = vld [vmem:[#allocation2 + $0x32] sm:$0xff]
    %v699 = vld [vmem:[#allocation2 + $0x3a] sm:$0xff]
    %v700 = vld [vmem:[#allocation2 + $0x4a] sm:$0xff]
    %v701 = vld [vmem:[#allocation2 + $0x52] sm:$0xff]
    %v702 = vld [vmem:[#allocation2 + $0x62] sm:$0xff]
    %v703 = vld [vmem:[#allocation2 + $0x6a] sm:$0xff]
    %v704 = vld [vmem:[#allocation2 + $0x7a] sm:$0xff]
    %v705 = vld [vmem:[#allocation2 + $0x82] sm:$0xff]
    %v706 = vld [vmem:[#allocation2 + $0x92] sm:$0xff]
    %v707 = vld [vmem:[#allocation2 + $0x9a] sm:$0xff]
    %v708 = vld [vmem:[#allocation2 + $0xaa] sm:$0xff]
    %v709 = vld [vmem:[#allocation2 + $0xb2] sm:$0xff]
    %v710 = vld [vmem:[#allocation2 + $0xc2] sm:$0xff]
    %v711 = vld [vmem:[#allocation2 + $0xca] sm:$0xff]
    %v712 = vld [vmem:[#allocation2 + $0xda] sm:$0xff]
    %v713 = vld [vmem:[#allocation2 + $0xe2] sm:$0xff]
    %v714 = vld [vmem:[#allocation2 + $0xf2] sm:$0xff]
    %v715 = vld [vmem:[#allocation2 + $0xfa] sm:$0xff]
    %v716 = vld [vmem:[#allocation2 + $0x10a] sm:$0xff]
    %v717 = vld [vmem:[#allocation2 + $0x112] sm:$0xff]
    %v718 = vld [vmem:[#allocation2 + $0x122] sm:$0xff]
    %v719 = vld [vmem:[#allocation2 + $0x12a] sm:$0xff]
    %v720 = vld [vmem:[#allocation2 + $0x13a] sm:$0xff]
    %v721 = vld [vmem:[#allocation2 + $0x142] sm:$0xff]
    %v722 = vld [vmem:[#allocation2 + $0x152] sm:$0xff]
    %v723 = vld [vmem:[#allocation2 + $0x15a] sm:$0xff]
    %v724 = vld [vmem:[#allocation2 + $0x16a] sm:$0xff]
    %v725 = vld [vmem:[#allocation2 + $0x172] sm:$0xff]
    %v726 = vld [vmem:[#allocation2 + $0x1b2] sm:$0xff]
    %v727 = vld [vmem:[#allocation2 + $0x1ba] sm:$0xff]
    %v728 = vld [vmem:[#allocation2 + $0x1ca] sm:$0xff]
    %v729 = vld [vmem:[#allocation2 + $0x1d2] sm:$0xff]
    %v730 = vld [vmem:[#allocation2 + $0x1e2] sm:$0xff]
    %v731 = vld [vmem:[#allocation2 + $0x1ea] sm:$0xff]
    %v732 = vld [vmem:[#allocation2 + $0x1fa] sm:$0xff]
    %v733 = vld [vmem:[#allocation2 + $0x202] sm:$0xff]
    %v734 = vld [vmem:[#allocation2 + $0x212] sm:$0xff]
    %v735 = vld [vmem:[#allocation2 + $0x21a] sm:$0xff]
    %v736 = vld [vmem:[#allocation2 + $0x22a] sm:$0xff]
    %v737 = vld [vmem:[#allocation2 + $0x232] sm:$0xff]
    %v738 = vld [vmem:[#allocation2 + $0x242] sm:$0xff]
    %v739 = vld [vmem:[#allocation2 + $0x24a] sm:$0xff]
    %v740 = vld [vmem:[#allocation2 + $0x25a] sm:$0xff]
    %v741 = vld [vmem:[#allocation2 + $0x262] sm:$0xff]
    %v742 = vld [vmem:[#allocation2 + $0x272] sm:$0xff]
    %v743 = vld [vmem:[#allocation2 + $0x27a] sm:$0xff]
    %v744 = vld [vmem:[#allocation2 + $0x28a] sm:$0xff]
    %v745 = vld [vmem:[#allocation2 + $0x292] sm:$0xff]
    %v746 = vld [vmem:[#allocation2 + $0x2a2] sm:$0xff]
    %v747 = vld [vmem:[#allocation2 + $0x2aa] sm:$0xff]
    %v748 = vld [vmem:[#allocation2 + $0x2ba] sm:$0xff]
    %v749 = vld [vmem:[#allocation2 + $0x2c2] sm:$0xff]
    %v750 = vld [vmem:[#allocation2 + $0x2d2] sm:$0xff]
    %v751 = vld [vmem:[#allocation2 + $0x2da] sm:$0xff]
    %v752 = vld [vmem:[#allocation2 + $0x2ea] sm:$0xff]
    %v753 = vld [vmem:[#allocation2 + $0x2f2] sm:$0xff]
    %v754 = vld [vmem:[#allocation2 + $0x302] sm:$0xff]
    %v755 = vld [vmem:[#allocation2 + $0x30a] sm:$0xff]
    %v756 = vld [vmem:[#allocation2 + $0x31a] sm:$0xff]
    %v757 = vld [vmem:[#allocation2 + $0x322] sm:$0xff]
    %v758 = vpack.c.bf16 %v695, %v694
    %v759 = vpack.c.bf16 %v697, %v696
    %v760 = vpack.c.bf16 %v699, %v698
    %v761 = vpack.c.bf16 %v701, %v700
    %v762 = vpack.c.bf16 %v703, %v702
    %v763 = vpack.c.bf16 %v705, %v704
    %v764 = vpack.c.bf16 %v707, %v706
    %v765 = vpack.c.bf16 %v709, %v708
    %v766 = vpack.c.bf16 %v711, %v710
    %v767 = vpack.c.bf16 %v713, %v712
    %v768 = vpack.c.bf16 %v715, %v714
    %v769 = vpack.c.bf16 %v717, %v716
    %v770 = vpack.c.bf16 %v719, %v718
    %v771 = vpack.c.bf16 %v721, %v720
    %v772 = vpack.c.bf16 %v723, %v722
    %v773 = vpack.c.bf16 %v725, %v724
    %v774 = vpack.c.bf16 %v727, %v726
    %v775 = vpack.c.bf16 %v729, %v728
    %v776 = vpack.c.bf16 %v731, %v730
    %v777 = vpack.c.bf16 %v733, %v732
    %v778 = vpack.c.bf16 %v735, %v734
    %v779 = vpack.c.bf16 %v737, %v736
    %v780 = vpack.c.bf16 %v739, %v738
    %v781 = vpack.c.bf16 %v741, %v740
    %v782 = vpack.c.bf16 %v743, %v742
    %v783 = vpack.c.bf16 %v745, %v744
    %v784 = vpack.c.bf16 %v747, %v746
    %v785 = vpack.c.bf16 %v749, %v748
    %v786 = vpack.c.bf16 %v751, %v750
    %v787 = vpack.c.bf16 %v753, %v752
    %v788 = vpack.c.bf16 %v755, %v754
    %v789 = vpack.c.bf16 %v757, %v756
    %822 = vrot.lane.b32.xlu0 %v758, 16
    %v823 = vpop.permute.xlu0 %822
    %824 = vrot.lane.b32.xlu0 %v759, 16
    %v825 = vpop.permute.xlu0 %824
    %826 = vrot.lane.b32.xlu0 %v760, 16
    %v827 = vpop.permute.xlu0 %826
    %828 = vrot.lane.b32.xlu0 %v761, 16
    %v829 = vpop.permute.xlu0 %828
    %830 = vrot.lane.b32.xlu0 %v762, 16
    %v831 = vpop.permute.xlu0 %830
    %832 = vrot.lane.b32.xlu0 %v763, 16
    %v833 = vpop.permute.xlu0 %832
    %834 = vrot.lane.b32.xlu0 %v764, 16
    %v835 = vpop.permute.xlu0 %834
    %836 = vrot.lane.b32.xlu0 %v765, 16
    %v837 = vpop.permute.xlu0 %836
    %838 = vrot.lane.b32.xlu0 %v766, 16
    %v839 = vpop.permute.xlu0 %838
    %840 = vrot.lane.b32.xlu0 %v767, 16
    %v841 = vpop.permute.xlu0 %840
    %842 = vrot.lane.b32.xlu0 %v768, 16
    %v843 = vpop.permute.xlu0 %842
    %844 = vrot.lane.b32.xlu0 %v769, 16
    %v845 = vpop.permute.xlu0 %844
    %846 = vrot.lane.b32.xlu0 %v770, 16
    %v847 = vpop.permute.xlu0 %846
    %848 = vrot.lane.b32.xlu0 %v771, 16
    %v849 = vpop.permute.xlu0 %848
    %850 = vrot.lane.b32.xlu0 %v772, 16
    %v851 = vpop.permute.xlu0 %850
    %852 = vrot.lane.b32.xlu0 %v773, 16
    %v853 = vpop.permute.xlu0 %852
    %854 = vrot.lane.b32.xlu0 %v774, 16
    %v855 = vpop.permute.xlu0 %854
    %856 = vrot.lane.b32.xlu0 %v775, 16
    %v857 = vpop.permute.xlu0 %856
    %858 = vrot.lane.b32.xlu0 %v776, 16
    %v859 = vpop.permute.xlu0 %858
    %860 = vrot.lane.b32.xlu0 %v777, 16
    %v861 = vpop.permute.xlu0 %860
    %862 = vrot.lane.b32.xlu0 %v778, 16
    %v863 = vpop.permute.xlu0 %862
    %864 = vrot.lane.b32.xlu0 %v779, 16
    %v865 = vpop.permute.xlu0 %864
    %866 = vrot.lane.b32.xlu0 %v780, 16
    %v867 = vpop.permute.xlu0 %866
    %868 = vrot.lane.b32.xlu0 %v781, 16
    %v869 = vpop.permute.xlu0 %868
    %870 = vrot.lane.b32.xlu0 %v782, 16
    %v871 = vpop.permute.xlu0 %870
    %872 = vrot.lane.b32.xlu0 %v783, 16
    %v873 = vpop.permute.xlu0 %872
    %874 = vrot.lane.b32.xlu0 %v784, 16
    %v875 = vpop.permute.xlu0 %874
    %876 = vrot.lane.b32.xlu0 %v785, 16
    %v877 = vpop.permute.xlu0 %876
    %878 = vrot.lane.b32.xlu0 %v786, 16
    %v879 = vpop.permute.xlu0 %878
    %880 = vrot.lane.b32.xlu0 %v787, 16
    %v881 = vpop.permute.xlu0 %880
    %882 = vrot.lane.b32.xlu0 %v788, 16
    %v883 = vpop.permute.xlu0 %882
    %884 = vrot.lane.b32.xlu0 %v789, 16
    %v885 = vpop.permute.xlu0 %884
    %vm918 = vcmask 195712
    %919 = vst.msk [vmem:[#allocation3] sm:$0xff] %vm918, %v823
    %920 = vst.msk [vmem:[#allocation3 + $0x8] sm:$0xff] %vm918, %v825
    %921 = vst.msk [vmem:[#allocation3 + $0x10] sm:$0xff] %vm918, %v827
    %922 = vst.msk [vmem:[#allocation3 + $0x18] sm:$0xff] %vm918, %v829
    %923 = vst.msk [vmem:[#allocation3 + $0x20] sm:$0xff] %vm918, %v831
    %924 = vst.msk [vmem:[#allocation3 + $0x28] sm:$0xff] %vm918, %v833
    %925 = vst.msk [vmem:[#allocation3 + $0x30] sm:$0xff] %vm918, %v835
    %926 = vst.msk [vmem:[#allocation3 + $0x38] sm:$0xff] %vm918, %v837
    %927 = vst.msk [vmem:[#allocation3 + $0x40] sm:$0xff] %vm918, %v839
    %928 = vst.msk [vmem:[#allocation3 + $0x48] sm:$0xff] %vm918, %v841
    %929 = vst.msk [vmem:[#allocation3 + $0x50] sm:$0xff] %vm918, %v843
    %930 = vst.msk [vmem:[#allocation3 + $0x58] sm:$0xff] %vm918, %v845
    %931 = vst.msk [vmem:[#allocation3 + $0x60] sm:$0xff] %vm918, %v847
    %932 = vst.msk [vmem:[#allocation3 + $0x68] sm:$0xff] %vm918, %v849
    %933 = vst.msk [vmem:[#allocation3 + $0x70] sm:$0xff] %vm918, %v851
    %934 = vst.msk [vmem:[#allocation3 + $0x78] sm:$0xff] %vm918, %v853
    %935 = vst.msk [vmem:[#allocation3 + $0x80] sm:$0xff] %vm918, %v855
    %936 = vst.msk [vmem:[#allocation3 + $0x88] sm:$0xff] %vm918, %v857
    %937 = vst.msk [vmem:[#allocation3 + $0x90] sm:$0xff] %vm918, %v859
    %938 = vst.msk [vmem:[#allocation3 + $0x98] sm:$0xff] %vm918, %v861
    %939 = vst.msk [vmem:[#allocation3 + $0xa0] sm:$0xff] %vm918, %v863
    %940 = vst.msk [vmem:[#allocation3 + $0xa8] sm:$0xff] %vm918, %v865
    %941 = vst.msk [vmem:[#allocation3 + $0xb0] sm:$0xff] %vm918, %v867
    %942 = vst.msk [vmem:[#allocation3 + $0xb8] sm:$0xff] %vm918, %v869
    %943 = vst.msk [vmem:[#allocation3 + $0xc0] sm:$0xff] %vm918, %v871
    %944 = vst.msk [vmem:[#allocation3 + $0xc8] sm:$0xff] %vm918, %v873
    %945 = vst.msk [vmem:[#allocation3 + $0xd0] sm:$0xff] %vm918, %v875
    %946 = vst.msk [vmem:[#allocation3 + $0xd8] sm:$0xff] %vm918, %v877
    %947 = vst.msk [vmem:[#allocation3 + $0xe0] sm:$0xff] %vm918, %v879
    %948 = vst.msk [vmem:[#allocation3 + $0xe8] sm:$0xff] %vm918, %v881
    %949 = vst.msk [vmem:[#allocation3 + $0xf0] sm:$0xff] %vm918, %v883
    %950 = vst.msk [vmem:[#allocation3 + $0xf8] sm:$0xff] %vm918, %v885
    %v951 = vld [vmem:[%s244] sm:$0xff]
    %v952 = vld [vmem:[%s244 + $0x8] sm:$0xff]
    %v953 = vld [vmem:[%s244 + $0x18] sm:$0xff]
    %v954 = vld [vmem:[%s244 + $0x20] sm:$0xff]
    %v955 = vld [vmem:[%s244 + $0x30] sm:$0xff]
    %v956 = vld [vmem:[%s244 + $0x38] sm:$0xff]
    %v957 = vld [vmem:[%s244 + $0x48] sm:$0xff]
    %v958 = vld [vmem:[%s244 + $0x50] sm:$0xff]
    %v959 = vld [vmem:[%s244 + $0x60] sm:$0xff]
    %v960 = vld [vmem:[%s244 + $0x68] sm:$0xff]
    %v961 = vld [vmem:[%s244 + $0x78] sm:$0xff]
    %v962 = vld [vmem:[%s244 + $0x80] sm:$0xff]
    %v963 = vld [vmem:[%s244 + $0x90] sm:$0xff]
    %v964 = vld [vmem:[%s244 + $0x98] sm:$0xff]
    %v965 = vld [vmem:[%s244 + $0xa8] sm:$0xff]
    %v966 = vld [vmem:[%s244 + $0xb0] sm:$0xff]
    %v967 = vld [vmem:[%s244 + $0xc0] sm:$0xff]
    %v968 = vld [vmem:[%s244 + $0xc8] sm:$0xff]
    %v969 = vld [vmem:[%s244 + $0xd8] sm:$0xff]
    %v970 = vld [vmem:[%s244 + $0xe0] sm:$0xff]
    %v971 = vld [vmem:[%s244 + $0xf0] sm:$0xff]
    %v972 = vld [vmem:[%s244 + $0xf8] sm:$0xff]
    %v973 = vld [vmem:[%s244 + $0x108] sm:$0xff]
    %v974 = vld [vmem:[%s244 + $0x110] sm:$0xff]
    %v975 = vld [vmem:[%s244 + $0x120] sm:$0xff]
    %v976 = vld [vmem:[%s244 + $0x128] sm:$0xff]
    %v977 = vld [vmem:[%s244 + $0x138] sm:$0xff]
    %v978 = vld [vmem:[%s244 + $0x140] sm:$0xff]
    %v979 = vld [vmem:[%s244 + $0x150] sm:$0xff]
    %v980 = vld [vmem:[%s244 + $0x158] sm:$0xff]
    %v981 = vld [vmem:[%s244 + $0x168] sm:$0xff]
    %v982 = vld [vmem:[%s244 + $0x170] sm:$0xff]
    %v983 = vld [vmem:[%s244 + $0x1b0] sm:$0xff]
    %v984 = vld [vmem:[%s244 + $0x1b8] sm:$0xff]
    %v985 = vld [vmem:[%s244 + $0x1c8] sm:$0xff]
    %v986 = vld [vmem:[%s244 + $0x1d0] sm:$0xff]
    %v987 = vld [vmem:[%s244 + $0x1e0] sm:$0xff]
    %v988 = vld [vmem:[%s244 + $0x1e8] sm:$0xff]
    %v989 = vld [vmem:[%s244 + $0x1f8] sm:$0xff]
    %v990 = vld [vmem:[%s244 + $0x200] sm:$0xff]
    %v991 = vld [vmem:[%s244 + $0x210] sm:$0xff]
    %v992 = vld [vmem:[%s244 + $0x218] sm:$0xff]
    %v993 = vld [vmem:[%s244 + $0x228] sm:$0xff]
    %v994 = vld [vmem:[%s244 + $0x230] sm:$0xff]
    %v995 = vld [vmem:[%s244 + $0x240] sm:$0xff]
    %v996 = vld [vmem:[%s244 + $0x248] sm:$0xff]
    %v997 = vld [vmem:[%s244 + $0x258] sm:$0xff]
    %v998 = vld [vmem:[%s244 + $0x260] sm:$0xff]
    %v999 = vld [vmem:[%s244 + $0x270] sm:$0xff]
    %v1000 = vld [vmem:[%s244 + $0x278] sm:$0xff]
    %v1001 = vld [vmem:[%s244 + $0x288] sm:$0xff]
    %v1002 = vld [vmem:[%s244 + $0x290] sm:$0xff]
    %v1003 = vld [vmem:[%s244 + $0x2a0] sm:$0xff]
    %v1004 = vld [vmem:[%s244 + $0x2a8] sm:$0xff]
    %v1005 = vld [vmem:[%s244 + $0x2b8] sm:$0xff]
    %v1006 = vld [vmem:[%s244 + $0x2c0] sm:$0xff]
    %v1007 = vld [vmem:[%s244 + $0x2d0] sm:$0xff]
    %v1008 = vld [vmem:[%s244 + $0x2d8] sm:$0xff]
    %v1009 = vld [vmem:[%s244 + $0x2e8] sm:$0xff]
    %v1010 = vld [vmem:[%s244 + $0x2f0] sm:$0xff]
    %v1011 = vld [vmem:[%s244 + $0x300] sm:$0xff]
    %v1012 = vld [vmem:[%s244 + $0x308] sm:$0xff]
    %v1013 = vld [vmem:[%s244 + $0x318] sm:$0xff]
    %v1014 = vld [vmem:[%s244 + $0x320] sm:$0xff]
    %v1015 = vpack.c.bf16 %v952, %v951
    %v1016 = vpack.c.bf16 %v954, %v953
    %v1017 = vpack.c.bf16 %v956, %v955
    %v1018 = vpack.c.bf16 %v958, %v957
    %v1019 = vpack.c.bf16 %v960, %v959
    %v1020 = vpack.c.bf16 %v962, %v961
    %v1021 = vpack.c.bf16 %v964, %v963
    %v1022 = vpack.c.bf16 %v966, %v965
    %v1023 = vpack.c.bf16 %v968, %v967
    %v1024 = vpack.c.bf16 %v970, %v969
    %v1025 = vpack.c.bf16 %v972, %v971
    %v1026 = vpack.c.bf16 %v974, %v973
    %v1027 = vpack.c.bf16 %v976, %v975
    %v1028 = vpack.c.bf16 %v978, %v977
    %v1029 = vpack.c.bf16 %v980, %v979
    %v1030 = vpack.c.bf16 %v982, %v981
    %v1031 = vpack.c.bf16 %v984, %v983
    %v1032 = vpack.c.bf16 %v986, %v985
    %v1033 = vpack.c.bf16 %v988, %v987
    %v1034 = vpack.c.bf16 %v990, %v989
    %v1035 = vpack.c.bf16 %v992, %v991
    %v1036 = vpack.c.bf16 %v994, %v993
    %v1037 = vpack.c.bf16 %v996, %v995
    %v1038 = vpack.c.bf16 %v998, %v997
    %v1039 = vpack.c.bf16 %v1000, %v999
    %v1040 = vpack.c.bf16 %v1002, %v1001
    %v1041 = vpack.c.bf16 %v1004, %v1003
    %v1042 = vpack.c.bf16 %v1006, %v1005
    %v1043 = vpack.c.bf16 %v1008, %v1007
    %v1044 = vpack.c.bf16 %v1010, %v1009
    %v1045 = vpack.c.bf16 %v1012, %v1011
    %v1046 = vpack.c.bf16 %v1014, %v1013
    %1079 = vrot.lane.b32.xlu0 %v1015, 24
    %v1080 = vpop.permute.xlu0 %1079
    %1081 = vrot.lane.b32.xlu0 %v1016, 24
    %v1082 = vpop.permute.xlu0 %1081
    %1083 = vrot.lane.b32.xlu0 %v1017, 24
    %v1084 = vpop.permute.xlu0 %1083
    %1085 = vrot.lane.b32.xlu0 %v1018, 24
    %v1086 = vpop.permute.xlu0 %1085
    %1087 = vrot.lane.b32.xlu0 %v1019, 24
    %v1088 = vpop.permute.xlu0 %1087
    %1089 = vrot.lane.b32.xlu0 %v1020, 24
    %v1090 = vpop.permute.xlu0 %1089
    %1091 = vrot.lane.b32.xlu0 %v1021, 24
    %v1092 = vpop.permute.xlu0 %1091
    %1093 = vrot.lane.b32.xlu0 %v1022, 24
    %v1094 = vpop.permute.xlu0 %1093
    %1095 = vrot.lane.b32.xlu0 %v1023, 24
    %v1096 = vpop.permute.xlu0 %1095
    %1097 = vrot.lane.b32.xlu0 %v1024, 24
    %v1098 = vpop.permute.xlu0 %1097
    %1099 = vrot.lane.b32.xlu0 %v1025, 24
    %v1100 = vpop.permute.xlu0 %1099
    %1101 = vrot.lane.b32.xlu0 %v1026, 24
    %v1102 = vpop.permute.xlu0 %1101
    %1103 = vrot.lane.b32.xlu0 %v1027, 24
    %v1104 = vpop.permute.xlu0 %1103
    %1105 = vrot.lane.b32.xlu0 %v1028, 24
    %v1106 = vpop.permute.xlu0 %1105
    %1107 = vrot.lane.b32.xlu0 %v1029, 24
    %v1108 = vpop.permute.xlu0 %1107
    %1109 = vrot.lane.b32.xlu0 %v1030, 24
    %v1110 = vpop.permute.xlu0 %1109
    %1111 = vrot.lane.b32.xlu0 %v1031, 24
    %v1112 = vpop.permute.xlu0 %1111
    %1113 = vrot.lane.b32.xlu0 %v1032, 24
    %v1114 = vpop.permute.xlu0 %1113
    %1115 = vrot.lane.b32.xlu0 %v1033, 24
    %v1116 = vpop.permute.xlu0 %1115
    %1117 = vrot.lane.b32.xlu0 %v1034, 24
    %v1118 = vpop.permute.xlu0 %1117
    %1119 = vrot.lane.b32.xlu0 %v1035, 24
    %v1120 = vpop.permute.xlu0 %1119
    %1121 = vrot.lane.b32.xlu0 %v1036, 24
    %v1122 = vpop.permute.xlu0 %1121
    %1123 = vrot.lane.b32.xlu0 %v1037, 24
    %v1124 = vpop.permute.xlu0 %1123
    %1125 = vrot.lane.b32.xlu0 %v1038, 24
    %v1126 = vpop.permute.xlu0 %1125
    %1127 = vrot.lane.b32.xlu0 %v1039, 24
    %v1128 = vpop.permute.xlu0 %1127
    %1129 = vrot.lane.b32.xlu0 %v1040, 24
    %v1130 = vpop.permute.xlu0 %1129
    %1131 = vrot.lane.b32.xlu0 %v1041, 24
    %v1132 = vpop.permute.xlu0 %1131
    %1133 = vrot.lane.b32.xlu0 %v1042, 24
    %v1134 = vpop.permute.xlu0 %1133
    %1135 = vrot.lane.b32.xlu0 %v1043, 24
    %v1136 = vpop.permute.xlu0 %1135
    %1137 = vrot.lane.b32.xlu0 %v1044, 24
    %v1138 = vpop.permute.xlu0 %1137
    %1139 = vrot.lane.b32.xlu0 %v1045, 24
    %v1140 = vpop.permute.xlu0 %1139
    %1141 = vrot.lane.b32.xlu0 %v1046, 24
    %v1142 = vpop.permute.xlu0 %1141
    %vm1175 = vcmask 261312
    %1176 = vst.msk [vmem:[#allocation3] sm:$0xff] %vm1175, %v1080
    %1177 = vst.msk [vmem:[#allocation3 + $0x8] sm:$0xff] %vm1175, %v1082
    %1178 = vst.msk [vmem:[#allocation3 + $0x10] sm:$0xff] %vm1175, %v1084
    %1179 = vst.msk [vmem:[#allocation3 + $0x18] sm:$0xff] %vm1175, %v1086
    %1180 = vst.msk [vmem:[#allocation3 + $0x20] sm:$0xff] %vm1175, %v1088
    %1181 = vst.msk [vmem:[#allocation3 + $0x28] sm:$0xff] %vm1175, %v1090
    %1182 = vst.msk [vmem:[#allocation3 + $0x30] sm:$0xff] %vm1175, %v1092
    %1183 = vst.msk [vmem:[#allocation3 + $0x38] sm:$0xff] %vm1175, %v1094
    %1184 = vst.msk [vmem:[#allocation3 + $0x40] sm:$0xff] %vm1175, %v1096
    %1185 = vst.msk [vmem:[#allocation3 + $0x48] sm:$0xff] %vm1175, %v1098
    %1186 = vst.msk [vmem:[#allocation3 + $0x50] sm:$0xff] %vm1175, %v1100
    %1187 = vst.msk [vmem:[#allocation3 + $0x58] sm:$0xff] %vm1175, %v1102
    %1188 = vst.msk [vmem:[#allocation3 + $0x60] sm:$0xff] %vm1175, %v1104
    %1189 = vst.msk [vmem:[#allocation3 + $0x68] sm:$0xff] %vm1175, %v1106
    %1190 = vst.msk [vmem:[#allocation3 + $0x70] sm:$0xff] %vm1175, %v1108
    %1191 = vst.msk [vmem:[#allocation3 + $0x78] sm:$0xff] %vm1175, %v1110
    %1192 = vst.msk [vmem:[#allocation3 + $0x80] sm:$0xff] %vm1175, %v1112
    %1193 = vst.msk [vmem:[#allocation3 + $0x88] sm:$0xff] %vm1175, %v1114
    %1194 = vst.msk [vmem:[#allocation3 + $0x90] sm:$0xff] %vm1175, %v1116
    %1195 = vst.msk [vmem:[#allocation3 + $0x98] sm:$0xff] %vm1175, %v1118
    %1196 = vst.msk [vmem:[#allocation3 + $0xa0] sm:$0xff] %vm1175, %v1120
    %1197 = vst.msk [vmem:[#allocation3 + $0xa8] sm:$0xff] %vm1175, %v1122
    %1198 = vst.msk [vmem:[#allocation3 + $0xb0] sm:$0xff] %vm1175, %v1124
    %1199 = vst.msk [vmem:[#allocation3 + $0xb8] sm:$0xff] %vm1175, %v1126
    %1200 = vst.msk [vmem:[#allocation3 + $0xc0] sm:$0xff] %vm1175, %v1128
    %1201 = vst.msk [vmem:[#allocation3 + $0xc8] sm:$0xff] %vm1175, %v1130
    %1202 = vst.msk [vmem:[#allocation3 + $0xd0] sm:$0xff] %vm1175, %v1132
    %1203 = vst.msk [vmem:[#allocation3 + $0xd8] sm:$0xff] %vm1175, %v1134
    %1204 = vst.msk [vmem:[#allocation3 + $0xe0] sm:$0xff] %vm1175, %v1136
    %1205 = vst.msk [vmem:[#allocation3 + $0xe8] sm:$0xff] %vm1175, %v1138
    %1206 = vst.msk [vmem:[#allocation3 + $0xf0] sm:$0xff] %vm1175, %v1140
    %1207 = vst.msk [vmem:[#allocation3 + $0xf8] sm:$0xff] %vm1175, %v1142
    %v1208 = vld [vmem:[%s244 + $0x1] sm:$0xff]
    %v1209 = vld [vmem:[%s244 + $0x9] sm:$0xff]
    %v1210 = vld [vmem:[%s244 + $0x19] sm:$0xff]
    %v1211 = vld [vmem:[%s244 + $0x21] sm:$0xff]
    %v1212 = vld [vmem:[%s244 + $0x31] sm:$0xff]
    %v1213 = vld [vmem:[%s244 + $0x39] sm:$0xff]
    %v1214 = vld [vmem:[%s244 + $0x49] sm:$0xff]
    %v1215 = vld [vmem:[%s244 + $0x51] sm:$0xff]
    %v1216 = vld [vmem:[%s244 + $0x61] sm:$0xff]
    %v1217 = vld [vmem:[%s244 + $0x69] sm:$0xff]
    %v1218 = vld [vmem:[%s244 + $0x79] sm:$0xff]
    %v1219 = vld [vmem:[%s244 + $0x81] sm:$0xff]
    %v1220 = vld [vmem:[%s244 + $0x91] sm:$0xff]
    %v1221 = vld [vmem:[%s244 + $0x99] sm:$0xff]
    %v1222 = vld [vmem:[%s244 + $0xa9] sm:$0xff]
    %v1223 = vld [vmem:[%s244 + $0xb1] sm:$0xff]
    %v1224 = vld [vmem:[%s244 + $0xc1] sm:$0xff]
    %v1225 = vld [vmem:[%s244 + $0xc9] sm:$0xff]
    %v1226 = vld [vmem:[%s244 + $0xd9] sm:$0xff]
    %v1227 = vld [vmem:[%s244 + $0xe1] sm:$0xff]
    %v1228 = vld [vmem:[%s244 + $0xf1] sm:$0xff]
    %v1229 = vld [vmem:[%s244 + $0xf9] sm:$0xff]
    %v1230 = vld [vmem:[%s244 + $0x109] sm:$0xff]
    %v1231 = vld [vmem:[%s244 + $0x111] sm:$0xff]
    %v1232 = vld [vmem:[%s244 + $0x121] sm:$0xff]
    %v1233 = vld [vmem:[%s244 + $0x129] sm:$0xff]
    %v1234 = vld [vmem:[%s244 + $0x139] sm:$0xff]
    %v1235 = vld [vmem:[%s244 + $0x141] sm:$0xff]
    %v1236 = vld [vmem:[%s244 + $0x151] sm:$0xff]
    %v1237 = vld [vmem:[%s244 + $0x159] sm:$0xff]
    %v1238 = vld [vmem:[%s244 + $0x169] sm:$0xff]
    %v1239 = vld [vmem:[%s244 + $0x171] sm:$0xff]
    %v1240 = vld [vmem:[%s244 + $0x1b1] sm:$0xff]
    %v1241 = vld [vmem:[%s244 + $0x1b9] sm:$0xff]
    %v1242 = vld [vmem:[%s244 + $0x1c9] sm:$0xff]
    %v1243 = vld [vmem:[%s244 + $0x1d1] sm:$0xff]
    %v1244 = vld [vmem:[%s244 + $0x1e1] sm:$0xff]
    %v1245 = vld [vmem:[%s244 + $0x1e9] sm:$0xff]
    %v1246 = vld [vmem:[%s244 + $0x1f9] sm:$0xff]
    %v1247 = vld [vmem:[%s244 + $0x201] sm:$0xff]
    %v1248 = vld [vmem:[%s244 + $0x211] sm:$0xff]
    %v1249 = vld [vmem:[%s244 + $0x219] sm:$0xff]
    %v1250 = vld [vmem:[%s244 + $0x229] sm:$0xff]
    %v1251 = vld [vmem:[%s244 + $0x231] sm:$0xff]
    %v1252 = vld [vmem:[%s244 + $0x241] sm:$0xff]
    %v1253 = vld [vmem:[%s244 + $0x249] sm:$0xff]
    %v1254 = vld [vmem:[%s244 + $0x259] sm:$0xff]
    %v1255 = vld [vmem:[%s244 + $0x261] sm:$0xff]
    %v1256 = vld [vmem:[%s244 + $0x271] sm:$0xff]
    %v1257 = vld [vmem:[%s244 + $0x279] sm:$0xff]
    %v1258 = vld [vmem:[%s244 + $0x289] sm:$0xff]
    %v1259 = vld [vmem:[%s244 + $0x291] sm:$0xff]
    %v1260 = vld [vmem:[%s244 + $0x2a1] sm:$0xff]
    %v1261 = vld [vmem:[%s244 + $0x2a9] sm:$0xff]
    %v1262 = vld [vmem:[%s244 + $0x2b9] sm:$0xff]
    %v1263 = vld [vmem:[%s244 + $0x2c1] sm:$0xff]
    %v1264 = vld [vmem:[%s244 + $0x2d1] sm:$0xff]
    %v1265 = vld [vmem:[%s244 + $0x2d9] sm:$0xff]
    %v1266 = vld [vmem:[%s244 + $0x2e9] sm:$0xff]
    %v1267 = vld [vmem:[%s244 + $0x2f1] sm:$0xff]
    %v1268 = vld [vmem:[%s244 + $0x301] sm:$0xff]
    %v1269 = vld [vmem:[%s244 + $0x309] sm:$0xff]
    %v1270 = vld [vmem:[%s244 + $0x319] sm:$0xff]
    %v1271 = vld [vmem:[%s244 + $0x321] sm:$0xff]
    %v1272 = vpack.c.bf16 %v1209, %v1208
    %v1273 = vpack.c.bf16 %v1211, %v1210
    %v1274 = vpack.c.bf16 %v1213, %v1212
    %v1275 = vpack.c.bf16 %v1215, %v1214
    %v1276 = vpack.c.bf16 %v1217, %v1216
    %v1277 = vpack.c.bf16 %v1219, %v1218
    %v1278 = vpack.c.bf16 %v1221, %v1220
    %v1279 = vpack.c.bf16 %v1223, %v1222
    %v1280 = vpack.c.bf16 %v1225, %v1224
    %v1281 = vpack.c.bf16 %v1227, %v1226
    %v1282 = vpack.c.bf16 %v1229, %v1228
    %v1283 = vpack.c.bf16 %v1231, %v1230
    %v1284 = vpack.c.bf16 %v1233, %v1232
    %v1285 = vpack.c.bf16 %v1235, %v1234
    %v1286 = vpack.c.bf16 %v1237, %v1236
    %v1287 = vpack.c.bf16 %v1239, %v1238
    %v1288 = vpack.c.bf16 %v1241, %v1240
    %v1289 = vpack.c.bf16 %v1243, %v1242
    %v1290 = vpack.c.bf16 %v1245, %v1244
    %v1291 = vpack.c.bf16 %v1247, %v1246
    %v1292 = vpack.c.bf16 %v1249, %v1248
    %v1293 = vpack.c.bf16 %v1251, %v1250
    %v1294 = vpack.c.bf16 %v1253, %v1252
    %v1295 = vpack.c.bf16 %v1255, %v1254
    %v1296 = vpack.c.bf16 %v1257, %v1256
    %v1297 = vpack.c.bf16 %v1259, %v1258
    %v1298 = vpack.c.bf16 %v1261, %v1260
    %v1299 = vpack.c.bf16 %v1263, %v1262
    %v1300 = vpack.c.bf16 %v1265, %v1264
    %v1301 = vpack.c.bf16 %v1267, %v1266
    %v1302 = vpack.c.bf16 %v1269, %v1268
    %v1303 = vpack.c.bf16 %v1271, %v1270
    %1336 = vrot.lane.b32.xlu0 %v1272, 32
    %v1337 = vpop.permute.xlu0 %1336
    %1338 = vrot.lane.b32.xlu0 %v1273, 32
    %v1339 = vpop.permute.xlu0 %1338
    %1340 = vrot.lane.b32.xlu0 %v1274, 32
    %v1341 = vpop.permute.xlu0 %1340
    %1342 = vrot.lane.b32.xlu0 %v1275, 32
    %v1343 = vpop.permute.xlu0 %1342
    %1344 = vrot.lane.b32.xlu0 %v1276, 32
    %v1345 = vpop.permute.xlu0 %1344
    %1346 = vrot.lane.b32.xlu0 %v1277, 32
    %v1347 = vpop.permute.xlu0 %1346
    %1348 = vrot.lane.b32.xlu0 %v1278, 32
    %v1349 = vpop.permute.xlu0 %1348
    %1350 = vrot.lane.b32.xlu0 %v1279, 32
    %v1351 = vpop.permute.xlu0 %1350
    %1352 = vrot.lane.b32.xlu0 %v1280, 32
    %v1353 = vpop.permute.xlu0 %1352
    %1354 = vrot.lane.b32.xlu0 %v1281, 32
    %v1355 = vpop.permute.xlu0 %1354
    %1356 = vrot.lane.b32.xlu0 %v1282, 32
    %v1357 = vpop.permute.xlu0 %1356
    %1358 = vrot.lane.b32.xlu0 %v1283, 32
    %v1359 = vpop.permute.xlu0 %1358
    %1360 = vrot.lane.b32.xlu0 %v1284, 32
    %v1361 = vpop.permute.xlu0 %1360
    %1362 = vrot.lane.b32.xlu0 %v1285, 32
    %v1363 = vpop.permute.xlu0 %1362
    %1364 = vrot.lane.b32.xlu0 %v1286, 32
    %v1365 = vpop.permute.xlu0 %1364
    %1366 = vrot.lane.b32.xlu0 %v1287, 32
    %v1367 = vpop.permute.xlu0 %1366
    %1368 = vrot.lane.b32.xlu0 %v1288, 32
    %v1369 = vpop.permute.xlu0 %1368
    %1370 = vrot.lane.b32.xlu0 %v1289, 32
    %v1371 = vpop.permute.xlu0 %1370
    %1372 = vrot.lane.b32.xlu0 %v1290, 32
    %v1373 = vpop.permute.xlu0 %1372
    %1374 = vrot.lane.b32.xlu0 %v1291, 32
    %v1375 = vpop.permute.xlu0 %1374
    %1376 = vrot.lane.b32.xlu0 %v1292, 32
    %v1377 = vpop.permute.xlu0 %1376
    %1378 = vrot.lane.b32.xlu0 %v1293, 32
    %v1379 = vpop.permute.xlu0 %1378
    %1380 = vrot.lane.b32.xlu0 %v1294, 32
    %v1381 = vpop.permute.xlu0 %1380
    %1382 = vrot.lane.b32.xlu0 %v1295, 32
    %v1383 = vpop.permute.xlu0 %1382
    %1384 = vrot.lane.b32.xlu0 %v1296, 32
    %v1385 = vpop.permute.xlu0 %1384
    %1386 = vrot.lane.b32.xlu0 %v1297, 32
    %v1387 = vpop.permute.xlu0 %1386
    %1388 = vrot.lane.b32.xlu0 %v1298, 32
    %v1389 = vpop.permute.xlu0 %1388
    %1390 = vrot.lane.b32.xlu0 %v1299, 32
    %v1391 = vpop.permute.xlu0 %1390
    %1392 = vrot.lane.b32.xlu0 %v1300, 32
    %v1393 = vpop.permute.xlu0 %1392
    %1394 = vrot.lane.b32.xlu0 %v1301, 32
    %v1395 = vpop.permute.xlu0 %1394
    %1396 = vrot.lane.b32.xlu0 %v1302, 32
    %v1397 = vpop.permute.xlu0 %1396
    %1398 = vrot.lane.b32.xlu0 %v1303, 32
    %v1399 = vpop.permute.xlu0 %1398
    %vm1432 = vcmask 326912
    %1433 = vst.msk [vmem:[#allocation3] sm:$0xff] %vm1432, %v1337
    %1434 = vst.msk [vmem:[#allocation3 + $0x8] sm:$0xff] %vm1432, %v1339
    %1435 = vst.msk [vmem:[#allocation3 + $0x10] sm:$0xff] %vm1432, %v1341
    %1436 = vst.msk [vmem:[#allocation3 + $0x18] sm:$0xff] %vm1432, %v1343
    %1437 = vst.msk [vmem:[#allocation3 + $0x20] sm:$0xff] %vm1432, %v1345
    %1438 = vst.msk [vmem:[#allocation3 + $0x28] sm:$0xff] %vm1432, %v1347
    %1439 = vst.msk [vmem:[#allocation3 + $0x30] sm:$0xff] %vm1432, %v1349
    %1440 = vst.msk [vmem:[#allocation3 + $0x38] sm:$0xff] %vm1432, %v1351
    %1441 = vst.msk [vmem:[#allocation3 + $0x40] sm:$0xff] %vm1432, %v1353
    %1442 = vst.msk [vmem:[#allocation3 + $0x48] sm:$0xff] %vm1432, %v1355
    %1443 = vst.msk [vmem:[#allocation3 + $0x50] sm:$0xff] %vm1432, %v1357
    %1444 = vst.msk [vmem:[#allocation3 + $0x58] sm:$0xff] %vm1432, %v1359
    %1445 = vst.msk [vmem:[#allocation3 + $0x60] sm:$0xff] %vm1432, %v1361
    %1446 = vst.msk [vmem:[#allocation3 + $0x68] sm:$0xff] %vm1432, %v1363
    %1447 = vst.msk [vmem:[#allocation3 + $0x70] sm:$0xff] %vm1432, %v1365
    %1448 = vst.msk [vmem:[#allocation3 + $0x78] sm:$0xff] %vm1432, %v1367
    %1449 = vst.msk [vmem:[#allocation3 + $0x80] sm:$0xff] %vm1432, %v1369
    %1450 = vst.msk [vmem:[#allocation3 + $0x88] sm:$0xff] %vm1432, %v1371
    %1451 = vst.msk [vmem:[#allocation3 + $0x90] sm:$0xff] %vm1432, %v1373
    %1452 = vst.msk [vmem:[#allocation3 + $0x98] sm:$0xff] %vm1432, %v1375
    %1453 = vst.msk [vmem:[#allocation3 + $0xa0] sm:$0xff] %vm1432, %v1377
    %1454 = vst.msk [vmem:[#allocation3 + $0xa8] sm:$0xff] %vm1432, %v1379
    %1455 = vst.msk [vmem:[#allocation3 + $0xb0] sm:$0xff] %vm1432, %v1381
    %1456 = vst.msk [vmem:[#allocation3 + $0xb8] sm:$0xff] %vm1432, %v1383
    %1457 = vst.msk [vmem:[#allocation3 + $0xc0] sm:$0xff] %vm1432, %v1385
    %1458 = vst.msk [vmem:[#allocation3 + $0xc8] sm:$0xff] %vm1432, %v1387
    %1459 = vst.msk [vmem:[#allocation3 + $0xd0] sm:$0xff] %vm1432, %v1389
    %1460 = vst.msk [vmem:[#allocation3 + $0xd8] sm:$0xff] %vm1432, %v1391
    %1461 = vst.msk [vmem:[#allocation3 + $0xe0] sm:$0xff] %vm1432, %v1393
    %1462 = vst.msk [vmem:[#allocation3 + $0xe8] sm:$0xff] %vm1432, %v1395
    %1463 = vst.msk [vmem:[#allocation3 + $0xf0] sm:$0xff] %vm1432, %v1397
    %1464 = vst.msk [vmem:[#allocation3 + $0xf8] sm:$0xff] %vm1432, %v1399
    %v1465 = vld [vmem:[%s244 + $0x2] sm:$0xff]
    %v1466 = vld [vmem:[%s244 + $0xa] sm:$0xff]
    %v1467 = vld [vmem:[%s244 + $0x1a] sm:$0xff]
    %v1468 = vld [vmem:[%s244 + $0x22] sm:$0xff]
    %v1469 = vld [vmem:[%s244 + $0x32] sm:$0xff]
    %v1470 = vld [vmem:[%s244 + $0x3a] sm:$0xff]
    %v1471 = vld [vmem:[%s244 + $0x4a] sm:$0xff]
    %v1472 = vld [vmem:[%s244 + $0x52] sm:$0xff]
    %v1473 = vld [vmem:[%s244 + $0x62] sm:$0xff]
    %v1474 = vld [vmem:[%s244 + $0x6a] sm:$0xff]
    %v1475 = vld [vmem:[%s244 + $0x7a] sm:$0xff]
    %v1476 = vld [vmem:[%s244 + $0x82] sm:$0xff]
    %v1477 = vld [vmem:[%s244 + $0x92] sm:$0xff]
    %v1478 = vld [vmem:[%s244 + $0x9a] sm:$0xff]
    %v1479 = vld [vmem:[%s244 + $0xaa] sm:$0xff]
    %v1480 = vld [vmem:[%s244 + $0xb2] sm:$0xff]
    %v1481 = vld [vmem:[%s244 + $0xc2] sm:$0xff]
    %v1482 = vld [vmem:[%s244 + $0xca] sm:$0xff]
    %v1483 = vld [vmem:[%s244 + $0xda] sm:$0xff]
    %v1484 = vld [vmem:[%s244 + $0xe2] sm:$0xff]
    %v1485 = vld [vmem:[%s244 + $0xf2] sm:$0xff]
    %v1486 = vld [vmem:[%s244 + $0xfa] sm:$0xff]
    %v1487 = vld [vmem:[%s244 + $0x10a] sm:$0xff]
    %v1488 = vld [vmem:[%s244 + $0x112] sm:$0xff]
    %v1489 = vld [vmem:[%s244 + $0x122] sm:$0xff]
    %v1490 = vld [vmem:[%s244 + $0x12a] sm:$0xff]
    %v1491 = vld [vmem:[%s244 + $0x13a] sm:$0xff]
    %v1492 = vld [vmem:[%s244 + $0x142] sm:$0xff]
    %v1493 = vld [vmem:[%s244 + $0x152] sm:$0xff]
    %v1494 = vld [vmem:[%s244 + $0x15a] sm:$0xff]
    %v1495 = vld [vmem:[%s244 + $0x16a] sm:$0xff]
    %v1496 = vld [vmem:[%s244 + $0x172] sm:$0xff]
    %v1497 = vld [vmem:[%s244 + $0x1b2] sm:$0xff]
    %v1498 = vld [vmem:[%s244 + $0x1ba] sm:$0xff]
    %v1499 = vld [vmem:[%s244 + $0x1ca] sm:$0xff]
    %v1500 = vld [vmem:[%s244 + $0x1d2] sm:$0xff]
    %v1501 = vld [vmem:[%s244 + $0x1e2] sm:$0xff]
    %v1502 = vld [vmem:[%s244 + $0x1ea] sm:$0xff]
    %v1503 = vld [vmem:[%s244 + $0x1fa] sm:$0xff]
    %v1504 = vld [vmem:[%s244 + $0x202] sm:$0xff]
    %v1505 = vld [vmem:[%s244 + $0x212] sm:$0xff]
    %v1506 = vld [vmem:[%s244 + $0x21a] sm:$0xff]
    %v1507 = vld [vmem:[%s244 + $0x22a] sm:$0xff]
    %v1508 = vld [vmem:[%s244 + $0x232] sm:$0xff]
    %v1509 = vld [vmem:[%s244 + $0x242] sm:$0xff]
    %v1510 = vld [vmem:[%s244 + $0x24a] sm:$0xff]
    %v1511 = vld [vmem:[%s244 + $0x25a] sm:$0xff]
    %v1512 = vld [vmem:[%s244 + $0x262] sm:$0xff]
    %v1513 = vld [vmem:[%s244 + $0x272] sm:$0xff]
    %v1514 = vld [vmem:[%s244 + $0x27a] sm:$0xff]
    %v1515 = vld [vmem:[%s244 + $0x28a] sm:$0xff]
    %v1516 = vld [vmem:[%s244 + $0x292] sm:$0xff]
    %v1517 = vld [vmem:[%s244 + $0x2a2] sm:$0xff]
    %v1518 = vld [vmem:[%s244 + $0x2aa] sm:$0xff]
    %v1519 = vld [vmem:[%s244 + $0x2ba] sm:$0xff]
    %v1520 = vld [vmem:[%s244 + $0x2c2] sm:$0xff]
    %v1521 = vld [vmem:[%s244 + $0x2d2] sm:$0xff]
    %v1522 = vld [vmem:[%s244 + $0x2da] sm:$0xff]
    %v1523 = vld [vmem:[%s244 + $0x2ea] sm:$0xff]
    %v1524 = vld [vmem:[%s244 + $0x2f2] sm:$0xff]
    %v1525 = vld [vmem:[%s244 + $0x302] sm:$0xff]
    %v1526 = vld [vmem:[%s244 + $0x30a] sm:$0xff]
    %v1527 = vld [vmem:[%s244 + $0x31a] sm:$0xff]
    %v1528 = vld [vmem:[%s244 + $0x322] sm:$0xff]
    %v1529 = vpack.c.bf16 %v1466, %v1465
    %v1530 = vpack.c.bf16 %v1468, %v1467
    %v1531 = vpack.c.bf16 %v1470, %v1469
    %v1532 = vpack.c.bf16 %v1472, %v1471
    %v1533 = vpack.c.bf16 %v1474, %v1473
    %v1534 = vpack.c.bf16 %v1476, %v1475
    %v1535 = vpack.c.bf16 %v1478, %v1477
    %v1536 = vpack.c.bf16 %v1480, %v1479
    %v1537 = vpack.c.bf16 %v1482, %v1481
    %v1538 = vpack.c.bf16 %v1484, %v1483
    %v1539 = vpack.c.bf16 %v1486, %v1485
    %v1540 = vpack.c.bf16 %v1488, %v1487
    %v1541 = vpack.c.bf16 %v1490, %v1489
    %v1542 = vpack.c.bf16 %v1492, %v1491
    %v1543 = vpack.c.bf16 %v1494, %v1493
    %v1544 = vpack.c.bf16 %v1496, %v1495
    %v1545 = vpack.c.bf16 %v1498, %v1497
    %v1546 = vpack.c.bf16 %v1500, %v1499
    %v1547 = vpack.c.bf16 %v1502, %v1501
    %v1548 = vpack.c.bf16 %v1504, %v1503
    %v1549 = vpack.c.bf16 %v1506, %v1505
    %v1550 = vpack.c.bf16 %v1508, %v1507
    %v1551 = vpack.c.bf16 %v1510, %v1509
    %v1552 = vpack.c.bf16 %v1512, %v1511
    %v1553 = vpack.c.bf16 %v1514, %v1513
    %v1554 = vpack.c.bf16 %v1516, %v1515
    %v1555 = vpack.c.bf16 %v1518, %v1517
    %v1556 = vpack.c.bf16 %v1520, %v1519
    %v1557 = vpack.c.bf16 %v1522, %v1521
    %v1558 = vpack.c.bf16 %v1524, %v1523
    %v1559 = vpack.c.bf16 %v1526, %v1525
    %v1560 = vpack.c.bf16 %v1528, %v1527
    %1593 = vrot.lane.b32.xlu0 %v1529, 40
    %v1594 = vpop.permute.xlu0 %1593
    %1595 = vrot.lane.b32.xlu0 %v1530, 40
    %v1596 = vpop.permute.xlu0 %1595
    %1597 = vrot.lane.b32.xlu0 %v1531, 40
    %v1598 = vpop.permute.xlu0 %1597
    %1599 = vrot.lane.b32.xlu0 %v1532, 40
    %v1600 = vpop.permute.xlu0 %1599
    %1601 = vrot.lane.b32.xlu0 %v1533, 40
    %v1602 = vpop.permute.xlu0 %1601
    %1603 = vrot.lane.b32.xlu0 %v1534, 40
    %v1604 = vpop.permute.xlu0 %1603
    %1605 = vrot.lane.b32.xlu0 %v1535, 40
    %v1606 = vpop.permute.xlu0 %1605
    %1607 = vrot.lane.b32.xlu0 %v1536, 40
    %v1608 = vpop.permute.xlu0 %1607
    %1609 = vrot.lane.b32.xlu0 %v1537, 40
    %v1610 = vpop.permute.xlu0 %1609
    %1611 = vrot.lane.b32.xlu0 %v1538, 40
    %v1612 = vpop.permute.xlu0 %1611
    %1613 = vrot.lane.b32.xlu0 %v1539, 40
    %v1614 = vpop.permute.xlu0 %1613
    %1615 = vrot.lane.b32.xlu0 %v1540, 40
    %v1616 = vpop.permute.xlu0 %1615
    %1617 = vrot.lane.b32.xlu0 %v1541, 40
    %v1618 = vpop.permute.xlu0 %1617
    %1619 = vrot.lane.b32.xlu0 %v1542, 40
    %v1620 = vpop.permute.xlu0 %1619
    %1621 = vrot.lane.b32.xlu0 %v1543, 40
    %v1622 = vpop.permute.xlu0 %1621
    %1623 = vrot.lane.b32.xlu0 %v1544, 40
    %v1624 = vpop.permute.xlu0 %1623
    %1625 = vrot.lane.b32.xlu0 %v1545, 40
    %v1626 = vpop.permute.xlu0 %1625
    %1627 = vrot.lane.b32.xlu0 %v1546, 40
    %v1628 = vpop.permute.xlu0 %1627
    %1629 = vrot.lane.b32.xlu0 %v1547, 40
    %v1630 = vpop.permute.xlu0 %1629
    %1631 = vrot.lane.b32.xlu0 %v1548, 40
    %v1632 = vpop.permute.xlu0 %1631
    %1633 = vrot.lane.b32.xlu0 %v1549, 40
    %v1634 = vpop.permute.xlu0 %1633
    %1635 = vrot.lane.b32.xlu0 %v1550, 40
    %v1636 = vpop.permute.xlu0 %1635
    %1637 = vrot.lane.b32.xlu0 %v1551, 40
    %v1638 = vpop.permute.xlu0 %1637
    %1639 = vrot.lane.b32.xlu0 %v1552, 40
    %v1640 = vpop.permute.xlu0 %1639
    %1641 = vrot.lane.b32.xlu0 %v1553, 40
    %v1642 = vpop.permute.xlu0 %1641
    %1643 = vrot.lane.b32.xlu0 %v1554, 40
    %v1644 = vpop.permute.xlu0 %1643
    %1645 = vrot.lane.b32.xlu0 %v1555, 40
    %v1646 = vpop.permute.xlu0 %1645
    %1647 = vrot.lane.b32.xlu0 %v1556, 40
    %v1648 = vpop.permute.xlu0 %1647
    %1649 = vrot.lane.b32.xlu0 %v1557, 40
    %v1650 = vpop.permute.xlu0 %1649
    %1651 = vrot.lane.b32.xlu0 %v1558, 40
    %v1652 = vpop.permute.xlu0 %1651
    %1653 = vrot.lane.b32.xlu0 %v1559, 40
    %v1654 = vpop.permute.xlu0 %1653
    %1655 = vrot.lane.b32.xlu0 %v1560, 40
    %v1656 = vpop.permute.xlu0 %1655
    %vm1689 = vcmask 392512
    %1690 = vst.msk [vmem:[#allocation3] sm:$0xff] %vm1689, %v1594
    %1691 = vst.msk [vmem:[#allocation3 + $0x8] sm:$0xff] %vm1689, %v1596
    %1692 = vst.msk [vmem:[#allocation3 + $0x10] sm:$0xff] %vm1689, %v1598
    %1693 = vst.msk [vmem:[#allocation3 + $0x18] sm:$0xff] %vm1689, %v1600
    %1694 = vst.msk [vmem:[#allocation3 + $0x20] sm:$0xff] %vm1689, %v1602
    %1695 = vst.msk [vmem:[#allocation3 + $0x28] sm:$0xff] %vm1689, %v1604
    %1696 = vst.msk [vmem:[#allocation3 + $0x30] sm:$0xff] %vm1689, %v1606
    %1697 = vst.msk [vmem:[#allocation3 + $0x38] sm:$0xff] %vm1689, %v1608
    %1698 = vst.msk [vmem:[#allocation3 + $0x40] sm:$0xff] %vm1689, %v1610
    %1699 = vst.msk [vmem:[#allocation3 + $0x48] sm:$0xff] %vm1689, %v1612
    %1700 = vst.msk [vmem:[#allocation3 + $0x50] sm:$0xff] %vm1689, %v1614
    %1701 = vst.msk [vmem:[#allocation3 + $0x58] sm:$0xff] %vm1689, %v1616
    %1702 = vst.msk [vmem:[#allocation3 + $0x60] sm:$0xff] %vm1689, %v1618
    %1703 = vst.msk [vmem:[#allocation3 + $0x68] sm:$0xff] %vm1689, %v1620
    %1704 = vst.msk [vmem:[#allocation3 + $0x70] sm:$0xff] %vm1689, %v1622
    %1705 = vst.msk [vmem:[#allocation3 + $0x78] sm:$0xff] %vm1689, %v1624
    %1706 = vst.msk [vmem:[#allocation3 + $0x80] sm:$0xff] %vm1689, %v1626
    %1707 = vst.msk [vmem:[#allocation3 + $0x88] sm:$0xff] %vm1689, %v1628
    %1708 = vst.msk [vmem:[#allocation3 + $0x90] sm:$0xff] %vm1689, %v1630
    %1709 = vst.msk [vmem:[#allocation3 + $0x98] sm:$0xff] %vm1689, %v1632
    %1710 = vst.msk [vmem:[#allocation3 + $0xa0] sm:$0xff] %vm1689, %v1634
    %1711 = vst.msk [vmem:[#allocation3 + $0xa8] sm:$0xff] %vm1689, %v1636
    %1712 = vst.msk [vmem:[#allocation3 + $0xb0] sm:$0xff] %vm1689, %v1638
    %1713 = vst.msk [vmem:[#allocation3 + $0xb8] sm:$0xff] %vm1689, %v1640
    %1714 = vst.msk [vmem:[#allocation3 + $0xc0] sm:$0xff] %vm1689, %v1642
    %1715 = vst.msk [vmem:[#allocation3 + $0xc8] sm:$0xff] %vm1689, %v1644
    %1716 = vst.msk [vmem:[#allocation3 + $0xd0] sm:$0xff] %vm1689, %v1646
    %1717 = vst.msk [vmem:[#allocation3 + $0xd8] sm:$0xff] %vm1689, %v1648
    %1718 = vst.msk [vmem:[#allocation3 + $0xe0] sm:$0xff] %vm1689, %v1650
    %1719 = vst.msk [vmem:[#allocation3 + $0xe8] sm:$0xff] %vm1689, %v1652
    %1720 = vst.msk [vmem:[#allocation3 + $0xf0] sm:$0xff] %vm1689, %v1654
    %1721 = vst.msk [vmem:[#allocation3 + $0xf8] sm:$0xff] %vm1689, %v1656
    %s1722 = scalar_lea.vmem [#allocation2], 48
    %v1723 = vld [vmem:[%s1722] sm:$0xff]
    %v1724 = vld [vmem:[%s1722 + $0x8] sm:$0xff]
    %v1725 = vld [vmem:[%s1722 + $0x18] sm:$0xff]
    %v1726 = vld [vmem:[%s1722 + $0x20] sm:$0xff]
    %v1727 = vld [vmem:[%s1722 + $0x30] sm:$0xff]
    %v1728 = vld [vmem:[%s1722 + $0x38] sm:$0xff]
    %v1729 = vld [vmem:[%s1722 + $0x48] sm:$0xff]
    %v1730 = vld [vmem:[%s1722 + $0x50] sm:$0xff]
    %v1731 = vld [vmem:[%s1722 + $0x60] sm:$0xff]
    %v1732 = vld [vmem:[%s1722 + $0x68] sm:$0xff]
    %v1733 = vld [vmem:[%s1722 + $0x78] sm:$0xff]
    %v1734 = vld [vmem:[%s1722 + $0x80] sm:$0xff]
    %v1735 = vld [vmem:[%s1722 + $0x90] sm:$0xff]
    %v1736 = vld [vmem:[%s1722 + $0x98] sm:$0xff]
    %v1737 = vld [vmem:[%s1722 + $0xa8] sm:$0xff]
    %v1738 = vld [vmem:[%s1722 + $0xb0] sm:$0xff]
    %v1739 = vld [vmem:[%s1722 + $0xc0] sm:$0xff]
    %v1740 = vld [vmem:[%s1722 + $0xc8] sm:$0xff]
    %v1741 = vld [vmem:[%s1722 + $0xd8] sm:$0xff]
    %v1742 = vld [vmem:[%s1722 + $0xe0] sm:$0xff]
    %v1743 = vld [vmem:[%s1722 + $0xf0] sm:$0xff]
    %v1744 = vld [vmem:[%s1722 + $0xf8] sm:$0xff]
    %v1745 = vld [vmem:[%s1722 + $0x108] sm:$0xff]
    %v1746 = vld [vmem:[%s1722 + $0x110] sm:$0xff]
    %v1747 = vld [vmem:[%s1722 + $0x120] sm:$0xff]
    %v1748 = vld [vmem:[%s1722 + $0x128] sm:$0xff]
    %v1749 = vld [vmem:[%s1722 + $0x138] sm:$0xff]
    %v1750 = vld [vmem:[%s1722 + $0x140] sm:$0xff]
    %v1751 = vld [vmem:[%s1722 + $0x150] sm:$0xff]
    %v1752 = vld [vmem:[%s1722 + $0x158] sm:$0xff]
    %v1753 = vld [vmem:[%s1722 + $0x168] sm:$0xff]
    %v1754 = vld [vmem:[%s1722 + $0x170] sm:$0xff]
    %v1755 = vld [vmem:[%s1722 + $0x1b0] sm:$0xff]
    %v1756 = vld [vmem:[%s1722 + $0x1b8] sm:$0xff]
    %v1757 = vld [vmem:[%s1722 + $0x1c8] sm:$0xff]
    %v1758 = vld [vmem:[%s1722 + $0x1d0] sm:$0xff]
    %v1759 = vld [vmem:[%s1722 + $0x1e0] sm:$0xff]
    %v1760 = vld [vmem:[%s1722 + $0x1e8] sm:$0xff]
    %v1761 = vld [vmem:[%s1722 + $0x1f8] sm:$0xff]
    %v1762 = vld [vmem:[%s1722 + $0x200] sm:$0xff]
    %v1763 = vld [vmem:[%s1722 + $0x210] sm:$0xff]
    %v1764 = vld [vmem:[%s1722 + $0x218] sm:$0xff]
    %v1765 = vld [vmem:[%s1722 + $0x228] sm:$0xff]
    %v1766 = vld [vmem:[%s1722 + $0x230] sm:$0xff]
    %v1767 = vld [vmem:[%s1722 + $0x240] sm:$0xff]
    %v1768 = vld [vmem:[%s1722 + $0x248] sm:$0xff]
    %v1769 = vld [vmem:[%s1722 + $0x258] sm:$0xff]
    %v1770 = vld [vmem:[%s1722 + $0x260] sm:$0xff]
    %v1771 = vld [vmem:[%s1722 + $0x270] sm:$0xff]
    %v1772 = vld [vmem:[%s1722 + $0x278] sm:$0xff]
    %v1773 = vld [vmem:[%s1722 + $0x288] sm:$0xff]
    %v1774 = vld [vmem:[%s1722 + $0x290] sm:$0xff]
    %v1775 = vld [vmem:[%s1722 + $0x2a0] sm:$0xff]
    %v1776 = vld [vmem:[%s1722 + $0x2a8] sm:$0xff]
    %v1777 = vld [vmem:[%s1722 + $0x2b8] sm:$0xff]
    %v1778 = vld [vmem:[%s1722 + $0x2c0] sm:$0xff]
    %v1779 = vld [vmem:[%s1722 + $0x2d0] sm:$0xff]
    %v1780 = vld [vmem:[%s1722 + $0x2d8] sm:$0xff]
    %v1781 = vld [vmem:[%s1722 + $0x2e8] sm:$0xff]
    %v1782 = vld [vmem:[%s1722 + $0x2f0] sm:$0xff]
    %v1783 = vld [vmem:[%s1722 + $0x300] sm:$0xff]
    %v1784 = vld [vmem:[%s1722 + $0x308] sm:$0xff]
    %v1785 = vld [vmem:[%s1722 + $0x318] sm:$0xff]
    %v1786 = vld [vmem:[%s1722 + $0x320] sm:$0xff]
    %v1787 = vpack.c.bf16 %v1724, %v1723
    %v1788 = vpack.c.bf16 %v1726, %v1725
    %v1789 = vpack.c.bf16 %v1728, %v1727
    %v1790 = vpack.c.bf16 %v1730, %v1729
    %v1791 = vpack.c.bf16 %v1732, %v1731
    %v1792 = vpack.c.bf16 %v1734, %v1733
    %v1793 = vpack.c.bf16 %v1736, %v1735
    %v1794 = vpack.c.bf16 %v1738, %v1737
    %v1795 = vpack.c.bf16 %v1740, %v1739
    %v1796 = vpack.c.bf16 %v1742, %v1741
    %v1797 = vpack.c.bf16 %v1744, %v1743
    %v1798 = vpack.c.bf16 %v1746, %v1745
    %v1799 = vpack.c.bf16 %v1748, %v1747
    %v1800 = vpack.c.bf16 %v1750, %v1749
    %v1801 = vpack.c.bf16 %v1752, %v1751
    %v1802 = vpack.c.bf16 %v1754, %v1753
    %v1803 = vpack.c.bf16 %v1756, %v1755
    %v1804 = vpack.c.bf16 %v1758, %v1757
    %v1805 = vpack.c.bf16 %v1760, %v1759
    %v1806 = vpack.c.bf16 %v1762, %v1761
    %v1807 = vpack.c.bf16 %v1764, %v1763
    %v1808 = vpack.c.bf16 %v1766, %v1765
    %v1809 = vpack.c.bf16 %v1768, %v1767
    %v1810 = vpack.c.bf16 %v1770, %v1769
    %v1811 = vpack.c.bf16 %v1772, %v1771
    %v1812 = vpack.c.bf16 %v1774, %v1773
    %v1813 = vpack.c.bf16 %v1776, %v1775
    %v1814 = vpack.c.bf16 %v1778, %v1777
    %v1815 = vpack.c.bf16 %v1780, %v1779
    %v1816 = vpack.c.bf16 %v1782, %v1781
    %v1817 = vpack.c.bf16 %v1784, %v1783
    %v1818 = vpack.c.bf16 %v1786, %v1785
    %1851 = vrot.lane.b32.xlu0 %v1787, 48
    %v1852 = vpop.permute.xlu0 %1851
    %1853 = vrot.lane.b32.xlu0 %v1788, 48
    %v1854 = vpop.permute.xlu0 %1853
    %1855 = vrot.lane.b32.xlu0 %v1789, 48
    %v1856 = vpop.permute.xlu0 %1855
    %1857 = vrot.lane.b32.xlu0 %v1790, 48
    %v1858 = vpop.permute.xlu0 %1857
    %1859 = vrot.lane.b32.xlu0 %v1791, 48
    %v1860 = vpop.permute.xlu0 %1859
    %1861 = vrot.lane.b32.xlu0 %v1792, 48
    %v1862 = vpop.permute.xlu0 %1861
    %1863 = vrot.lane.b32.xlu0 %v1793, 48
    %v1864 = vpop.permute.xlu0 %1863
    %1865 = vrot.lane.b32.xlu0 %v1794, 48
    %v1866 = vpop.permute.xlu0 %1865
    %1867 = vrot.lane.b32.xlu0 %v1795, 48
    %v1868 = vpop.permute.xlu0 %1867
    %1869 = vrot.lane.b32.xlu0 %v1796, 48
    %v1870 = vpop.permute.xlu0 %1869
    %1871 = vrot.lane.b32.xlu0 %v1797, 48
    %v1872 = vpop.permute.xlu0 %1871
    %1873 = vrot.lane.b32.xlu0 %v1798, 48
    %v1874 = vpop.permute.xlu0 %1873
    %1875 = vrot.lane.b32.xlu0 %v1799, 48
    %v1876 = vpop.permute.xlu0 %1875
    %1877 = vrot.lane.b32.xlu0 %v1800, 48
    %v1878 = vpop.permute.xlu0 %1877
    %1879 = vrot.lane.b32.xlu0 %v1801, 48
    %v1880 = vpop.permute.xlu0 %1879
    %1881 = vrot.lane.b32.xlu0 %v1802, 48
    %v1882 = vpop.permute.xlu0 %1881
    %1883 = vrot.lane.b32.xlu0 %v1803, 48
    %v1884 = vpop.permute.xlu0 %1883
    %1885 = vrot.lane.b32.xlu0 %v1804, 48
    %v1886 = vpop.permute.xlu0 %1885
    %1887 = vrot.lane.b32.xlu0 %v1805, 48
    %v1888 = vpop.permute.xlu0 %1887
    %1889 = vrot.lane.b32.xlu0 %v1806, 48
    %v1890 = vpop.permute.xlu0 %1889
    %1891 = vrot.lane.b32.xlu0 %v1807, 48
    %v1892 = vpop.permute.xlu0 %1891
    %1893 = vrot.lane.b32.xlu0 %v1808, 48
    %v1894 = vpop.permute.xlu0 %1893
    %1895 = vrot.lane.b32.xlu0 %v1809, 48
    %v1896 = vpop.permute.xlu0 %1895
    %1897 = vrot.lane.b32.xlu0 %v1810, 48
    %v1898 = vpop.permute.xlu0 %1897
    %1899 = vrot.lane.b32.xlu0 %v1811, 48
    %v1900 = vpop.permute.xlu0 %1899
    %1901 = vrot.lane.b32.xlu0 %v1812, 48
    %v1902 = vpop.permute.xlu0 %1901
    %1903 = vrot.lane.b32.xlu0 %v1813, 48
    %v1904 = vpop.permute.xlu0 %1903
    %1905 = vrot.lane.b32.xlu0 %v1814, 48
    %v1906 = vpop.permute.xlu0 %1905
    %1907 = vrot.lane.b32.xlu0 %v1815, 48
    %v1908 = vpop.permute.xlu0 %1907
    %1909 = vrot.lane.b32.xlu0 %v1816, 48
    %v1910 = vpop.permute.xlu0 %1909
    %1911 = vrot.lane.b32.xlu0 %v1817, 48
    %v1912 = vpop.permute.xlu0 %1911
    %1913 = vrot.lane.b32.xlu0 %v1818, 48
    %v1914 = vpop.permute.xlu0 %1913
    %vm1947 = vcmask 458112
    %1948 = vst.msk [vmem:[#allocation3] sm:$0xff] %vm1947, %v1852
    %1949 = vst.msk [vmem:[#allocation3 + $0x8] sm:$0xff] %vm1947, %v1854
    %1950 = vst.msk [vmem:[#allocation3 + $0x10] sm:$0xff] %vm1947, %v1856
    %1951 = vst.msk [vmem:[#allocation3 + $0x18] sm:$0xff] %vm1947, %v1858
    %1952 = vst.msk [vmem:[#allocation3 + $0x20] sm:$0xff] %vm1947, %v1860
    %1953 = vst.msk [vmem:[#allocation3 + $0x28] sm:$0xff] %vm1947, %v1862
    %1954 = vst.msk [vmem:[#allocation3 + $0x30] sm:$0xff] %vm1947, %v1864
    %1955 = vst.msk [vmem:[#allocation3 + $0x38] sm:$0xff] %vm1947, %v1866
    %1956 = vst.msk [vmem:[#allocation3 + $0x40] sm:$0xff] %vm1947, %v1868
    %1957 = vst.msk [vmem:[#allocation3 + $0x48] sm:$0xff] %vm1947, %v1870
    %1958 = vst.msk [vmem:[#allocation3 + $0x50] sm:$0xff] %vm1947, %v1872
    %1959 = vst.msk [vmem:[#allocation3 + $0x58] sm:$0xff] %vm1947, %v1874
    %1960 = vst.msk [vmem:[#allocation3 + $0x60] sm:$0xff] %vm1947, %v1876
    %1961 = vst.msk [vmem:[#allocation3 + $0x68] sm:$0xff] %vm1947, %v1878
    %1962 = vst.msk [vmem:[#allocation3 + $0x70] sm:$0xff] %vm1947, %v1880
    %1963 = vst.msk [vmem:[#allocation3 + $0x78] sm:$0xff] %vm1947, %v1882
    %1964 = vst.msk [vmem:[#allocation3 + $0x80] sm:$0xff] %vm1947, %v1884
    %1965 = vst.msk [vmem:[#allocation3 + $0x88] sm:$0xff] %vm1947, %v1886
    %1966 = vst.msk [vmem:[#allocation3 + $0x90] sm:$0xff] %vm1947, %v1888
    %1967 = vst.msk [vmem:[#allocation3 + $0x98] sm:$0xff] %vm1947, %v1890
    %1968 = vst.msk [vmem:[#allocation3 + $0xa0] sm:$0xff] %vm1947, %v1892
    %1969 = vst.msk [vmem:[#allocation3 + $0xa8] sm:$0xff] %vm1947, %v1894
    %1970 = vst.msk [vmem:[#allocation3 + $0xb0] sm:$0xff] %vm1947, %v1896
    %1971 = vst.msk [vmem:[#allocation3 + $0xb8] sm:$0xff] %vm1947, %v1898
    %1972 = vst.msk [vmem:[#allocation3 + $0xc0] sm:$0xff] %vm1947, %v1900
    %1973 = vst.msk [vmem:[#allocation3 + $0xc8] sm:$0xff] %vm1947, %v1902
    %1974 = vst.msk [vmem:[#allocation3 + $0xd0] sm:$0xff] %vm1947, %v1904
    %1975 = vst.msk [vmem:[#allocation3 + $0xd8] sm:$0xff] %vm1947, %v1906
    %1976 = vst.msk [vmem:[#allocation3 + $0xe0] sm:$0xff] %vm1947, %v1908
    %1977 = vst.msk [vmem:[#allocation3 + $0xe8] sm:$0xff] %vm1947, %v1910
    %1978 = vst.msk [vmem:[#allocation3 + $0xf0] sm:$0xff] %vm1947, %v1912
    %1979 = vst.msk [vmem:[#allocation3 + $0xf8] sm:$0xff] %vm1947, %v1914
    %v1980 = vld [vmem:[%s1722 + $0x1] sm:$0xff]
    %v1981 = vld [vmem:[%s1722 + $0x9] sm:$0xff]
    %v1982 = vld [vmem:[%s1722 + $0x19] sm:$0xff]
    %v1983 = vld [vmem:[%s1722 + $0x21] sm:$0xff]
    %v1984 = vld [vmem:[%s1722 + $0x31] sm:$0xff]
    %v1985 = vld [vmem:[%s1722 + $0x39] sm:$0xff]
    %v1986 = vld [vmem:[%s1722 + $0x49] sm:$0xff]
    %v1987 = vld [vmem:[%s1722 + $0x51] sm:$0xff]
    %v1988 = vld [vmem:[%s1722 + $0x61] sm:$0xff]
    %v1989 = vld [vmem:[%s1722 + $0x69] sm:$0xff]
    %v1990 = vld [vmem:[%s1722 + $0x79] sm:$0xff]
    %v1991 = vld [vmem:[%s1722 + $0x81] sm:$0xff]
    %v1992 = vld [vmem:[%s1722 + $0x91] sm:$0xff]
    %v1993 = vld [vmem:[%s1722 + $0x99] sm:$0xff]
    %v1994 = vld [vmem:[%s1722 + $0xa9] sm:$0xff]
    %v1995 = vld [vmem:[%s1722 + $0xb1] sm:$0xff]
    %v1996 = vld [vmem:[%s1722 + $0xc1] sm:$0xff]
    %v1997 = vld [vmem:[%s1722 + $0xc9] sm:$0xff]
    %v1998 = vld [vmem:[%s1722 + $0xd9] sm:$0xff]
    %v1999 = vld [vmem:[%s1722 + $0xe1] sm:$0xff]
    %v2000 = vld [vmem:[%s1722 + $0xf1] sm:$0xff]
    %v2001 = vld [vmem:[%s1722 + $0xf9] sm:$0xff]
    %v2002 = vld [vmem:[%s1722 + $0x109] sm:$0xff]
    %v2003 = vld [vmem:[%s1722 + $0x111] sm:$0xff]
    %v2004 = vld [vmem:[%s1722 + $0x121] sm:$0xff]
    %v2005 = vld [vmem:[%s1722 + $0x129] sm:$0xff]
    %v2006 = vld [vmem:[%s1722 + $0x139] sm:$0xff]
    %v2007 = vld [vmem:[%s1722 + $0x141] sm:$0xff]
    %v2008 = vld [vmem:[%s1722 + $0x151] sm:$0xff]
    %v2009 = vld [vmem:[%s1722 + $0x159] sm:$0xff]
    %v2010 = vld [vmem:[%s1722 + $0x169] sm:$0xff]
    %v2011 = vld [vmem:[%s1722 + $0x171] sm:$0xff]
    %v2012 = vld [vmem:[%s1722 + $0x1b1] sm:$0xff]
    %v2013 = vld [vmem:[%s1722 + $0x1b9] sm:$0xff]
    %v2014 = vld [vmem:[%s1722 + $0x1c9] sm:$0xff]
    %v2015 = vld [vmem:[%s1722 + $0x1d1] sm:$0xff]
    %v2016 = vld [vmem:[%s1722 + $0x1e1] sm:$0xff]
    %v2017 = vld [vmem:[%s1722 + $0x1e9] sm:$0xff]
    %v2018 = vld [vmem:[%s1722 + $0x1f9] sm:$0xff]
    %v2019 = vld [vmem:[%s1722 + $0x201] sm:$0xff]
    %v2020 = vld [vmem:[%s1722 + $0x211] sm:$0xff]
    %v2021 = vld [vmem:[%s1722 + $0x219] sm:$0xff]
    %v2022 = vld [vmem:[%s1722 + $0x229] sm:$0xff]
    %v2023 = vld [vmem:[%s1722 + $0x231] sm:$0xff]
    %v2024 = vld [vmem:[%s1722 + $0x241] sm:$0xff]
    %v2025 = vld [vmem:[%s1722 + $0x249] sm:$0xff]
    %v2026 = vld [vmem:[%s1722 + $0x259] sm:$0xff]
    %v2027 = vld [vmem:[%s1722 + $0x261] sm:$0xff]
    %v2028 = vld [vmem:[%s1722 + $0x271] sm:$0xff]
    %v2029 = vld [vmem:[%s1722 + $0x279] sm:$0xff]
    %v2030 = vld [vmem:[%s1722 + $0x289] sm:$0xff]
    %v2031 = vld [vmem:[%s1722 + $0x291] sm:$0xff]
    %v2032 = vld [vmem:[%s1722 + $0x2a1] sm:$0xff]
    %v2033 = vld [vmem:[%s1722 + $0x2a9] sm:$0xff]
    %v2034 = vld [vmem:[%s1722 + $0x2b9] sm:$0xff]
    %v2035 = vld [vmem:[%s1722 + $0x2c1] sm:$0xff]
    %v2036 = vld [vmem:[%s1722 + $0x2d1] sm:$0xff]
    %v2037 = vld [vmem:[%s1722 + $0x2d9] sm:$0xff]
    %v2038 = vld [vmem:[%s1722 + $0x2e9] sm:$0xff]
    %v2039 = vld [vmem:[%s1722 + $0x2f1] sm:$0xff]
    %v2040 = vld [vmem:[%s1722 + $0x301] sm:$0xff]
    %v2041 = vld [vmem:[%s1722 + $0x309] sm:$0xff]
    %v2042 = vld [vmem:[%s1722 + $0x319] sm:$0xff]
    %v2043 = vld [vmem:[%s1722 + $0x321] sm:$0xff]
    %v2044 = vpack.c.bf16 %v1981, %v1980
    %v2045 = vpack.c.bf16 %v1983, %v1982
    %v2046 = vpack.c.bf16 %v1985, %v1984
    %v2047 = vpack.c.bf16 %v1987, %v1986
    %v2048 = vpack.c.bf16 %v1989, %v1988
    %v2049 = vpack.c.bf16 %v1991, %v1990
    %v2050 = vpack.c.bf16 %v1993, %v1992
    %v2051 = vpack.c.bf16 %v1995, %v1994
    %v2052 = vpack.c.bf16 %v1997, %v1996
    %v2053 = vpack.c.bf16 %v1999, %v1998
    %v2054 = vpack.c.bf16 %v2001, %v2000
    %v2055 = vpack.c.bf16 %v2003, %v2002
    %v2056 = vpack.c.bf16 %v2005, %v2004
    %v2057 = vpack.c.bf16 %v2007, %v2006
    %v2058 = vpack.c.bf16 %v2009, %v2008
    %v2059 = vpack.c.bf16 %v2011, %v2010
    %v2060 = vpack.c.bf16 %v2013, %v2012
    %v2061 = vpack.c.bf16 %v2015, %v2014
    %v2062 = vpack.c.bf16 %v2017, %v2016
    %v2063 = vpack.c.bf16 %v2019, %v2018
    %v2064 = vpack.c.bf16 %v2021, %v2020
    %v2065 = vpack.c.bf16 %v2023, %v2022
    %v2066 = vpack.c.bf16 %v2025, %v2024
    %v2067 = vpack.c.bf16 %v2027, %v2026
    %v2068 = vpack.c.bf16 %v2029, %v2028
    %v2069 = vpack.c.bf16 %v2031, %v2030
    %v2070 = vpack.c.bf16 %v2033, %v2032
    %v2071 = vpack.c.bf16 %v2035, %v2034
    %v2072 = vpack.c.bf16 %v2037, %v2036
    %v2073 = vpack.c.bf16 %v2039, %v2038
    %v2074 = vpack.c.bf16 %v2041, %v2040
    %v2075 = vpack.c.bf16 %v2043, %v2042
    %2108 = vrot.lane.b32.xlu0 %v2044, 56
    %v2109 = vpop.permute.xlu0 %2108
    %2110 = vrot.lane.b32.xlu0 %v2045, 56
    %v2111 = vpop.permute.xlu0 %2110
    %2112 = vrot.lane.b32.xlu0 %v2046, 56
    %v2113 = vpop.permute.xlu0 %2112
    %2114 = vrot.lane.b32.xlu0 %v2047, 56
    %v2115 = vpop.permute.xlu0 %2114
    %2116 = vrot.lane.b32.xlu0 %v2048, 56
    %v2117 = vpop.permute.xlu0 %2116
    %2118 = vrot.lane.b32.xlu0 %v2049, 56
    %v2119 = vpop.permute.xlu0 %2118
    %2120 = vrot.lane.b32.xlu0 %v2050, 56
    %v2121 = vpop.permute.xlu0 %2120
    %2122 = vrot.lane.b32.xlu0 %v2051, 56
    %v2123 = vpop.permute.xlu0 %2122
    %2124 = vrot.lane.b32.xlu0 %v2052, 56
    %v2125 = vpop.permute.xlu0 %2124
    %2126 = vrot.lane.b32.xlu0 %v2053, 56
    %v2127 = vpop.permute.xlu0 %2126
    %2128 = vrot.lane.b32.xlu0 %v2054, 56
    %v2129 = vpop.permute.xlu0 %2128
    %2130 = vrot.lane.b32.xlu0 %v2055, 56
    %v2131 = vpop.permute.xlu0 %2130
    %2132 = vrot.lane.b32.xlu0 %v2056, 56
    %v2133 = vpop.permute.xlu0 %2132
    %2134 = vrot.lane.b32.xlu0 %v2057, 56
    %v2135 = vpop.permute.xlu0 %2134
    %2136 = vrot.lane.b32.xlu0 %v2058, 56
    %v2137 = vpop.permute.xlu0 %2136
    %2138 = vrot.lane.b32.xlu0 %v2059, 56
    %v2139 = vpop.permute.xlu0 %2138
    %2140 = vrot.lane.b32.xlu0 %v2060, 56
    %v2141 = vpop.permute.xlu0 %2140
    %2142 = vrot.lane.b32.xlu0 %v2061, 56
    %v2143 = vpop.permute.xlu0 %2142
    %2144 = vrot.lane.b32.xlu0 %v2062, 56
    %v2145 = vpop.permute.xlu0 %2144
    %2146 = vrot.lane.b32.xlu0 %v2063, 56
    %v2147 = vpop.permute.xlu0 %2146
    %2148 = vrot.lane.b32.xlu0 %v2064, 56
    %v2149 = vpop.permute.xlu0 %2148
    %2150 = vrot.lane.b32.xlu0 %v2065, 56
    %v2151 = vpop.permute.xlu0 %2150
    %2152 = vrot.lane.b32.xlu0 %v2066, 56
    %v2153 = vpop.permute.xlu0 %2152
    %2154 = vrot.lane.b32.xlu0 %v2067, 56
    %v2155 = vpop.permute.xlu0 %2154
    %2156 = vrot.lane.b32.xlu0 %v2068, 56
    %v2157 = vpop.permute.xlu0 %2156
    %2158 = vrot.lane.b32.xlu0 %v2069, 56
    %v2159 = vpop.permute.xlu0 %2158
    %2160 = vrot.lane.b32.xlu0 %v2070, 56
    %v2161 = vpop.permute.xlu0 %2160
    %2162 = vrot.lane.b32.xlu0 %v2071, 56
    %v2163 = vpop.permute.xlu0 %2162
    %2164 = vrot.lane.b32.xlu0 %v2072, 56
    %v2165 = vpop.permute.xlu0 %2164
    %2166 = vrot.lane.b32.xlu0 %v2073, 56
    %v2167 = vpop.permute.xlu0 %2166
    %2168 = vrot.lane.b32.xlu0 %v2074, 56
    %v2169 = vpop.permute.xlu0 %2168
    %2170 = vrot.lane.b32.xlu0 %v2075, 56
    %v2171 = vpop.permute.xlu0 %2170
    %vm2204 = vcmask 523712
    %2205 = vst.msk [vmem:[#allocation3] sm:$0xff] %vm2204, %v2109
    %2206 = vst.msk [vmem:[#allocation3 + $0x8] sm:$0xff] %vm2204, %v2111
    %2207 = vst.msk [vmem:[#allocation3 + $0x10] sm:$0xff] %vm2204, %v2113
    %2208 = vst.msk [vmem:[#allocation3 + $0x18] sm:$0xff] %vm2204, %v2115
    %2209 = vst.msk [vmem:[#allocation3 + $0x20] sm:$0xff] %vm2204, %v2117
    %2210 = vst.msk [vmem:[#allocation3 + $0x28] sm:$0xff] %vm2204, %v2119
    %2211 = vst.msk [vmem:[#allocation3 + $0x30] sm:$0xff] %vm2204, %v2121
    %2212 = vst.msk [vmem:[#allocation3 + $0x38] sm:$0xff] %vm2204, %v2123
    %2213 = vst.msk [vmem:[#allocation3 + $0x40] sm:$0xff] %vm2204, %v2125
    %2214 = vst.msk [vmem:[#allocation3 + $0x48] sm:$0xff] %vm2204, %v2127
    %2215 = vst.msk [vmem:[#allocation3 + $0x50] sm:$0xff] %vm2204, %v2129
    %2216 = vst.msk [vmem:[#allocation3 + $0x58] sm:$0xff] %vm2204, %v2131
    %2217 = vst.msk [vmem:[#allocation3 + $0x60] sm:$0xff] %vm2204, %v2133
    %2218 = vst.msk [vmem:[#allocation3 + $0x68] sm:$0xff] %vm2204, %v2135
    %2219 = vst.msk [vmem:[#allocation3 + $0x70] sm:$0xff] %vm2204, %v2137
    %2220 = vst.msk [vmem:[#allocation3 + $0x78] sm:$0xff] %vm2204, %v2139
    %2221 = vst.msk [vmem:[#allocation3 + $0x80] sm:$0xff] %vm2204, %v2141
    %2222 = vst.msk [vmem:[#allocation3 + $0x88] sm:$0xff] %vm2204, %v2143
    %2223 = vst.msk [vmem:[#allocation3 + $0x90] sm:$0xff] %vm2204, %v2145
    %2224 = vst.msk [vmem:[#allocation3 + $0x98] sm:$0xff] %vm2204, %v2147
    %2225 = vst.msk [vmem:[#allocation3 + $0xa0] sm:$0xff] %vm2204, %v2149
    %2226 = vst.msk [vmem:[#allocation3 + $0xa8] sm:$0xff] %vm2204, %v2151
    %2227 = vst.msk [vmem:[#allocation3 + $0xb0] sm:$0xff] %vm2204, %v2153
    %2228 = vst.msk [vmem:[#allocation3 + $0xb8] sm:$0xff] %vm2204, %v2155
    %2229 = vst.msk [vmem:[#allocation3 + $0xc0] sm:$0xff] %vm2204, %v2157
    %2230 = vst.msk [vmem:[#allocation3 + $0xc8] sm:$0xff] %vm2204, %v2159
    %2231 = vst.msk [vmem:[#allocation3 + $0xd0] sm:$0xff] %vm2204, %v2161
    %2232 = vst.msk [vmem:[#allocation3 + $0xd8] sm:$0xff] %vm2204, %v2163
    %2233 = vst.msk [vmem:[#allocation3 + $0xe0] sm:$0xff] %vm2204, %v2165
    %2234 = vst.msk [vmem:[#allocation3 + $0xe8] sm:$0xff] %vm2204, %v2167
    %2235 = vst.msk [vmem:[#allocation3 + $0xf0] sm:$0xff] %vm2204, %v2169
    %2236 = vst.msk [vmem:[#allocation3 + $0xf8] sm:$0xff] %vm2204, %v2171
    %v2237 = vld [vmem:[%s1722 + $0x2] sm:$0xff]
    %v2238 = vld [vmem:[%s1722 + $0xa] sm:$0xff]
    %v2239 = vld [vmem:[%s1722 + $0x1a] sm:$0xff]
    %v2240 = vld [vmem:[%s1722 + $0x22] sm:$0xff]
    %v2241 = vld [vmem:[%s1722 + $0x32] sm:$0xff]
    %v2242 = vld [vmem:[%s1722 + $0x3a] sm:$0xff]
    %v2243 = vld [vmem:[%s1722 + $0x4a] sm:$0xff]
    %v2244 = vld [vmem:[%s1722 + $0x52] sm:$0xff]
    %v2245 = vld [vmem:[%s1722 + $0x62] sm:$0xff]
    %v2246 = vld [vmem:[%s1722 + $0x6a] sm:$0xff]
    %v2247 = vld [vmem:[%s1722 + $0x7a] sm:$0xff]
    %v2248 = vld [vmem:[%s1722 + $0x82] sm:$0xff]
    %v2249 = vld [vmem:[%s1722 + $0x92] sm:$0xff]
    %v2250 = vld [vmem:[%s1722 + $0x9a] sm:$0xff]
    %v2251 = vld [vmem:[%s1722 + $0xaa] sm:$0xff]
    %v2252 = vld [vmem:[%s1722 + $0xb2] sm:$0xff]
    %v2253 = vld [vmem:[%s1722 + $0xc2] sm:$0xff]
    %v2254 = vld [vmem:[%s1722 + $0xca] sm:$0xff]
    %v2255 = vld [vmem:[%s1722 + $0xda] sm:$0xff]
    %v2256 = vld [vmem:[%s1722 + $0xe2] sm:$0xff]
    %v2257 = vld [vmem:[%s1722 + $0xf2] sm:$0xff]
    %v2258 = vld [vmem:[%s1722 + $0xfa] sm:$0xff]
    %v2259 = vld [vmem:[%s1722 + $0x10a] sm:$0xff]
    %v2260 = vld [vmem:[%s1722 + $0x112] sm:$0xff]
    %v2261 = vld [vmem:[%s1722 + $0x122] sm:$0xff]
    %v2262 = vld [vmem:[%s1722 + $0x12a] sm:$0xff]
    %v2263 = vld [vmem:[%s1722 + $0x13a] sm:$0xff]
    %v2264 = vld [vmem:[%s1722 + $0x142] sm:$0xff]
    %v2265 = vld [vmem:[%s1722 + $0x152] sm:$0xff]
    %v2266 = vld [vmem:[%s1722 + $0x15a] sm:$0xff]
    %v2267 = vld [vmem:[%s1722 + $0x16a] sm:$0xff]
    %v2268 = vld [vmem:[%s1722 + $0x172] sm:$0xff]
    %v2269 = vld [vmem:[%s1722 + $0x1b2] sm:$0xff]
    %v2270 = vld [vmem:[%s1722 + $0x1ba] sm:$0xff]
    %v2271 = vld [vmem:[%s1722 + $0x1ca] sm:$0xff]
    %v2272 = vld [vmem:[%s1722 + $0x1d2] sm:$0xff]
    %v2273 = vld [vmem:[%s1722 + $0x1e2] sm:$0xff]
    %v2274 = vld [vmem:[%s1722 + $0x1ea] sm:$0xff]
    %v2275 = vld [vmem:[%s1722 + $0x1fa] sm:$0xff]
    %v2276 = vld [vmem:[%s1722 + $0x202] sm:$0xff]
    %v2277 = vld [vmem:[%s1722 + $0x212] sm:$0xff]
    %v2278 = vld [vmem:[%s1722 + $0x21a] sm:$0xff]
    %v2279 = vld [vmem:[%s1722 + $0x22a] sm:$0xff]
    %v2280 = vld [vmem:[%s1722 + $0x232] sm:$0xff]
    %v2281 = vld [vmem:[%s1722 + $0x242] sm:$0xff]
    %v2282 = vld [vmem:[%s1722 + $0x24a] sm:$0xff]
    %v2283 = vld [vmem:[%s1722 + $0x25a] sm:$0xff]
    %v2284 = vld [vmem:[%s1722 + $0x262] sm:$0xff]
    %v2285 = vld [vmem:[%s1722 + $0x272] sm:$0xff]
    %v2286 = vld [vmem:[%s1722 + $0x27a] sm:$0xff]
    %v2287 = vld [vmem:[%s1722 + $0x28a] sm:$0xff]
    %v2288 = vld [vmem:[%s1722 + $0x292] sm:$0xff]
    %v2289 = vld [vmem:[%s1722 + $0x2a2] sm:$0xff]
    %v2290 = vld [vmem:[%s1722 + $0x2aa] sm:$0xff]
    %v2291 = vld [vmem:[%s1722 + $0x2ba] sm:$0xff]
    %v2292 = vld [vmem:[%s1722 + $0x2c2] sm:$0xff]
    %v2293 = vld [vmem:[%s1722 + $0x2d2] sm:$0xff]
    %v2294 = vld [vmem:[%s1722 + $0x2da] sm:$0xff]
    %v2295 = vld [vmem:[%s1722 + $0x2ea] sm:$0xff]
    %v2296 = vld [vmem:[%s1722 + $0x2f2] sm:$0xff]
    %v2297 = vld [vmem:[%s1722 + $0x302] sm:$0xff]
    %v2298 = vld [vmem:[%s1722 + $0x30a] sm:$0xff]
    %v2299 = vld [vmem:[%s1722 + $0x31a] sm:$0xff]
    %v2300 = vld [vmem:[%s1722 + $0x322] sm:$0xff]
    %v2301 = vpack.c.bf16 %v2238, %v2237
    %v2302 = vpack.c.bf16 %v2240, %v2239
    %v2303 = vpack.c.bf16 %v2242, %v2241
    %v2304 = vpack.c.bf16 %v2244, %v2243
    %v2305 = vpack.c.bf16 %v2246, %v2245
    %v2306 = vpack.c.bf16 %v2248, %v2247
    %v2307 = vpack.c.bf16 %v2250, %v2249
    %v2308 = vpack.c.bf16 %v2252, %v2251
    %v2309 = vpack.c.bf16 %v2254, %v2253
    %v2310 = vpack.c.bf16 %v2256, %v2255
    %v2311 = vpack.c.bf16 %v2258, %v2257
    %v2312 = vpack.c.bf16 %v2260, %v2259
    %v2313 = vpack.c.bf16 %v2262, %v2261
    %v2314 = vpack.c.bf16 %v2264, %v2263
    %v2315 = vpack.c.bf16 %v2266, %v2265
    %v2316 = vpack.c.bf16 %v2268, %v2267
    %v2317 = vpack.c.bf16 %v2270, %v2269
    %v2318 = vpack.c.bf16 %v2272, %v2271
    %v2319 = vpack.c.bf16 %v2274, %v2273
    %v2320 = vpack.c.bf16 %v2276, %v2275
    %v2321 = vpack.c.bf16 %v2278, %v2277
    %v2322 = vpack.c.bf16 %v2280, %v2279
    %v2323 = vpack.c.bf16 %v2282, %v2281
    %v2324 = vpack.c.bf16 %v2284, %v2283
    %v2325 = vpack.c.bf16 %v2286, %v2285
    %v2326 = vpack.c.bf16 %v2288, %v2287
    %v2327 = vpack.c.bf16 %v2290, %v2289
    %v2328 = vpack.c.bf16 %v2292, %v2291
    %v2329 = vpack.c.bf16 %v2294, %v2293
    %v2330 = vpack.c.bf16 %v2296, %v2295
    %v2331 = vpack.c.bf16 %v2298, %v2297
    %v2332 = vpack.c.bf16 %v2300, %v2299
    %2365 = vrot.lane.b32.xlu0 %v2301, 64
    %v2366 = vpop.permute.xlu0 %2365
    %2367 = vrot.lane.b32.xlu0 %v2302, 64
    %v2368 = vpop.permute.xlu0 %2367
    %2369 = vrot.lane.b32.xlu0 %v2303, 64
    %v2370 = vpop.permute.xlu0 %2369
    %2371 = vrot.lane.b32.xlu0 %v2304, 64
    %v2372 = vpop.permute.xlu0 %2371
    %2373 = vrot.lane.b32.xlu0 %v2305, 64
    %v2374 = vpop.permute.xlu0 %2373
    %2375 = vrot.lane.b32.xlu0 %v2306, 64
    %v2376 = vpop.permute.xlu0 %2375
    %2377 = vrot.lane.b32.xlu0 %v2307, 64
    %v2378 = vpop.permute.xlu0 %2377
    %2379 = vrot.lane.b32.xlu0 %v2308, 64
    %v2380 = vpop.permute.xlu0 %2379
    %2381 = vrot.lane.b32.xlu0 %v2309, 64
    %v2382 = vpop.permute.xlu0 %2381
    %2383 = vrot.lane.b32.xlu0 %v2310, 64
    %v2384 = vpop.permute.xlu0 %2383
    %2385 = vrot.lane.b32.xlu0 %v2311, 64
    %v2386 = vpop.permute.xlu0 %2385
    %2387 = vrot.lane.b32.xlu0 %v2312, 64
    %v2388 = vpop.permute.xlu0 %2387
    %2389 = vrot.lane.b32.xlu0 %v2313, 64
    %v2390 = vpop.permute.xlu0 %2389
    %2391 = vrot.lane.b32.xlu0 %v2314, 64
    %v2392 = vpop.permute.xlu0 %2391
    %2393 = vrot.lane.b32.xlu0 %v2315, 64
    %v2394 = vpop.permute.xlu0 %2393
    %2395 = vrot.lane.b32.xlu0 %v2316, 64
    %v2396 = vpop.permute.xlu0 %2395
    %2397 = vrot.lane.b32.xlu0 %v2317, 64
    %v2398 = vpop.permute.xlu0 %2397
    %2399 = vrot.lane.b32.xlu0 %v2318, 64
    %v2400 = vpop.permute.xlu0 %2399
    %2401 = vrot.lane.b32.xlu0 %v2319, 64
    %v2402 = vpop.permute.xlu0 %2401
    %2403 = vrot.lane.b32.xlu0 %v2320, 64
    %v2404 = vpop.permute.xlu0 %2403
    %2405 = vrot.lane.b32.xlu0 %v2321, 64
    %v2406 = vpop.permute.xlu0 %2405
    %2407 = vrot.lane.b32.xlu0 %v2322, 64
    %v2408 = vpop.permute.xlu0 %2407
    %2409 = vrot.lane.b32.xlu0 %v2323, 64
    %v2410 = vpop.permute.xlu0 %2409
    %2411 = vrot.lane.b32.xlu0 %v2324, 64
    %v2412 = vpop.permute.xlu0 %2411
    %2413 = vrot.lane.b32.xlu0 %v2325, 64
    %v2414 = vpop.permute.xlu0 %2413
    %2415 = vrot.lane.b32.xlu0 %v2326, 64
    %v2416 = vpop.permute.xlu0 %2415
    %2417 = vrot.lane.b32.xlu0 %v2327, 64
    %v2418 = vpop.permute.xlu0 %2417
    %2419 = vrot.lane.b32.xlu0 %v2328, 64
    %v2420 = vpop.permute.xlu0 %2419
    %2421 = vrot.lane.b32.xlu0 %v2329, 64
    %v2422 = vpop.permute.xlu0 %2421
    %2423 = vrot.lane.b32.xlu0 %v2330, 64
    %v2424 = vpop.permute.xlu0 %2423
    %2425 = vrot.lane.b32.xlu0 %v2331, 64
    %v2426 = vpop.permute.xlu0 %2425
    %2427 = vrot.lane.b32.xlu0 %v2332, 64
    %v2428 = vpop.permute.xlu0 %2427
    %vm2461 = vcmask 589312
    %2462 = vst.msk [vmem:[#allocation3] sm:$0xff] %vm2461, %v2366
    %2463 = vst.msk [vmem:[#allocation3 + $0x8] sm:$0xff] %vm2461, %v2368
    %2464 = vst.msk [vmem:[#allocation3 + $0x10] sm:$0xff] %vm2461, %v2370
    %2465 = vst.msk [vmem:[#allocation3 + $0x18] sm:$0xff] %vm2461, %v2372
    %2466 = vst.msk [vmem:[#allocation3 + $0x20] sm:$0xff] %vm2461, %v2374
    %2467 = vst.msk [vmem:[#allocation3 + $0x28] sm:$0xff] %vm2461, %v2376
    %2468 = vst.msk [vmem:[#allocation3 + $0x30] sm:$0xff] %vm2461, %v2378
    %2469 = vst.msk [vmem:[#allocation3 + $0x38] sm:$0xff] %vm2461, %v2380
    %2470 = vst.msk [vmem:[#allocation3 + $0x40] sm:$0xff] %vm2461, %v2382
    %2471 = vst.msk [vmem:[#allocation3 + $0x48] sm:$0xff] %vm2461, %v2384
    %2472 = vst.msk [vmem:[#allocation3 + $0x50] sm:$0xff] %vm2461, %v2386
    %2473 = vst.msk [vmem:[#allocation3 + $0x58] sm:$0xff] %vm2461, %v2388
    %2474 = vst.msk [vmem:[#allocation3 + $0x60] sm:$0xff] %vm2461, %v2390
    %2475 = vst.msk [vmem:[#allocation3 + $0x68] sm:$0xff] %vm2461, %v2392
    %2476 = vst.msk [vmem:[#allocation3 + $0x70] sm:$0xff] %vm2461, %v2394
    %2477 = vst.msk [vmem:[#allocation3 + $0x78] sm:$0xff] %vm2461, %v2396
    %2478 = vst.msk [vmem:[#allocation3 + $0x80] sm:$0xff] %vm2461, %v2398
    %2479 = vst.msk [vmem:[#allocation3 + $0x88] sm:$0xff] %vm2461, %v2400
    %2480 = vst.msk [vmem:[#allocation3 + $0x90] sm:$0xff] %vm2461, %v2402
    %2481 = vst.msk [vmem:[#allocation3 + $0x98] sm:$0xff] %vm2461, %v2404
    %2482 = vst.msk [vmem:[#allocation3 + $0xa0] sm:$0xff] %vm2461, %v2406
    %2483 = vst.msk [vmem:[#allocation3 + $0xa8] sm:$0xff] %vm2461, %v2408
    %2484 = vst.msk [vmem:[#allocation3 + $0xb0] sm:$0xff] %vm2461, %v2410
    %2485 = vst.msk [vmem:[#allocation3 + $0xb8] sm:$0xff] %vm2461, %v2412
    %2486 = vst.msk [vmem:[#allocation3 + $0xc0] sm:$0xff] %vm2461, %v2414
    %2487 = vst.msk [vmem:[#allocation3 + $0xc8] sm:$0xff] %vm2461, %v2416
    %2488 = vst.msk [vmem:[#allocation3 + $0xd0] sm:$0xff] %vm2461, %v2418
    %2489 = vst.msk [vmem:[#allocation3 + $0xd8] sm:$0xff] %vm2461, %v2420
    %2490 = vst.msk [vmem:[#allocation3 + $0xe0] sm:$0xff] %vm2461, %v2422
    %2491 = vst.msk [vmem:[#allocation3 + $0xe8] sm:$0xff] %vm2461, %v2424
    %2492 = vst.msk [vmem:[#allocation3 + $0xf0] sm:$0xff] %vm2461, %v2426
    %2493 = vst.msk [vmem:[#allocation3 + $0xf8] sm:$0xff] %vm2461, %v2428
    %v2494 = vld [vmem:[#allocation3] sm:$0xff]
    %v2495 = vld [vmem:[#allocation3 + $0x8] sm:$0xff]
    %v2496 = vld [vmem:[#allocation3 + $0x10] sm:$0xff]
    %v2497 = vld [vmem:[#allocation3 + $0x18] sm:$0xff]
    %v2498 = vld [vmem:[#allocation3 + $0x20] sm:$0xff]
    %v2499 = vld [vmem:[#allocation3 + $0x28] sm:$0xff]
    %v2500 = vld [vmem:[#allocation3 + $0x30] sm:$0xff]
    %v2501 = vld [vmem:[#allocation3 + $0x38] sm:$0xff]
    %v2502 = vld [vmem:[#allocation3 + $0x40] sm:$0xff]
    %v2503 = vld [vmem:[#allocation3 + $0x48] sm:$0xff]
    %v2504 = vld [vmem:[#allocation3 + $0x50] sm:$0xff]
    %v2505 = vld [vmem:[#allocation3 + $0x58] sm:$0xff]
    %v2506 = vld [vmem:[#allocation3 + $0x60] sm:$0xff]
    %v2507 = vld [vmem:[#allocation3 + $0x68] sm:$0xff]
    %v2508 = vld [vmem:[#allocation3 + $0x70] sm:$0xff]
    %v2509 = vld [vmem:[#allocation3 + $0x78] sm:$0xff]
    %v2510 = vld [vmem:[#allocation3 + $0x80] sm:$0xff]
    %v2511 = vld [vmem:[#allocation3 + $0x88] sm:$0xff]
    %v2512 = vld [vmem:[#allocation3 + $0x90] sm:$0xff]
    %v2513 = vld [vmem:[#allocation3 + $0x98] sm:$0xff]
    %v2514 = vld [vmem:[#allocation3 + $0xa0] sm:$0xff]
    %v2515 = vld [vmem:[#allocation3 + $0xa8] sm:$0xff]
    %v2516 = vld [vmem:[#allocation3 + $0xb0] sm:$0xff]
    %v2517 = vld [vmem:[#allocation3 + $0xb8] sm:$0xff]
    %v2518 = vld [vmem:[#allocation3 + $0xc0] sm:$0xff]
    %v2519 = vld [vmem:[#allocation3 + $0xc8] sm:$0xff]
    %v2520 = vld [vmem:[#allocation3 + $0xd0] sm:$0xff]
    %v2521 = vld [vmem:[#allocation3 + $0xd8] sm:$0xff]
    %v2522 = vld [vmem:[#allocation3 + $0xe0] sm:$0xff]
    %v2523 = vld [vmem:[#allocation3 + $0xe8] sm:$0xff]
    %v2524 = vld [vmem:[#allocation3 + $0xf0] sm:$0xff]
    %v2525 = vld [vmem:[#allocation3 + $0xf8] sm:$0xff]
    %v2526 = vld [vmem:[%s1] sm:$0xf]
    %v2527 = vld [vmem:[%s1 + $0x4] sm:$0xf]
    %v2528 = vld [vmem:[%s1 + $0x8] sm:$0xf]
    %v2529 = vld [vmem:[%s1 + $0xc] sm:$0xf]
    %v2530 = vld [vmem:[%s1 + $0x10] sm:$0xf]
    %v2531 = vld [vmem:[%s1 + $0x14] sm:$0xf]
    %v2532 = vld [vmem:[%s1 + $0x18] sm:$0xf]
    %v2533 = vld [vmem:[%s1 + $0x1c] sm:$0xf]
    %v2534 = vld [vmem:[%s1 + $0x20] sm:$0xf]
    %v2544 = vunpack.c.l.b16 %v2526
    %v2545 = vunpack.c.l.b16 %v2527
    %v2546 = vunpack.c.l.b16 %v2528
    %v2547 = vunpack.c.l.b16 %v2529
    %v2548 = vunpack.c.l.b16 %v2530
    %v2549 = vunpack.c.l.b16 %v2531
    %v2550 = vunpack.c.l.b16 %v2532
    %v2551 = vunpack.c.l.b16 %v2533
    %v2552 = vunpack.c.l.b16 %v2534
    %v2553 = vpack.c.b16 %v2545, %v2544
    %v2554 = vpack.c.b16 %v2547, %v2546
    %v2555 = vpack.c.b16 %v2549, %v2548
    %v2556 = vpack.c.b16 %v2551, %v2550
    %v2557 = vpack.c.b16 %v2552, %v2552
    %vm2562 = vcmask 588800
    %v2564 = vsel %vm2562, %v2494, 0
    %v2567 = vsel %vm2562, %v2495, 0
    %v2570 = vsel %vm2562, %v2496, 0
    %v2573 = vsel %vm2562, %v2497, 0
    %v2576 = vsel %vm2562, %v2498, 0
    %v2579 = vsel %vm2562, %v2499, 0
    %v2582 = vsel %vm2562, %v2500, 0
    %v2585 = vsel %vm2562, %v2501, 0
    %v2588 = vsel %vm2562, %v2502, 0
    %v2591 = vsel %vm2562, %v2503, 0
    %v2594 = vsel %vm2562, %v2504, 0
    %v2597 = vsel %vm2562, %v2505, 0
    %v2600 = vsel %vm2562, %v2506, 0
    %v2603 = vsel %vm2562, %v2507, 0
    %v2606 = vsel %vm2562, %v2508, 0
    %v2609 = vsel %vm2562, %v2509, 0
    %v2612 = vsel %vm2562, %v2510, 0
    %v2615 = vsel %vm2562, %v2511, 0
    %v2618 = vsel %vm2562, %v2512, 0
    %v2621 = vsel %vm2562, %v2513, 0
    %v2624 = vsel %vm2562, %v2514, 0
    %v2627 = vsel %vm2562, %v2515, 0
    %v2630 = vsel %vm2562, %v2516, 0
    %v2633 = vsel %vm2562, %v2517, 0
    %v2636 = vsel %vm2562, %v2518, 0
    %v2639 = vsel %vm2562, %v2519, 0
    %v2642 = vsel %vm2562, %v2520, 0
    %v2645 = vsel %vm2562, %v2521, 0
    %v2648 = vsel %vm2562, %v2522, 0
    %v2651 = vsel %vm2562, %v2523, 0
    %v2654 = vsel %vm2562, %v2524, 0
    %v2657 = vsel %vm2562, %v2525, 0
    %vm2659 = vcmask 1043456
    %v2661 = vsel %vm2659, %v2557, 0
    %2663 = vmatprep.subr.bf16.mxu0 0
    %2664 = vmatpush1.bf16.msra.mxu0 %v2553
    %2665 = vmatprep.subr.bf16.mxu0 0
    %2666 = vmatpush1.bf16.msra.mxu0 %v2554
    %2667 = vmatprep.subr.bf16.mxu0 0
    %2668 = vmatpush1.bf16.msra.mxu0 %v2555
    %2669 = vmatprep.subr.bf16.mxu0 0
    %2670 = vmatpush1.bf16.msra.mxu0 %v2556
    %2671 = vmatprep.subr.bf16.mxu0 0
    %2672 = vmatpush1.bf16.msra.mxu0 %v2661
    %2673 = vmatprep.subr.bf16.mxu0 0
    %2674 = vmatpush1.bf16.msra.mxu0 0
    %2675 = vmatprep.subr.bf16.mxu0 0
    %2676 = vmatpush1.bf16.msra.mxu0 0
    %2677 = vmatprep.subr.bf16.mxu0 0
    %2678 = vmatpush1.bf16.msra.mxu0 0
    %2679 = vmatprep.subr.bf16.mxu0 0
    %2680 = vmatpush1.bf16.msra.mxu0 0
    %2681 = vmatprep.subr.bf16.mxu0 0
    %2682 = vmatpush1.bf16.msra.mxu0 0
    %2683 = vmatprep.subr.bf16.mxu0 0
    %2684 = vmatpush1.bf16.msra.mxu0 0
    %2685 = vmatprep.subr.bf16.mxu0 0
    %2686 = vmatpush1.bf16.msra.mxu0 0
    %2687 = vmatprep.subr.bf16.mxu0 0
    %2688 = vmatpush1.bf16.msra.mxu0 0
    %2689 = vmatprep.subr.bf16.mxu0 0
    %2690 = vmatpush1.bf16.msra.mxu0 0
    %2691 = vmatprep.subr.bf16.mxu0 0
    %2692 = vmatpush1.bf16.msra.mxu0 0
    %2693 = vmatprep.subr.bf16.mxu0 0
    %2694 = vmatpush1.bf16.msra.mxu0 0
    %2695 = vmatprep.mubr.bf16.mxu0 0
    %2696 = vmatmul.mubr.bf16.gmra.mrb[0].mxu0 %v2564
    %v2697 = vpop.f32.mrb[0].mxu0
    %v2698 = vadd.f32 0.0, %v2697
    %v2699 = vpop.f32.mrb[0].mxu0
    %v2700 = vpop.f32.mrb[0].mxu0
    %v2701 = vadd.f32 0.0, %v2700
    %v2702 = vpop.f32.mrb[0].mxu0
    %2703 = vmatprep.mubr.bf16.mxu0 0
    %2704 = vmatmul.mubr.bf16.gmra.mrb[0].mxu0 %v2567
    %v2705 = vpop.f32.mrb[0].mxu0
    %v2706 = vadd.f32 0.0, %v2705
    %v2707 = vpop.f32.mrb[0].mxu0
    %v2708 = vpop.f32.mrb[0].mxu0
    %v2709 = vadd.f32 0.0, %v2708
    %v2710 = vpop.f32.mrb[0].mxu0
    %2711 = vmatprep.mubr.bf16.mxu0 0
    %2712 = vmatmul.mubr.bf16.gmra.mrb[0].mxu0 %v2570
    %v2713 = vpop.f32.mrb[0].mxu0
    %v2714 = vadd.f32 0.0, %v2713
    %v2715 = vpop.f32.mrb[0].mxu0
    %v2716 = vpop.f32.mrb[0].mxu0
    %v2717 = vadd.f32 0.0, %v2716
    %v2718 = vpop.f32.mrb[0].mxu0
    %2719 = vmatprep.mubr.bf16.mxu0 0
    %2720 = vmatmul.mubr.bf16.gmra.mrb[0].mxu0 %v2573
    %v2721 = vpop.f32.mrb[0].mxu0
    %v2722 = vadd.f32 0.0, %v2721
    %v2723 = vpop.f32.mrb[0].mxu0
    %v2724 = vpop.f32.mrb[0].mxu0
    %v2725 = vadd.f32 0.0, %v2724
    %v2726 = vpop.f32.mrb[0].mxu0
    %2727 = vmatprep.mubr.bf16.mxu0 0
    %2728 = vmatmul.mubr.bf16.gmra.mrb[0].mxu0 %v2576
    %v2729 = vpop.f32.mrb[0].mxu0
    %v2730 = vadd.f32 0.0, %v2729
    %v2731 = vpop.f32.mrb[0].mxu0
    %v2732 = vpop.f32.mrb[0].mxu0
    %v2733 = vadd.f32 0.0, %v2732
    %v2734 = vpop.f32.mrb[0].mxu0
    %2735 = vmatprep.mubr.bf16.mxu0 0
    %2736 = vmatmul.mubr.bf16.gmra.mrb[0].mxu0 %v2579
    %v2737 = vpop.f32.mrb[0].mxu0
    %v2738 = vadd.f32 0.0, %v2737
    %v2739 = vpop.f32.mrb[0].mxu0
    %v2740 = vpop.f32.mrb[0].mxu0
    %v2741 = vadd.f32 0.0, %v2740
    %v2742 = vpop.f32.mrb[0].mxu0
    %2743 = vmatprep.mubr.bf16.mxu0 0
    %2744 = vmatmul.mubr.bf16.gmra.mrb[0].mxu0 %v2582
    %v2745 = vpop.f32.mrb[0].mxu0
    %v2746 = vadd.f32 0.0, %v2745
    %v2747 = vpop.f32.mrb[0].mxu0
    %v2748 = vpop.f32.mrb[0].mxu0
    %v2749 = vadd.f32 0.0, %v2748
    %v2750 = vpop.f32.mrb[0].mxu0
    %2751 = vmatprep.mubr.bf16.mxu0 0
    %2752 = vmatmul.mubr.bf16.gmra.mrb[0].mxu0 %v2585
    %v2753 = vpop.f32.mrb[0].mxu0
    %v2754 = vadd.f32 0.0, %v2753
    %v2755 = vpop.f32.mrb[0].mxu0
    %v2756 = vpop.f32.mrb[0].mxu0
    %v2757 = vadd.f32 0.0, %v2756
    %v2758 = vpop.f32.mrb[0].mxu0
    %2759 = vmatprep.mubr.bf16.mxu0 0
    %2760 = vmatmul.mubr.bf16.gmra.mrb[0].mxu0 %v2588
    %v2761 = vpop.f32.mrb[0].mxu0
    %v2762 = vadd.f32 0.0, %v2761
    %v2763 = vpop.f32.mrb[0].mxu0
    %v2764 = vpop.f32.mrb[0].mxu0
    %v2765 = vadd.f32 0.0, %v2764
    %v2766 = vpop.f32.mrb[0].mxu0
    %2767 = vmatprep.mubr.bf16.mxu0 0
    %2768 = vmatmul.mubr.bf16.gmra.mrb[0].mxu0 %v2591
    %v2769 = vpop.f32.mrb[0].mxu0
    %v2770 = vadd.f32 0.0, %v2769
    %v2771 = vpop.f32.mrb[0].mxu0
    %v2772 = vpop.f32.mrb[0].mxu0
    %v2773 = vadd.f32 0.0, %v2772
    %v2774 = vpop.f32.mrb[0].mxu0
    %2775 = vmatprep.mubr.bf16.mxu0 0
    %2776 = vmatmul.mubr.bf16.gmra.mrb[0].mxu0 %v2594
    %v2777 = vpop.f32.mrb[0].mxu0
    %v2778 = vadd.f32 0.0, %v2777
    %v2779 = vpop.f32.mrb[0].mxu0
    %v2780 = vpop.f32.mrb[0].mxu0
    %v2781 = vadd.f32 0.0, %v2780
    %v2782 = vpop.f32.mrb[0].mxu0
    %2783 = vmatprep.mubr.bf16.mxu0 0
    %2784 = vmatmul.mubr.bf16.gmra.mrb[0].mxu0 %v2597
    %v2785 = vpop.f32.mrb[0].mxu0
    %v2786 = vadd.f32 0.0, %v2785
    %v2787 = vpop.f32.mrb[0].mxu0
    %v2788 = vpop.f32.mrb[0].mxu0
    %v2789 = vadd.f32 0.0, %v2788
    %v2790 = vpop.f32.mrb[0].mxu0
    %2791 = vmatprep.mubr.bf16.mxu0 0
    %2792 = vmatmul.mubr.bf16.gmra.mrb[0].mxu0 %v2600
    %v2793 = vpop.f32.mrb[0].mxu0
    %v2794 = vadd.f32 0.0, %v2793
    %v2795 = vpop.f32.mrb[0].mxu0
    %v2796 = vpop.f32.mrb[0].mxu0
    %v2797 = vadd.f32 0.0, %v2796
    %v2798 = vpop.f32.mrb[0].mxu0
    %2799 = vmatprep.mubr.bf16.mxu0 0
    %2800 = vmatmul.mubr.bf16.gmra.mrb[0].mxu0 %v2603
    %v2801 = vpop.f32.mrb[0].mxu0
    %v2802 = vadd.f32 0.0, %v2801
    %v2803 = vpop.f32.mrb[0].mxu0
    %v2804 = vpop.f32.mrb[0].mxu0
    %v2805 = vadd.f32 0.0, %v2804
    %v2806 = vpop.f32.mrb[0].mxu0
    %2807 = vmatprep.mubr.bf16.mxu0 0
    %2808 = vmatmul.mubr.bf16.gmra.mrb[0].mxu0 %v2606
    %v2809 = vpop.f32.mrb[0].mxu0
    %v2810 = vadd.f32 0.0, %v2809
    %v2811 = vpop.f32.mrb[0].mxu0
    %v2812 = vpop.f32.mrb[0].mxu0
    %v2813 = vadd.f32 0.0, %v2812
    %v2814 = vpop.f32.mrb[0].mxu0
    %2815 = vmatprep.mubr.bf16.mxu0 0
    %2816 = vmatmul.mubr.bf16.gmra.mrb[0].mxu0 %v2609
    %v2817 = vpop.f32.mrb[0].mxu0
    %v2818 = vadd.f32 0.0, %v2817
    %v2819 = vpop.f32.mrb[0].mxu0
    %v2820 = vpop.f32.mrb[0].mxu0
    %v2821 = vadd.f32 0.0, %v2820
    %v2822 = vpop.f32.mrb[0].mxu0
    %2823 = vmatprep.mubr.bf16.mxu0 0
    %2824 = vmatmul.mubr.bf16.gmra.mrb[0].mxu0 %v2612
    %v2825 = vpop.f32.mrb[0].mxu0
    %v2826 = vadd.f32 0.0, %v2825
    %v2827 = vpop.f32.mrb[0].mxu0
    %v2828 = vpop.f32.mrb[0].mxu0
    %v2829 = vadd.f32 0.0, %v2828
    %v2830 = vpop.f32.mrb[0].mxu0
    %2831 = vmatprep.mubr.bf16.mxu0 0
    %2832 = vmatmul.mubr.bf16.gmra.mrb[0].mxu0 %v2615
    %v2833 = vpop.f32.mrb[0].mxu0
    %v2834 = vadd.f32 0.0, %v2833
    %v2835 = vpop.f32.mrb[0].mxu0
    %v2836 = vpop.f32.mrb[0].mxu0
    %v2837 = vadd.f32 0.0, %v2836
    %v2838 = vpop.f32.mrb[0].mxu0
    %2839 = vmatprep.mubr.bf16.mxu0 0
    %2840 = vmatmul.mubr.bf16.gmra.mrb[0].mxu0 %v2618
    %v2841 = vpop.f32.mrb[0].mxu0
    %v2842 = vadd.f32 0.0, %v2841
    %v2843 = vpop.f32.mrb[0].mxu0
    %v2844 = vpop.f32.mrb[0].mxu0
    %v2845 = vadd.f32 0.0, %v2844
    %v2846 = vpop.f32.mrb[0].mxu0
    %2847 = vmatprep.mubr.bf16.mxu0 0
    %2848 = vmatmul.mubr.bf16.gmra.mrb[0].mxu0 %v2621
    %v2849 = vpop.f32.mrb[0].mxu0
    %v2850 = vadd.f32 0.0, %v2849
    %v2851 = vpop.f32.mrb[0].mxu0
    %v2852 = vpop.f32.mrb[0].mxu0
    %v2853 = vadd.f32 0.0, %v2852
    %v2854 = vpop.f32.mrb[0].mxu0
    %2855 = vmatprep.mubr.bf16.mxu0 0
    %2856 = vmatmul.mubr.bf16.gmra.mrb[0].mxu0 %v2624
    %v2857 = vpop.f32.mrb[0].mxu0
    %v2858 = vadd.f32 0.0, %v2857
    %v2859 = vpop.f32.mrb[0].mxu0
    %v2860 = vpop.f32.mrb[0].mxu0
    %v2861 = vadd.f32 0.0, %v2860
    %v2862 = vpop.f32.mrb[0].mxu0
    %2863 = vmatprep.mubr.bf16.mxu0 0
    %2864 = vmatmul.mubr.bf16.gmra.mrb[0].mxu0 %v2627
    %v2865 = vpop.f32.mrb[0].mxu0
    %v2866 = vadd.f32 0.0, %v2865
    %v2867 = vpop.f32.mrb[0].mxu0
    %v2868 = vpop.f32.mrb[0].mxu0
    %v2869 = vadd.f32 0.0, %v2868
    %v2870 = vpop.f32.mrb[0].mxu0
    %2871 = vmatprep.mubr.bf16.mxu0 0
    %2872 = vmatmul.mubr.bf16.gmra.mrb[0].mxu0 %v2630
    %v2873 = vpop.f32.mrb[0].mxu0
    %v2874 = vadd.f32 0.0, %v2873
    %v2875 = vpop.f32.mrb[0].mxu0
    %v2876 = vpop.f32.mrb[0].mxu0
    %v2877 = vadd.f32 0.0, %v2876
    %v2878 = vpop.f32.mrb[0].mxu0
    %2879 = vmatprep.mubr.bf16.mxu0 0
    %2880 = vmatmul.mubr.bf16.gmra.mrb[0].mxu0 %v2633
    %v2881 = vpop.f32.mrb[0].mxu0
    %v2882 = vadd.f32 0.0, %v2881
    %v2883 = vpop.f32.mrb[0].mxu0
    %v2884 = vpop.f32.mrb[0].mxu0
    %v2885 = vadd.f32 0.0, %v2884
    %v2886 = vpop.f32.mrb[0].mxu0
    %2887 = vmatprep.mubr.bf16.mxu0 0
    %2888 = vmatmul.mubr.bf16.gmra.mrb[0].mxu0 %v2636
    %v2889 = vpop.f32.mrb[0].mxu0
    %v2890 = vadd.f32 0.0, %v2889
    %v2891 = vpop.f32.mrb[0].mxu0
    %v2892 = vpop.f32.mrb[0].mxu0
    %v2893 = vadd.f32 0.0, %v2892
    %v2894 = vpop.f32.mrb[0].mxu0
    %2895 = vmatprep.mubr.bf16.mxu0 0
    %2896 = vmatmul.mubr.bf16.gmra.mrb[0].mxu0 %v2639
    %v2897 = vpop.f32.mrb[0].mxu0
    %v2898 = vadd.f32 0.0, %v2897
    %v2899 = vpop.f32.mrb[0].mxu0
    %v2900 = vpop.f32.mrb[0].mxu0
    %v2901 = vadd.f32 0.0, %v2900
    %v2902 = vpop.f32.mrb[0].mxu0
    %2903 = vmatprep.mubr.bf16.mxu0 0
    %2904 = vmatmul.mubr.bf16.gmra.mrb[0].mxu0 %v2642
    %v2905 = vpop.f32.mrb[0].mxu0
    %v2906 = vadd.f32 0.0, %v2905
    %v2907 = vpop.f32.mrb[0].mxu0
    %v2908 = vpop.f32.mrb[0].mxu0
    %v2909 = vadd.f32 0.0, %v2908
    %v2910 = vpop.f32.mrb[0].mxu0
    %2911 = vmatprep.mubr.bf16.mxu0 0
    %2912 = vmatmul.mubr.bf16.gmra.mrb[0].mxu0 %v2645
    %v2913 = vpop.f32.mrb[0].mxu0
    %v2914 = vadd.f32 0.0, %v2913
    %v2915 = vpop.f32.mrb[0].mxu0
    %v2916 = vpop.f32.mrb[0].mxu0
    %v2917 = vadd.f32 0.0, %v2916
    %v2918 = vpop.f32.mrb[0].mxu0
    %2919 = vmatprep.mubr.bf16.mxu0 0
    %2920 = vmatmul.mubr.bf16.gmra.mrb[0].mxu0 %v2648
    %v2921 = vpop.f32.mrb[0].mxu0
    %v2922 = vadd.f32 0.0, %v2921
    %v2923 = vpop.f32.mrb[0].mxu0
    %v2924 = vpop.f32.mrb[0].mxu0
    %v2925 = vadd.f32 0.0, %v2924
    %v2926 = vpop.f32.mrb[0].mxu0
    %2927 = vmatprep.mubr.bf16.mxu0 0
    %2928 = vmatmul.mubr.bf16.gmra.mrb[0].mxu0 %v2651
    %v2929 = vpop.f32.mrb[0].mxu0
    %v2930 = vadd.f32 0.0, %v2929
    %v2931 = vpop.f32.mrb[0].mxu0
    %v2932 = vpop.f32.mrb[0].mxu0
    %v2933 = vadd.f32 0.0, %v2932
    %v2934 = vpop.f32.mrb[0].mxu0
    %2935 = vmatprep.mubr.bf16.mxu0 0
    %2936 = vmatmul.mubr.bf16.gmra.mrb[0].mxu0 %v2654
    %v2937 = vpop.f32.mrb[0].mxu0
    %v2938 = vadd.f32 0.0, %v2937
    %v2939 = vpop.f32.mrb[0].mxu0
    %v2940 = vpop.f32.mrb[0].mxu0
    %v2941 = vadd.f32 0.0, %v2940
    %v2942 = vpop.f32.mrb[0].mxu0
    %2943 = vmatprep.mubr.bf16.mxu0 0
    %2944 = vmatmul.mubr.bf16.gmra.mrb[0].mxu0 %v2657
    %v2945 = vpop.f32.mrb[0].mxu0
    %v2946 = vadd.f32 0.0, %v2945
    %v2947 = vpop.f32.mrb[0].mxu0
    %v2948 = vpop.f32.mrb[0].mxu0
    %v2949 = vadd.f32 0.0, %v2948
    %v2950 = vpop.f32.mrb[0].mxu0
    %2951 = vdwg.mxu0
    %v2952 = vld [vmem:[%s2] sm:$0x1]
    %v2954 = vlaneseq
    %v2955 = vshrl.u32 %v2954, 7
    %v2956 = vsub.s32 0, %v2955
    %v2957 = vrot.slane %v2952, %v2956
    %v2959 = vmul.f32 %v2698, %v2957
    %v2960 = vmul.f32 %v2701, %v2957
    %v2961 = vmul.f32 %v2706, %v2957
    %v2962 = vmul.f32 %v2709, %v2957
    %v2963 = vmul.f32 %v2714, %v2957
    %v2964 = vmul.f32 %v2717, %v2957
    %v2965 = vmul.f32 %v2722, %v2957
    %v2966 = vmul.f32 %v2725, %v2957
    %v2967 = vmul.f32 %v2730, %v2957
    %v2968 = vmul.f32 %v2733, %v2957
    %v2969 = vmul.f32 %v2738, %v2957
    %v2970 = vmul.f32 %v2741, %v2957
    %v2971 = vmul.f32 %v2746, %v2957
    %v2972 = vmul.f32 %v2749, %v2957
    %v2973 = vmul.f32 %v2754, %v2957
    %v2974 = vmul.f32 %v2757, %v2957
    %v2975 = vmul.f32 %v2762, %v2957
    %v2976 = vmul.f32 %v2765, %v2957
    %v2977 = vmul.f32 %v2770, %v2957
    %v2978 = vmul.f32 %v2773, %v2957
    %v2979 = vmul.f32 %v2778, %v2957
    %v2980 = vmul.f32 %v2781, %v2957
    %v2981 = vmul.f32 %v2786, %v2957
    %v2982 = vmul.f32 %v2789, %v2957
    %v2983 = vmul.f32 %v2794, %v2957
    %v2984 = vmul.f32 %v2797, %v2957
    %v2985 = vmul.f32 %v2802, %v2957
    %v2986 = vmul.f32 %v2805, %v2957
    %v2987 = vmul.f32 %v2810, %v2957
    %v2988 = vmul.f32 %v2813, %v2957
    %v2989 = vmul.f32 %v2818, %v2957
    %v2990 = vmul.f32 %v2821, %v2957
    %v2991 = vmul.f32 %v2826, %v2957
    %v2992 = vmul.f32 %v2829, %v2957
    %v2993 = vmul.f32 %v2834, %v2957
    %v2994 = vmul.f32 %v2837, %v2957
    %v2995 = vmul.f32 %v2842, %v2957
    %v2996 = vmul.f32 %v2845, %v2957
    %v2997 = vmul.f32 %v2850, %v2957
    %v2998 = vmul.f32 %v2853, %v2957
    %v2999 = vmul.f32 %v2858, %v2957
    %v3000 = vmul.f32 %v2861, %v2957
    %v3001 = vmul.f32 %v2866, %v2957
    %v3002 = vmul.f32 %v2869, %v2957
    %v3003 = vmul.f32 %v2874, %v2957
    %v3004 = vmul.f32 %v2877, %v2957
    %v3005 = vmul.f32 %v2882, %v2957
    %v3006 = vmul.f32 %v2885, %v2957
    %v3007 = vmul.f32 %v2890, %v2957
    %v3008 = vmul.f32 %v2893, %v2957
    %v3009 = vmul.f32 %v2898, %v2957
    %v3010 = vmul.f32 %v2901, %v2957
    %v3011 = vmul.f32 %v2906, %v2957
    %v3012 = vmul.f32 %v2909, %v2957
    %v3013 = vmul.f32 %v2914, %v2957
    %v3014 = vmul.f32 %v2917, %v2957
    %v3015 = vmul.f32 %v2922, %v2957
    %v3016 = vmul.f32 %v2925, %v2957
    %v3017 = vmul.f32 %v2930, %v2957
    %v3018 = vmul.f32 %v2933, %v2957
    %v3019 = vmul.f32 %v2938, %v2957
    %v3020 = vmul.f32 %v2941, %v2957
    %v3021 = vmul.f32 %v2946, %v2957
    %v3022 = vmul.f32 %v2949, %v2957
    %v3023 = vld [vmem:[%s3] sm:$0x1]
    %v3025 = vlaneseq
    %v3026 = vshrl.u32 %v3025, 7
    %v3027 = vsub.s32 0, %v3026
    %v3028 = vrot.slane %v3023, %v3027
    %v3030 = vadd.f32 %v2959, %v3028
    %v3031 = vadd.f32 %v2960, %v3028
    %v3032 = vadd.f32 %v2961, %v3028
    %v3033 = vadd.f32 %v2962, %v3028
    %v3034 = vadd.f32 %v2963, %v3028
    %v3035 = vadd.f32 %v2964, %v3028
    %v3036 = vadd.f32 %v2965, %v3028
    %v3037 = vadd.f32 %v2966, %v3028
    %v3038 = vadd.f32 %v2967, %v3028
    %v3039 = vadd.f32 %v2968, %v3028
    %v3040 = vadd.f32 %v2969, %v3028
    %v3041 = vadd.f32 %v2970, %v3028
    %v3042 = vadd.f32 %v2971, %v3028
    %v3043 = vadd.f32 %v2972, %v3028
    %v3044 = vadd.f32 %v2973, %v3028
    %v3045 = vadd.f32 %v2974, %v3028
    %v3046 = vadd.f32 %v2975, %v3028
    %v3047 = vadd.f32 %v2976, %v3028
    %v3048 = vadd.f32 %v2977, %v3028
    %v3049 = vadd.f32 %v2978, %v3028
    %v3050 = vadd.f32 %v2979, %v3028
    %v3051 = vadd.f32 %v2980, %v3028
    %v3052 = vadd.f32 %v2981, %v3028
    %v3053 = vadd.f32 %v2982, %v3028
    %v3054 = vadd.f32 %v2983, %v3028
    %v3055 = vadd.f32 %v2984, %v3028
    %v3056 = vadd.f32 %v2985, %v3028
    %v3057 = vadd.f32 %v2986, %v3028
    %v3058 = vadd.f32 %v2987, %v3028
    %v3059 = vadd.f32 %v2988, %v3028
    %v3060 = vadd.f32 %v2989, %v3028
    %v3061 = vadd.f32 %v2990, %v3028
    %v3062 = vadd.f32 %v2991, %v3028
    %v3063 = vadd.f32 %v2992, %v3028
    %v3064 = vadd.f32 %v2993, %v3028
    %v3065 = vadd.f32 %v2994, %v3028
    %v3066 = vadd.f32 %v2995, %v3028
    %v3067 = vadd.f32 %v2996, %v3028
    %v3068 = vadd.f32 %v2997, %v3028
    %v3069 = vadd.f32 %v2998, %v3028
    %v3070 = vadd.f32 %v2999, %v3028
    %v3071 = vadd.f32 %v3000, %v3028
    %v3072 = vadd.f32 %v3001, %v3028
    %v3073 = vadd.f32 %v3002, %v3028
    %v3074 = vadd.f32 %v3003, %v3028
    %v3075 = vadd.f32 %v3004, %v3028
    %v3076 = vadd.f32 %v3005, %v3028
    %v3077 = vadd.f32 %v3006, %v3028
    %v3078 = vadd.f32 %v3007, %v3028
    %v3079 = vadd.f32 %v3008, %v3028
    %v3080 = vadd.f32 %v3009, %v3028
    %v3081 = vadd.f32 %v3010, %v3028
    %v3082 = vadd.f32 %v3011, %v3028
    %v3083 = vadd.f32 %v3012, %v3028
    %v3084 = vadd.f32 %v3013, %v3028
    %v3085 = vadd.f32 %v3014, %v3028
    %v3086 = vadd.f32 %v3015, %v3028
    %v3087 = vadd.f32 %v3016, %v3028
    %v3088 = vadd.f32 %v3017, %v3028
    %v3089 = vadd.f32 %v3018, %v3028
    %v3090 = vadd.f32 %v3019, %v3028
    %v3091 = vadd.f32 %v3020, %v3028
    %v3092 = vadd.f32 %v3021, %v3028
    %v3093 = vadd.f32 %v3022, %v3028
    %v3094 = vmax.f32 %v3030, 0.0
    %v3095 = vmax.f32 %v3031, 0.0
    %v3096 = vmax.f32 %v3032, 0.0
    %v3097 = vmax.f32 %v3033, 0.0
    %v3098 = vmax.f32 %v3034, 0.0
    %v3099 = vmax.f32 %v3035, 0.0
    %v3100 = vmax.f32 %v3036, 0.0
    %v3101 = vmax.f32 %v3037, 0.0
    %v3102 = vmax.f32 %v3038, 0.0
    %v3103 = vmax.f32 %v3039, 0.0
    %v3104 = vmax.f32 %v3040, 0.0
    %v3105 = vmax.f32 %v3041, 0.0
    %v3106 = vmax.f32 %v3042, 0.0
    %v3107 = vmax.f32 %v3043, 0.0
    %v3108 = vmax.f32 %v3044, 0.0
    %v3109 = vmax.f32 %v3045, 0.0
    %v3110 = vmax.f32 %v3046, 0.0
    %v3111 = vmax.f32 %v3047, 0.0
    %v3112 = vmax.f32 %v3048, 0.0
    %v3113 = vmax.f32 %v3049, 0.0
    %v3114 = vmax.f32 %v3050, 0.0
    %v3115 = vmax.f32 %v3051, 0.0
    %v3116 = vmax.f32 %v3052, 0.0
    %v3117 = vmax.f32 %v3053, 0.0
    %v3118 = vmax.f32 %v3054, 0.0
    %v3119 = vmax.f32 %v3055, 0.0
    %v3120 = vmax.f32 %v3056, 0.0
    %v3121 = vmax.f32 %v3057, 0.0
    %v3122 = vmax.f32 %v3058, 0.0
    %v3123 = vmax.f32 %v3059, 0.0
    %v3124 = vmax.f32 %v3060, 0.0
    %v3125 = vmax.f32 %v3061, 0.0
    %v3126 = vmax.f32 %v3062, 0.0
    %v3127 = vmax.f32 %v3063, 0.0
    %v3128 = vmax.f32 %v3064, 0.0
    %v3129 = vmax.f32 %v3065, 0.0
    %v3130 = vmax.f32 %v3066, 0.0
    %v3131 = vmax.f32 %v3067, 0.0
    %v3132 = vmax.f32 %v3068, 0.0
    %v3133 = vmax.f32 %v3069, 0.0
    %v3134 = vmax.f32 %v3070, 0.0
    %v3135 = vmax.f32 %v3071, 0.0
    %v3136 = vmax.f32 %v3072, 0.0
    %v3137 = vmax.f32 %v3073, 0.0
    %v3138 = vmax.f32 %v3074, 0.0
    %v3139 = vmax.f32 %v3075, 0.0
    %v3140 = vmax.f32 %v3076, 0.0
    %v3141 = vmax.f32 %v3077, 0.0
    %v3142 = vmax.f32 %v3078, 0.0
    %v3143 = vmax.f32 %v3079, 0.0
    %v3144 = vmax.f32 %v3080, 0.0
    %v3145 = vmax.f32 %v3081, 0.0
    %v3146 = vmax.f32 %v3082, 0.0
    %v3147 = vmax.f32 %v3083, 0.0
    %v3148 = vmax.f32 %v3084, 0.0
    %v3149 = vmax.f32 %v3085, 0.0
    %v3150 = vmax.f32 %v3086, 0.0
    %v3151 = vmax.f32 %v3087, 0.0
    %v3152 = vmax.f32 %v3088, 0.0
    %v3153 = vmax.f32 %v3089, 0.0
    %v3154 = vmax.f32 %v3090, 0.0
    %v3155 = vmax.f32 %v3091, 0.0
    %v3156 = vmax.f32 %v3092, 0.0
    %v3157 = vmax.f32 %v3093, 0.0
    %3158 = vst.msk [vmem:[%s244 + $0x1] sm:$0xff] %vm28, %v3094
    %3159 = vst.msk [vmem:[%s244 + $0x9] sm:$0xff] %vm28, %v3095
    %3160 = vst.msk [vmem:[%s244 + $0x19] sm:$0xff] %vm28, %v3096
    %3161 = vst.msk [vmem:[%s244 + $0x21] sm:$0xff] %vm28, %v3097
    %3162 = vst.msk [vmem:[%s244 + $0x31] sm:$0xff] %vm28, %v3098
    %3163 = vst.msk [vmem:[%s244 + $0x39] sm:$0xff] %vm28, %v3099
    %3164 = vst.msk [vmem:[%s244 + $0x49] sm:$0xff] %vm28, %v3100
    %3165 = vst.msk [vmem:[%s244 + $0x51] sm:$0xff] %vm28, %v3101
    %3166 = vst.msk [vmem:[%s244 + $0x61] sm:$0xff] %vm28, %v3102
    %3167 = vst.msk [vmem:[%s244 + $0x69] sm:$0xff] %vm28, %v3103
    %3168 = vst.msk [vmem:[%s244 + $0x79] sm:$0xff] %vm28, %v3104
    %3169 = vst.msk [vmem:[%s244 + $0x81] sm:$0xff] %vm28, %v3105
    %3170 = vst.msk [vmem:[%s244 + $0x91] sm:$0xff] %vm28, %v3106
    %3171 = vst.msk [vmem:[%s244 + $0x99] sm:$0xff] %vm28, %v3107
    %3172 = vst.msk [vmem:[%s244 + $0xa9] sm:$0xff] %vm28, %v3108
    %3173 = vst.msk [vmem:[%s244 + $0xb1] sm:$0xff] %vm28, %v3109
    %3174 = vst.msk [vmem:[%s244 + $0xc1] sm:$0xff] %vm28, %v3110
    %3175 = vst.msk [vmem:[%s244 + $0xc9] sm:$0xff] %vm28, %v3111
    %3176 = vst.msk [vmem:[%s244 + $0xd9] sm:$0xff] %vm28, %v3112
    %3177 = vst.msk [vmem:[%s244 + $0xe1] sm:$0xff] %vm28, %v3113
    %3178 = vst.msk [vmem:[%s244 + $0xf1] sm:$0xff] %vm28, %v3114
    %3179 = vst.msk [vmem:[%s244 + $0xf9] sm:$0xff] %vm28, %v3115
    %3180 = vst.msk [vmem:[%s244 + $0x109] sm:$0xff] %vm28, %v3116
    %3181 = vst.msk [vmem:[%s244 + $0x111] sm:$0xff] %vm28, %v3117
    %3182 = vst.msk [vmem:[%s244 + $0x121] sm:$0xff] %vm28, %v3118
    %3183 = vst.msk [vmem:[%s244 + $0x129] sm:$0xff] %vm28, %v3119
    %3184 = vst.msk [vmem:[%s244 + $0x139] sm:$0xff] %vm28, %v3120
    %3185 = vst.msk [vmem:[%s244 + $0x141] sm:$0xff] %vm28, %v3121
    %3186 = vst.msk [vmem:[%s244 + $0x151] sm:$0xff] %vm28, %v3122
    %3187 = vst.msk [vmem:[%s244 + $0x159] sm:$0xff] %vm28, %v3123
    %3188 = vst.msk [vmem:[%s244 + $0x169] sm:$0xff] %vm28, %v3124
    %3189 = vst.msk [vmem:[%s244 + $0x171] sm:$0xff] %vm28, %v3125
    %3190 = vst.msk [vmem:[%s244 + $0x1b1] sm:$0xff] %vm28, %v3126
    %3191 = vst.msk [vmem:[%s244 + $0x1b9] sm:$0xff] %vm28, %v3127
    %3192 = vst.msk [vmem:[%s244 + $0x1c9] sm:$0xff] %vm28, %v3128
    %3193 = vst.msk [vmem:[%s244 + $0x1d1] sm:$0xff] %vm28, %v3129
    %3194 = vst.msk [vmem:[%s244 + $0x1e1] sm:$0xff] %vm28, %v3130
    %3195 = vst.msk [vmem:[%s244 + $0x1e9] sm:$0xff] %vm28, %v3131
    %3196 = vst.msk [vmem:[%s244 + $0x1f9] sm:$0xff] %vm28, %v3132
    %3197 = vst.msk [vmem:[%s244 + $0x201] sm:$0xff] %vm28, %v3133
    %3198 = vst.msk [vmem:[%s244 + $0x211] sm:$0xff] %vm28, %v3134
    %3199 = vst.msk [vmem:[%s244 + $0x219] sm:$0xff] %vm28, %v3135
    %3200 = vst.msk [vmem:[%s244 + $0x229] sm:$0xff] %vm28, %v3136
    %3201 = vst.msk [vmem:[%s244 + $0x231] sm:$0xff] %vm28, %v3137
    %3202 = vst.msk [vmem:[%s244 + $0x241] sm:$0xff] %vm28, %v3138
    %3203 = vst.msk [vmem:[%s244 + $0x249] sm:$0xff] %vm28, %v3139
    %3204 = vst.msk [vmem:[%s244 + $0x259] sm:$0xff] %vm28, %v3140
    %3205 = vst.msk [vmem:[%s244 + $0x261] sm:$0xff] %vm28, %v3141
    %3206 = vst.msk [vmem:[%s244 + $0x271] sm:$0xff] %vm28, %v3142
    %3207 = vst.msk [vmem:[%s244 + $0x279] sm:$0xff] %vm28, %v3143
    %3208 = vst.msk [vmem:[%s244 + $0x289] sm:$0xff] %vm28, %v3144
    %3209 = vst.msk [vmem:[%s244 + $0x291] sm:$0xff] %vm28, %v3145
    %3210 = vst.msk [vmem:[%s244 + $0x2a1] sm:$0xff] %vm28, %v3146
    %3211 = vst.msk [vmem:[%s244 + $0x2a9] sm:$0xff] %vm28, %v3147
    %3212 = vst.msk [vmem:[%s244 + $0x2b9] sm:$0xff] %vm28, %v3148
    %3213 = vst.msk [vmem:[%s244 + $0x2c1] sm:$0xff] %vm28, %v3149
    %3214 = vst.msk [vmem:[%s244 + $0x2d1] sm:$0xff] %vm28, %v3150
    %3215 = vst.msk [vmem:[%s244 + $0x2d9] sm:$0xff] %vm28, %v3151
    %3216 = vst.msk [vmem:[%s244 + $0x2e9] sm:$0xff] %vm28, %v3152
    %3217 = vst.msk [vmem:[%s244 + $0x2f1] sm:$0xff] %vm28, %v3153
    %3218 = vst.msk [vmem:[%s244 + $0x301] sm:$0xff] %vm28, %v3154
    %3219 = vst.msk [vmem:[%s244 + $0x309] sm:$0xff] %vm28, %v3155
    %3220 = vst.msk [vmem:[%s244 + $0x319] sm:$0xff] %vm28, %v3156
    %3221 = vst.msk [vmem:[%s244 + $0x321] sm:$0xff] %vm28, %v3157
    %v3222 = vld [vmem:[#allocation2] sm:$0xff]
    %v3223 = vld [vmem:[#allocation2 + $0x8] sm:$0xff]
    %v3224 = vld [vmem:[#allocation2 + $0x18] sm:$0xff]
    %v3225 = vld [vmem:[#allocation2 + $0x20] sm:$0xff]
    %v3226 = vld [vmem:[#allocation2 + $0x30] sm:$0xff]
    %v3227 = vld [vmem:[#allocation2 + $0x38] sm:$0xff]
    %v3228 = vld [vmem:[#allocation2 + $0x48] sm:$0xff]
    %v3229 = vld [vmem:[#allocation2 + $0x50] sm:$0xff]
    %v3230 = vld [vmem:[#allocation2 + $0x60] sm:$0xff]
    %v3231 = vld [vmem:[#allocation2 + $0x68] sm:$0xff]
    %v3232 = vld [vmem:[#allocation2 + $0x78] sm:$0xff]
    %v3233 = vld [vmem:[#allocation2 + $0x80] sm:$0xff]
    %v3234 = vld [vmem:[#allocation2 + $0x90] sm:$0xff]
    %v3235 = vld [vmem:[#allocation2 + $0x98] sm:$0xff]
    %v3236 = vld [vmem:[#allocation2 + $0xa8] sm:$0xff]
    %v3237 = vld [vmem:[#allocation2 + $0xb0] sm:$0xff]
    %v3238 = vld [vmem:[#allocation2 + $0xc0] sm:$0xff]
    %v3239 = vld [vmem:[#allocation2 + $0xc8] sm:$0xff]
    %v3240 = vld [vmem:[#allocation2 + $0xd8] sm:$0xff]
    %v3241 = vld [vmem:[#allocation2 + $0xe0] sm:$0xff]
    %v3242 = vld [vmem:[#allocation2 + $0xf0] sm:$0xff]
    %v3243 = vld [vmem:[#allocation2 + $0xf8] sm:$0xff]
    %v3244 = vld [vmem:[#allocation2 + $0x108] sm:$0xff]
    %v3245 = vld [vmem:[#allocation2 + $0x110] sm:$0xff]
    %v3246 = vld [vmem:[#allocation2 + $0x120] sm:$0xff]
    %v3247 = vld [vmem:[#allocation2 + $0x128] sm:$0xff]
    %v3248 = vld [vmem:[#allocation2 + $0x138] sm:$0xff]
    %v3249 = vld [vmem:[#allocation2 + $0x140] sm:$0xff]
    %v3250 = vld [vmem:[#allocation2 + $0x150] sm:$0xff]
    %v3251 = vld [vmem:[#allocation2 + $0x158] sm:$0xff]
    %v3252 = vld [vmem:[#allocation2 + $0x168] sm:$0xff]
    %v3253 = vld [vmem:[#allocation2 + $0x170] sm:$0xff]
    %v3254 = vld [vmem:[#allocation2 + $0x1b0] sm:$0xff]
    %v3255 = vld [vmem:[#allocation2 + $0x1b8] sm:$0xff]
    %v3256 = vld [vmem:[#allocation2 + $0x1c8] sm:$0xff]
    %v3257 = vld [vmem:[#allocation2 + $0x1d0] sm:$0xff]
    %v3258 = vld [vmem:[#allocation2 + $0x1e0] sm:$0xff]
    %v3259 = vld [vmem:[#allocation2 + $0x1e8] sm:$0xff]
    %v3260 = vld [vmem:[#allocation2 + $0x1f8] sm:$0xff]
    %v3261 = vld [vmem:[#allocation2 + $0x200] sm:$0xff]
    %v3262 = vld [vmem:[#allocation2 + $0x210] sm:$0xff]
    %v3263 = vld [vmem:[#allocation2 + $0x218] sm:$0xff]
    %v3264 = vld [vmem:[#allocation2 + $0x228] sm:$0xff]
    %v3265 = vld [vmem:[#allocation2 + $0x230] sm:$0xff]
    %v3266 = vld [vmem:[#allocation2 + $0x240] sm:$0xff]
    %v3267 = vld [vmem:[#allocation2 + $0x248] sm:$0xff]
    %v3268 = vld [vmem:[#allocation2 + $0x258] sm:$0xff]
    %v3269 = vld [vmem:[#allocation2 + $0x260] sm:$0xff]
    %v3270 = vld [vmem:[#allocation2 + $0x270] sm:$0xff]
    %v3271 = vld [vmem:[#allocation2 + $0x278] sm:$0xff]
    %v3272 = vld [vmem:[#allocation2 + $0x288] sm:$0xff]
    %v3273 = vld [vmem:[#allocation2 + $0x290] sm:$0xff]
    %v3274 = vld [vmem:[#allocation2 + $0x2a0] sm:$0xff]
    %v3275 = vld [vmem:[#allocation2 + $0x2a8] sm:$0xff]
    %v3276 = vld [vmem:[#allocation2 + $0x2b8] sm:$0xff]
    %v3277 = vld [vmem:[#allocation2 + $0x2c0] sm:$0xff]
    %v3278 = vld [vmem:[#allocation2 + $0x2d0] sm:$0xff]
    %v3279 = vld [vmem:[#allocation2 + $0x2d8] sm:$0xff]
    %v3280 = vld [vmem:[#allocation2 + $0x2e8] sm:$0xff]
    %v3281 = vld [vmem:[#allocation2 + $0x2f0] sm:$0xff]
    %v3282 = vld [vmem:[#allocation2 + $0x300] sm:$0xff]
    %v3283 = vld [vmem:[#allocation2 + $0x308] sm:$0xff]
    %v3284 = vld [vmem:[#allocation2 + $0x318] sm:$0xff]
    %v3285 = vld [vmem:[#allocation2 + $0x320] sm:$0xff]
    %v3286 = vpack.c.bf16 %v3223, %v3222
    %v3287 = vpack.c.bf16 %v3225, %v3224
    %v3288 = vpack.c.bf16 %v3227, %v3226
    %v3289 = vpack.c.bf16 %v3229, %v3228
    %v3290 = vpack.c.bf16 %v3231, %v3230
    %v3291 = vpack.c.bf16 %v3233, %v3232
    %v3292 = vpack.c.bf16 %v3235, %v3234
    %v3293 = vpack.c.bf16 %v3237, %v3236
    %v3294 = vpack.c.bf16 %v3239, %v3238
    %v3295 = vpack.c.bf16 %v3241, %v3240
    %v3296 = vpack.c.bf16 %v3243, %v3242
    %v3297 = vpack.c.bf16 %v3245, %v3244
    %v3298 = vpack.c.bf16 %v3247, %v3246
    %v3299 = vpack.c.bf16 %v3249, %v3248
    %v3300 = vpack.c.bf16 %v3251, %v3250
    %v3301 = vpack.c.bf16 %v3253, %v3252
    %v3302 = vpack.c.bf16 %v3255, %v3254
    %v3303 = vpack.c.bf16 %v3257, %v3256
    %v3304 = vpack.c.bf16 %v3259, %v3258
    %v3305 = vpack.c.bf16 %v3261, %v3260
    %v3306 = vpack.c.bf16 %v3263, %v3262
    %v3307 = vpack.c.bf16 %v3265, %v3264
    %v3308 = vpack.c.bf16 %v3267, %v3266
    %v3309 = vpack.c.bf16 %v3269, %v3268
    %v3310 = vpack.c.bf16 %v3271, %v3270
    %v3311 = vpack.c.bf16 %v3273, %v3272
    %v3312 = vpack.c.bf16 %v3275, %v3274
    %v3313 = vpack.c.bf16 %v3277, %v3276
    %v3314 = vpack.c.bf16 %v3279, %v3278
    %v3315 = vpack.c.bf16 %v3281, %v3280
    %v3316 = vpack.c.bf16 %v3283, %v3282
    %v3317 = vpack.c.bf16 %v3285, %v3284
    %3318 = vst.msk [vmem:[#allocation3] sm:$0xff] %vm28, %v3286
    %3319 = vst.msk [vmem:[#allocation3 + $0x8] sm:$0xff] %vm28, %v3287
    %3320 = vst.msk [vmem:[#allocation3 + $0x10] sm:$0xff] %vm28, %v3288
    %3321 = vst.msk [vmem:[#allocation3 + $0x18] sm:$0xff] %vm28, %v3289
    %3322 = vst.msk [vmem:[#allocation3 + $0x20] sm:$0xff] %vm28, %v3290
    %3323 = vst.msk [vmem:[#allocation3 + $0x28] sm:$0xff] %vm28, %v3291
    %3324 = vst.msk [vmem:[#allocation3 + $0x30] sm:$0xff] %vm28, %v3292
    %3325 = vst.msk [vmem:[#allocation3 + $0x38] sm:$0xff] %vm28, %v3293
    %3326 = vst.msk [vmem:[#allocation3 + $0x40] sm:$0xff] %vm28, %v3294
    %3327 = vst.msk [vmem:[#allocation3 + $0x48] sm:$0xff] %vm28, %v3295
    %3328 = vst.msk [vmem:[#allocation3 + $0x50] sm:$0xff] %vm28, %v3296
    %3329 = vst.msk [vmem:[#allocation3 + $0x58] sm:$0xff] %vm28, %v3297
    %3330 = vst.msk [vmem:[#allocation3 + $0x60] sm:$0xff] %vm28, %v3298
    %3331 = vst.msk [vmem:[#allocation3 + $0x68] sm:$0xff] %vm28, %v3299
    %3332 = vst.msk [vmem:[#allocation3 + $0x70] sm:$0xff] %vm28, %v3300
    %3333 = vst.msk [vmem:[#allocation3 + $0x78] sm:$0xff] %vm28, %v3301
    %3334 = vst.msk [vmem:[#allocation3 + $0x80] sm:$0xff] %vm28, %v3302
    %3335 = vst.msk [vmem:[#allocation3 + $0x88] sm:$0xff] %vm28, %v3303
    %3336 = vst.msk [vmem:[#allocation3 + $0x90] sm:$0xff] %vm28, %v3304
    %3337 = vst.msk [vmem:[#allocation3 + $0x98] sm:$0xff] %vm28, %v3305
    %3338 = vst.msk [vmem:[#allocation3 + $0xa0] sm:$0xff] %vm28, %v3306
    %3339 = vst.msk [vmem:[#allocation3 + $0xa8] sm:$0xff] %vm28, %v3307
    %3340 = vst.msk [vmem:[#allocation3 + $0xb0] sm:$0xff] %vm28, %v3308
    %3341 = vst.msk [vmem:[#allocation3 + $0xb8] sm:$0xff] %vm28, %v3309
    %3342 = vst.msk [vmem:[#allocation3 + $0xc0] sm:$0xff] %vm28, %v3310
    %3343 = vst.msk [vmem:[#allocation3 + $0xc8] sm:$0xff] %vm28, %v3311
    %3344 = vst.msk [vmem:[#allocation3 + $0xd0] sm:$0xff] %vm28, %v3312
    %3345 = vst.msk [vmem:[#allocation3 + $0xd8] sm:$0xff] %vm28, %v3313
    %3346 = vst.msk [vmem:[#allocation3 + $0xe0] sm:$0xff] %vm28, %v3314
    %3347 = vst.msk [vmem:[#allocation3 + $0xe8] sm:$0xff] %vm28, %v3315
    %3348 = vst.msk [vmem:[#allocation3 + $0xf0] sm:$0xff] %vm28, %v3316
    %3349 = vst.msk [vmem:[#allocation3 + $0xf8] sm:$0xff] %vm28, %v3317
    %v3350 = vld [vmem:[#allocation2 + $0x1] sm:$0xff]
    %v3351 = vld [vmem:[#allocation2 + $0x9] sm:$0xff]
    %v3352 = vld [vmem:[#allocation2 + $0x19] sm:$0xff]
    %v3353 = vld [vmem:[#allocation2 + $0x21] sm:$0xff]
    %v3354 = vld [vmem:[#allocation2 + $0x31] sm:$0xff]
    %v3355 = vld [vmem:[#allocation2 + $0x39] sm:$0xff]
    %v3356 = vld [vmem:[#allocation2 + $0x49] sm:$0xff]
    %v3357 = vld [vmem:[#allocation2 + $0x51] sm:$0xff]
    %v3358 = vld [vmem:[#allocation2 + $0x61] sm:$0xff]
    %v3359 = vld [vmem:[#allocation2 + $0x69] sm:$0xff]
    %v3360 = vld [vmem:[#allocation2 + $0x79] sm:$0xff]
    %v3361 = vld [vmem:[#allocation2 + $0x81] sm:$0xff]
    %v3362 = vld [vmem:[#allocation2 + $0x91] sm:$0xff]
    %v3363 = vld [vmem:[#allocation2 + $0x99] sm:$0xff]
    %v3364 = vld [vmem:[#allocation2 + $0xa9] sm:$0xff]
    %v3365 = vld [vmem:[#allocation2 + $0xb1] sm:$0xff]
    %v3366 = vld [vmem:[#allocation2 + $0xc1] sm:$0xff]
    %v3367 = vld [vmem:[#allocation2 + $0xc9] sm:$0xff]
    %v3368 = vld [vmem:[#allocation2 + $0xd9] sm:$0xff]
    %v3369 = vld [vmem:[#allocation2 + $0xe1] sm:$0xff]
    %v3370 = vld [vmem:[#allocation2 + $0xf1] sm:$0xff]
    %v3371 = vld [vmem:[#allocation2 + $0xf9] sm:$0xff]
    %v3372 = vld [vmem:[#allocation2 + $0x109] sm:$0xff]
    %v3373 = vld [vmem:[#allocation2 + $0x111] sm:$0xff]
    %v3374 = vld [vmem:[#allocation2 + $0x121] sm:$0xff]
    %v3375 = vld [vmem:[#allocation2 + $0x129] sm:$0xff]
    %v3376 = vld [vmem:[#allocation2 + $0x139] sm:$0xff]
    %v3377 = vld [vmem:[#allocation2 + $0x141] sm:$0xff]
    %v3378 = vld [vmem:[#allocation2 + $0x151] sm:$0xff]
    %v3379 = vld [vmem:[#allocation2 + $0x159] sm:$0xff]
    %v3380 = vld [vmem:[#allocation2 + $0x169] sm:$0xff]
    %v3381 = vld [vmem:[#allocation2 + $0x171] sm:$0xff]
    %v3382 = vld [vmem:[#allocation2 + $0x1b1] sm:$0xff]
    %v3383 = vld [vmem:[#allocation2 + $0x1b9] sm:$0xff]
    %v3384 = vld [vmem:[#allocation2 + $0x1c9] sm:$0xff]
    %v3385 = vld [vmem:[#allocation2 + $0x1d1] sm:$0xff]
    %v3386 = vld [vmem:[#allocation2 + $0x1e1] sm:$0xff]
    %v3387 = vld [vmem:[#allocation2 + $0x1e9] sm:$0xff]
    %v3388 = vld [vmem:[#allocation2 + $0x1f9] sm:$0xff]
    %v3389 = vld [vmem:[#allocation2 + $0x201] sm:$0xff]
    %v3390 = vld [vmem:[#allocation2 + $0x211] sm:$0xff]
    %v3391 = vld [vmem:[#allocation2 + $0x219] sm:$0xff]
    %v3392 = vld [vmem:[#allocation2 + $0x229] sm:$0xff]
    %v3393 = vld [vmem:[#allocation2 + $0x231] sm:$0xff]
    %v3394 = vld [vmem:[#allocation2 + $0x241] sm:$0xff]
    %v3395 = vld [vmem:[#allocation2 + $0x249] sm:$0xff]
    %v3396 = vld [vmem:[#allocation2 + $0x259] sm:$0xff]
    %v3397 = vld [vmem:[#allocation2 + $0x261] sm:$0xff]
    %v3398 = vld [vmem:[#allocation2 + $0x271] sm:$0xff]
    %v3399 = vld [vmem:[#allocation2 + $0x279] sm:$0xff]
    %v3400 = vld [vmem:[#allocation2 + $0x289] sm:$0xff]
    %v3401 = vld [vmem:[#allocation2 + $0x291] sm:$0xff]
    %v3402 = vld [vmem:[#allocation2 + $0x2a1] sm:$0xff]
    %v3403 = vld [vmem:[#allocation2 + $0x2a9] sm:$0xff]
    %v3404 = vld [vmem:[#allocation2 + $0x2b9] sm:$0xff]
    %v3405 = vld [vmem:[#allocation2 + $0x2c1] sm:$0xff]
    %v3406 = vld [vmem:[#allocation2 + $0x2d1] sm:$0xff]
    %v3407 = vld [vmem:[#allocation2 + $0x2d9] sm:$0xff]
    %v3408 = vld [vmem:[#allocation2 + $0x2e9] sm:$0xff]
    %v3409 = vld [vmem:[#allocation2 + $0x2f1] sm:$0xff]
    %v3410 = vld [vmem:[#allocation2 + $0x301] sm:$0xff]
    %v3411 = vld [vmem:[#allocation2 + $0x309] sm:$0xff]
    %v3412 = vld [vmem:[#allocation2 + $0x319] sm:$0xff]
    %v3413 = vld [vmem:[#allocation2 + $0x321] sm:$0xff]
    %v3414 = vpack.c.bf16 %v3351, %v3350
    %v3415 = vpack.c.bf16 %v3353, %v3352
    %v3416 = vpack.c.bf16 %v3355, %v3354
    %v3417 = vpack.c.bf16 %v3357, %v3356
    %v3418 = vpack.c.bf16 %v3359, %v3358
    %v3419 = vpack.c.bf16 %v3361, %v3360
    %v3420 = vpack.c.bf16 %v3363, %v3362
    %v3421 = vpack.c.bf16 %v3365, %v3364
    %v3422 = vpack.c.bf16 %v3367, %v3366
    %v3423 = vpack.c.bf16 %v3369, %v3368
    %v3424 = vpack.c.bf16 %v3371, %v3370
    %v3425 = vpack.c.bf16 %v3373, %v3372
    %v3426 = vpack.c.bf16 %v3375, %v3374
    %v3427 = vpack.c.bf16 %v3377, %v3376
    %v3428 = vpack.c.bf16 %v3379, %v3378
    %v3429 = vpack.c.bf16 %v3381, %v3380
    %v3430 = vpack.c.bf16 %v3383, %v3382
    %v3431 = vpack.c.bf16 %v3385, %v3384
    %v3432 = vpack.c.bf16 %v3387, %v3386
    %v3433 = vpack.c.bf16 %v3389, %v3388
    %v3434 = vpack.c.bf16 %v3391, %v3390
    %v3435 = vpack.c.bf16 %v3393, %v3392
    %v3436 = vpack.c.bf16 %v3395, %v3394
    %v3437 = vpack.c.bf16 %v3397, %v3396
    %v3438 = vpack.c.bf16 %v3399, %v3398
    %v3439 = vpack.c.bf16 %v3401, %v3400
    %v3440 = vpack.c.bf16 %v3403, %v3402
    %v3441 = vpack.c.bf16 %v3405, %v3404
    %v3442 = vpack.c.bf16 %v3407, %v3406
    %v3443 = vpack.c.bf16 %v3409, %v3408
    %v3444 = vpack.c.bf16 %v3411, %v3410
    %v3445 = vpack.c.bf16 %v3413, %v3412
    %3478 = vrot.lane.b32.xlu0 %v3414, 8
    %v3479 = vpop.permute.xlu0 %3478
    %3480 = vrot.lane.b32.xlu0 %v3415, 8
    %v3481 = vpop.permute.xlu0 %3480
    %3482 = vrot.lane.b32.xlu0 %v3416, 8
    %v3483 = vpop.permute.xlu0 %3482
    %3484 = vrot.lane.b32.xlu0 %v3417, 8
    %v3485 = vpop.permute.xlu0 %3484
    %3486 = vrot.lane.b32.xlu0 %v3418, 8
    %v3487 = vpop.permute.xlu0 %3486
    %3488 = vrot.lane.b32.xlu0 %v3419, 8
    %v3489 = vpop.permute.xlu0 %3488
    %3490 = vrot.lane.b32.xlu0 %v3420, 8
    %v3491 = vpop.permute.xlu0 %3490
    %3492 = vrot.lane.b32.xlu0 %v3421, 8
    %v3493 = vpop.permute.xlu0 %3492
    %3494 = vrot.lane.b32.xlu0 %v3422, 8
    %v3495 = vpop.permute.xlu0 %3494
    %3496 = vrot.lane.b32.xlu0 %v3423, 8
    %v3497 = vpop.permute.xlu0 %3496
    %3498 = vrot.lane.b32.xlu0 %v3424, 8
    %v3499 = vpop.permute.xlu0 %3498
    %3500 = vrot.lane.b32.xlu0 %v3425, 8
    %v3501 = vpop.permute.xlu0 %3500
    %3502 = vrot.lane.b32.xlu0 %v3426, 8
    %v3503 = vpop.permute.xlu0 %3502
    %3504 = vrot.lane.b32.xlu0 %v3427, 8
    %v3505 = vpop.permute.xlu0 %3504
    %3506 = vrot.lane.b32.xlu0 %v3428, 8
    %v3507 = vpop.permute.xlu0 %3506
    %3508 = vrot.lane.b32.xlu0 %v3429, 8
    %v3509 = vpop.permute.xlu0 %3508
    %3510 = vrot.lane.b32.xlu0 %v3430, 8
    %v3511 = vpop.permute.xlu0 %3510
    %3512 = vrot.lane.b32.xlu0 %v3431, 8
    %v3513 = vpop.permute.xlu0 %3512
    %3514 = vrot.lane.b32.xlu0 %v3432, 8
    %v3515 = vpop.permute.xlu0 %3514
    %3516 = vrot.lane.b32.xlu0 %v3433, 8
    %v3517 = vpop.permute.xlu0 %3516
    %3518 = vrot.lane.b32.xlu0 %v3434, 8
    %v3519 = vpop.permute.xlu0 %3518
    %3520 = vrot.lane.b32.xlu0 %v3435, 8
    %v3521 = vpop.permute.xlu0 %3520
    %3522 = vrot.lane.b32.xlu0 %v3436, 8
    %v3523 = vpop.permute.xlu0 %3522
    %3524 = vrot.lane.b32.xlu0 %v3437, 8
    %v3525 = vpop.permute.xlu0 %3524
    %3526 = vrot.lane.b32.xlu0 %v3438, 8
    %v3527 = vpop.permute.xlu0 %3526
    %3528 = vrot.lane.b32.xlu0 %v3439, 8
    %v3529 = vpop.permute.xlu0 %3528
    %3530 = vrot.lane.b32.xlu0 %v3440, 8
    %v3531 = vpop.permute.xlu0 %3530
    %3532 = vrot.lane.b32.xlu0 %v3441, 8
    %v3533 = vpop.permute.xlu0 %3532
    %3534 = vrot.lane.b32.xlu0 %v3442, 8
    %v3535 = vpop.permute.xlu0 %3534
    %3536 = vrot.lane.b32.xlu0 %v3443, 8
    %v3537 = vpop.permute.xlu0 %3536
    %3538 = vrot.lane.b32.xlu0 %v3444, 8
    %v3539 = vpop.permute.xlu0 %3538
    %3540 = vrot.lane.b32.xlu0 %v3445, 8
    %v3541 = vpop.permute.xlu0 %3540
    %3574 = vst.msk [vmem:[#allocation3] sm:$0xff] %vm661, %v3479
    %3575 = vst.msk [vmem:[#allocation3 + $0x8] sm:$0xff] %vm661, %v3481
    %3576 = vst.msk [vmem:[#allocation3 + $0x10] sm:$0xff] %vm661, %v3483
    %3577 = vst.msk [vmem:[#allocation3 + $0x18] sm:$0xff] %vm661, %v3485
    %3578 = vst.msk [vmem:[#allocation3 + $0x20] sm:$0xff] %vm661, %v3487
    %3579 = vst.msk [vmem:[#allocation3 + $0x28] sm:$0xff] %vm661, %v3489
    %3580 = vst.msk [vmem:[#allocation3 + $0x30] sm:$0xff] %vm661, %v3491
    %3581 = vst.msk [vmem:[#allocation3 + $0x38] sm:$0xff] %vm661, %v3493
    %3582 = vst.msk [vmem:[#allocation3 + $0x40] sm:$0xff] %vm661, %v3495
    %3583 = vst.msk [vmem:[#allocation3 + $0x48] sm:$0xff] %vm661, %v3497
    %3584 = vst.msk [vmem:[#allocation3 + $0x50] sm:$0xff] %vm661, %v3499
    %3585 = vst.msk [vmem:[#allocation3 + $0x58] sm:$0xff] %vm661, %v3501
    %3586 = vst.msk [vmem:[#allocation3 + $0x60] sm:$0xff] %vm661, %v3503
    %3587 = vst.msk [vmem:[#allocation3 + $0x68] sm:$0xff] %vm661, %v3505
    %3588 = vst.msk [vmem:[#allocation3 + $0x70] sm:$0xff] %vm661, %v3507
    %3589 = vst.msk [vmem:[#allocation3 + $0x78] sm:$0xff] %vm661, %v3509
    %3590 = vst.msk [vmem:[#allocation3 + $0x80] sm:$0xff] %vm661, %v3511
    %3591 = vst.msk [vmem:[#allocation3 + $0x88] sm:$0xff] %vm661, %v3513
    %3592 = vst.msk [vmem:[#allocation3 + $0x90] sm:$0xff] %vm661, %v3515
    %3593 = vst.msk [vmem:[#allocation3 + $0x98] sm:$0xff] %vm661, %v3517
    %3594 = vst.msk [vmem:[#allocation3 + $0xa0] sm:$0xff] %vm661, %v3519
    %3595 = vst.msk [vmem:[#allocation3 + $0xa8] sm:$0xff] %vm661, %v3521
    %3596 = vst.msk [vmem:[#allocation3 + $0xb0] sm:$0xff] %vm661, %v3523
    %3597 = vst.msk [vmem:[#allocation3 + $0xb8] sm:$0xff] %vm661, %v3525
    %3598 = vst.msk [vmem:[#allocation3 + $0xc0] sm:$0xff] %vm661, %v3527
    %3599 = vst.msk [vmem:[#allocation3 + $0xc8] sm:$0xff] %vm661, %v3529
    %3600 = vst.msk [vmem:[#allocation3 + $0xd0] sm:$0xff] %vm661, %v3531
    %3601 = vst.msk [vmem:[#allocation3 + $0xd8] sm:$0xff] %vm661, %v3533
    %3602 = vst.msk [vmem:[#allocation3 + $0xe0] sm:$0xff] %vm661, %v3535
    %3603 = vst.msk [vmem:[#allocation3 + $0xe8] sm:$0xff] %vm661, %v3537
    %3604 = vst.msk [vmem:[#allocation3 + $0xf0] sm:$0xff] %vm661, %v3539
    %3605 = vst.msk [vmem:[#allocation3 + $0xf8] sm:$0xff] %vm661, %v3541
    %v3606 = vld [vmem:[#allocation2 + $0x2] sm:$0xff]
    %v3607 = vld [vmem:[#allocation2 + $0xa] sm:$0xff]
    %v3608 = vld [vmem:[#allocation2 + $0x1a] sm:$0xff]
    %v3609 = vld [vmem:[#allocation2 + $0x22] sm:$0xff]
    %v3610 = vld [vmem:[#allocation2 + $0x32] sm:$0xff]
    %v3611 = vld [vmem:[#allocation2 + $0x3a] sm:$0xff]
    %v3612 = vld [vmem:[#allocation2 + $0x4a] sm:$0xff]
    %v3613 = vld [vmem:[#allocation2 + $0x52] sm:$0xff]
    %v3614 = vld [vmem:[#allocation2 + $0x62] sm:$0xff]
    %v3615 = vld [vmem:[#allocation2 + $0x6a] sm:$0xff]
    %v3616 = vld [vmem:[#allocation2 + $0x7a] sm:$0xff]
    %v3617 = vld [vmem:[#allocation2 + $0x82] sm:$0xff]
    %v3618 = vld [vmem:[#allocation2 + $0x92] sm:$0xff]
    %v3619 = vld [vmem:[#allocation2 + $0x9a] sm:$0xff]
    %v3620 = vld [vmem:[#allocation2 + $0xaa] sm:$0xff]
    %v3621 = vld [vmem:[#allocation2 + $0xb2] sm:$0xff]
    %v3622 = vld [vmem:[#allocation2 + $0xc2] sm:$0xff]
    %v3623 = vld [vmem:[#allocation2 + $0xca] sm:$0xff]
    %v3624 = vld [vmem:[#allocation2 + $0xda] sm:$0xff]
    %v3625 = vld [vmem:[#allocation2 + $0xe2] sm:$0xff]
    %v3626 = vld [vmem:[#allocation2 + $0xf2] sm:$0xff]
    %v3627 = vld [vmem:[#allocation2 + $0xfa] sm:$0xff]
    %v3628 = vld [vmem:[#allocation2 + $0x10a] sm:$0xff]
    %v3629 = vld [vmem:[#allocation2 + $0x112] sm:$0xff]
    %v3630 = vld [vmem:[#allocation2 + $0x122] sm:$0xff]
    %v3631 = vld [vmem:[#allocation2 + $0x12a] sm:$0xff]
    %v3632 = vld [vmem:[#allocation2 + $0x13a] sm:$0xff]
    %v3633 = vld [vmem:[#allocation2 + $0x142] sm:$0xff]
    %v3634 = vld [vmem:[#allocation2 + $0x152] sm:$0xff]
    %v3635 = vld [vmem:[#allocation2 + $0x15a] sm:$0xff]
    %v3636 = vld [vmem:[#allocation2 + $0x16a] sm:$0xff]
    %v3637 = vld [vmem:[#allocation2 + $0x172] sm:$0xff]
    %v3638 = vld [vmem:[#allocation2 + $0x1b2] sm:$0xff]
    %v3639 = vld [vmem:[#allocation2 + $0x1ba] sm:$0xff]
    %v3640 = vld [vmem:[#allocation2 + $0x1ca] sm:$0xff]
    %v3641 = vld [vmem:[#allocation2 + $0x1d2] sm:$0xff]
    %v3642 = vld [vmem:[#allocation2 + $0x1e2] sm:$0xff]
    %v3643 = vld [vmem:[#allocation2 + $0x1ea] sm:$0xff]
    %v3644 = vld [vmem:[#allocation2 + $0x1fa] sm:$0xff]
    %v3645 = vld [vmem:[#allocation2 + $0x202] sm:$0xff]
    %v3646 = vld [vmem:[#allocation2 + $0x212] sm:$0xff]
    %v3647 = vld [vmem:[#allocation2 + $0x21a] sm:$0xff]
    %v3648 = vld [vmem:[#allocation2 + $0x22a] sm:$0xff]
    %v3649 = vld [vmem:[#allocation2 + $0x232] sm:$0xff]
    %v3650 = vld [vmem:[#allocation2 + $0x242] sm:$0xff]
    %v3651 = vld [vmem:[#allocation2 + $0x24a] sm:$0xff]
    %v3652 = vld [vmem:[#allocation2 + $0x25a] sm:$0xff]
    %v3653 = vld [vmem:[#allocation2 + $0x262] sm:$0xff]
    %v3654 = vld [vmem:[#allocation2 + $0x272] sm:$0xff]
    %v3655 = vld [vmem:[#allocation2 + $0x27a] sm:$0xff]
    %v3656 = vld [vmem:[#allocation2 + $0x28a] sm:$0xff]
    %v3657 = vld [vmem:[#allocation2 + $0x292] sm:$0xff]
    %v3658 = vld [vmem:[#allocation2 + $0x2a2] sm:$0xff]
    %v3659 = vld [vmem:[#allocation2 + $0x2aa] sm:$0xff]
    %v3660 = vld [vmem:[#allocation2 + $0x2ba] sm:$0xff]
    %v3661 = vld [vmem:[#allocation2 + $0x2c2] sm:$0xff]
    %v3662 = vld [vmem:[#allocation2 + $0x2d2] sm:$0xff]
    %v3663 = vld [vmem:[#allocation2 + $0x2da] sm:$0xff]
    %v3664 = vld [vmem:[#allocation2 + $0x2ea] sm:$0xff]
    %v3665 = vld [vmem:[#allocation2 + $0x2f2] sm:$0xff]
    %v3666 = vld [vmem:[#allocation2 + $0x302] sm:$0xff]
    %v3667 = vld [vmem:[#allocation2 + $0x30a] sm:$0xff]
    %v3668 = vld [vmem:[#allocation2 + $0x31a] sm:$0xff]
    %v3669 = vld [vmem:[#allocation2 + $0x322] sm:$0xff]
    %v3670 = vpack.c.bf16 %v3607, %v3606
    %v3671 = vpack.c.bf16 %v3609, %v3608
    %v3672 = vpack.c.bf16 %v3611, %v3610
    %v3673 = vpack.c.bf16 %v3613, %v3612
    %v3674 = vpack.c.bf16 %v3615, %v3614
    %v3675 = vpack.c.bf16 %v3617, %v3616
    %v3676 = vpack.c.bf16 %v3619, %v3618
    %v3677 = vpack.c.bf16 %v3621, %v3620
    %v3678 = vpack.c.bf16 %v3623, %v3622
    %v3679 = vpack.c.bf16 %v3625, %v3624
    %v3680 = vpack.c.bf16 %v3627, %v3626
    %v3681 = vpack.c.bf16 %v3629, %v3628
    %v3682 = vpack.c.bf16 %v3631, %v3630
    %v3683 = vpack.c.bf16 %v3633, %v3632
    %v3684 = vpack.c.bf16 %v3635, %v3634
    %v3685 = vpack.c.bf16 %v3637, %v3636
    %v3686 = vpack.c.bf16 %v3639, %v3638
    %v3687 = vpack.c.bf16 %v3641, %v3640
    %v3688 = vpack.c.bf16 %v3643, %v3642
    %v3689 = vpack.c.bf16 %v3645, %v3644
    %v3690 = vpack.c.bf16 %v3647, %v3646
    %v3691 = vpack.c.bf16 %v3649, %v3648
    %v3692 = vpack.c.bf16 %v3651, %v3650
    %v3693 = vpack.c.bf16 %v3653, %v3652
    %v3694 = vpack.c.bf16 %v3655, %v3654
    %v3695 = vpack.c.bf16 %v3657, %v3656
    %v3696 = vpack.c.bf16 %v3659, %v3658
    %v3697 = vpack.c.bf16 %v3661, %v3660
    %v3698 = vpack.c.bf16 %v3663, %v3662
    %v3699 = vpack.c.bf16 %v3665, %v3664
    %v3700 = vpack.c.bf16 %v3667, %v3666
    %v3701 = vpack.c.bf16 %v3669, %v3668
    %3734 = vrot.lane.b32.xlu0 %v3670, 16
    %v3735 = vpop.permute.xlu0 %3734
    %3736 = vrot.lane.b32.xlu0 %v3671, 16
    %v3737 = vpop.permute.xlu0 %3736
    %3738 = vrot.lane.b32.xlu0 %v3672, 16
    %v3739 = vpop.permute.xlu0 %3738
    %3740 = vrot.lane.b32.xlu0 %v3673, 16
    %v3741 = vpop.permute.xlu0 %3740
    %3742 = vrot.lane.b32.xlu0 %v3674, 16
    %v3743 = vpop.permute.xlu0 %3742
    %3744 = vrot.lane.b32.xlu0 %v3675, 16
    %v3745 = vpop.permute.xlu0 %3744
    %3746 = vrot.lane.b32.xlu0 %v3676, 16
    %v3747 = vpop.permute.xlu0 %3746
    %3748 = vrot.lane.b32.xlu0 %v3677, 16
    %v3749 = vpop.permute.xlu0 %3748
    %3750 = vrot.lane.b32.xlu0 %v3678, 16
    %v3751 = vpop.permute.xlu0 %3750
    %3752 = vrot.lane.b32.xlu0 %v3679, 16
    %v3753 = vpop.permute.xlu0 %3752
    %3754 = vrot.lane.b32.xlu0 %v3680, 16
    %v3755 = vpop.permute.xlu0 %3754
    %3756 = vrot.lane.b32.xlu0 %v3681, 16
    %v3757 = vpop.permute.xlu0 %3756
    %3758 = vrot.lane.b32.xlu0 %v3682, 16
    %v3759 = vpop.permute.xlu0 %3758
    %3760 = vrot.lane.b32.xlu0 %v3683, 16
    %v3761 = vpop.permute.xlu0 %3760
    %3762 = vrot.lane.b32.xlu0 %v3684, 16
    %v3763 = vpop.permute.xlu0 %3762
    %3764 = vrot.lane.b32.xlu0 %v3685, 16
    %v3765 = vpop.permute.xlu0 %3764
    %3766 = vrot.lane.b32.xlu0 %v3686, 16
    %v3767 = vpop.permute.xlu0 %3766
    %3768 = vrot.lane.b32.xlu0 %v3687, 16
    %v3769 = vpop.permute.xlu0 %3768
    %3770 = vrot.lane.b32.xlu0 %v3688, 16
    %v3771 = vpop.permute.xlu0 %3770
    %3772 = vrot.lane.b32.xlu0 %v3689, 16
    %v3773 = vpop.permute.xlu0 %3772
    %3774 = vrot.lane.b32.xlu0 %v3690, 16
    %v3775 = vpop.permute.xlu0 %3774
    %3776 = vrot.lane.b32.xlu0 %v3691, 16
    %v3777 = vpop.permute.xlu0 %3776
    %3778 = vrot.lane.b32.xlu0 %v3692, 16
    %v3779 = vpop.permute.xlu0 %3778
    %3780 = vrot.lane.b32.xlu0 %v3693, 16
    %v3781 = vpop.permute.xlu0 %3780
    %3782 = vrot.lane.b32.xlu0 %v3694, 16
    %v3783 = vpop.permute.xlu0 %3782
    %3784 = vrot.lane.b32.xlu0 %v3695, 16
    %v3785 = vpop.permute.xlu0 %3784
    %3786 = vrot.lane.b32.xlu0 %v3696, 16
    %v3787 = vpop.permute.xlu0 %3786
    %3788 = vrot.lane.b32.xlu0 %v3697, 16
    %v3789 = vpop.permute.xlu0 %3788
    %3790 = vrot.lane.b32.xlu0 %v3698, 16
    %v3791 = vpop.permute.xlu0 %3790
    %3792 = vrot.lane.b32.xlu0 %v3699, 16
    %v3793 = vpop.permute.xlu0 %3792
    %3794 = vrot.lane.b32.xlu0 %v3700, 16
    %v3795 = vpop.permute.xlu0 %3794
    %3796 = vrot.lane.b32.xlu0 %v3701, 16
    %v3797 = vpop.permute.xlu0 %3796
    %3830 = vst.msk [vmem:[#allocation3] sm:$0xff] %vm918, %v3735
    %3831 = vst.msk [vmem:[#allocation3 + $0x8] sm:$0xff] %vm918, %v3737
    %3832 = vst.msk [vmem:[#allocation3 + $0x10] sm:$0xff] %vm918, %v3739
    %3833 = vst.msk [vmem:[#allocation3 + $0x18] sm:$0xff] %vm918, %v3741
    %3834 = vst.msk [vmem:[#allocation3 + $0x20] sm:$0xff] %vm918, %v3743
    %3835 = vst.msk [vmem:[#allocation3 + $0x28] sm:$0xff] %vm918, %v3745
    %3836 = vst.msk [vmem:[#allocation3 + $0x30] sm:$0xff] %vm918, %v3747
    %3837 = vst.msk [vmem:[#allocation3 + $0x38] sm:$0xff] %vm918, %v3749
    %3838 = vst.msk [vmem:[#allocation3 + $0x40] sm:$0xff] %vm918, %v3751
    %3839 = vst.msk [vmem:[#allocation3 + $0x48] sm:$0xff] %vm918, %v3753
    %3840 = vst.msk [vmem:[#allocation3 + $0x50] sm:$0xff] %vm918, %v3755
    %3841 = vst.msk [vmem:[#allocation3 + $0x58] sm:$0xff] %vm918, %v3757
    %3842 = vst.msk [vmem:[#allocation3 + $0x60] sm:$0xff] %vm918, %v3759
    %3843 = vst.msk [vmem:[#allocation3 + $0x68] sm:$0xff] %vm918, %v3761
    %3844 = vst.msk [vmem:[#allocation3 + $0x70] sm:$0xff] %vm918, %v3763
    %3845 = vst.msk [vmem:[#allocation3 + $0x78] sm:$0xff] %vm918, %v3765
    %3846 = vst.msk [vmem:[#allocation3 + $0x80] sm:$0xff] %vm918, %v3767
    %3847 = vst.msk [vmem:[#allocation3 + $0x88] sm:$0xff] %vm918, %v3769
    %3848 = vst.msk [vmem:[#allocation3 + $0x90] sm:$0xff] %vm918, %v3771
    %3849 = vst.msk [vmem:[#allocation3 + $0x98] sm:$0xff] %vm918, %v3773
    %3850 = vst.msk [vmem:[#allocation3 + $0xa0] sm:$0xff] %vm918, %v3775
    %3851 = vst.msk [vmem:[#allocation3 + $0xa8] sm:$0xff] %vm918, %v3777
    %3852 = vst.msk [vmem:[#allocation3 + $0xb0] sm:$0xff] %vm918, %v3779
    %3853 = vst.msk [vmem:[#allocation3 + $0xb8] sm:$0xff] %vm918, %v3781
    %3854 = vst.msk [vmem:[#allocation3 + $0xc0] sm:$0xff] %vm918, %v3783
    %3855 = vst.msk [vmem:[#allocation3 + $0xc8] sm:$0xff] %vm918, %v3785
    %3856 = vst.msk [vmem:[#allocation3 + $0xd0] sm:$0xff] %vm918, %v3787
    %3857 = vst.msk [vmem:[#allocation3 + $0xd8] sm:$0xff] %vm918, %v3789
    %3858 = vst.msk [vmem:[#allocation3 + $0xe0] sm:$0xff] %vm918, %v3791
    %3859 = vst.msk [vmem:[#allocation3 + $0xe8] sm:$0xff] %vm918, %v3793
    %3860 = vst.msk [vmem:[#allocation3 + $0xf0] sm:$0xff] %vm918, %v3795
    %3861 = vst.msk [vmem:[#allocation3 + $0xf8] sm:$0xff] %vm918, %v3797
    %v3862 = vld [vmem:[%s244] sm:$0xff]
    %v3863 = vld [vmem:[%s244 + $0x8] sm:$0xff]
    %v3864 = vld [vmem:[%s244 + $0x18] sm:$0xff]
    %v3865 = vld [vmem:[%s244 + $0x20] sm:$0xff]
    %v3866 = vld [vmem:[%s244 + $0x30] sm:$0xff]
    %v3867 = vld [vmem:[%s244 + $0x38] sm:$0xff]
    %v3868 = vld [vmem:[%s244 + $0x48] sm:$0xff]
    %v3869 = vld [vmem:[%s244 + $0x50] sm:$0xff]
    %v3870 = vld [vmem:[%s244 + $0x60] sm:$0xff]
    %v3871 = vld [vmem:[%s244 + $0x68] sm:$0xff]
    %v3872 = vld [vmem:[%s244 + $0x78] sm:$0xff]
    %v3873 = vld [vmem:[%s244 + $0x80] sm:$0xff]
    %v3874 = vld [vmem:[%s244 + $0x90] sm:$0xff]
    %v3875 = vld [vmem:[%s244 + $0x98] sm:$0xff]
    %v3876 = vld [vmem:[%s244 + $0xa8] sm:$0xff]
    %v3877 = vld [vmem:[%s244 + $0xb0] sm:$0xff]
    %v3878 = vld [vmem:[%s244 + $0xc0] sm:$0xff]
    %v3879 = vld [vmem:[%s244 + $0xc8] sm:$0xff]
    %v3880 = vld [vmem:[%s244 + $0xd8] sm:$0xff]
    %v3881 = vld [vmem:[%s244 + $0xe0] sm:$0xff]
    %v3882 = vld [vmem:[%s244 + $0xf0] sm:$0xff]
    %v3883 = vld [vmem:[%s244 + $0xf8] sm:$0xff]
    %v3884 = vld [vmem:[%s244 + $0x108] sm:$0xff]
    %v3885 = vld [vmem:[%s244 + $0x110] sm:$0xff]
    %v3886 = vld [vmem:[%s244 + $0x120] sm:$0xff]
    %v3887 = vld [vmem:[%s244 + $0x128] sm:$0xff]
    %v3888 = vld [vmem:[%s244 + $0x138] sm:$0xff]
    %v3889 = vld [vmem:[%s244 + $0x140] sm:$0xff]
    %v3890 = vld [vmem:[%s244 + $0x150] sm:$0xff]
    %v3891 = vld [vmem:[%s244 + $0x158] sm:$0xff]
    %v3892 = vld [vmem:[%s244 + $0x168] sm:$0xff]
    %v3893 = vld [vmem:[%s244 + $0x170] sm:$0xff]
    %v3894 = vld [vmem:[%s244 + $0x1b0] sm:$0xff]
    %v3895 = vld [vmem:[%s244 + $0x1b8] sm:$0xff]
    %v3896 = vld [vmem:[%s244 + $0x1c8] sm:$0xff]
    %v3897 = vld [vmem:[%s244 + $0x1d0] sm:$0xff]
    %v3898 = vld [vmem:[%s244 + $0x1e0] sm:$0xff]
    %v3899 = vld [vmem:[%s244 + $0x1e8] sm:$0xff]
    %v3900 = vld [vmem:[%s244 + $0x1f8] sm:$0xff]
    %v3901 = vld [vmem:[%s244 + $0x200] sm:$0xff]
    %v3902 = vld [vmem:[%s244 + $0x210] sm:$0xff]
    %v3903 = vld [vmem:[%s244 + $0x218] sm:$0xff]
    %v3904 = vld [vmem:[%s244 + $0x228] sm:$0xff]
    %v3905 = vld [vmem:[%s244 + $0x230] sm:$0xff]
    %v3906 = vld [vmem:[%s244 + $0x240] sm:$0xff]
    %v3907 = vld [vmem:[%s244 + $0x248] sm:$0xff]
    %v3908 = vld [vmem:[%s244 + $0x258] sm:$0xff]
    %v3909 = vld [vmem:[%s244 + $0x260] sm:$0xff]
    %v3910 = vld [vmem:[%s244 + $0x270] sm:$0xff]
    %v3911 = vld [vmem:[%s244 + $0x278] sm:$0xff]
    %v3912 = vld [vmem:[%s244 + $0x288] sm:$0xff]
    %v3913 = vld [vmem:[%s244 + $0x290] sm:$0xff]
    %v3914 = vld [vmem:[%s244 + $0x2a0] sm:$0xff]
    %v3915 = vld [vmem:[%s244 + $0x2a8] sm:$0xff]
    %v3916 = vld [vmem:[%s244 + $0x2b8] sm:$0xff]
    %v3917 = vld [vmem:[%s244 + $0x2c0] sm:$0xff]
    %v3918 = vld [vmem:[%s244 + $0x2d0] sm:$0xff]
    %v3919 = vld [vmem:[%s244 + $0x2d8] sm:$0xff]
    %v3920 = vld [vmem:[%s244 + $0x2e8] sm:$0xff]
    %v3921 = vld [vmem:[%s244 + $0x2f0] sm:$0xff]
    %v3922 = vld [vmem:[%s244 + $0x300] sm:$0xff]
    %v3923 = vld [vmem:[%s244 + $0x308] sm:$0xff]
    %v3924 = vld [vmem:[%s244 + $0x318] sm:$0xff]
    %v3925 = vld [vmem:[%s244 + $0x320] sm:$0xff]
    %v3926 = vpack.c.bf16 %v3863, %v3862
    %v3927 = vpack.c.bf16 %v3865, %v3864
    %v3928 = vpack.c.bf16 %v3867, %v3866
    %v3929 = vpack.c.bf16 %v3869, %v3868
    %v3930 = vpack.c.bf16 %v3871, %v3870
    %v3931 = vpack.c.bf16 %v3873, %v3872
    %v3932 = vpack.c.bf16 %v3875, %v3874
    %v3933 = vpack.c.bf16 %v3877, %v3876
    %v3934 = vpack.c.bf16 %v3879, %v3878
    %v3935 = vpack.c.bf16 %v3881, %v3880
    %v3936 = vpack.c.bf16 %v3883, %v3882
    %v3937 = vpack.c.bf16 %v3885, %v3884
    %v3938 = vpack.c.bf16 %v3887, %v3886
    %v3939 = vpack.c.bf16 %v3889, %v3888
    %v3940 = vpack.c.bf16 %v3891, %v3890
    %v3941 = vpack.c.bf16 %v3893, %v3892
    %v3942 = vpack.c.bf16 %v3895, %v3894
    %v3943 = vpack.c.bf16 %v3897, %v3896
    %v3944 = vpack.c.bf16 %v3899, %v3898
    %v3945 = vpack.c.bf16 %v3901, %v3900
    %v3946 = vpack.c.bf16 %v3903, %v3902
    %v3947 = vpack.c.bf16 %v3905, %v3904
    %v3948 = vpack.c.bf16 %v3907, %v3906
    %v3949 = vpack.c.bf16 %v3909, %v3908
    %v3950 = vpack.c.bf16 %v3911, %v3910
    %v3951 = vpack.c.bf16 %v3913, %v3912
    %v3952 = vpack.c.bf16 %v3915, %v3914
    %v3953 = vpack.c.bf16 %v3917, %v3916
    %v3954 = vpack.c.bf16 %v3919, %v3918
    %v3955 = vpack.c.bf16 %v3921, %v3920
    %v3956 = vpack.c.bf16 %v3923, %v3922
    %v3957 = vpack.c.bf16 %v3925, %v3924
    %3990 = vrot.lane.b32.xlu0 %v3926, 24
    %v3991 = vpop.permute.xlu0 %3990
    %3992 = vrot.lane.b32.xlu0 %v3927, 24
    %v3993 = vpop.permute.xlu0 %3992
    %3994 = vrot.lane.b32.xlu0 %v3928, 24
    %v3995 = vpop.permute.xlu0 %3994
    %3996 = vrot.lane.b32.xlu0 %v3929, 24
    %v3997 = vpop.permute.xlu0 %3996
    %3998 = vrot.lane.b32.xlu0 %v3930, 24
    %v3999 = vpop.permute.xlu0 %3998
    %4000 = vrot.lane.b32.xlu0 %v3931, 24
    %v4001 = vpop.permute.xlu0 %4000
    %4002 = vrot.lane.b32.xlu0 %v3932, 24
    %v4003 = vpop.permute.xlu0 %4002
    %4004 = vrot.lane.b32.xlu0 %v3933, 24
    %v4005 = vpop.permute.xlu0 %4004
    %4006 = vrot.lane.b32.xlu0 %v3934, 24
    %v4007 = vpop.permute.xlu0 %4006
    %4008 = vrot.lane.b32.xlu0 %v3935, 24
    %v4009 = vpop.permute.xlu0 %4008
    %4010 = vrot.lane.b32.xlu0 %v3936, 24
    %v4011 = vpop.permute.xlu0 %4010
    %4012 = vrot.lane.b32.xlu0 %v3937, 24
    %v4013 = vpop.permute.xlu0 %4012
    %4014 = vrot.lane.b32.xlu0 %v3938, 24
    %v4015 = vpop.permute.xlu0 %4014
    %4016 = vrot.lane.b32.xlu0 %v3939, 24
    %v4017 = vpop.permute.xlu0 %4016
    %4018 = vrot.lane.b32.xlu0 %v3940, 24
    %v4019 = vpop.permute.xlu0 %4018
    %4020 = vrot.lane.b32.xlu0 %v3941, 24
    %v4021 = vpop.permute.xlu0 %4020
    %4022 = vrot.lane.b32.xlu0 %v3942, 24
    %v4023 = vpop.permute.xlu0 %4022
    %4024 = vrot.lane.b32.xlu0 %v3943, 24
    %v4025 = vpop.permute.xlu0 %4024
    %4026 = vrot.lane.b32.xlu0 %v3944, 24
    %v4027 = vpop.permute.xlu0 %4026
    %4028 = vrot.lane.b32.xlu0 %v3945, 24
    %v4029 = vpop.permute.xlu0 %4028
    %4030 = vrot.lane.b32.xlu0 %v3946, 24
    %v4031 = vpop.permute.xlu0 %4030
    %4032 = vrot.lane.b32.xlu0 %v3947, 24
    %v4033 = vpop.permute.xlu0 %4032
    %4034 = vrot.lane.b32.xlu0 %v3948, 24
    %v4035 = vpop.permute.xlu0 %4034
    %4036 = vrot.lane.b32.xlu0 %v3949, 24
    %v4037 = vpop.permute.xlu0 %4036
    %4038 = vrot.lane.b32.xlu0 %v3950, 24
    %v4039 = vpop.permute.xlu0 %4038
    %4040 = vrot.lane.b32.xlu0 %v3951, 24
    %v4041 = vpop.permute.xlu0 %4040
    %4042 = vrot.lane.b32.xlu0 %v3952, 24
    %v4043 = vpop.permute.xlu0 %4042
    %4044 = vrot.lane.b32.xlu0 %v3953, 24
    %v4045 = vpop.permute.xlu0 %4044
    %4046 = vrot.lane.b32.xlu0 %v3954, 24
    %v4047 = vpop.permute.xlu0 %4046
    %4048 = vrot.lane.b32.xlu0 %v3955, 24
    %v4049 = vpop.permute.xlu0 %4048
    %4050 = vrot.lane.b32.xlu0 %v3956, 24
    %v4051 = vpop.permute.xlu0 %4050
    %4052 = vrot.lane.b32.xlu0 %v3957, 24
    %v4053 = vpop.permute.xlu0 %4052
    %4086 = vst.msk [vmem:[#allocation3] sm:$0xff] %vm1175, %v3991
    %4087 = vst.msk [vmem:[#allocation3 + $0x8] sm:$0xff] %vm1175, %v3993
    %4088 = vst.msk [vmem:[#allocation3 + $0x10] sm:$0xff] %vm1175, %v3995
    %4089 = vst.msk [vmem:[#allocation3 + $0x18] sm:$0xff] %vm1175, %v3997
    %4090 = vst.msk [vmem:[#allocation3 + $0x20] sm:$0xff] %vm1175, %v3999
    %4091 = vst.msk [vmem:[#allocation3 + $0x28] sm:$0xff] %vm1175, %v4001
    %4092 = vst.msk [vmem:[#allocation3 + $0x30] sm:$0xff] %vm1175, %v4003
    %4093 = vst.msk [vmem:[#allocation3 + $0x38] sm:$0xff] %vm1175, %v4005
    %4094 = vst.msk [vmem:[#allocation3 + $0x40] sm:$0xff] %vm1175, %v4007
    %4095 = vst.msk [vmem:[#allocation3 + $0x48] sm:$0xff] %vm1175, %v4009
    %4096 = vst.msk [vmem:[#allocation3 + $0x50] sm:$0xff] %vm1175, %v4011
    %4097 = vst.msk [vmem:[#allocation3 + $0x58] sm:$0xff] %vm1175, %v4013
    %4098 = vst.msk [vmem:[#allocation3 + $0x60] sm:$0xff] %vm1175, %v4015
    %4099 = vst.msk [vmem:[#allocation3 + $0x68] sm:$0xff] %vm1175, %v4017
    %4100 = vst.msk [vmem:[#allocation3 + $0x70] sm:$0xff] %vm1175, %v4019
    %4101 = vst.msk [vmem:[#allocation3 + $0x78] sm:$0xff] %vm1175, %v4021
    %4102 = vst.msk [vmem:[#allocation3 + $0x80] sm:$0xff] %vm1175, %v4023
    %4103 = vst.msk [vmem:[#allocation3 + $0x88] sm:$0xff] %vm1175, %v4025
    %4104 = vst.msk [vmem:[#allocation3 + $0x90] sm:$0xff] %vm1175, %v4027
    %4105 = vst.msk [vmem:[#allocation3 + $0x98] sm:$0xff] %vm1175, %v4029
    %4106 = vst.msk [vmem:[#allocation3 + $0xa0] sm:$0xff] %vm1175, %v4031
    %4107 = vst.msk [vmem:[#allocation3 + $0xa8] sm:$0xff] %vm1175, %v4033
    %4108 = vst.msk [vmem:[#allocation3 + $0xb0] sm:$0xff] %vm1175, %v4035
    %4109 = vst.msk [vmem:[#allocation3 + $0xb8] sm:$0xff] %vm1175, %v4037
    %4110 = vst.msk [vmem:[#allocation3 + $0xc0] sm:$0xff] %vm1175, %v4039
    %4111 = vst.msk [vmem:[#allocation3 + $0xc8] sm:$0xff] %vm1175, %v4041
    %4112 = vst.msk [vmem:[#allocation3 + $0xd0] sm:$0xff] %vm1175, %v4043
    %4113 = vst.msk [vmem:[#allocation3 + $0xd8] sm:$0xff] %vm1175, %v4045
    %4114 = vst.msk [vmem:[#allocation3 + $0xe0] sm:$0xff] %vm1175, %v4047
    %4115 = vst.msk [vmem:[#allocation3 + $0xe8] sm:$0xff] %vm1175, %v4049
    %4116 = vst.msk [vmem:[#allocation3 + $0xf0] sm:$0xff] %vm1175, %v4051
    %4117 = vst.msk [vmem:[#allocation3 + $0xf8] sm:$0xff] %vm1175, %v4053
    %v4118 = vld [vmem:[%s244 + $0x1] sm:$0xff]
    %v4119 = vld [vmem:[%s244 + $0x9] sm:$0xff]
    %v4120 = vld [vmem:[%s244 + $0x19] sm:$0xff]
    %v4121 = vld [vmem:[%s244 + $0x21] sm:$0xff]
    %v4122 = vld [vmem:[%s244 + $0x31] sm:$0xff]
    %v4123 = vld [vmem:[%s244 + $0x39] sm:$0xff]
    %v4124 = vld [vmem:[%s244 + $0x49] sm:$0xff]
    %v4125 = vld [vmem:[%s244 + $0x51] sm:$0xff]
    %v4126 = vld [vmem:[%s244 + $0x61] sm:$0xff]
    %v4127 = vld [vmem:[%s244 + $0x69] sm:$0xff]
    %v4128 = vld [vmem:[%s244 + $0x79] sm:$0xff]
    %v4129 = vld [vmem:[%s244 + $0x81] sm:$0xff]
    %v4130 = vld [vmem:[%s244 + $0x91] sm:$0xff]
    %v4131 = vld [vmem:[%s244 + $0x99] sm:$0xff]
    %v4132 = vld [vmem:[%s244 + $0xa9] sm:$0xff]
    %v4133 = vld [vmem:[%s244 + $0xb1] sm:$0xff]
    %v4134 = vld [vmem:[%s244 + $0xc1] sm:$0xff]
    %v4135 = vld [vmem:[%s244 + $0xc9] sm:$0xff]
    %v4136 = vld [vmem:[%s244 + $0xd9] sm:$0xff]
    %v4137 = vld [vmem:[%s244 + $0xe1] sm:$0xff]
    %v4138 = vld [vmem:[%s244 + $0xf1] sm:$0xff]
    %v4139 = vld [vmem:[%s244 + $0xf9] sm:$0xff]
    %v4140 = vld [vmem:[%s244 + $0x109] sm:$0xff]
    %v4141 = vld [vmem:[%s244 + $0x111] sm:$0xff]
    %v4142 = vld [vmem:[%s244 + $0x121] sm:$0xff]
    %v4143 = vld [vmem:[%s244 + $0x129] sm:$0xff]
    %v4144 = vld [vmem:[%s244 + $0x139] sm:$0xff]
    %v4145 = vld [vmem:[%s244 + $0x141] sm:$0xff]
    %v4146 = vld [vmem:[%s244 + $0x151] sm:$0xff]
    %v4147 = vld [vmem:[%s244 + $0x159] sm:$0xff]
    %v4148 = vld [vmem:[%s244 + $0x169] sm:$0xff]
    %v4149 = vld [vmem:[%s244 + $0x171] sm:$0xff]
    %v4150 = vld [vmem:[%s244 + $0x1b1] sm:$0xff]
    %v4151 = vld [vmem:[%s244 + $0x1b9] sm:$0xff]
    %v4152 = vld [vmem:[%s244 + $0x1c9] sm:$0xff]
    %v4153 = vld [vmem:[%s244 + $0x1d1] sm:$0xff]
    %v4154 = vld [vmem:[%s244 + $0x1e1] sm:$0xff]
    %v4155 = vld [vmem:[%s244 + $0x1e9] sm:$0xff]
    %v4156 = vld [vmem:[%s244 + $0x1f9] sm:$0xff]
    %v4157 = vld [vmem:[%s244 + $0x201] sm:$0xff]
    %v4158 = vld [vmem:[%s244 + $0x211] sm:$0xff]
    %v4159 = vld [vmem:[%s244 + $0x219] sm:$0xff]
    %v4160 = vld [vmem:[%s244 + $0x229] sm:$0xff]
    %v4161 = vld [vmem:[%s244 + $0x231] sm:$0xff]
    %v4162 = vld [vmem:[%s244 + $0x241] sm:$0xff]
    %v4163 = vld [vmem:[%s244 + $0x249] sm:$0xff]
    %v4164 = vld [vmem:[%s244 + $0x259] sm:$0xff]
    %v4165 = vld [vmem:[%s244 + $0x261] sm:$0xff]
    %v4166 = vld [vmem:[%s244 + $0x271] sm:$0xff]
    %v4167 = vld [vmem:[%s244 + $0x279] sm:$0xff]
    %v4168 = vld [vmem:[%s244 + $0x289] sm:$0xff]
    %v4169 = vld [vmem:[%s244 + $0x291] sm:$0xff]
    %v4170 = vld [vmem:[%s244 + $0x2a1] sm:$0xff]
    %v4171 = vld [vmem:[%s244 + $0x2a9] sm:$0xff]
    %v4172 = vld [vmem:[%s244 + $0x2b9] sm:$0xff]
    %v4173 = vld [vmem:[%s244 + $0x2c1] sm:$0xff]
    %v4174 = vld [vmem:[%s244 + $0x2d1] sm:$0xff]
    %v4175 = vld [vmem:[%s244 + $0x2d9] sm:$0xff]
    %v4176 = vld [vmem:[%s244 + $0x2e9] sm:$0xff]
    %v4177 = vld [vmem:[%s244 + $0x2f1] sm:$0xff]
    %v4178 = vld [vmem:[%s244 + $0x301] sm:$0xff]
    %v4179 = vld [vmem:[%s244 + $0x309] sm:$0xff]
    %v4180 = vld [vmem:[%s244 + $0x319] sm:$0xff]
    %v4181 = vld [vmem:[%s244 + $0x321] sm:$0xff]
    %v4182 = vpack.c.bf16 %v4119, %v4118
    %v4183 = vpack.c.bf16 %v4121, %v4120
    %v4184 = vpack.c.bf16 %v4123, %v4122
    %v4185 = vpack.c.bf16 %v4125, %v4124
    %v4186 = vpack.c.bf16 %v4127, %v4126
    %v4187 = vpack.c.bf16 %v4129, %v4128
    %v4188 = vpack.c.bf16 %v4131, %v4130
    %v4189 = vpack.c.bf16 %v4133, %v4132
    %v4190 = vpack.c.bf16 %v4135, %v4134
    %v4191 = vpack.c.bf16 %v4137, %v4136
    %v4192 = vpack.c.bf16 %v4139, %v4138
    %v4193 = vpack.c.bf16 %v4141, %v4140
    %v4194 = vpack.c.bf16 %v4143, %v4142
    %v4195 = vpack.c.bf16 %v4145, %v4144
    %v4196 = vpack.c.bf16 %v4147, %v4146
    %v4197 = vpack.c.bf16 %v4149, %v4148
    %v4198 = vpack.c.bf16 %v4151, %v4150
    %v4199 = vpack.c.bf16 %v4153, %v4152
    %v4200 = vpack.c.bf16 %v4155, %v4154
    %v4201 = vpack.c.bf16 %v4157, %v4156
    %v4202 = vpack.c.bf16 %v4159, %v4158
    %v4203 = vpack.c.bf16 %v4161, %v4160
    %v4204 = vpack.c.bf16 %v4163, %v4162
    %v4205 = vpack.c.bf16 %v4165, %v4164
    %v4206 = vpack.c.bf16 %v4167, %v4166
    %v4207 = vpack.c.bf16 %v4169, %v4168
    %v4208 = vpack.c.bf16 %v4171, %v4170
    %v4209 = vpack.c.bf16 %v4173, %v4172
    %v4210 = vpack.c.bf16 %v4175, %v4174
    %v4211 = vpack.c.bf16 %v4177, %v4176
    %v4212 = vpack.c.bf16 %v4179, %v4178
    %v4213 = vpack.c.bf16 %v4181, %v4180
    %4246 = vrot.lane.b32.xlu0 %v4182, 32
    %v4247 = vpop.permute.xlu0 %4246
    %4248 = vrot.lane.b32.xlu0 %v4183, 32
    %v4249 = vpop.permute.xlu0 %4248
    %4250 = vrot.lane.b32.xlu0 %v4184, 32
    %v4251 = vpop.permute.xlu0 %4250
    %4252 = vrot.lane.b32.xlu0 %v4185, 32
    %v4253 = vpop.permute.xlu0 %4252
    %4254 = vrot.lane.b32.xlu0 %v4186, 32
    %v4255 = vpop.permute.xlu0 %4254
    %4256 = vrot.lane.b32.xlu0 %v4187, 32
    %v4257 = vpop.permute.xlu0 %4256
    %4258 = vrot.lane.b32.xlu0 %v4188, 32
    %v4259 = vpop.permute.xlu0 %4258
    %4260 = vrot.lane.b32.xlu0 %v4189, 32
    %v4261 = vpop.permute.xlu0 %4260
    %4262 = vrot.lane.b32.xlu0 %v4190, 32
    %v4263 = vpop.permute.xlu0 %4262
    %4264 = vrot.lane.b32.xlu0 %v4191, 32
    %v4265 = vpop.permute.xlu0 %4264
    %4266 = vrot.lane.b32.xlu0 %v4192, 32
    %v4267 = vpop.permute.xlu0 %4266
    %4268 = vrot.lane.b32.xlu0 %v4193, 32
    %v4269 = vpop.permute.xlu0 %4268
    %4270 = vrot.lane.b32.xlu0 %v4194, 32
    %v4271 = vpop.permute.xlu0 %4270
    %4272 = vrot.lane.b32.xlu0 %v4195, 32
    %v4273 = vpop.permute.xlu0 %4272
    %4274 = vrot.lane.b32.xlu0 %v4196, 32
    %v4275 = vpop.permute.xlu0 %4274
    %4276 = vrot.lane.b32.xlu0 %v4197, 32
    %v4277 = vpop.permute.xlu0 %4276
    %4278 = vrot.lane.b32.xlu0 %v4198, 32
    %v4279 = vpop.permute.xlu0 %4278
    %4280 = vrot.lane.b32.xlu0 %v4199, 32
    %v4281 = vpop.permute.xlu0 %4280
    %4282 = vrot.lane.b32.xlu0 %v4200, 32
    %v4283 = vpop.permute.xlu0 %4282
    %4284 = vrot.lane.b32.xlu0 %v4201, 32
    %v4285 = vpop.permute.xlu0 %4284
    %4286 = vrot.lane.b32.xlu0 %v4202, 32
    %v4287 = vpop.permute.xlu0 %4286
    %4288 = vrot.lane.b32.xlu0 %v4203, 32
    %v4289 = vpop.permute.xlu0 %4288
    %4290 = vrot.lane.b32.xlu0 %v4204, 32
    %v4291 = vpop.permute.xlu0 %4290
    %4292 = vrot.lane.b32.xlu0 %v4205, 32
    %v4293 = vpop.permute.xlu0 %4292
    %4294 = vrot.lane.b32.xlu0 %v4206, 32
    %v4295 = vpop.permute.xlu0 %4294
    %4296 = vrot.lane.b32.xlu0 %v4207, 32
    %v4297 = vpop.permute.xlu0 %4296
    %4298 = vrot.lane.b32.xlu0 %v4208, 32
    %v4299 = vpop.permute.xlu0 %4298
    %4300 = vrot.lane.b32.xlu0 %v4209, 32
    %v4301 = vpop.permute.xlu0 %4300
    %4302 = vrot.lane.b32.xlu0 %v4210, 32
    %v4303 = vpop.permute.xlu0 %4302
    %4304 = vrot.lane.b32.xlu0 %v4211, 32
    %v4305 = vpop.permute.xlu0 %4304
    %4306 = vrot.lane.b32.xlu0 %v4212, 32
    %v4307 = vpop.permute.xlu0 %4306
    %4308 = vrot.lane.b32.xlu0 %v4213, 32
    %v4309 = vpop.permute.xlu0 %4308
    %4342 = vst.msk [vmem:[#allocation3] sm:$0xff] %vm1432, %v4247
    %4343 = vst.msk [vmem:[#allocation3 + $0x8] sm:$0xff] %vm1432, %v4249
    %4344 = vst.msk [vmem:[#allocation3 + $0x10] sm:$0xff] %vm1432, %v4251
    %4345 = vst.msk [vmem:[#allocation3 + $0x18] sm:$0xff] %vm1432, %v4253
    %4346 = vst.msk [vmem:[#allocation3 + $0x20] sm:$0xff] %vm1432, %v4255
    %4347 = vst.msk [vmem:[#allocation3 + $0x28] sm:$0xff] %vm1432, %v4257
    %4348 = vst.msk [vmem:[#allocation3 + $0x30] sm:$0xff] %vm1432, %v4259
    %4349 = vst.msk [vmem:[#allocation3 + $0x38] sm:$0xff] %vm1432, %v4261
    %4350 = vst.msk [vmem:[#allocation3 + $0x40] sm:$0xff] %vm1432, %v4263
    %4351 = vst.msk [vmem:[#allocation3 + $0x48] sm:$0xff] %vm1432, %v4265
    %4352 = vst.msk [vmem:[#allocation3 + $0x50] sm:$0xff] %vm1432, %v4267
    %4353 = vst.msk [vmem:[#allocation3 + $0x58] sm:$0xff] %vm1432, %v4269
    %4354 = vst.msk [vmem:[#allocation3 + $0x60] sm:$0xff] %vm1432, %v4271
    %4355 = vst.msk [vmem:[#allocation3 + $0x68] sm:$0xff] %vm1432, %v4273
    %4356 = vst.msk [vmem:[#allocation3 + $0x70] sm:$0xff] %vm1432, %v4275
    %4357 = vst.msk [vmem:[#allocation3 + $0x78] sm:$0xff] %vm1432, %v4277
    %4358 = vst.msk [vmem:[#allocation3 + $0x80] sm:$0xff] %vm1432, %v4279
    %4359 = vst.msk [vmem:[#allocation3 + $0x88] sm:$0xff] %vm1432, %v4281
    %4360 = vst.msk [vmem:[#allocation3 + $0x90] sm:$0xff] %vm1432, %v4283
    %4361 = vst.msk [vmem:[#allocation3 + $0x98] sm:$0xff] %vm1432, %v4285
    %4362 = vst.msk [vmem:[#allocation3 + $0xa0] sm:$0xff] %vm1432, %v4287
    %4363 = vst.msk [vmem:[#allocation3 + $0xa8] sm:$0xff] %vm1432, %v4289
    %4364 = vst.msk [vmem:[#allocation3 + $0xb0] sm:$0xff] %vm1432, %v4291
    %4365 = vst.msk [vmem:[#allocation3 + $0xb8] sm:$0xff] %vm1432, %v4293
    %4366 = vst.msk [vmem:[#allocation3 + $0xc0] sm:$0xff] %vm1432, %v4295
    %4367 = vst.msk [vmem:[#allocation3 + $0xc8] sm:$0xff] %vm1432, %v4297
    %4368 = vst.msk [vmem:[#allocation3 + $0xd0] sm:$0xff] %vm1432, %v4299
    %4369 = vst.msk [vmem:[#allocation3 + $0xd8] sm:$0xff] %vm1432, %v4301
    %4370 = vst.msk [vmem:[#allocation3 + $0xe0] sm:$0xff] %vm1432, %v4303
    %4371 = vst.msk [vmem:[#allocation3 + $0xe8] sm:$0xff] %vm1432, %v4305
    %4372 = vst.msk [vmem:[#allocation3 + $0xf0] sm:$0xff] %vm1432, %v4307
    %4373 = vst.msk [vmem:[#allocation3 + $0xf8] sm:$0xff] %vm1432, %v4309
    %v4374 = vld [vmem:[%s244 + $0x2] sm:$0xff]
    %v4375 = vld [vmem:[%s244 + $0xa] sm:$0xff]
    %v4376 = vld [vmem:[%s244 + $0x1a] sm:$0xff]
    %v4377 = vld [vmem:[%s244 + $0x22] sm:$0xff]
    %v4378 = vld [vmem:[%s244 + $0x32] sm:$0xff]
    %v4379 = vld [vmem:[%s244 + $0x3a] sm:$0xff]
    %v4380 = vld [vmem:[%s244 + $0x4a] sm:$0xff]
    %v4381 = vld [vmem:[%s244 + $0x52] sm:$0xff]
    %v4382 = vld [vmem:[%s244 + $0x62] sm:$0xff]
    %v4383 = vld [vmem:[%s244 + $0x6a] sm:$0xff]
    %v4384 = vld [vmem:[%s244 + $0x7a] sm:$0xff]
    %v4385 = vld [vmem:[%s244 + $0x82] sm:$0xff]
    %v4386 = vld [vmem:[%s244 + $0x92] sm:$0xff]
    %v4387 = vld [vmem:[%s244 + $0x9a] sm:$0xff]
    %v4388 = vld [vmem:[%s244 + $0xaa] sm:$0xff]
    %v4389 = vld [vmem:[%s244 + $0xb2] sm:$0xff]
    %v4390 = vld [vmem:[%s244 + $0xc2] sm:$0xff]
    %v4391 = vld [vmem:[%s244 + $0xca] sm:$0xff]
    %v4392 = vld [vmem:[%s244 + $0xda] sm:$0xff]
    %v4393 = vld [vmem:[%s244 + $0xe2] sm:$0xff]
    %v4394 = vld [vmem:[%s244 + $0xf2] sm:$0xff]
    %v4395 = vld [vmem:[%s244 + $0xfa] sm:$0xff]
    %v4396 = vld [vmem:[%s244 + $0x10a] sm:$0xff]
    %v4397 = vld [vmem:[%s244 + $0x112] sm:$0xff]
    %v4398 = vld [vmem:[%s244 + $0x122] sm:$0xff]
    %v4399 = vld [vmem:[%s244 + $0x12a] sm:$0xff]
    %v4400 = vld [vmem:[%s244 + $0x13a] sm:$0xff]
    %v4401 = vld [vmem:[%s244 + $0x142] sm:$0xff]
    %v4402 = vld [vmem:[%s244 + $0x152] sm:$0xff]
    %v4403 = vld [vmem:[%s244 + $0x15a] sm:$0xff]
    %v4404 = vld [vmem:[%s244 + $0x16a] sm:$0xff]
    %v4405 = vld [vmem:[%s244 + $0x172] sm:$0xff]
    %v4406 = vld [vmem:[%s244 + $0x1b2] sm:$0xff]
    %v4407 = vld [vmem:[%s244 + $0x1ba] sm:$0xff]
    %v4408 = vld [vmem:[%s244 + $0x1ca] sm:$0xff]
    %v4409 = vld [vmem:[%s244 + $0x1d2] sm:$0xff]
    %v4410 = vld [vmem:[%s244 + $0x1e2] sm:$0xff]
    %v4411 = vld [vmem:[%s244 + $0x1ea] sm:$0xff]
    %v4412 = vld [vmem:[%s244 + $0x1fa] sm:$0xff]
    %v4413 = vld [vmem:[%s244 + $0x202] sm:$0xff]
    %v4414 = vld [vmem:[%s244 + $0x212] sm:$0xff]
    %v4415 = vld [vmem:[%s244 + $0x21a] sm:$0xff]
    %v4416 = vld [vmem:[%s244 + $0x22a] sm:$0xff]
    %v4417 = vld [vmem:[%s244 + $0x232] sm:$0xff]
    %v4418 = vld [vmem:[%s244 + $0x242] sm:$0xff]
    %v4419 = vld [vmem:[%s244 + $0x24a] sm:$0xff]
    %v4420 = vld [vmem:[%s244 + $0x25a] sm:$0xff]
    %v4421 = vld [vmem:[%s244 + $0x262] sm:$0xff]
    %v4422 = vld [vmem:[%s244 + $0x272] sm:$0xff]
    %v4423 = vld [vmem:[%s244 + $0x27a] sm:$0xff]
    %v4424 = vld [vmem:[%s244 + $0x28a] sm:$0xff]
    %v4425 = vld [vmem:[%s244 + $0x292] sm:$0xff]
    %v4426 = vld [vmem:[%s244 + $0x2a2] sm:$0xff]
    %v4427 = vld [vmem:[%s244 + $0x2aa] sm:$0xff]
    %v4428 = vld [vmem:[%s244 + $0x2ba] sm:$0xff]
    %v4429 = vld [vmem:[%s244 + $0x2c2] sm:$0xff]
    %v4430 = vld [vmem:[%s244 + $0x2d2] sm:$0xff]
    %v4431 = vld [vmem:[%s244 + $0x2da] sm:$0xff]
    %v4432 = vld [vmem:[%s244 + $0x2ea] sm:$0xff]
    %v4433 = vld [vmem:[%s244 + $0x2f2] sm:$0xff]
    %v4434 = vld [vmem:[%s244 + $0x302] sm:$0xff]
    %v4435 = vld [vmem:[%s244 + $0x30a] sm:$0xff]
    %v4436 = vld [vmem:[%s244 + $0x31a] sm:$0xff]
    %v4437 = vld [vmem:[%s244 + $0x322] sm:$0xff]
    %v4438 = vpack.c.bf16 %v4375, %v4374
    %v4439 = vpack.c.bf16 %v4377, %v4376
    %v4440 = vpack.c.bf16 %v4379, %v4378
    %v4441 = vpack.c.bf16 %v4381, %v4380
    %v4442 = vpack.c.bf16 %v4383, %v4382
    %v4443 = vpack.c.bf16 %v4385, %v4384
    %v4444 = vpack.c.bf16 %v4387, %v4386
    %v4445 = vpack.c.bf16 %v4389, %v4388
    %v4446 = vpack.c.bf16 %v4391, %v4390
    %v4447 = vpack.c.bf16 %v4393, %v4392
    %v4448 = vpack.c.bf16 %v4395, %v4394
    %v4449 = vpack.c.bf16 %v4397, %v4396
    %v4450 = vpack.c.bf16 %v4399, %v4398
    %v4451 = vpack.c.bf16 %v4401, %v4400
    %v4452 = vpack.c.bf16 %v4403, %v4402
    %v4453 = vpack.c.bf16 %v4405, %v4404
    %v4454 = vpack.c.bf16 %v4407, %v4406
    %v4455 = vpack.c.bf16 %v4409, %v4408
    %v4456 = vpack.c.bf16 %v4411, %v4410
    %v4457 = vpack.c.bf16 %v4413, %v4412
    %v4458 = vpack.c.bf16 %v4415, %v4414
    %v4459 = vpack.c.bf16 %v4417, %v4416
    %v4460 = vpack.c.bf16 %v4419, %v4418
    %v4461 = vpack.c.bf16 %v4421, %v4420
    %v4462 = vpack.c.bf16 %v4423, %v4422
    %v4463 = vpack.c.bf16 %v4425, %v4424
    %v4464 = vpack.c.bf16 %v4427, %v4426
    %v4465 = vpack.c.bf16 %v4429, %v4428
    %v4466 = vpack.c.bf16 %v4431, %v4430
    %v4467 = vpack.c.bf16 %v4433, %v4432
    %v4468 = vpack.c.bf16 %v4435, %v4434
    %v4469 = vpack.c.bf16 %v4437, %v4436
    %4502 = vrot.lane.b32.xlu0 %v4438, 40
    %v4503 = vpop.permute.xlu0 %4502
    %4504 = vrot.lane.b32.xlu0 %v4439, 40
    %v4505 = vpop.permute.xlu0 %4504
    %4506 = vrot.lane.b32.xlu0 %v4440, 40
    %v4507 = vpop.permute.xlu0 %4506
    %4508 = vrot.lane.b32.xlu0 %v4441, 40
    %v4509 = vpop.permute.xlu0 %4508
    %4510 = vrot.lane.b32.xlu0 %v4442, 40
    %v4511 = vpop.permute.xlu0 %4510
    %4512 = vrot.lane.b32.xlu0 %v4443, 40
    %v4513 = vpop.permute.xlu0 %4512
    %4514 = vrot.lane.b32.xlu0 %v4444, 40
    %v4515 = vpop.permute.xlu0 %4514
    %4516 = vrot.lane.b32.xlu0 %v4445, 40
    %v4517 = vpop.permute.xlu0 %4516
    %4518 = vrot.lane.b32.xlu0 %v4446, 40
    %v4519 = vpop.permute.xlu0 %4518
    %4520 = vrot.lane.b32.xlu0 %v4447, 40
    %v4521 = vpop.permute.xlu0 %4520
    %4522 = vrot.lane.b32.xlu0 %v4448, 40
    %v4523 = vpop.permute.xlu0 %4522
    %4524 = vrot.lane.b32.xlu0 %v4449, 40
    %v4525 = vpop.permute.xlu0 %4524
    %4526 = vrot.lane.b32.xlu0 %v4450, 40
    %v4527 = vpop.permute.xlu0 %4526
    %4528 = vrot.lane.b32.xlu0 %v4451, 40
    %v4529 = vpop.permute.xlu0 %4528
    %4530 = vrot.lane.b32.xlu0 %v4452, 40
    %v4531 = vpop.permute.xlu0 %4530
    %4532 = vrot.lane.b32.xlu0 %v4453, 40
    %v4533 = vpop.permute.xlu0 %4532
    %4534 = vrot.lane.b32.xlu0 %v4454, 40
    %v4535 = vpop.permute.xlu0 %4534
    %4536 = vrot.lane.b32.xlu0 %v4455, 40
    %v4537 = vpop.permute.xlu0 %4536
    %4538 = vrot.lane.b32.xlu0 %v4456, 40
    %v4539 = vpop.permute.xlu0 %4538
    %4540 = vrot.lane.b32.xlu0 %v4457, 40
    %v4541 = vpop.permute.xlu0 %4540
    %4542 = vrot.lane.b32.xlu0 %v4458, 40
    %v4543 = vpop.permute.xlu0 %4542
    %4544 = vrot.lane.b32.xlu0 %v4459, 40
    %v4545 = vpop.permute.xlu0 %4544
    %4546 = vrot.lane.b32.xlu0 %v4460, 40
    %v4547 = vpop.permute.xlu0 %4546
    %4548 = vrot.lane.b32.xlu0 %v4461, 40
    %v4549 = vpop.permute.xlu0 %4548
    %4550 = vrot.lane.b32.xlu0 %v4462, 40
    %v4551 = vpop.permute.xlu0 %4550
    %4552 = vrot.lane.b32.xlu0 %v4463, 40
    %v4553 = vpop.permute.xlu0 %4552
    %4554 = vrot.lane.b32.xlu0 %v4464, 40
    %v4555 = vpop.permute.xlu0 %4554
    %4556 = vrot.lane.b32.xlu0 %v4465, 40
    %v4557 = vpop.permute.xlu0 %4556
    %4558 = vrot.lane.b32.xlu0 %v4466, 40
    %v4559 = vpop.permute.xlu0 %4558
    %4560 = vrot.lane.b32.xlu0 %v4467, 40
    %v4561 = vpop.permute.xlu0 %4560
    %4562 = vrot.lane.b32.xlu0 %v4468, 40
    %v4563 = vpop.permute.xlu0 %4562
    %4564 = vrot.lane.b32.xlu0 %v4469, 40
    %v4565 = vpop.permute.xlu0 %4564
    %4598 = vst.msk [vmem:[#allocation3] sm:$0xff] %vm1689, %v4503
    %4599 = vst.msk [vmem:[#allocation3 + $0x8] sm:$0xff] %vm1689, %v4505
    %4600 = vst.msk [vmem:[#allocation3 + $0x10] sm:$0xff] %vm1689, %v4507
    %4601 = vst.msk [vmem:[#allocation3 + $0x18] sm:$0xff] %vm1689, %v4509
    %4602 = vst.msk [vmem:[#allocation3 + $0x20] sm:$0xff] %vm1689, %v4511
    %4603 = vst.msk [vmem:[#allocation3 + $0x28] sm:$0xff] %vm1689, %v4513
    %4604 = vst.msk [vmem:[#allocation3 + $0x30] sm:$0xff] %vm1689, %v4515
    %4605 = vst.msk [vmem:[#allocation3 + $0x38] sm:$0xff] %vm1689, %v4517
    %4606 = vst.msk [vmem:[#allocation3 + $0x40] sm:$0xff] %vm1689, %v4519
    %4607 = vst.msk [vmem:[#allocation3 + $0x48] sm:$0xff] %vm1689, %v4521
    %4608 = vst.msk [vmem:[#allocation3 + $0x50] sm:$0xff] %vm1689, %v4523
    %4609 = vst.msk [vmem:[#allocation3 + $0x58] sm:$0xff] %vm1689, %v4525
    %4610 = vst.msk [vmem:[#allocation3 + $0x60] sm:$0xff] %vm1689, %v4527
    %4611 = vst.msk [vmem:[#allocation3 + $0x68] sm:$0xff] %vm1689, %v4529
    %4612 = vst.msk [vmem:[#allocation3 + $0x70] sm:$0xff] %vm1689, %v4531
    %4613 = vst.msk [vmem:[#allocation3 + $0x78] sm:$0xff] %vm1689, %v4533
    %4614 = vst.msk [vmem:[#allocation3 + $0x80] sm:$0xff] %vm1689, %v4535
    %4615 = vst.msk [vmem:[#allocation3 + $0x88] sm:$0xff] %vm1689, %v4537
    %4616 = vst.msk [vmem:[#allocation3 + $0x90] sm:$0xff] %vm1689, %v4539
    %4617 = vst.msk [vmem:[#allocation3 + $0x98] sm:$0xff] %vm1689, %v4541
    %4618 = vst.msk [vmem:[#allocation3 + $0xa0] sm:$0xff] %vm1689, %v4543
    %4619 = vst.msk [vmem:[#allocation3 + $0xa8] sm:$0xff] %vm1689, %v4545
    %4620 = vst.msk [vmem:[#allocation3 + $0xb0] sm:$0xff] %vm1689, %v4547
    %4621 = vst.msk [vmem:[#allocation3 + $0xb8] sm:$0xff] %vm1689, %v4549
    %4622 = vst.msk [vmem:[#allocation3 + $0xc0] sm:$0xff] %vm1689, %v4551
    %4623 = vst.msk [vmem:[#allocation3 + $0xc8] sm:$0xff] %vm1689, %v4553
    %4624 = vst.msk [vmem:[#allocation3 + $0xd0] sm:$0xff] %vm1689, %v4555
    %4625 = vst.msk [vmem:[#allocation3 + $0xd8] sm:$0xff] %vm1689, %v4557
    %4626 = vst.msk [vmem:[#allocation3 + $0xe0] sm:$0xff] %vm1689, %v4559
    %4627 = vst.msk [vmem:[#allocation3 + $0xe8] sm:$0xff] %vm1689, %v4561
    %4628 = vst.msk [vmem:[#allocation3 + $0xf0] sm:$0xff] %vm1689, %v4563
    %4629 = vst.msk [vmem:[#allocation3 + $0xf8] sm:$0xff] %vm1689, %v4565
    %v4630 = vld [vmem:[%s1722] sm:$0xff]
    %v4631 = vld [vmem:[%s1722 + $0x8] sm:$0xff]
    %v4632 = vld [vmem:[%s1722 + $0x18] sm:$0xff]
    %v4633 = vld [vmem:[%s1722 + $0x20] sm:$0xff]
    %v4634 = vld [vmem:[%s1722 + $0x30] sm:$0xff]
    %v4635 = vld [vmem:[%s1722 + $0x38] sm:$0xff]
    %v4636 = vld [vmem:[%s1722 + $0x48] sm:$0xff]
    %v4637 = vld [vmem:[%s1722 + $0x50] sm:$0xff]
    %v4638 = vld [vmem:[%s1722 + $0x60] sm:$0xff]
    %v4639 = vld [vmem:[%s1722 + $0x68] sm:$0xff]
    %v4640 = vld [vmem:[%s1722 + $0x78] sm:$0xff]
    %v4641 = vld [vmem:[%s1722 + $0x80] sm:$0xff]
    %v4642 = vld [vmem:[%s1722 + $0x90] sm:$0xff]
    %v4643 = vld [vmem:[%s1722 + $0x98] sm:$0xff]
    %v4644 = vld [vmem:[%s1722 + $0xa8] sm:$0xff]
    %v4645 = vld [vmem:[%s1722 + $0xb0] sm:$0xff]
    %v4646 = vld [vmem:[%s1722 + $0xc0] sm:$0xff]
    %v4647 = vld [vmem:[%s1722 + $0xc8] sm:$0xff]
    %v4648 = vld [vmem:[%s1722 + $0xd8] sm:$0xff]
    %v4649 = vld [vmem:[%s1722 + $0xe0] sm:$0xff]
    %v4650 = vld [vmem:[%s1722 + $0xf0] sm:$0xff]
    %v4651 = vld [vmem:[%s1722 + $0xf8] sm:$0xff]
    %v4652 = vld [vmem:[%s1722 + $0x108] sm:$0xff]
    %v4653 = vld [vmem:[%s1722 + $0x110] sm:$0xff]
    %v4654 = vld [vmem:[%s1722 + $0x120] sm:$0xff]
    %v4655 = vld [vmem:[%s1722 + $0x128] sm:$0xff]
    %v4656 = vld [vmem:[%s1722 + $0x138] sm:$0xff]
    %v4657 = vld [vmem:[%s1722 + $0x140] sm:$0xff]
    %v4658 = vld [vmem:[%s1722 + $0x150] sm:$0xff]
    %v4659 = vld [vmem:[%s1722 + $0x158] sm:$0xff]
    %v4660 = vld [vmem:[%s1722 + $0x168] sm:$0xff]
    %v4661 = vld [vmem:[%s1722 + $0x170] sm:$0xff]
    %v4662 = vld [vmem:[%s1722 + $0x1b0] sm:$0xff]
    %v4663 = vld [vmem:[%s1722 + $0x1b8] sm:$0xff]
    %v4664 = vld [vmem:[%s1722 + $0x1c8] sm:$0xff]
    %v4665 = vld [vmem:[%s1722 + $0x1d0] sm:$0xff]
    %v4666 = vld [vmem:[%s1722 + $0x1e0] sm:$0xff]
    %v4667 = vld [vmem:[%s1722 + $0x1e8] sm:$0xff]
    %v4668 = vld [vmem:[%s1722 + $0x1f8] sm:$0xff]
    %v4669 = vld [vmem:[%s1722 + $0x200] sm:$0xff]
    %v4670 = vld [vmem:[%s1722 + $0x210] sm:$0xff]
    %v4671 = vld [vmem:[%s1722 + $0x218] sm:$0xff]
    %v4672 = vld [vmem:[%s1722 + $0x228] sm:$0xff]
    %v4673 = vld [vmem:[%s1722 + $0x230] sm:$0xff]
    %v4674 = vld [vmem:[%s1722 + $0x240] sm:$0xff]
    %v4675 = vld [vmem:[%s1722 + $0x248] sm:$0xff]
    %v4676 = vld [vmem:[%s1722 + $0x258] sm:$0xff]
    %v4677 = vld [vmem:[%s1722 + $0x260] sm:$0xff]
    %v4678 = vld [vmem:[%s1722 + $0x270] sm:$0xff]
    %v4679 = vld [vmem:[%s1722 + $0x278] sm:$0xff]
    %v4680 = vld [vmem:[%s1722 + $0x288] sm:$0xff]
    %v4681 = vld [vmem:[%s1722 + $0x290] sm:$0xff]
    %v4682 = vld [vmem:[%s1722 + $0x2a0] sm:$0xff]
    %v4683 = vld [vmem:[%s1722 + $0x2a8] sm:$0xff]
    %v4684 = vld [vmem:[%s1722 + $0x2b8] sm:$0xff]
    %v4685 = vld [vmem:[%s1722 + $0x2c0] sm:$0xff]
    %v4686 = vld [vmem:[%s1722 + $0x2d0] sm:$0xff]
    %v4687 = vld [vmem:[%s1722 + $0x2d8] sm:$0xff]
    %v4688 = vld [vmem:[%s1722 + $0x2e8] sm:$0xff]
    %v4689 = vld [vmem:[%s1722 + $0x2f0] sm:$0xff]
    %v4690 = vld [vmem:[%s1722 + $0x300] sm:$0xff]
    %v4691 = vld [vmem:[%s1722 + $0x308] sm:$0xff]
    %v4692 = vld [vmem:[%s1722 + $0x318] sm:$0xff]
    %v4693 = vld [vmem:[%s1722 + $0x320] sm:$0xff]
    %v4694 = vpack.c.bf16 %v4631, %v4630
    %v4695 = vpack.c.bf16 %v4633, %v4632
    %v4696 = vpack.c.bf16 %v4635, %v4634
    %v4697 = vpack.c.bf16 %v4637, %v4636
    %v4698 = vpack.c.bf16 %v4639, %v4638
    %v4699 = vpack.c.bf16 %v4641, %v4640
    %v4700 = vpack.c.bf16 %v4643, %v4642
    %v4701 = vpack.c.bf16 %v4645, %v4644
    %v4702 = vpack.c.bf16 %v4647, %v4646
    %v4703 = vpack.c.bf16 %v4649, %v4648
    %v4704 = vpack.c.bf16 %v4651, %v4650
    %v4705 = vpack.c.bf16 %v4653, %v4652
    %v4706 = vpack.c.bf16 %v4655, %v4654
    %v4707 = vpack.c.bf16 %v4657, %v4656
    %v4708 = vpack.c.bf16 %v4659, %v4658
    %v4709 = vpack.c.bf16 %v4661, %v4660
    %v4710 = vpack.c.bf16 %v4663, %v4662
    %v4711 = vpack.c.bf16 %v4665, %v4664
    %v4712 = vpack.c.bf16 %v4667, %v4666
    %v4713 = vpack.c.bf16 %v4669, %v4668
    %v4714 = vpack.c.bf16 %v4671, %v4670
    %v4715 = vpack.c.bf16 %v4673, %v4672
    %v4716 = vpack.c.bf16 %v4675, %v4674
    %v4717 = vpack.c.bf16 %v4677, %v4676
    %v4718 = vpack.c.bf16 %v4679, %v4678
    %v4719 = vpack.c.bf16 %v4681, %v4680
    %v4720 = vpack.c.bf16 %v4683, %v4682
    %v4721 = vpack.c.bf16 %v4685, %v4684
    %v4722 = vpack.c.bf16 %v4687, %v4686
    %v4723 = vpack.c.bf16 %v4689, %v4688
    %v4724 = vpack.c.bf16 %v4691, %v4690
    %v4725 = vpack.c.bf16 %v4693, %v4692
    %4758 = vrot.lane.b32.xlu0 %v4694, 48
    %v4759 = vpop.permute.xlu0 %4758
    %4760 = vrot.lane.b32.xlu0 %v4695, 48
    %v4761 = vpop.permute.xlu0 %4760
    %4762 = vrot.lane.b32.xlu0 %v4696, 48
    %v4763 = vpop.permute.xlu0 %4762
    %4764 = vrot.lane.b32.xlu0 %v4697, 48
    %v4765 = vpop.permute.xlu0 %4764
    %4766 = vrot.lane.b32.xlu0 %v4698, 48
    %v4767 = vpop.permute.xlu0 %4766
    %4768 = vrot.lane.b32.xlu0 %v4699, 48
    %v4769 = vpop.permute.xlu0 %4768
    %4770 = vrot.lane.b32.xlu0 %v4700, 48
    %v4771 = vpop.permute.xlu0 %4770
    %4772 = vrot.lane.b32.xlu0 %v4701, 48
    %v4773 = vpop.permute.xlu0 %4772
    %4774 = vrot.lane.b32.xlu0 %v4702, 48
    %v4775 = vpop.permute.xlu0 %4774
    %4776 = vrot.lane.b32.xlu0 %v4703, 48
    %v4777 = vpop.permute.xlu0 %4776
    %4778 = vrot.lane.b32.xlu0 %v4704, 48
    %v4779 = vpop.permute.xlu0 %4778
    %4780 = vrot.lane.b32.xlu0 %v4705, 48
    %v4781 = vpop.permute.xlu0 %4780
    %4782 = vrot.lane.b32.xlu0 %v4706, 48
    %v4783 = vpop.permute.xlu0 %4782
    %4784 = vrot.lane.b32.xlu0 %v4707, 48
    %v4785 = vpop.permute.xlu0 %4784
    %4786 = vrot.lane.b32.xlu0 %v4708, 48
    %v4787 = vpop.permute.xlu0 %4786
    %4788 = vrot.lane.b32.xlu0 %v4709, 48
    %v4789 = vpop.permute.xlu0 %4788
    %4790 = vrot.lane.b32.xlu0 %v4710, 48
    %v4791 = vpop.permute.xlu0 %4790
    %4792 = vrot.lane.b32.xlu0 %v4711, 48
    %v4793 = vpop.permute.xlu0 %4792
    %4794 = vrot.lane.b32.xlu0 %v4712, 48
    %v4795 = vpop.permute.xlu0 %4794
    %4796 = vrot.lane.b32.xlu0 %v4713, 48
    %v4797 = vpop.permute.xlu0 %4796
    %4798 = vrot.lane.b32.xlu0 %v4714, 48
    %v4799 = vpop.permute.xlu0 %4798
    %4800 = vrot.lane.b32.xlu0 %v4715, 48
    %v4801 = vpop.permute.xlu0 %4800
    %4802 = vrot.lane.b32.xlu0 %v4716, 48
    %v4803 = vpop.permute.xlu0 %4802
    %4804 = vrot.lane.b32.xlu0 %v4717, 48
    %v4805 = vpop.permute.xlu0 %4804
    %4806 = vrot.lane.b32.xlu0 %v4718, 48
    %v4807 = vpop.permute.xlu0 %4806
    %4808 = vrot.lane.b32.xlu0 %v4719, 48
    %v4809 = vpop.permute.xlu0 %4808
    %4810 = vrot.lane.b32.xlu0 %v4720, 48
    %v4811 = vpop.permute.xlu0 %4810
    %4812 = vrot.lane.b32.xlu0 %v4721, 48
    %v4813 = vpop.permute.xlu0 %4812
    %4814 = vrot.lane.b32.xlu0 %v4722, 48
    %v4815 = vpop.permute.xlu0 %4814
    %4816 = vrot.lane.b32.xlu0 %v4723, 48
    %v4817 = vpop.permute.xlu0 %4816
    %4818 = vrot.lane.b32.xlu0 %v4724, 48
    %v4819 = vpop.permute.xlu0 %4818
    %4820 = vrot.lane.b32.xlu0 %v4725, 48
    %v4821 = vpop.permute.xlu0 %4820
    %4854 = vst.msk [vmem:[#allocation3] sm:$0xff] %vm1947, %v4759
    %4855 = vst.msk [vmem:[#allocation3 + $0x8] sm:$0xff] %vm1947, %v4761
    %4856 = vst.msk [vmem:[#allocation3 + $0x10] sm:$0xff] %vm1947, %v4763
    %4857 = vst.msk [vmem:[#allocation3 + $0x18] sm:$0xff] %vm1947, %v4765
    %4858 = vst.msk [vmem:[#allocation3 + $0x20] sm:$0xff] %vm1947, %v4767
    %4859 = vst.msk [vmem:[#allocation3 + $0x28] sm:$0xff] %vm1947, %v4769
    %4860 = vst.msk [vmem:[#allocation3 + $0x30] sm:$0xff] %vm1947, %v4771
    %4861 = vst.msk [vmem:[#allocation3 + $0x38] sm:$0xff] %vm1947, %v4773
    %4862 = vst.msk [vmem:[#allocation3 + $0x40] sm:$0xff] %vm1947, %v4775
    %4863 = vst.msk [vmem:[#allocation3 + $0x48] sm:$0xff] %vm1947, %v4777
    %4864 = vst.msk [vmem:[#allocation3 + $0x50] sm:$0xff] %vm1947, %v4779
    %4865 = vst.msk [vmem:[#allocation3 + $0x58] sm:$0xff] %vm1947, %v4781
    %4866 = vst.msk [vmem:[#allocation3 + $0x60] sm:$0xff] %vm1947, %v4783
    %4867 = vst.msk [vmem:[#allocation3 + $0x68] sm:$0xff] %vm1947, %v4785
    %4868 = vst.msk [vmem:[#allocation3 + $0x70] sm:$0xff] %vm1947, %v4787
    %4869 = vst.msk [vmem:[#allocation3 + $0x78] sm:$0xff] %vm1947, %v4789
    %4870 = vst.msk [vmem:[#allocation3 + $0x80] sm:$0xff] %vm1947, %v4791
    %4871 = vst.msk [vmem:[#allocation3 + $0x88] sm:$0xff] %vm1947, %v4793
    %4872 = vst.msk [vmem:[#allocation3 + $0x90] sm:$0xff] %vm1947, %v4795
    %4873 = vst.msk [vmem:[#allocation3 + $0x98] sm:$0xff] %vm1947, %v4797
    %4874 = vst.msk [vmem:[#allocation3 + $0xa0] sm:$0xff] %vm1947, %v4799
    %4875 = vst.msk [vmem:[#allocation3 + $0xa8] sm:$0xff] %vm1947, %v4801
    %4876 = vst.msk [vmem:[#allocation3 + $0xb0] sm:$0xff] %vm1947, %v4803
    %4877 = vst.msk [vmem:[#allocation3 + $0xb8] sm:$0xff] %vm1947, %v4805
    %4878 = vst.msk [vmem:[#allocation3 + $0xc0] sm:$0xff] %vm1947, %v4807
    %4879 = vst.msk [vmem:[#allocation3 + $0xc8] sm:$0xff] %vm1947, %v4809
    %4880 = vst.msk [vmem:[#allocation3 + $0xd0] sm:$0xff] %vm1947, %v4811
    %4881 = vst.msk [vmem:[#allocation3 + $0xd8] sm:$0xff] %vm1947, %v4813
    %4882 = vst.msk [vmem:[#allocation3 + $0xe0] sm:$0xff] %vm1947, %v4815
    %4883 = vst.msk [vmem:[#allocation3 + $0xe8] sm:$0xff] %vm1947, %v4817
    %4884 = vst.msk [vmem:[#allocation3 + $0xf0] sm:$0xff] %vm1947, %v4819
    %4885 = vst.msk [vmem:[#allocation3 + $0xf8] sm:$0xff] %vm1947, %v4821
    %v4886 = vld [vmem:[%s1722 + $0x1] sm:$0xff]
    %v4887 = vld [vmem:[%s1722 + $0x9] sm:$0xff]
    %v4888 = vld [vmem:[%s1722 + $0x19] sm:$0xff]
    %v4889 = vld [vmem:[%s1722 + $0x21] sm:$0xff]
    %v4890 = vld [vmem:[%s1722 + $0x31] sm:$0xff]
    %v4891 = vld [vmem:[%s1722 + $0x39] sm:$0xff]
    %v4892 = vld [vmem:[%s1722 + $0x49] sm:$0xff]
    %v4893 = vld [vmem:[%s1722 + $0x51] sm:$0xff]
    %v4894 = vld [vmem:[%s1722 + $0x61] sm:$0xff]
    %v4895 = vld [vmem:[%s1722 + $0x69] sm:$0xff]
    %v4896 = vld [vmem:[%s1722 + $0x79] sm:$0xff]
    %v4897 = vld [vmem:[%s1722 + $0x81] sm:$0xff]
    %v4898 = vld [vmem:[%s1722 + $0x91] sm:$0xff]
    %v4899 = vld [vmem:[%s1722 + $0x99] sm:$0xff]
    %v4900 = vld [vmem:[%s1722 + $0xa9] sm:$0xff]
    %v4901 = vld [vmem:[%s1722 + $0xb1] sm:$0xff]
    %v4902 = vld [vmem:[%s1722 + $0xc1] sm:$0xff]
    %v4903 = vld [vmem:[%s1722 + $0xc9] sm:$0xff]
    %v4904 = vld [vmem:[%s1722 + $0xd9] sm:$0xff]
    %v4905 = vld [vmem:[%s1722 + $0xe1] sm:$0xff]
    %v4906 = vld [vmem:[%s1722 + $0xf1] sm:$0xff]
    %v4907 = vld [vmem:[%s1722 + $0xf9] sm:$0xff]
    %v4908 = vld [vmem:[%s1722 + $0x109] sm:$0xff]
    %v4909 = vld [vmem:[%s1722 + $0x111] sm:$0xff]
    %v4910 = vld [vmem:[%s1722 + $0x121] sm:$0xff]
    %v4911 = vld [vmem:[%s1722 + $0x129] sm:$0xff]
    %v4912 = vld [vmem:[%s1722 + $0x139] sm:$0xff]
    %v4913 = vld [vmem:[%s1722 + $0x141] sm:$0xff]
    %v4914 = vld [vmem:[%s1722 + $0x151] sm:$0xff]
    %v4915 = vld [vmem:[%s1722 + $0x159] sm:$0xff]
    %v4916 = vld [vmem:[%s1722 + $0x169] sm:$0xff]
    %v4917 = vld [vmem:[%s1722 + $0x171] sm:$0xff]
    %v4918 = vld [vmem:[%s1722 + $0x1b1] sm:$0xff]
    %v4919 = vld [vmem:[%s1722 + $0x1b9] sm:$0xff]
    %v4920 = vld [vmem:[%s1722 + $0x1c9] sm:$0xff]
    %v4921 = vld [vmem:[%s1722 + $0x1d1] sm:$0xff]
    %v4922 = vld [vmem:[%s1722 + $0x1e1] sm:$0xff]
    %v4923 = vld [vmem:[%s1722 + $0x1e9] sm:$0xff]
    %v4924 = vld [vmem:[%s1722 + $0x1f9] sm:$0xff]
    %v4925 = vld [vmem:[%s1722 + $0x201] sm:$0xff]
    %v4926 = vld [vmem:[%s1722 + $0x211] sm:$0xff]
    %v4927 = vld [vmem:[%s1722 + $0x219] sm:$0xff]
    %v4928 = vld [vmem:[%s1722 + $0x229] sm:$0xff]
    %v4929 = vld [vmem:[%s1722 + $0x231] sm:$0xff]
    %v4930 = vld [vmem:[%s1722 + $0x241] sm:$0xff]
    %v4931 = vld [vmem:[%s1722 + $0x249] sm:$0xff]
    %v4932 = vld [vmem:[%s1722 + $0x259] sm:$0xff]
    %v4933 = vld [vmem:[%s1722 + $0x261] sm:$0xff]
    %v4934 = vld [vmem:[%s1722 + $0x271] sm:$0xff]
    %v4935 = vld [vmem:[%s1722 + $0x279] sm:$0xff]
    %v4936 = vld [vmem:[%s1722 + $0x289] sm:$0xff]
    %v4937 = vld [vmem:[%s1722 + $0x291] sm:$0xff]
    %v4938 = vld [vmem:[%s1722 + $0x2a1] sm:$0xff]
    %v4939 = vld [vmem:[%s1722 + $0x2a9] sm:$0xff]
    %v4940 = vld [vmem:[%s1722 + $0x2b9] sm:$0xff]
    %v4941 = vld [vmem:[%s1722 + $0x2c1] sm:$0xff]
    %v4942 = vld [vmem:[%s1722 + $0x2d1] sm:$0xff]
    %v4943 = vld [vmem:[%s1722 + $0x2d9] sm:$0xff]
    %v4944 = vld [vmem:[%s1722 + $0x2e9] sm:$0xff]
    %v4945 = vld [vmem:[%s1722 + $0x2f1] sm:$0xff]
    %v4946 = vld [vmem:[%s1722 + $0x301] sm:$0xff]
    %v4947 = vld [vmem:[%s1722 + $0x309] sm:$0xff]
    %v4948 = vld [vmem:[%s1722 + $0x319] sm:$0xff]
    %v4949 = vld [vmem:[%s1722 + $0x321] sm:$0xff]
    %v4950 = vpack.c.bf16 %v4887, %v4886
    %v4951 = vpack.c.bf16 %v4889, %v4888
    %v4952 = vpack.c.bf16 %v4891, %v4890
    %v4953 = vpack.c.bf16 %v4893, %v4892
    %v4954 = vpack.c.bf16 %v4895, %v4894
    %v4955 = vpack.c.bf16 %v4897, %v4896
    %v4956 = vpack.c.bf16 %v4899, %v4898
    %v4957 = vpack.c.bf16 %v4901, %v4900
    %v4958 = vpack.c.bf16 %v4903, %v4902
    %v4959 = vpack.c.bf16 %v4905, %v4904
    %v4960 = vpack.c.bf16 %v4907, %v4906
    %v4961 = vpack.c.bf16 %v4909, %v4908
    %v4962 = vpack.c.bf16 %v4911, %v4910
    %v4963 = vpack.c.bf16 %v4913, %v4912
    %v4964 = vpack.c.bf16 %v4915, %v4914
    %v4965 = vpack.c.bf16 %v4917, %v4916
    %v4966 = vpack.c.bf16 %v4919, %v4918
    %v4967 = vpack.c.bf16 %v4921, %v4920
    %v4968 = vpack.c.bf16 %v4923, %v4922
    %v4969 = vpack.c.bf16 %v4925, %v4924
    %v4970 = vpack.c.bf16 %v4927, %v4926
    %v4971 = vpack.c.bf16 %v4929, %v4928
    %v4972 = vpack.c.bf16 %v4931, %v4930
    %v4973 = vpack.c.bf16 %v4933, %v4932
    %v4974 = vpack.c.bf16 %v4935, %v4934
    %v4975 = vpack.c.bf16 %v4937, %v4936
    %v4976 = vpack.c.bf16 %v4939, %v4938
    %v4977 = vpack.c.bf16 %v4941, %v4940
    %v4978 = vpack.c.bf16 %v4943, %v4942
    %v4979 = vpack.c.bf16 %v4945, %v4944
    %v4980 = vpack.c.bf16 %v4947, %v4946
    %v4981 = vpack.c.bf16 %v4949, %v4948
    %5014 = vrot.lane.b32.xlu0 %v4950, 56
    %v5015 = vpop.permute.xlu0 %5014
    %5016 = vrot.lane.b32.xlu0 %v4951, 56
    %v5017 = vpop.permute.xlu0 %5016
    %5018 = vrot.lane.b32.xlu0 %v4952, 56
    %v5019 = vpop.permute.xlu0 %5018
    %5020 = vrot.lane.b32.xlu0 %v4953, 56
    %v5021 = vpop.permute.xlu0 %5020
    %5022 = vrot.lane.b32.xlu0 %v4954, 56
    %v5023 = vpop.permute.xlu0 %5022
    %5024 = vrot.lane.b32.xlu0 %v4955, 56
    %v5025 = vpop.permute.xlu0 %5024
    %5026 = vrot.lane.b32.xlu0 %v4956, 56
    %v5027 = vpop.permute.xlu0 %5026
    %5028 = vrot.lane.b32.xlu0 %v4957, 56
    %v5029 = vpop.permute.xlu0 %5028
    %5030 = vrot.lane.b32.xlu0 %v4958, 56
    %v5031 = vpop.permute.xlu0 %5030
    %5032 = vrot.lane.b32.xlu0 %v4959, 56
    %v5033 = vpop.permute.xlu0 %5032
    %5034 = vrot.lane.b32.xlu0 %v4960, 56
    %v5035 = vpop.permute.xlu0 %5034
    %5036 = vrot.lane.b32.xlu0 %v4961, 56
    %v5037 = vpop.permute.xlu0 %5036
    %5038 = vrot.lane.b32.xlu0 %v4962, 56
    %v5039 = vpop.permute.xlu0 %5038
    %5040 = vrot.lane.b32.xlu0 %v4963, 56
    %v5041 = vpop.permute.xlu0 %5040
    %5042 = vrot.lane.b32.xlu0 %v4964, 56
    %v5043 = vpop.permute.xlu0 %5042
    %5044 = vrot.lane.b32.xlu0 %v4965, 56
    %v5045 = vpop.permute.xlu0 %5044
    %5046 = vrot.lane.b32.xlu0 %v4966, 56
    %v5047 = vpop.permute.xlu0 %5046
    %5048 = vrot.lane.b32.xlu0 %v4967, 56
    %v5049 = vpop.permute.xlu0 %5048
    %5050 = vrot.lane.b32.xlu0 %v4968, 56
    %v5051 = vpop.permute.xlu0 %5050
    %5052 = vrot.lane.b32.xlu0 %v4969, 56
    %v5053 = vpop.permute.xlu0 %5052
    %5054 = vrot.lane.b32.xlu0 %v4970, 56
    %v5055 = vpop.permute.xlu0 %5054
    %5056 = vrot.lane.b32.xlu0 %v4971, 56
    %v5057 = vpop.permute.xlu0 %5056
    %5058 = vrot.lane.b32.xlu0 %v4972, 56
    %v5059 = vpop.permute.xlu0 %5058
    %5060 = vrot.lane.b32.xlu0 %v4973, 56
    %v5061 = vpop.permute.xlu0 %5060
    %5062 = vrot.lane.b32.xlu0 %v4974, 56
    %v5063 = vpop.permute.xlu0 %5062
    %5064 = vrot.lane.b32.xlu0 %v4975, 56
    %v5065 = vpop.permute.xlu0 %5064
    %5066 = vrot.lane.b32.xlu0 %v4976, 56
    %v5067 = vpop.permute.xlu0 %5066
    %5068 = vrot.lane.b32.xlu0 %v4977, 56
    %v5069 = vpop.permute.xlu0 %5068
    %5070 = vrot.lane.b32.xlu0 %v4978, 56
    %v5071 = vpop.permute.xlu0 %5070
    %5072 = vrot.lane.b32.xlu0 %v4979, 56
    %v5073 = vpop.permute.xlu0 %5072
    %5074 = vrot.lane.b32.xlu0 %v4980, 56
    %v5075 = vpop.permute.xlu0 %5074
    %5076 = vrot.lane.b32.xlu0 %v4981, 56
    %v5077 = vpop.permute.xlu0 %5076
    %5110 = vst.msk [vmem:[#allocation3] sm:$0xff] %vm2204, %v5015
    %5111 = vst.msk [vmem:[#allocation3 + $0x8] sm:$0xff] %vm2204, %v5017
    %5112 = vst.msk [vmem:[#allocation3 + $0x10] sm:$0xff] %vm2204, %v5019
    %5113 = vst.msk [vmem:[#allocation3 + $0x18] sm:$0xff] %vm2204, %v5021
    %5114 = vst.msk [vmem:[#allocation3 + $0x20] sm:$0xff] %vm2204, %v5023
    %5115 = vst.msk [vmem:[#allocation3 + $0x28] sm:$0xff] %vm2204, %v5025
    %5116 = vst.msk [vmem:[#allocation3 + $0x30] sm:$0xff] %vm2204, %v5027
    %5117 = vst.msk [vmem:[#allocation3 + $0x38] sm:$0xff] %vm2204, %v5029
    %5118 = vst.msk [vmem:[#allocation3 + $0x40] sm:$0xff] %vm2204, %v5031
    %5119 = vst.msk [vmem:[#allocation3 + $0x48] sm:$0xff] %vm2204, %v5033
    %5120 = vst.msk [vmem:[#allocation3 + $0x50] sm:$0xff] %vm2204, %v5035
    %5121 = vst.msk [vmem:[#allocation3 + $0x58] sm:$0xff] %vm2204, %v5037
    %5122 = vst.msk [vmem:[#allocation3 + $0x60] sm:$0xff] %vm2204, %v5039
    %5123 = vst.msk [vmem:[#allocation3 + $0x68] sm:$0xff] %vm2204, %v5041
    %5124 = vst.msk [vmem:[#allocation3 + $0x70] sm:$0xff] %vm2204, %v5043
    %5125 = vst.msk [vmem:[#allocation3 + $0x78] sm:$0xff] %vm2204, %v5045
    %5126 = vst.msk [vmem:[#allocation3 + $0x80] sm:$0xff] %vm2204, %v5047
    %5127 = vst.msk [vmem:[#allocation3 + $0x88] sm:$0xff] %vm2204, %v5049
    %5128 = vst.msk [vmem:[#allocation3 + $0x90] sm:$0xff] %vm2204, %v5051
    %5129 = vst.msk [vmem:[#allocation3 + $0x98] sm:$0xff] %vm2204, %v5053
    %5130 = vst.msk [vmem:[#allocation3 + $0xa0] sm:$0xff] %vm2204, %v5055
    %5131 = vst.msk [vmem:[#allocation3 + $0xa8] sm:$0xff] %vm2204, %v5057
    %5132 = vst.msk [vmem:[#allocation3 + $0xb0] sm:$0xff] %vm2204, %v5059
    %5133 = vst.msk [vmem:[#allocation3 + $0xb8] sm:$0xff] %vm2204, %v5061
    %5134 = vst.msk [vmem:[#allocation3 + $0xc0] sm:$0xff] %vm2204, %v5063
    %5135 = vst.msk [vmem:[#allocation3 + $0xc8] sm:$0xff] %vm2204, %v5065
    %5136 = vst.msk [vmem:[#allocation3 + $0xd0] sm:$0xff] %vm2204, %v5067
    %5137 = vst.msk [vmem:[#allocation3 + $0xd8] sm:$0xff] %vm2204, %v5069
    %5138 = vst.msk [vmem:[#allocation3 + $0xe0] sm:$0xff] %vm2204, %v5071
    %5139 = vst.msk [vmem:[#allocation3 + $0xe8] sm:$0xff] %vm2204, %v5073
    %5140 = vst.msk [vmem:[#allocation3 + $0xf0] sm:$0xff] %vm2204, %v5075
    %5141 = vst.msk [vmem:[#allocation3 + $0xf8] sm:$0xff] %vm2204, %v5077
    %v5142 = vld [vmem:[%s1722 + $0x2] sm:$0xff]
    %v5143 = vld [vmem:[%s1722 + $0xa] sm:$0xff]
    %v5144 = vld [vmem:[%s1722 + $0x1a] sm:$0xff]
    %v5145 = vld [vmem:[%s1722 + $0x22] sm:$0xff]
    %v5146 = vld [vmem:[%s1722 + $0x32] sm:$0xff]
    %v5147 = vld [vmem:[%s1722 + $0x3a] sm:$0xff]
    %v5148 = vld [vmem:[%s1722 + $0x4a] sm:$0xff]
    %v5149 = vld [vmem:[%s1722 + $0x52] sm:$0xff]
    %v5150 = vld [vmem:[%s1722 + $0x62] sm:$0xff]
    %v5151 = vld [vmem:[%s1722 + $0x6a] sm:$0xff]
    %v5152 = vld [vmem:[%s1722 + $0x7a] sm:$0xff]
    %v5153 = vld [vmem:[%s1722 + $0x82] sm:$0xff]
    %v5154 = vld [vmem:[%s1722 + $0x92] sm:$0xff]
    %v5155 = vld [vmem:[%s1722 + $0x9a] sm:$0xff]
    %v5156 = vld [vmem:[%s1722 + $0xaa] sm:$0xff]
    %v5157 = vld [vmem:[%s1722 + $0xb2] sm:$0xff]
    %v5158 = vld [vmem:[%s1722 + $0xc2] sm:$0xff]
    %v5159 = vld [vmem:[%s1722 + $0xca] sm:$0xff]
    %v5160 = vld [vmem:[%s1722 + $0xda] sm:$0xff]
    %v5161 = vld [vmem:[%s1722 + $0xe2] sm:$0xff]
    %v5162 = vld [vmem:[%s1722 + $0xf2] sm:$0xff]
    %v5163 = vld [vmem:[%s1722 + $0xfa] sm:$0xff]
    %v5164 = vld [vmem:[%s1722 + $0x10a] sm:$0xff]
    %v5165 = vld [vmem:[%s1722 + $0x112] sm:$0xff]
    %v5166 = vld [vmem:[%s1722 + $0x122] sm:$0xff]
    %v5167 = vld [vmem:[%s1722 + $0x12a] sm:$0xff]
    %v5168 = vld [vmem:[%s1722 + $0x13a] sm:$0xff]
    %v5169 = vld [vmem:[%s1722 + $0x142] sm:$0xff]
    %v5170 = vld [vmem:[%s1722 + $0x152] sm:$0xff]
    %v5171 = vld [vmem:[%s1722 + $0x15a] sm:$0xff]
    %v5172 = vld [vmem:[%s1722 + $0x16a] sm:$0xff]
    %v5173 = vld [vmem:[%s1722 + $0x172] sm:$0xff]
    %v5174 = vld [vmem:[%s1722 + $0x1b2] sm:$0xff]
    %v5175 = vld [vmem:[%s1722 + $0x1ba] sm:$0xff]
    %v5176 = vld [vmem:[%s1722 + $0x1ca] sm:$0xff]
    %v5177 = vld [vmem:[%s1722 + $0x1d2] sm:$0xff]
    %v5178 = vld [vmem:[%s1722 + $0x1e2] sm:$0xff]
    %v5179 = vld [vmem:[%s1722 + $0x1ea] sm:$0xff]
    %v5180 = vld [vmem:[%s1722 + $0x1fa] sm:$0xff]
    %v5181 = vld [vmem:[%s1722 + $0x202] sm:$0xff]
    %v5182 = vld [vmem:[%s1722 + $0x212] sm:$0xff]
    %v5183 = vld [vmem:[%s1722 + $0x21a] sm:$0xff]
    %v5184 = vld [vmem:[%s1722 + $0x22a] sm:$0xff]
    %v5185 = vld [vmem:[%s1722 + $0x232] sm:$0xff]
    %v5186 = vld [vmem:[%s1722 + $0x242] sm:$0xff]
    %v5187 = vld [vmem:[%s1722 + $0x24a] sm:$0xff]
    %v5188 = vld [vmem:[%s1722 + $0x25a] sm:$0xff]
    %v5189 = vld [vmem:[%s1722 + $0x262] sm:$0xff]
    %v5190 = vld [vmem:[%s1722 + $0x272] sm:$0xff]
    %v5191 = vld [vmem:[%s1722 + $0x27a] sm:$0xff]
    %v5192 = vld [vmem:[%s1722 + $0x28a] sm:$0xff]
    %v5193 = vld [vmem:[%s1722 + $0x292] sm:$0xff]
    %v5194 = vld [vmem:[%s1722 + $0x2a2] sm:$0xff]
    %v5195 = vld [vmem:[%s1722 + $0x2aa] sm:$0xff]
    %v5196 = vld [vmem:[%s1722 + $0x2ba] sm:$0xff]
    %v5197 = vld [vmem:[%s1722 + $0x2c2] sm:$0xff]
    %v5198 = vld [vmem:[%s1722 + $0x2d2] sm:$0xff]
    %v5199 = vld [vmem:[%s1722 + $0x2da] sm:$0xff]
    %v5200 = vld [vmem:[%s1722 + $0x2ea] sm:$0xff]
    %v5201 = vld [vmem:[%s1722 + $0x2f2] sm:$0xff]
    %v5202 = vld [vmem:[%s1722 + $0x302] sm:$0xff]
    %v5203 = vld [vmem:[%s1722 + $0x30a] sm:$0xff]
    %v5204 = vld [vmem:[%s1722 + $0x31a] sm:$0xff]
    %v5205 = vld [vmem:[%s1722 + $0x322] sm:$0xff]
    %v5206 = vpack.c.bf16 %v5143, %v5142
    %v5207 = vpack.c.bf16 %v5145, %v5144
    %v5208 = vpack.c.bf16 %v5147, %v5146
    %v5209 = vpack.c.bf16 %v5149, %v5148
    %v5210 = vpack.c.bf16 %v5151, %v5150
    %v5211 = vpack.c.bf16 %v5153, %v5152
    %v5212 = vpack.c.bf16 %v5155, %v5154
    %v5213 = vpack.c.bf16 %v5157, %v5156
    %v5214 = vpack.c.bf16 %v5159, %v5158
    %v5215 = vpack.c.bf16 %v5161, %v5160
    %v5216 = vpack.c.bf16 %v5163, %v5162
    %v5217 = vpack.c.bf16 %v5165, %v5164
    %v5218 = vpack.c.bf16 %v5167, %v5166
    %v5219 = vpack.c.bf16 %v5169, %v5168
    %v5220 = vpack.c.bf16 %v5171, %v5170
    %v5221 = vpack.c.bf16 %v5173, %v5172
    %v5222 = vpack.c.bf16 %v5175, %v5174
    %v5223 = vpack.c.bf16 %v5177, %v5176
    %v5224 = vpack.c.bf16 %v5179, %v5178
    %v5225 = vpack.c.bf16 %v5181, %v5180
    %v5226 = vpack.c.bf16 %v5183, %v5182
    %v5227 = vpack.c.bf16 %v5185, %v5184
    %v5228 = vpack.c.bf16 %v5187, %v5186
    %v5229 = vpack.c.bf16 %v5189, %v5188
    %v5230 = vpack.c.bf16 %v5191, %v5190
    %v5231 = vpack.c.bf16 %v5193, %v5192
    %v5232 = vpack.c.bf16 %v5195, %v5194
    %v5233 = vpack.c.bf16 %v5197, %v5196
    %v5234 = vpack.c.bf16 %v5199, %v5198
    %v5235 = vpack.c.bf16 %v5201, %v5200
    %v5236 = vpack.c.bf16 %v5203, %v5202
    %v5237 = vpack.c.bf16 %v5205, %v5204
    %5270 = vrot.lane.b32.xlu0 %v5206, 64
    %v5271 = vpop.permute.xlu0 %5270
    %5272 = vrot.lane.b32.xlu0 %v5207, 64
    %v5273 = vpop.permute.xlu0 %5272
    %5274 = vrot.lane.b32.xlu0 %v5208, 64
    %v5275 = vpop.permute.xlu0 %5274
    %5276 = vrot.lane.b32.xlu0 %v5209, 64
    %v5277 = vpop.permute.xlu0 %5276
    %5278 = vrot.lane.b32.xlu0 %v5210, 64
    %v5279 = vpop.permute.xlu0 %5278
    %5280 = vrot.lane.b32.xlu0 %v5211, 64
    %v5281 = vpop.permute.xlu0 %5280
    %5282 = vrot.lane.b32.xlu0 %v5212, 64
    %v5283 = vpop.permute.xlu0 %5282
    %5284 = vrot.lane.b32.xlu0 %v5213, 64
    %v5285 = vpop.permute.xlu0 %5284
    %5286 = vrot.lane.b32.xlu0 %v5214, 64
    %v5287 = vpop.permute.xlu0 %5286
    %5288 = vrot.lane.b32.xlu0 %v5215, 64
    %v5289 = vpop.permute.xlu0 %5288
    %5290 = vrot.lane.b32.xlu0 %v5216, 64
    %v5291 = vpop.permute.xlu0 %5290
    %5292 = vrot.lane.b32.xlu0 %v5217, 64
    %v5293 = vpop.permute.xlu0 %5292
    %5294 = vrot.lane.b32.xlu0 %v5218, 64
    %v5295 = vpop.permute.xlu0 %5294
    %5296 = vrot.lane.b32.xlu0 %v5219, 64
    %v5297 = vpop.permute.xlu0 %5296
    %5298 = vrot.lane.b32.xlu0 %v5220, 64
    %v5299 = vpop.permute.xlu0 %5298
    %5300 = vrot.lane.b32.xlu0 %v5221, 64
    %v5301 = vpop.permute.xlu0 %5300
    %5302 = vrot.lane.b32.xlu0 %v5222, 64
    %v5303 = vpop.permute.xlu0 %5302
    %5304 = vrot.lane.b32.xlu0 %v5223, 64
    %v5305 = vpop.permute.xlu0 %5304
    %5306 = vrot.lane.b32.xlu0 %v5224, 64
    %v5307 = vpop.permute.xlu0 %5306
    %5308 = vrot.lane.b32.xlu0 %v5225, 64
    %v5309 = vpop.permute.xlu0 %5308
    %5310 = vrot.lane.b32.xlu0 %v5226, 64
    %v5311 = vpop.permute.xlu0 %5310
    %5312 = vrot.lane.b32.xlu0 %v5227, 64
    %v5313 = vpop.permute.xlu0 %5312
    %5314 = vrot.lane.b32.xlu0 %v5228, 64
    %v5315 = vpop.permute.xlu0 %5314
    %5316 = vrot.lane.b32.xlu0 %v5229, 64
    %v5317 = vpop.permute.xlu0 %5316
    %5318 = vrot.lane.b32.xlu0 %v5230, 64
    %v5319 = vpop.permute.xlu0 %5318
    %5320 = vrot.lane.b32.xlu0 %v5231, 64
    %v5321 = vpop.permute.xlu0 %5320
    %5322 = vrot.lane.b32.xlu0 %v5232, 64
    %v5323 = vpop.permute.xlu0 %5322
    %5324 = vrot.lane.b32.xlu0 %v5233, 64
    %v5325 = vpop.permute.xlu0 %5324
    %5326 = vrot.lane.b32.xlu0 %v5234, 64
    %v5327 = vpop.permute.xlu0 %5326
    %5328 = vrot.lane.b32.xlu0 %v5235, 64
    %v5329 = vpop.permute.xlu0 %5328
    %5330 = vrot.lane.b32.xlu0 %v5236, 64
    %v5331 = vpop.permute.xlu0 %5330
    %5332 = vrot.lane.b32.xlu0 %v5237, 64
    %v5333 = vpop.permute.xlu0 %5332
    %5366 = vst.msk [vmem:[#allocation3] sm:$0xff] %vm2461, %v5271
    %5367 = vst.msk [vmem:[#allocation3 + $0x8] sm:$0xff] %vm2461, %v5273
    %5368 = vst.msk [vmem:[#allocation3 + $0x10] sm:$0xff] %vm2461, %v5275
    %5369 = vst.msk [vmem:[#allocation3 + $0x18] sm:$0xff] %vm2461, %v5277
    %5370 = vst.msk [vmem:[#allocation3 + $0x20] sm:$0xff] %vm2461, %v5279
    %5371 = vst.msk [vmem:[#allocation3 + $0x28] sm:$0xff] %vm2461, %v5281
    %5372 = vst.msk [vmem:[#allocation3 + $0x30] sm:$0xff] %vm2461, %v5283
    %5373 = vst.msk [vmem:[#allocation3 + $0x38] sm:$0xff] %vm2461, %v5285
    %5374 = vst.msk [vmem:[#allocation3 + $0x40] sm:$0xff] %vm2461, %v5287
    %5375 = vst.msk [vmem:[#allocation3 + $0x48] sm:$0xff] %vm2461, %v5289
    %5376 = vst.msk [vmem:[#allocation3 + $0x50] sm:$0xff] %vm2461, %v5291
    %5377 = vst.msk [vmem:[#allocation3 + $0x58] sm:$0xff] %vm2461, %v5293
    %5378 = vst.msk [vmem:[#allocation3 + $0x60] sm:$0xff] %vm2461, %v5295
    %5379 = vst.msk [vmem:[#allocation3 + $0x68] sm:$0xff] %vm2461, %v5297
    %5380 = vst.msk [vmem:[#allocation3 + $0x70] sm:$0xff] %vm2461, %v5299
    %5381 = vst.msk [vmem:[#allocation3 + $0x78] sm:$0xff] %vm2461, %v5301
    %5382 = vst.msk [vmem:[#allocation3 + $0x80] sm:$0xff] %vm2461, %v5303
    %5383 = vst.msk [vmem:[#allocation3 + $0x88] sm:$0xff] %vm2461, %v5305
    %5384 = vst.msk [vmem:[#allocation3 + $0x90] sm:$0xff] %vm2461, %v5307
    %5385 = vst.msk [vmem:[#allocation3 + $0x98] sm:$0xff] %vm2461, %v5309
    %5386 = vst.msk [vmem:[#allocation3 + $0xa0] sm:$0xff] %vm2461, %v5311
    %5387 = vst.msk [vmem:[#allocation3 + $0xa8] sm:$0xff] %vm2461, %v5313
    %5388 = vst.msk [vmem:[#allocation3 + $0xb0] sm:$0xff] %vm2461, %v5315
    %5389 = vst.msk [vmem:[#allocation3 + $0xb8] sm:$0xff] %vm2461, %v5317
    %5390 = vst.msk [vmem:[#allocation3 + $0xc0] sm:$0xff] %vm2461, %v5319
    %5391 = vst.msk [vmem:[#allocation3 + $0xc8] sm:$0xff] %vm2461, %v5321
    %5392 = vst.msk [vmem:[#allocation3 + $0xd0] sm:$0xff] %vm2461, %v5323
    %5393 = vst.msk [vmem:[#allocation3 + $0xd8] sm:$0xff] %vm2461, %v5325
    %5394 = vst.msk [vmem:[#allocation3 + $0xe0] sm:$0xff] %vm2461, %v5327
    %5395 = vst.msk [vmem:[#allocation3 + $0xe8] sm:$0xff] %vm2461, %v5329
    %5396 = vst.msk [vmem:[#allocation3 + $0xf0] sm:$0xff] %vm2461, %v5331
    %5397 = vst.msk [vmem:[#allocation3 + $0xf8] sm:$0xff] %vm2461, %v5333
    %v5398 = vld [vmem:[#allocation3] sm:$0xff]
    %v5399 = vld [vmem:[#allocation3 + $0x8] sm:$0xff]
    %v5400 = vld [vmem:[#allocation3 + $0x10] sm:$0xff]
    %v5401 = vld [vmem:[#allocation3 + $0x18] sm:$0xff]
    %v5402 = vld [vmem:[#allocation3 + $0x20] sm:$0xff]
    %v5403 = vld [vmem:[#allocation3 + $0x28] sm:$0xff]
    %v5404 = vld [vmem:[#allocation3 + $0x30] sm:$0xff]
    %v5405 = vld [vmem:[#allocation3 + $0x38] sm:$0xff]
    %v5406 = vld [vmem:[#allocation3 + $0x40] sm:$0xff]
    %v5407 = vld [vmem:[#allocation3 + $0x48] sm:$0xff]
    %v5408 = vld [vmem:[#allocation3 + $0x50] sm:$0xff]
    %v5409 = vld [vmem:[#allocation3 + $0x58] sm:$0xff]
    %v5410 = vld [vmem:[#allocation3 + $0x60] sm:$0xff]
    %v5411 = vld [vmem:[#allocation3 + $0x68] sm:$0xff]
    %v5412 = vld [vmem:[#allocation3 + $0x70] sm:$0xff]
    %v5413 = vld [vmem:[#allocation3 + $0x78] sm:$0xff]
    %v5414 = vld [vmem:[#allocation3 + $0x80] sm:$0xff]
    %v5415 = vld [vmem:[#allocation3 + $0x88] sm:$0xff]
    %v5416 = vld [vmem:[#allocation3 + $0x90] sm:$0xff]
    %v5417 = vld [vmem:[#allocation3 + $0x98] sm:$0xff]
    %v5418 = vld [vmem:[#allocation3 + $0xa0] sm:$0xff]
    %v5419 = vld [vmem:[#allocation3 + $0xa8] sm:$0xff]
    %v5420 = vld [vmem:[#allocation3 + $0xb0] sm:$0xff]
    %v5421 = vld [vmem:[#allocation3 + $0xb8] sm:$0xff]
    %v5422 = vld [vmem:[#allocation3 + $0xc0] sm:$0xff]
    %v5423 = vld [vmem:[#allocation3 + $0xc8] sm:$0xff]
    %v5424 = vld [vmem:[#allocation3 + $0xd0] sm:$0xff]
    %v5425 = vld [vmem:[#allocation3 + $0xd8] sm:$0xff]
    %v5426 = vld [vmem:[#allocation3 + $0xe0] sm:$0xff]
    %v5427 = vld [vmem:[#allocation3 + $0xe8] sm:$0xff]
    %v5428 = vld [vmem:[#allocation3 + $0xf0] sm:$0xff]
    %v5429 = vld [vmem:[#allocation3 + $0xf8] sm:$0xff]
    %v5430 = vld [vmem:[%s4] sm:$0xf]
    %v5432 = vsel %vm2562, %v5430, 0
    %v5435 = vsel %vm2562, %v5398, 0
    %v5438 = vsel %vm2562, %v5399, 0
    %v5441 = vsel %vm2562, %v5400, 0
    %v5444 = vsel %vm2562, %v5401, 0
    %v5447 = vsel %vm2562, %v5402, 0
    %v5450 = vsel %vm2562, %v5403, 0
    %v5453 = vsel %vm2562, %v5404, 0
    %v5456 = vsel %vm2562, %v5405, 0
    %v5459 = vsel %vm2562, %v5406, 0
    %v5462 = vsel %vm2562, %v5407, 0
    %v5465 = vsel %vm2562, %v5408, 0
    %v5468 = vsel %vm2562, %v5409, 0
    %v5471 = vsel %vm2562, %v5410, 0
    %v5474 = vsel %vm2562, %v5411, 0
    %v5477 = vsel %vm2562, %v5412, 0
    %v5480 = vsel %vm2562, %v5413, 0
    %v5483 = vsel %vm2562, %v5414, 0
    %v5486 = vsel %vm2562, %v5415, 0
    %v5489 = vsel %vm2562, %v5416, 0
    %v5492 = vsel %vm2562, %v5417, 0
    %v5495 = vsel %vm2562, %v5418, 0
    %v5498 = vsel %vm2562, %v5419, 0
    %v5501 = vsel %vm2562, %v5420, 0
    %v5504 = vsel %vm2562, %v5421, 0
    %v5507 = vsel %vm2562, %v5422, 0
    %v5510 = vsel %vm2562, %v5423, 0
    %v5513 = vsel %vm2562, %v5424, 0
    %v5516 = vsel %vm2562, %v5425, 0
    %v5519 = vsel %vm2562, %v5426, 0
    %v5522 = vsel %vm2562, %v5427, 0
    %v5525 = vsel %vm2562, %v5428, 0
    %v5528 = vsel %vm2562, %v5429, 0
    %5530 = vmatprep.subr.bf16.mxu0 0
    %5531 = vmatpush1.bf16.xpose.msra.mxu0 %v5435
    %5532 = vmatprep.subr.bf16.mxu0 0
    %5533 = vmatpush1.bf16.xpose.msra.mxu0 %v5438
    %5534 = vmatprep.subr.bf16.mxu0 0
    %5535 = vmatpush1.bf16.xpose.msra.mxu0 %v5441
    %5536 = vmatprep.subr.bf16.mxu0 0
    %5537 = vmatpush1.bf16.xpose.msra.mxu0 %v5444
    %5538 = vmatprep.subr.bf16.mxu0 0
    %5539 = vmatpush1.bf16.xpose.msra.mxu0 %v5447
    %5540 = vmatprep.subr.bf16.mxu0 0
    %5541 = vmatpush1.bf16.xpose.msra.mxu0 %v5450
    %5542 = vmatprep.subr.bf16.mxu0 0
    %5543 = vmatpush1.bf16.xpose.msra.mxu0 %v5453
    %5544 = vmatprep.subr.bf16.mxu0 0
    %5545 = vmatpush1.bf16.xpose.msra.mxu0 %v5456
    %5546 = vmatprep.subr.bf16.mxu0 0
    %5547 = vmatpush1.bf16.xpose.msra.mxu0 %v5459
    %5548 = vmatprep.subr.bf16.mxu0 0
    %5549 = vmatpush1.bf16.xpose.msra.mxu0 %v5462
    %5550 = vmatprep.subr.bf16.mxu0 0
    %5551 = vmatpush1.bf16.xpose.msra.mxu0 %v5465
    %5552 = vmatprep.subr.bf16.mxu0 0
    %5553 = vmatpush1.bf16.xpose.msra.mxu0 %v5468
    %5554 = vmatprep.subr.bf16.mxu0 0
    %5555 = vmatpush1.bf16.xpose.msra.mxu0 %v5471
    %5556 = vmatprep.subr.bf16.mxu0 0
    %5557 = vmatpush1.bf16.xpose.msra.mxu0 %v5474
    %5558 = vmatprep.subr.bf16.mxu0 0
    %5559 = vmatpush1.bf16.xpose.msra.mxu0 %v5477
    %5560 = vmatprep.subr.bf16.mxu0 0
    %5561 = vmatpush1.bf16.xpose.msra.mxu0 %v5480
    %5562 = vmatprep.mubr.bf16.mxu0 0
    %5563 = vmatmul.mubr.bf16.gmra.mrb[0].mxu0 %v5432
    %v5564 = vpop.f32.mrb[0].mxu0
    %v5565 = vadd.f32 0.0, %v5564
    %v5566 = vpop.f32.mrb[0].mxu0
    %v5567 = vadd.f32 0.0, %v5566
    %v5568 = vpop.f32.mrb[0].mxu0
    %v5569 = vpop.f32.mrb[0].mxu0
    %5570 = vdwg.mxu0
    %5571 = vmatprep.subr.bf16.mxu0 0
    %5572 = vmatpush1.bf16.xpose.msra.mxu0 %v5483
    %5573 = vmatprep.subr.bf16.mxu0 0
    %5574 = vmatpush1.bf16.xpose.msra.mxu0 %v5486
    %5575 = vmatprep.subr.bf16.mxu0 0
    %5576 = vmatpush1.bf16.xpose.msra.mxu0 %v5489
    %5577 = vmatprep.subr.bf16.mxu0 0
    %5578 = vmatpush1.bf16.xpose.msra.mxu0 %v5492
    %5579 = vmatprep.subr.bf16.mxu0 0
    %5580 = vmatpush1.bf16.xpose.msra.mxu0 %v5495
    %5581 = vmatprep.subr.bf16.mxu0 0
    %5582 = vmatpush1.bf16.xpose.msra.mxu0 %v5498
    %5583 = vmatprep.subr.bf16.mxu0 0
    %5584 = vmatpush1.bf16.xpose.msra.mxu0 %v5501
    %5585 = vmatprep.subr.bf16.mxu0 0
    %5586 = vmatpush1.bf16.xpose.msra.mxu0 %v5504
    %5587 = vmatprep.subr.bf16.mxu0 0
    %5588 = vmatpush1.bf16.xpose.msra.mxu0 %v5507
    %5589 = vmatprep.subr.bf16.mxu0 0
    %5590 = vmatpush1.bf16.xpose.msra.mxu0 %v5510
    %5591 = vmatprep.subr.bf16.mxu0 0
    %5592 = vmatpush1.bf16.xpose.msra.mxu0 %v5513
    %5593 = vmatprep.subr.bf16.mxu0 0
    %5594 = vmatpush1.bf16.xpose.msra.mxu0 %v5516
    %5595 = vmatprep.subr.bf16.mxu0 0
    %5596 = vmatpush1.bf16.xpose.msra.mxu0 %v5519
    %5597 = vmatprep.subr.bf16.mxu0 0
    %5598 = vmatpush1.bf16.xpose.msra.mxu0 %v5522
    %5599 = vmatprep.subr.bf16.mxu0 0
    %5600 = vmatpush1.bf16.xpose.msra.mxu0 %v5525
    %5601 = vmatprep.subr.bf16.mxu0 0
    %5602 = vmatpush1.bf16.xpose.msra.mxu0 %v5528
    %5603 = vmatprep.mubr.bf16.mxu0 0
    %5604 = vmatmul.mubr.bf16.gmra.mrb[0].mxu0 %v5432
    %v5605 = vpop.f32.mrb[0].mxu0
    %v5606 = vadd.f32 0.0, %v5605
    %v5607 = vpop.f32.mrb[0].mxu0
    %v5608 = vadd.f32 0.0, %v5607
    %v5609 = vpop.f32.mrb[0].mxu0
    %v5610 = vpop.f32.mrb[0].mxu0
    %5611 = vdwg.mxu0
    %v5612 = vld [vmem:[%s5] sm:$0xff]
    %5614 = vset.pattern.permute.xlu0 0
    %5615 = vperm.xlu0 %5614, %v5612
    %v5616 = vpop.permute.xlu0 %5615
    %v5618 = vmul.f32 %v5565, %v5616
    %v5619 = vmul.f32 %v5567, %v5616
    %v5620 = vmul.f32 %v5606, %v5616
    %v5621 = vmul.f32 %v5608, %v5616
    %v5622 = vld [vmem:[%s6] sm:$0xff]
    %5624 = vset.pattern.permute.xlu0 0
    %5625 = vperm.xlu0 %5624, %v5622
    %v5626 = vpop.permute.xlu0 %5625
    %v5628 = vadd.f32 %v5618, %v5626
    %v5629 = vadd.f32 %v5619, %v5626
    %v5630 = vadd.f32 %v5620, %v5626
    %v5631 = vadd.f32 %v5621, %v5626
    %v5632 = vld [vmem:[%s0] sm:$0xf]
    %v5633 = vld [vmem:[%s0 + $0x4] sm:$0xf]
    %v5634 = vld [vmem:[%s0 + $0x8] sm:$0xf]
    %v5635 = vld [vmem:[%s0 + $0xc] sm:$0xf]
    %v5636 = vld [vmem:[%s0 + $0x10] sm:$0xf]
    %v5637 = vld [vmem:[%s0 + $0x14] sm:$0xf]
    %v5638 = vld [vmem:[%s0 + $0x18] sm:$0xf]
    %v5639 = vld [vmem:[%s0 + $0x1c] sm:$0xf]
    %v5640 = vld [vmem:[%s0 + $0x20] sm:$0xf]
    %v5641 = vld [vmem:[%s0 + $0x24] sm:$0xf]
    %v5642 = vld [vmem:[%s0 + $0x28] sm:$0xf]
    %v5643 = vld [vmem:[%s0 + $0x2c] sm:$0xf]
    %v5644 = vld [vmem:[%s0 + $0x30] sm:$0xf]
    %v5645 = vld [vmem:[%s0 + $0x34] sm:$0xf]
    %v5646 = vld [vmem:[%s0 + $0x38] sm:$0xf]
    %v5647 = vld [vmem:[%s0 + $0x3c] sm:$0xf]
    %v5648 = vld [vmem:[%s0 + $0x40] sm:$0xf]
    %v5649 = vld [vmem:[%s0 + $0x44] sm:$0xf]
    %v5650 = vld [vmem:[%s0 + $0x48] sm:$0xf]
    %v5651 = vld [vmem:[%s0 + $0x4c] sm:$0xf]
    %v5652 = vld [vmem:[%s0 + $0x50] sm:$0xf]
    %v5653 = vld [vmem:[%s0 + $0x54] sm:$0xf]
    %v5654 = vld [vmem:[%s0 + $0x58] sm:$0xf]
    %v5655 = vld [vmem:[%s0 + $0x5c] sm:$0xf]
    %v5656 = vld [vmem:[%s0 + $0x60] sm:$0xf]
    %v5657 = vld [vmem:[%s0 + $0x64] sm:$0xf]
    %v5658 = vld [vmem:[%s0 + $0x68] sm:$0xf]
    %v5659 = vld [vmem:[%s0 + $0x6c] sm:$0xf]
    %v5660 = vld [vmem:[%s0 + $0x70] sm:$0xf]
    %v5661 = vld [vmem:[%s0 + $0x74] sm:$0xf]
    %v5662 = vld [vmem:[%s0 + $0x78] sm:$0xf]
    %v5663 = vld [vmem:[%s0 + $0x7c] sm:$0xf]
    %v5664 = vld [vmem:[%s0 + $0x80] sm:$0xf]
    %v5665 = vld [vmem:[%s0 + $0x84] sm:$0xf]
    %v5666 = vld [vmem:[%s0 + $0x88] sm:$0xf]
    %v5667 = vld [vmem:[%s0 + $0x8c] sm:$0xf]
    %v5668 = vld [vmem:[%s0 + $0x90] sm:$0xf]
    %v5669 = vld [vmem:[%s0 + $0x94] sm:$0xf]
    %v5670 = vld [vmem:[%s0 + $0x98] sm:$0xf]
    %v5671 = vld [vmem:[%s0 + $0x9c] sm:$0xf]
    %v5672 = vld [vmem:[%s0 + $0xa0] sm:$0xf]
    %v5673 = vld [vmem:[%s0 + $0xa4] sm:$0xf]
    %v5674 = vld [vmem:[%s0 + $0xa8] sm:$0xf]
    %v5675 = vld [vmem:[%s0 + $0xac] sm:$0xf]
    %v5676 = vld [vmem:[%s0 + $0xb0] sm:$0xf]
    %v5677 = vld [vmem:[%s0 + $0xb4] sm:$0xf]
    %v5678 = vld [vmem:[%s0 + $0xb8] sm:$0xf]
    %v5679 = vld [vmem:[%s0 + $0xbc] sm:$0xf]
    %v5680 = vld [vmem:[%s0 + $0xc0] sm:$0xf]
    %v5681 = vld [vmem:[%s0 + $0xc4] sm:$0xf]
    %v5682 = vld [vmem:[%s0 + $0xc8] sm:$0xf]
    %v5683 = vld [vmem:[%s0 + $0xcc] sm:$0xf]
    %v5684 = vld [vmem:[%s0 + $0xd0] sm:$0xf]
    %v5685 = vld [vmem:[%s0 + $0xd4] sm:$0xf]
    %v5686 = vld [vmem:[%s0 + $0xd8] sm:$0xf]
    %v5687 = vld [vmem:[%s0 + $0xdc] sm:$0xf]
    %v5688 = vld [vmem:[%s0 + $0xe0] sm:$0xf]
    %v5689 = vld [vmem:[%s0 + $0xe4] sm:$0xf]
    %v5690 = vld [vmem:[%s0 + $0xe8] sm:$0xf]
    %v5691 = vld [vmem:[%s0 + $0xec] sm:$0xf]
    %v5692 = vld [vmem:[%s0 + $0xf0] sm:$0xf]
    %v5693 = vld [vmem:[%s0 + $0xf4] sm:$0xf]
    %v5694 = vld [vmem:[%s0 + $0xf8] sm:$0xf]
    %v5695 = vld [vmem:[%s0 + $0xfc] sm:$0xf]
    %v5696 = vlaneseq
    %v5697 = vshrl.u32 %v5696, 7
    %v5698 = vlaneseq
    %v5699 = vand.u32 %v5698, 127
    %vm5700 = vcmp.eq.s32.totalorder %v5697, %v5699
    %v5701 = vsel %vm5700, 1, 0
    %v5702 = vcvt.s32.f32 %v5701
    %v5703 = vpack.c.bf16 %v5702, %v5702
    %v5768 = vunpack.c.l.b16 %v5632
    %v5769 = vunpack.c.l.b16 %v5633
    %v5770 = vunpack.c.l.b16 %v5634
    %v5771 = vunpack.c.l.b16 %v5635
    %v5772 = vunpack.c.l.b16 %v5636
    %v5773 = vunpack.c.l.b16 %v5637
    %v5774 = vunpack.c.l.b16 %v5638
    %v5775 = vunpack.c.l.b16 %v5639
    %v5776 = vunpack.c.l.b16 %v5640
    %v5777 = vunpack.c.l.b16 %v5641
    %v5778 = vunpack.c.l.b16 %v5642
    %v5779 = vunpack.c.l.b16 %v5643
    %v5780 = vunpack.c.l.b16 %v5644
    %v5781 = vunpack.c.l.b16 %v5645
    %v5782 = vunpack.c.l.b16 %v5646
    %v5783 = vunpack.c.l.b16 %v5647
    %v5784 = vunpack.c.l.b16 %v5648
    %v5785 = vunpack.c.l.b16 %v5649
    %v5786 = vunpack.c.l.b16 %v5650
    %v5787 = vunpack.c.l.b16 %v5651
    %v5788 = vunpack.c.l.b16 %v5652
    %v5789 = vunpack.c.l.b16 %v5653
    %v5790 = vunpack.c.l.b16 %v5654
    %v5791 = vunpack.c.l.b16 %v5655
    %v5792 = vunpack.c.l.b16 %v5656
    %v5793 = vunpack.c.l.b16 %v5657
    %v5794 = vunpack.c.l.b16 %v5658
    %v5795 = vunpack.c.l.b16 %v5659
    %v5796 = vunpack.c.l.b16 %v5660
    %v5797 = vunpack.c.l.b16 %v5661
    %v5798 = vunpack.c.l.b16 %v5662
    %v5799 = vunpack.c.l.b16 %v5663
    %v5800 = vunpack.c.l.b16 %v5664
    %v5801 = vunpack.c.l.b16 %v5665
    %v5802 = vunpack.c.l.b16 %v5666
    %v5803 = vunpack.c.l.b16 %v5667
    %v5804 = vunpack.c.l.b16 %v5668
    %v5805 = vunpack.c.l.b16 %v5669
    %v5806 = vunpack.c.l.b16 %v5670
    %v5807 = vunpack.c.l.b16 %v5671
    %v5808 = vunpack.c.l.b16 %v5672
    %v5809 = vunpack.c.l.b16 %v5673
    %v5810 = vunpack.c.l.b16 %v5674
    %v5811 = vunpack.c.l.b16 %v5675
    %v5812 = vunpack.c.l.b16 %v5676
    %v5813 = vunpack.c.l.b16 %v5677
    %v5814 = vunpack.c.l.b16 %v5678
    %v5815 = vunpack.c.l.b16 %v5679
    %v5816 = vunpack.c.l.b16 %v5680
    %v5817 = vunpack.c.l.b16 %v5681
    %v5818 = vunpack.c.l.b16 %v5682
    %v5819 = vunpack.c.l.b16 %v5683
    %v5820 = vunpack.c.l.b16 %v5684
    %v5821 = vunpack.c.l.b16 %v5685
    %v5822 = vunpack.c.l.b16 %v5686
    %v5823 = vunpack.c.l.b16 %v5687
    %v5824 = vunpack.c.l.b16 %v5688
    %v5825 = vunpack.c.l.b16 %v5689
    %v5826 = vunpack.c.l.b16 %v5690
    %v5827 = vunpack.c.l.b16 %v5691
    %v5828 = vunpack.c.l.b16 %v5692
    %v5829 = vunpack.c.l.b16 %v5693
    %v5830 = vunpack.c.l.b16 %v5694
    %v5831 = vunpack.c.l.b16 %v5695
    %v5832 = vpack.c.b16 %v5769, %v5768
    %v5833 = vpack.c.b16 %v5771, %v5770
    %v5834 = vpack.c.b16 %v5773, %v5772
    %v5835 = vpack.c.b16 %v5775, %v5774
    %v5836 = vpack.c.b16 %v5777, %v5776
    %v5837 = vpack.c.b16 %v5779, %v5778
    %v5838 = vpack.c.b16 %v5781, %v5780
    %v5839 = vpack.c.b16 %v5783, %v5782
    %v5840 = vpack.c.b16 %v5785, %v5784
    %v5841 = vpack.c.b16 %v5787, %v5786
    %v5842 = vpack.c.b16 %v5789, %v5788
    %v5843 = vpack.c.b16 %v5791, %v5790
    %v5844 = vpack.c.b16 %v5793, %v5792
    %v5845 = vpack.c.b16 %v5795, %v5794
    %v5846 = vpack.c.b16 %v5797, %v5796
    %v5847 = vpack.c.b16 %v5799, %v5798
    %v5848 = vpack.c.b16 %v5801, %v5800
    %v5849 = vpack.c.b16 %v5803, %v5802
    %v5850 = vpack.c.b16 %v5805, %v5804
    %v5851 = vpack.c.b16 %v5807, %v5806
    %v5852 = vpack.c.b16 %v5809, %v5808
    %v5853 = vpack.c.b16 %v5811, %v5810
    %v5854 = vpack.c.b16 %v5813, %v5812
    %v5855 = vpack.c.b16 %v5815, %v5814
    %v5856 = vpack.c.b16 %v5817, %v5816
    %v5857 = vpack.c.b16 %v5819, %v5818
    %v5858 = vpack.c.b16 %v5821, %v5820
    %v5859 = vpack.c.b16 %v5823, %v5822
    %v5860 = vpack.c.b16 %v5825, %v5824
    %v5861 = vpack.c.b16 %v5827, %v5826
    %v5862 = vpack.c.b16 %v5829, %v5828
    %v5863 = vpack.c.b16 %v5831, %v5830
    %v5865 = vsel %vm28, %v5703, 0
    %v5868 = vsel %vm28, %v5832, 0
    %v5871 = vsel %vm28, %v5833, 0
    %v5874 = vsel %vm28, %v5834, 0
    %v5877 = vsel %vm28, %v5835, 0
    %v5880 = vsel %vm28, %v5836, 0
    %v5883 = vsel %vm28, %v5837, 0
    %v5886 = vsel %vm28, %v5838, 0
    %v5889 = vsel %vm28, %v5839, 0
    %v5892 = vsel %vm28, %v5840, 0
    %v5895 = vsel %vm28, %v5841, 0
    %v5898 = vsel %vm28, %v5842, 0
    %v5901 = vsel %vm28, %v5843, 0
    %v5904 = vsel %vm28, %v5844, 0
    %v5907 = vsel %vm28, %v5845, 0
    %v5910 = vsel %vm28, %v5846, 0
    %v5913 = vsel %vm28, %v5847, 0
    %v5916 = vsel %vm28, %v5848, 0
    %v5919 = vsel %vm28, %v5849, 0
    %v5922 = vsel %vm28, %v5850, 0
    %v5925 = vsel %vm28, %v5851, 0
    %v5928 = vsel %vm28, %v5852, 0
    %v5931 = vsel %vm28, %v5853, 0
    %v5934 = vsel %vm28, %v5854, 0
    %v5937 = vsel %vm28, %v5855, 0
    %v5940 = vsel %vm28, %v5856, 0
    %v5943 = vsel %vm28, %v5857, 0
    %v5946 = vsel %vm28, %v5858, 0
    %v5949 = vsel %vm28, %v5859, 0
    %v5952 = vsel %vm28, %v5860, 0
    %v5955 = vsel %vm28, %v5861, 0
    %v5958 = vsel %vm28, %v5862, 0
    %v5961 = vsel %vm28, %v5863, 0
    %5963 = vmatprep.subr.bf16.mxu0 0
    %5964 = vmatpush1.bf16.xpose.msra.mxu0 %v5868
    %5965 = vmatprep.subr.bf16.mxu0 0
    %5966 = vmatpush1.bf16.xpose.msra.mxu0 %v5871
    %5967 = vmatprep.subr.bf16.mxu0 0
    %5968 = vmatpush1.bf16.xpose.msra.mxu0 %v5874
    %5969 = vmatprep.subr.bf16.mxu0 0
    %5970 = vmatpush1.bf16.xpose.msra.mxu0 %v5877
    %5971 = vmatprep.subr.bf16.mxu0 0
    %5972 = vmatpush1.bf16.xpose.msra.mxu0 %v5880
    %5973 = vmatprep.subr.bf16.mxu0 0
    %5974 = vmatpush1.bf16.xpose.msra.mxu0 %v5883
    %5975 = vmatprep.subr.bf16.mxu0 0
    %5976 = vmatpush1.bf16.xpose.msra.mxu0 %v5886
    %5977 = vmatprep.subr.bf16.mxu0 0
    %5978 = vmatpush1.bf16.xpose.msra.mxu0 %v5889
    %5979 = vmatprep.subr.bf16.mxu0 0
    %5980 = vmatpush1.bf16.xpose.msra.mxu0 %v5892
    %5981 = vmatprep.subr.bf16.mxu0 0
    %5982 = vmatpush1.bf16.xpose.msra.mxu0 %v5895
    %5983 = vmatprep.subr.bf16.mxu0 0
    %5984 = vmatpush1.bf16.xpose.msra.mxu0 %v5898
    %5985 = vmatprep.subr.bf16.mxu0 0
    %5986 = vmatpush1.bf16.xpose.msra.mxu0 %v5901
    %5987 = vmatprep.subr.bf16.mxu0 0
    %5988 = vmatpush1.bf16.xpose.msra.mxu0 %v5904
    %5989 = vmatprep.subr.bf16.mxu0 0
    %5990 = vmatpush1.bf16.xpose.msra.mxu0 %v5907
    %5991 = vmatprep.subr.bf16.mxu0 0
    %5992 = vmatpush1.bf16.xpose.msra.mxu0 %v5910
    %5993 = vmatprep.subr.bf16.mxu0 0
    %5994 = vmatpush1.bf16.xpose.msra.mxu0 %v5913
    %5995 = vmatprep.mubr.bf16.mxu0 0
    %5996 = vmatmul.mubr.bf16.gmra.mrb[0].mxu0 %v5865
    %v5997 = vpop.f32.mrb[0].mxu0
    %v5998 = vadd.f32 0.0, %v5997
    %v5999 = vpop.f32.mrb[0].mxu0
    %v6000 = vadd.f32 0.0, %v5999
    %v6001 = vpop.f32.mrb[0].mxu0
    %v6002 = vpop.f32.mrb[0].mxu0
    %6003 = vdwg.mxu0
    %6004 = vmatprep.subr.bf16.mxu0 0
    %6005 = vmatpush1.bf16.xpose.msra.mxu0 %v5916
    %6006 = vmatprep.subr.bf16.mxu0 0
    %6007 = vmatpush1.bf16.xpose.msra.mxu0 %v5919
    %6008 = vmatprep.subr.bf16.mxu0 0
    %6009 = vmatpush1.bf16.xpose.msra.mxu0 %v5922
    %6010 = vmatprep.subr.bf16.mxu0 0
    %6011 = vmatpush1.bf16.xpose.msra.mxu0 %v5925
    %6012 = vmatprep.subr.bf16.mxu0 0
    %6013 = vmatpush1.bf16.xpose.msra.mxu0 %v5928
    %6014 = vmatprep.subr.bf16.mxu0 0
    %6015 = vmatpush1.bf16.xpose.msra.mxu0 %v5931
    %6016 = vmatprep.subr.bf16.mxu0 0
    %6017 = vmatpush1.bf16.xpose.msra.mxu0 %v5934
    %6018 = vmatprep.subr.bf16.mxu0 0
    %6019 = vmatpush1.bf16.xpose.msra.mxu0 %v5937
    %6020 = vmatprep.subr.bf16.mxu0 0
    %6021 = vmatpush1.bf16.xpose.msra.mxu0 %v5940
    %6022 = vmatprep.subr.bf16.mxu0 0
    %6023 = vmatpush1.bf16.xpose.msra.mxu0 %v5943
    %6024 = vmatprep.subr.bf16.mxu0 0
    %6025 = vmatpush1.bf16.xpose.msra.mxu0 %v5946
    %6026 = vmatprep.subr.bf16.mxu0 0
    %6027 = vmatpush1.bf16.xpose.msra.mxu0 %v5949
    %6028 = vmatprep.subr.bf16.mxu0 0
    %6029 = vmatpush1.bf16.xpose.msra.mxu0 %v5952
    %6030 = vmatprep.subr.bf16.mxu0 0
    %6031 = vmatpush1.bf16.xpose.msra.mxu0 %v5955
    %6032 = vmatprep.subr.bf16.mxu0 0
    %6033 = vmatpush1.bf16.xpose.msra.mxu0 %v5958
    %6034 = vmatprep.subr.bf16.mxu0 0
    %6035 = vmatpush1.bf16.xpose.msra.mxu0 %v5961
    %6036 = vmatprep.mubr.bf16.mxu0 0
    %6037 = vmatmul.mubr.bf16.gmra.mrb[0].mxu0 %v5865
    %v6038 = vpop.f32.mrb[0].mxu0
    %v6039 = vadd.f32 0.0, %v6038
    %v6040 = vpop.f32.mrb[0].mxu0
    %v6041 = vadd.f32 0.0, %v6040
    %v6042 = vpop.f32.mrb[0].mxu0
    %v6043 = vpop.f32.mrb[0].mxu0
    %6044 = vdwg.mxu0
    %v6045 = vadd.f32 %v5628, %v5998
    %v6046 = vadd.f32 %v5629, %v6000
    %v6047 = vadd.f32 %v5630, %v6039
    %v6048 = vadd.f32 %v5631, %v6041
    %v6049 = vmax.f32 %v6045, 0.0
    %v6050 = vmax.f32 %v6046, 0.0
    %v6051 = vmax.f32 %v6047, 0.0
    %v6052 = vmax.f32 %v6048, 0.0
    %v6053 = vpack.c.bf16 %v6049, %v6049
    %v6054 = vpack.c.bf16 %v6050, %v6050
    %v6055 = vpack.c.bf16 %v6051, %v6051
    %v6056 = vpack.c.bf16 %v6052, %v6052
    %v6061 = vunpack.c.l.b16 %v6053
    %v6062 = vunpack.c.l.b16 %v6054
    %v6063 = vunpack.c.l.b16 %v6055
    %v6064 = vunpack.c.l.b16 %v6056
    %v6065 = vpack.c.b16 %v6062, %v6061
    %v6066 = vpack.c.b16 %v6064, %v6063
    %6069 = vst [vmem:[#allocation4] sm:$0xff] %v6065
    %6070 = vst [vmem:[#allocation4 + $0x8] sm:$0xff] %v6066
    // Predicated region
    $region30: #{tpu_custom_call.1} parent=1 // pred_check
      _
    $region31: #{tpu_custom_call.1} parent=1 // pred_check_branch
      %6072 = sbr.rel (0) target = $region33
    $region32: #{tpu_custom_call.1} parent=1 // pred_region
      %s6074 = ssub.s32 256, 256
      %6075 = vsyncadd [#allocation5], %s6074
      %s6077 = sshll.u32 [#allocation4], 4
      %s6078 = int_to_ptr.vmem [resolvable:$true] %s6077
      %6080 = dma.vmem_to_hbm [thread:$0]  %s6078, 256, %s7, [#allocation5]
    $region33: #{tpu_custom_call.1} parent=1 // pred_fallthru
      _
    // Predicated region
    $region34: #{tpu_custom_call.1} parent=1 // pred_check
      _
    $region35: #{tpu_custom_call.1} parent=1 // pred_check_branch
      %6082 = sbr.rel (0) target = $region37
    $region36: #{tpu_custom_call.1} parent=1 // pred_region
      %6083 = dma.done [#allocation5], 256
    $region37: #{tpu_custom_call.1} parent=1 // pred_fallthru
      _
    %6084 = vsyncpa [#allocation5], 1

</llo_original>
